<compile_context>
chip_gen: v7x
topology: tpu7x:2x2x1
jax: 0.10.0
libtpu: 0.0.40
codegen_flags: <defaults>
</compile_context>

<pallas_src>
import numpy as np
import jax
import jax.numpy as jnp
from jax import lax
from jax.experimental import pallas as pl
from jax.experimental.pallas import tpu as pltpu

_EPS = 1e-5
_MXU_DTYPE = jnp.float32       # keep f32 so the strict reference check passes
_ROLL_MODE = None              # "numpy" | "shift_left" | "concat"


# --------------------------- roll-convention probe ---------------------------

def _roll_probe_kernel(x_ref, o_ref):
    o_ref[...] = pltpu.roll(x_ref[...], 1, axis=1)


def _detect_roll_mode():
    """Detect pltpu.roll's rotation convention once (tiny probe kernel); fall
    back to slice+concat shifts if roll cannot be used."""
    global _ROLL_MODE
    if _ROLL_MODE is not None:
        return
    try:
        x = jnp.broadcast_to(
            lax.broadcasted_iota(jnp.float32, (1, 256), 1), (8, 256))
        r = pl.pallas_call(
            _roll_probe_kernel,
            out_shape=jax.ShapeDtypeStruct((8, 256), jnp.float32),
        )(x)
        v = float(jax.device_get(r)[0, 0])
        if v == 255.0:
            _ROLL_MODE = "numpy"        # roll(x, s)[l] == x[(l - s) % L]
        elif v == 1.0:
            _ROLL_MODE = "shift_left"   # roll(x, s)[l] == x[(l + s) % L]
        else:
            _ROLL_MODE = "concat"
    except Exception:
        _ROLL_MODE = "concat"


# ------------------------------ kernel helpers -------------------------------

def _silu(v):
    return v * jax.nn.sigmoid(v)          # sigmoid rides the EUP slot


def _dot(a, b):
    return jnp.dot(a.astype(_MXU_DTYPE), b.astype(_MXU_DTYPE),
                   preferred_element_type=jnp.float32)


def _bn(z, g, b):
    # Training-mode BatchNorm (per-channel batch stats, biased variance),
    # fused to one scale/shift.  z: (C, L); g, b: (C, 1).  Centered two-pass
    # stats in f32 (robust to activation magnitude).
    mean = jnp.mean(z, axis=1, keepdims=True)
    zc = z - mean
    var = jnp.mean(zc * zc, axis=1, keepdims=True)
    return zc * (g * lax.rsqrt(var + _EPS)) + b


def _lane_shift(u, d):
    # Returns T with T[:, l] = u[:, (l + d) % L]  (circular; callers mask the
    # wrap to zero).  Uses an XLU lane roll when available.
    L = u.shape[-1]
    d = d % L
    if d == 0:
        return u
    if _ROLL_MODE == "numpy":
        return pltpu.roll(u, (L - d) % L, axis=1)
    if _ROLL_MODE == "shift_left":
        return pltpu.roll(u, d, axis=1)
    return jnp.concatenate([u[:, d:], u[:, :d]], axis=1)


def _depthwise3x3(u, wdw, tapmask, W):
    # u: (C, L) with lanes ordered l = n*H*W + h*W + w;  wdw: (C, 9) taps in
    # (kh, kw) row-major order; tapmask: (9, L) zeroes out-of-image taps (this
    # also covers the circular wrap of the lane shifts).
    acc = u * wdw[:, 4:5]                                  # center tap
    k = 0
    for dh in (-1, 0, 1):
        for dw in (-1, 0, 1):
            if dh == 0 and dw == 0:
                k += 1
                continue
            t = _lane_shift(u, dh * W + dw)
            acc = acc + t * wdw[:, k:k + 1] * tapmask[k:k + 1, :]
            k += 1
    return acc


def _residual_bottleneck(x, w_in, w_dw, w_out, gb, tapmask, W):
    # x: (Ci, L) -> channel-shuffled output (Co, L).  The shuffle is pre-baked
    # into w_out's rows and the trailing BN params; conv biases are dropped
    # (exactly absorbed by the following training-mode BatchNorm).
    Ci = x.shape[0]
    Cch = Ci // 2
    x1, x2 = x[:Cch], x[Cch:]                              # sublane-tile views

    g_h2, b_h2 = gb[:Cch, 0:1], gb[:Cch, 1:2]
    g_dw, b_dw = gb[Cch:3 * Cch, 0:1], gb[Cch:3 * Cch, 1:2]
    g_o, b_o = gb[3 * Cch:, 0:1], gb[3 * Cch:, 1:2]

    # branch2 leading 1x1 ConvBnSiLu.
    h2 = _silu(_bn(_dot(w_in, x2), g_h2, b_h2))

    # both branches' 3x3 depthwise convs + BNs in one pass over [x1 ; h2].
    u = jnp.concatenate([x1, h2], axis=0)
    v = _bn(_depthwise3x3(u, w_dw, tapmask, W), g_dw, b_dw)

    # both branches' trailing 1x1 ConvBnSiLu + ChannelShuffle as ONE matmul.
    return _silu(_bn(_dot(w_out, v), g_o, b_o))


# --------------------------------- kernel ------------------------------------

def _make_decoder_kernel(N, H, W, nrb):
    HW = H * W

    def kernel(*refs):
        xup_ref, sc_ref, tT_ref, u_ref, s_ref, tm_ref = refs[:6]
        rbp = refs[6:6 + 4 * nrb]
        w1_ref, b1_ref, w2_ref, b2_ref = refs[6 + 4 * nrb:-1]
        out_ref = refs[-1]

        tapmask = tm_ref[...]
        upmat = u_ref[...]

        # 2x bilinear upsample (align_corners=False), fused: one small matmul
        # per batch element lands directly in the (C, L) working layout.
        up = jnp.concatenate([_dot(xup_ref[n], upmat) for n in range(N)],
                             axis=1)                               # (Cx, L)
        sc = jnp.concatenate([sc_ref[n] for n in range(N)], axis=1)  # (Csc, L)
        x = jnp.concatenate([up, sc], axis=0)                      # cat dim=1

        for i in range(nrb):
            if i == nrb - 1:
                # TimeMLP between conv0 and conv1: per-(n, c) bias + SiLU.
                hT = _silu(_dot(w1_ref[...], tT_ref[...]) + b1_ref[...])
                embT = _dot(w2_ref[...], hT) + b2_ref[...]         # (C, N)
                x = _silu(x + _dot(embT, s_ref[...]))              # (C, L)
            x = _residual_bottleneck(
                x, rbp[4 * i][...], rbp[4 * i + 1][...],
                rbp[4 * i + 2][...], rbp[4 * i + 3][...], tapmask, W)

        # lane-dense store: last dim H*W is a multiple of 128; the wrapper's
        # reshape back to NCHW is a free row-major reshape.
        for n in range(N):
            out_ref[n, :, :] = x[:, n * HW:(n + 1) * HW].astype(out_ref.dtype)

    return kernel


# --------------------------------- wrapper -----------------------------------

def _zero_map(nd):
    return lambda i, _nd=nd: (0,) * _nd


def _full_spec(a):
    return pl.BlockSpec(tuple(a.shape), _zero_map(a.ndim))


def decoder_block_pallas(x_nchw, sc_nchw, t, kparams):
    """DecoderBlock forward.  NCHW in / NCHW out; the wrapper only does free
    row-major reshapes (plus a tiny transpose of t)."""
    if _ROLL_MODE is None:
        _detect_roll_mode()

    N, Cx, h_in, w_in = x_nchw.shape
    _, Csc, H, W = sc_nchw.shape
    HW = H * W
    L = N * HW
    nrb = (len(kparams) - 7) // 4
    C_final = kparams[3 + 4 * (nrb - 1) + 2].shape[0]

    xup = x_nchw.reshape(N, Cx, h_in * w_in).astype(jnp.float32)
    sc = sc_nchw.reshape(N, Csc, HW).astype(jnp.float32)
    tT = jnp.transpose(t).astype(jnp.float32)                  # (E, N), tiny

    operands = [xup, sc, tT] + [p.astype(jnp.float32) for p in kparams]

    # advisory cost hint
    flops = 2 * N * Cx * (h_in * w_in) * HW
    trans = 0
    for i in range(nrb):
        cch = kparams[3 + 4 * i].shape[0]
        co = kparams[3 + 4 * i + 2].shape[0]
        flops += L * (2 * cch * cch + 4 * cch * co + 40 * cch + 36 * (3 * cch + co))
        trans += L * (cch + co)
    bytes_accessed = sum(int(np.prod(a.shape)) * 4 for a in operands)
    bytes_accessed += N * C_final * HW * 4

    y = pl.pallas_call(
        _make_decoder_kernel(N, H, W, nrb),
        out_shape=jax.ShapeDtypeStruct((N, C_final, HW), jnp.float32),
        grid=(1,),
        in_specs=[_full_spec(a) for a in operands],
        out_specs=pl.BlockSpec((N, C_final, HW), _zero_map(3)),
        compiler_params=pltpu.CompilerParams(
            dimension_semantics=("arbitrary",),
            vmem_limit_bytes=32 * 1024 * 1024),
        cost_estimate=pl.CostEstimate(
            flops=int(flops), transcendentals=int(trans),
            bytes_accessed=int(bytes_accessed)),
    )(*operands)
    # TODO(synk): at realistic H*W this all-resident design needs spatial
    # tiling (halos + two-pass BN stats) and a 2-TensorCore split for v7x.
    return y.reshape(N, C_final, H, W)


# ------------------------- constant-operand builders --------------------------

def _build_upsample_matrix(h, w):
    # Separable bilinear x2, align_corners=False (exact ATen rule).
    def axis_mat(n_in):
        n_out = 2 * n_in
        m = np.zeros((n_in, n_out), np.float32)
        for o in range(n_out):
            src = max(0.5 * (o + 0.5) - 0.5, 0.0)
            i0 = min(int(np.floor(src)), n_in - 1)
            frac = src - i0
            i1 = min(i0 + 1, n_in - 1)
            m[i0, o] += 1.0 - frac
            m[i1, o] += frac
        return m
    return jnp.asarray(np.kron(axis_mat(h), axis_mat(w)))      # (h*w, 4*h*w)


def _build_batch_selector(N, H, W):
    HW = H * W
    s = np.zeros((N, N * HW), np.float32)
    for n in range(N):
        s[n, n * HW:(n + 1) * HW] = 1.0
    return jnp.asarray(s)


def _build_tap_masks(N, H, W):
    L = N * H * W
    l = np.arange(L)
    hh = (l % (H * W)) // W
    ww = l % W
    masks = np.ones((9, L), np.float32)
    k = 0
    for dh in (-1, 0, 1):
        for dw in (-1, 0, 1):
            ok = ((hh + dh >= 0) & (hh + dh < H) &
                  (ww + dw >= 0) & (ww + dw < W))
            masks[k] = ok.astype(np.float32)
            k += 1
    return jnp.asarray(masks)


# ------------------------ deterministic raw parameters ------------------------

def _init_rb_raw(key, in_channels, out_channels):
    Cch, Och = in_channels // 2, out_channels // 2
    ks = iter(jax.random.split(key, 24))

    def conv(shape, fan_in):
        bound = 1.0 / float(fan_in) ** 0.5
        wgt = jax.random.uniform(next(ks), shape, jnp.float32, -bound, bound)
        bia = jax.random.uniform(next(ks), (shape[0],), jnp.float32, -bound, bound)
        return wgt, bia

    def bn(c):
        g = jax.random.uniform(next(ks), (c,), jnp.float32, 0.5, 1.5)
        b = jax.random.uniform(next(ks), (c,), jnp.float32, -0.5, 0.5)
        return g, b

    raw = {}
    raw["b1_dw_w"], raw["b1_dw_b"] = conv((Cch, 1, 3, 3), 9)       # groups=Cch
    raw["b1_bn1"] = bn(Cch)
    raw["b1_pw_w"], raw["b1_pw_b"] = conv((Och, Cch, 1, 1), Cch)
    raw["b1_bn2"] = bn(Och)
    raw["b2_pwa_w"], raw["b2_pwa_b"] = conv((Cch, Cch, 1, 1), Cch)
    raw["b2_bn1"] = bn(Cch)
    raw["b2_dw_w"], raw["b2_dw_b"] = conv((Cch, 1, 3, 3), 9)       # groups=Cch
    raw["b2_bn2"] = bn(Cch)
    raw["b2_pwb_w"], raw["b2_pwb_b"] = conv((Och, Cch, 1, 1), Cch)
    raw["b2_bn3"] = bn(Och)
    return raw


def _init_tm_raw(key, emb, hidden, out):
    ks = iter(jax.random.split(key, 4))

    def lin(i, o):
        bound = 1.0 / float(i) ** 0.5
        wgt = jax.random.uniform(next(ks), (o, i), jnp.float32, -bound, bound)
        bia = jax.random.uniform(next(ks), (o,), jnp.float32, -bound, bound)
        return wgt, bia

    w1, b1 = lin(emb, hidden)
    w2, b2 = lin(hidden, out)
    return {"w1": w1, "b1": b1, "w2": w2, "b2": b2}


def init_decoder_raw(key, in_channels, out_channels, t_dim):
    ks = jax.random.split(key, 6)
    specs = [(in_channels, in_channels)] * 3 + \
            [(in_channels, in_channels // 2),
             (in_channels // 2, out_channels // 2)]
    rb = [_init_rb_raw(ks[i], ci, co) for i, (ci, co) in enumerate(specs)]
    tm = _init_tm_raw(ks[5], t_dim, in_channels, in_channels // 2)
    return {"rb": rb, "rb_specs": specs, "tm": tm}


# ------------------------------ parameter packing -----------------------------

def _rb_pack(r, in_channels, out_channels):
    """Pack one ResidualBottleneck into 4 kernel arrays; conv biases are folded
    into the (training-mode) BN, and the ChannelShuffle is baked into the
    merged output weight rows and the trailing BN params."""
    Cch = in_channels // 2
    Co = out_channels
    w_in = r["b2_pwa_w"][:, :, 0, 0]                               # (Cch, Cch)
    w_dw = jnp.concatenate([r["b1_dw_w"].reshape(Cch, 9),
                            r["b2_dw_w"].reshape(Cch, 9)], axis=0)  # (2Cch, 9)
    pw1 = r["b1_pw_w"][:, :, 0, 0]                                 # (Och, Cch)
    pw2 = r["b2_pwb_w"][:, :, 0, 0]
    w_out = jnp.zeros((Co, 2 * Cch), jnp.float32)
    w_out = w_out.at[0::2, :Cch].set(pw1).at[1::2, Cch:].set(pw2)
    g_o = jnp.zeros((Co,), jnp.float32)
    b_o = jnp.zeros((Co,), jnp.float32)
    g_o = g_o.at[0::2].set(r["b1_bn2"][0]).at[1::2].set(r["b2_bn3"][0])
    b_o = b_o.at[0::2].set(r["b1_bn2"][1]).at[1::2].set(r["b2_bn3"][1])
    g = jnp.concatenate([r["b2_bn1"][0], r["b1_bn1"][0], r["b2_bn2"][0], g_o])
    b = jnp.concatenate([r["b2_bn1"][1], r["b1_bn1"][1], r["b2_bn2"][1], b_o])
    gb = jnp.stack([g, b], axis=1)                                 # (3Cch+Co, 2)
    return [w_in, w_dw, w_out, gb]


def pack_kernel_params(raw, N, h, w):
    H, W = 2 * h, 2 * w
    flat = [_build_upsample_matrix(h, w),
            _build_batch_selector(N, H, W),
            _build_tap_masks(N, H, W)]
    for r, (ci, co) in zip(raw["rb"], raw["rb_specs"]):
        flat += _rb_pack(r, ci, co)
    tm = raw["tm"]
    flat += [tm["w1"], tm["b1"].reshape(-1, 1),
             tm["w2"], tm["b2"].reshape(-1, 1)]
    return flat


# --------------------- pure-JAX reference (NCHW, op-for-op) -------------------

def _bn_ref(z, gb):
    gm, bt = gb
    mean = jnp.mean(z, axis=(0, 2, 3), keepdims=True)
    var = jnp.mean((z - mean) ** 2, axis=(0, 2, 3), keepdims=True)
    return ((z - mean) / jnp.sqrt(var + _EPS) * gm[None, :, None, None]
            + bt[None, :, None, None])


def _conv_ref(x, w, b, groups=1, padding=0):
    y = lax.conv_general_dilated(
        x, w, window_strides=(1, 1),
        padding=((padding, padding), (padding, padding)),
        feature_group_count=groups,
        dimension_numbers=("NCHW", "OIHW", "NCHW"),
        precision=lax.Precision.HIGHEST)
    return y + b[None, :, None, None]


def _rb_ref(x, r):
    Cch = x.shape[1] // 2
    x1, x2 = x[:, :Cch], x[:, Cch:]
    y1 = _bn_ref(_conv_ref(x1, r["b1_dw_w"], r["b1_dw_b"], groups=Cch, padding=1),
                 r["b1_bn1"])
    y1 = jax.nn.silu(_bn_ref(_conv_ref(y1, r["b1_pw_w"], r["b1_pw_b"]), r["b1_bn2"]))
    y2 = jax.nn.silu(_bn_ref(_conv_ref(x2, r["b2_pwa_w"], r["b2_pwa_b"]), r["b2_bn1"]))
    y2 = _bn_ref(_conv_ref(y2, r["b2_dw_w"], r["b2_dw_b"], groups=Cch, padding=1),
                 r["b2_bn2"])
    y2 = jax.nn.silu(_bn_ref(_conv_ref(y2, r["b2_pwb_w"], r["b2_pwb_b"]), r["b2_bn3"]))
    cat = jnp.concatenate([y1, y2], axis=1)
    N, Ct, H, W = cat.shape
    return cat.reshape(N, 2, Ct // 2, H, W).transpose(0, 2, 1, 3, 4).reshape(N, Ct, H, W)


def _upsample_ref(x):
    up = jnp.concatenate([x[:, :, :1], x[:, :, :-1]], axis=2)
    dn = jnp.concatenate([x[:, :, 1:], x[:, :, -1:]], axis=2)
    even = 0.25 * up + 0.75 * x
    odd = 0.75 * x + 0.25 * dn
    x = jnp.stack([even, odd], axis=3).reshape(x.shape[0], x.shape[1], -1, x.shape[3])
    lf = jnp.concatenate([x[:, :, :, :1], x[:, :, :, :-1]], axis=3)
    rt = jnp.concatenate([x[:, :, :, 1:], x[:, :, :, -1:]], axis=3)
    even = 0.25 * lf + 0.75 * x
    odd = 0.75 * x + 0.25 * rt
    return jnp.stack([even, odd], axis=4).reshape(x.shape[0], x.shape[1], x.shape[2], -1)


def _tm_ref(x, t, tm):
    h = jax.nn.silu(t @ tm["w1"].T + tm["b1"])
    e = h @ tm["w2"].T + tm["b2"]
    return jax.nn.silu(x + e[:, :, None, None])


def decoder_ref(x, sc, t, raw):
    x = _upsample_ref(x)
    x = jnp.concatenate([x, sc], axis=1)
    for i in range(4):                       # conv0
        x = _rb_ref(x, raw["rb"][i])
    x = _tm_ref(x, t, raw["tm"])             # time_mlp
    return _rb_ref(x, raw["rb"][4])          # conv1


# ------------------------------------ main ------------------------------------

if __name__ == "__main__":
    key = jax.random.PRNGKey(0)
    kx, ks, kt, kp = jax.random.split(key, 4)

    N = 2
    in_channels, out_channels, t_dim = 32, 32, 32
    h = w = 8                                 # pre-upsample spatial size
    Cx = in_channels // 2                     # upsampled-path channels
    Csc = in_channels - Cx                    # skip-connection channels

    x = jax.random.normal(kx, (N, Cx, h, w), jnp.float32)
    x_shortcut = jax.random.normal(ks, (N, Csc, 2 * h, 2 * w), jnp.float32)
    t = jax.random.normal(kt, (N, t_dim), jnp.float32)

    raw = init_decoder_raw(kp, in_channels, out_channels, t_dim)
    kparams = pack_kernel_params(raw, N, h, w)

    _detect_roll_mode()
    run = jax.jit(decoder_block_pallas)
    y = jax.block_until_ready(run(x, x_shortcut, t, kparams))
    assert y.shape == (N, out_channels // 2, 2 * h, 2 * w)
    assert y.dtype == jnp.float32

    y_ref = jax.block_until_ready(decoder_ref(x, x_shortcut, t, raw))
    if not bool(jnp.allclose(y, y_ref, atol=5e-3, rtol=5e-3)):
        err = float(jnp.max(jnp.abs(y - y_ref)))
        raise AssertionError(
            f"Pallas DecoderBlock does not match JAX reference (max|err|={err})")

    print("KERNEL_OK")
</pallas_src>

<mosaic_0001>
module attributes {stable_mosaic.version = 11 : i64} {
  func.func @_roll_probe_kernel(%arg0: memref<8x256xf32, #tpu.memory_space<vmem>>, %arg1: memref<8x256xf32, #tpu.memory_space<vmem>>) attributes {dimension_semantics = [], scalar_prefetch = 0 : i64, scratch_operands = 0 : i64, tpu.core_type = #tpu.core_type<tc>} {
    %c0 = arith.constant 0 : index
    %c0_0 = arith.constant 0 : index
    %0 = vector.load %arg0[%c0, %c0_0] : memref<8x256xf32, #tpu.memory_space<vmem>>, vector<8x256xf32>
    %c1_i32 = arith.constant 1 : i32
    %1 = tpu.dynamic_rotate %0 by %c1_i32 dim 1 : vector<8x256xf32>, i32 -> vector<8x256xf32>
    %c0_1 = arith.constant 0 : index
    %c0_2 = arith.constant 0 : index
    %2 = vector.load %arg1[%c0_1, %c0_2] : memref<8x256xf32, #tpu.memory_space<vmem>>, vector<8x256xf32>
    tpu.vector_store %arg1[%c0_1, %c0_2], %1 {strides = array<i32>} : memref<8x256xf32, #tpu.memory_space<vmem>>, vector<8x256xf32>,
    return
  }
}

module attributes {stable_mosaic.version = 11 : i64} {
  func.func @kernel(%arg0: i32, %arg1: memref<2x16x64xf32, #tpu.memory_space<vmem>>, %arg2: memref<2x16x256xf32, #tpu.memory_space<vmem>>, %arg3: memref<32x2xf32, #tpu.memory_space<vmem>>, %arg4: memref<64x256xf32, #tpu.memory_space<vmem>>, %arg5: memref<2x512xf32, #tpu.memory_space<vmem>>, %arg6: memref<9x512xf32, #tpu.memory_space<vmem>>, %arg7: memref<16x16xf32, #tpu.memory_space<vmem>>, %arg8: memref<32x9xf32, #tpu.memory_space<vmem>>, %arg9: memref<32x32xf32, #tpu.memory_space<vmem>>, %arg10: memref<80x2xf32, #tpu.memory_space<vmem>>, %arg11: memref<16x16xf32, #tpu.memory_space<vmem>>, %arg12: memref<32x9xf32, #tpu.memory_space<vmem>>, %arg13: memref<32x32xf32, #tpu.memory_space<vmem>>, %arg14: memref<80x2xf32, #tpu.memory_space<vmem>>, %arg15: memref<16x16xf32, #tpu.memory_space<vmem>>, %arg16: memref<32x9xf32, #tpu.memory_space<vmem>>, %arg17: memref<32x32xf32, #tpu.memory_space<vmem>>, %arg18: memref<80x2xf32, #tpu.memory_space<vmem>>, %arg19: memref<16x16xf32, #tpu.memory_space<vmem>>, %arg20: memref<32x9xf32, #tpu.memory_space<vmem>>, %arg21: memref<16x32xf32, #tpu.memory_space<vmem>>, %arg22: memref<64x2xf32, #tpu.memory_space<vmem>>, %arg23: memref<8x8xf32, #tpu.memory_space<vmem>>, %arg24: memref<16x9xf32, #tpu.memory_space<vmem>>, %arg25: memref<16x16xf32, #tpu.memory_space<vmem>>, %arg26: memref<40x2xf32, #tpu.memory_space<vmem>>, %arg27: memref<32x32xf32, #tpu.memory_space<vmem>>, %arg28: memref<32x1xf32, #tpu.memory_space<vmem>>, %arg29: memref<16x32xf32, #tpu.memory_space<vmem>>, %arg30: memref<16x1xf32, #tpu.memory_space<vmem>>, %arg31: memref<2x16x256xf32, #tpu.memory_space<vmem>>) attributes {dimension_semantics = [#tpu.dimension_semantics<arbitrary>], iteration_bounds = array<i64: 1>, scalar_prefetch = 0 : i64, scratch_operands = 0 : i64, tpu.core_type = #tpu.core_type<tc>, window_params = [{pipeline_mode = #tpu.pipeline_mode<synchronous>, transform_indices = @transform_0, window_bounds = array<i64: 2, 16, 64>}, {pipeline_mode = #tpu.pipeline_mode<synchronous>, transform_indices = @transform_1, window_bounds = array<i64: 2, 16, 256>}, {pipeline_mode = #tpu.pipeline_mode<synchronous>, transform_indices = @transform_2, window_bounds = array<i64: 32, 2>}, {pipeline_mode = #tpu.pipeline_mode<synchronous>, transform_indices = @transform_3, window_bounds = array<i64: 64, 256>}, {pipeline_mode = #tpu.pipeline_mode<synchronous>, transform_indices = @transform_4, window_bounds = array<i64: 2, 512>}, {pipeline_mode = #tpu.pipeline_mode<synchronous>, transform_indices = @transform_5, window_bounds = array<i64: 9, 512>}, {pipeline_mode = #tpu.pipeline_mode<synchronous>, transform_indices = @transform_6, window_bounds = array<i64: 16, 16>}, {pipeline_mode = #tpu.pipeline_mode<synchronous>, transform_indices = @transform_7, window_bounds = array<i64: 32, 9>}, {pipeline_mode = #tpu.pipeline_mode<synchronous>, transform_indices = @transform_8, window_bounds = array<i64: 32, 32>}, {pipeline_mode = #tpu.pipeline_mode<synchronous>, transform_indices = @transform_9, window_bounds = array<i64: 80, 2>}, {pipeline_mode = #tpu.pipeline_mode<synchronous>, transform_indices = @transform_10, window_bounds = array<i64: 16, 16>}, {pipeline_mode = #tpu.pipeline_mode<synchronous>, transform_indices = @transform_11, window_bounds = array<i64: 32, 9>}, {pipeline_mode = #tpu.pipeline_mode<synchronous>, transform_indices = @transform_12, window_bounds = array<i64: 32, 32>}, {pipeline_mode = #tpu.pipeline_mode<synchronous>, transform_indices = @transform_13, window_bounds = array<i64: 80, 2>}, {pipeline_mode = #tpu.pipeline_mode<synchronous>, transform_indices = @transform_14, window_bounds = array<i64: 16, 16>}, {pipeline_mode = #tpu.pipeline_mode<synchronous>, transform_indices = @transform_15, window_bounds = array<i64: 32, 9>}, {pipeline_mode = #tpu.pipeline_mode<synchronous>, transform_indices = @transform_16, window_bounds = array<i64: 32, 32>}, {pipeline_mode = #tpu.pipeline_mode<synchronous>, transform_indices = @transform_17, window_bounds = array<i64: 80, 2>}, {pipeline_mode = #tpu.pipeline_mode<synchronous>, transform_indices = @transform_18, window_bounds = array<i64: 16, 16>}, {pipeline_mode = #tpu.pipeline_mode<synchronous>, transform_indices = @transform_19, window_bounds = array<i64: 32, 9>}, {pipeline_mode = #tpu.pipeline_mode<synchronous>, transform_indices = @transform_20, window_bounds = array<i64: 16, 32>}, {pipeline_mode = #tpu.pipeline_mode<synchronous>, transform_indices = @transform_21, window_bounds = array<i64: 64, 2>}, {pipeline_mode = #tpu.pipeline_mode<synchronous>, transform_indices = @transform_22, window_bounds = array<i64: 8, 8>}, {pipeline_mode = #tpu.pipeline_mode<synchronous>, transform_indices = @transform_23, window_bounds = array<i64: 16, 9>}, {pipeline_mode = #tpu.pipeline_mode<synchronous>, transform_indices = @transform_24, window_bounds = array<i64: 16, 16>}, {pipeline_mode = #tpu.pipeline_mode<synchronous>, transform_indices = @transform_25, window_bounds = array<i64: 40, 2>}, {pipeline_mode = #tpu.pipeline_mode<synchronous>, transform_indices = @transform_26, window_bounds = array<i64: 32, 32>}, {pipeline_mode = #tpu.pipeline_mode<synchronous>, transform_indices = @transform_27, window_bounds = array<i64: 32, 1>}, {pipeline_mode = #tpu.pipeline_mode<synchronous>, transform_indices = @transform_28, window_bounds = array<i64: 16, 32>}, {pipeline_mode = #tpu.pipeline_mode<synchronous>, transform_indices = @transform_29, window_bounds = array<i64: 16, 1>}, {pipeline_mode = #tpu.pipeline_mode<synchronous>, transform_indices = @transform_30, window_bounds = array<i64: 2, 16, 256>}]} {
    %c0 = arith.constant 0 : index
    %c0_0 = arith.constant 0 : index
    %0 = vector.load %arg6[%c0, %c0_0] : memref<9x512xf32, #tpu.memory_space<vmem>>, vector<9x512xf32>
    %c0_1 = arith.constant 0 : index
    %c0_2 = arith.constant 0 : index
    %1 = vector.load %arg4[%c0_1, %c0_2] : memref<64x256xf32, #tpu.memory_space<vmem>>, vector<64x256xf32>
    %c0_3 = arith.constant 0 : index
    %c0_4 = arith.constant 0 : index
    %c0_5 = arith.constant 0 : index
    %2 = vector.load %arg1[%c0_3, %c0_4, %c0_5] : memref<2x16x64xf32, #tpu.memory_space<vmem>>, vector<1x16x64xf32>
    %3 = vector.shape_cast %2 : vector<1x16x64xf32> to vector<16x64xf32>
    %cst = arith.constant dense<0.000000e+00> : vector<16x256xf32>
    %4 = tpu.matmul %3, %1, %cst {dimension_numbers = #tpu.dot_dimension_numbers<[1], [0], [0], [1], [0, 0, 1, 1], [], []>} : vector<16x64xf32>, vector<64x256xf32>, vector<16x256xf32> -> vector<16x256xf32>
    %c1 = arith.constant 1 : index
    %c0_6 = arith.constant 0 : index
    %c0_7 = arith.constant 0 : index
    %5 = vector.load %arg1[%c1, %c0_6, %c0_7] : memref<2x16x64xf32, #tpu.memory_space<vmem>>, vector<1x16x64xf32>
    %6 = vector.shape_cast %5 : vector<1x16x64xf32> to vector<16x64xf32>
    %cst_8 = arith.constant dense<0.000000e+00> : vector<16x256xf32>
    %7 = tpu.matmul %6, %1, %cst_8 {dimension_numbers = #tpu.dot_dimension_numbers<[1], [0], [0], [1], [0, 0, 1, 1], [], []>} : vector<16x64xf32>, vector<64x256xf32>, vector<16x256xf32> -> vector<16x256xf32>
    %8 = tpu.concatenate %4, %7 in 1 : vector<16x256xf32>, vector<16x256xf32> -> vector<16x512xf32>
    %c0_9 = arith.constant 0 : index
    %c0_10 = arith.constant 0 : index
    %c0_11 = arith.constant 0 : index
    %9 = vector.load %arg2[%c0_9, %c0_10, %c0_11] : memref<2x16x256xf32, #tpu.memory_space<vmem>>, vector<1x16x256xf32>
    %10 = vector.shape_cast %9 : vector<1x16x256xf32> to vector<16x256xf32>
    %c1_12 = arith.constant 1 : index
    %c0_13 = arith.constant 0 : index
    %c0_14 = arith.constant 0 : index
    %11 = vector.load %arg2[%c1_12, %c0_13, %c0_14] : memref<2x16x256xf32, #tpu.memory_space<vmem>>, vector<1x16x256xf32>
    %12 = vector.shape_cast %11 : vector<1x16x256xf32> to vector<16x256xf32>
    %13 = tpu.concatenate %10, %12 in 1 : vector<16x256xf32>, vector<16x256xf32> -> vector<16x512xf32>
    %14 = tpu.concatenate %8, %13 in 0 : vector<16x512xf32>, vector<16x512xf32> -> vector<32x512xf32>
    %c0_15 = arith.constant 0 : index
    %c0_16 = arith.constant 0 : index
    %15 = vector.load %arg7[%c0_15, %c0_16] : memref<16x16xf32, #tpu.memory_space<vmem>>, vector<16x16xf32>
    %c0_17 = arith.constant 0 : index
    %c0_18 = arith.constant 0 : index
    %16 = vector.load %arg8[%c0_17, %c0_18] : memref<32x9xf32, #tpu.memory_space<vmem>>, vector<32x9xf32>
    %c0_19 = arith.constant 0 : index
    %c0_20 = arith.constant 0 : index
    %17 = vector.load %arg9[%c0_19, %c0_20] : memref<32x32xf32, #tpu.memory_space<vmem>>, vector<32x32xf32>
    %c0_21 = arith.constant 0 : index
    %c0_22 = arith.constant 0 : index
    %18 = vector.load %arg10[%c0_21, %c0_22] : memref<80x2xf32, #tpu.memory_space<vmem>>, vector<80x2xf32>
    %19 = vector.extract_strided_slice %14 {offsets = [0, 0], sizes = [16, 512], strides = [1, 1]} : vector<32x512xf32> to vector<16x512xf32>
    %20 = vector.extract_strided_slice %14 {offsets = [16, 0], sizes = [16, 512], strides = [1, 1]} : vector<32x512xf32> to vector<16x512xf32>
    %21 = vector.extract_strided_slice %18 {offsets = [0, 0], sizes = [16, 1], strides = [1, 1]} : vector<80x2xf32> to vector<16x1xf32>
    %22 = vector.extract_strided_slice %18 {offsets = [0, 1], sizes = [16, 1], strides = [1, 1]} : vector<80x2xf32> to vector<16x1xf32>
    %23 = vector.extract_strided_slice %18 {offsets = [16, 0], sizes = [32, 1], strides = [1, 1]} : vector<80x2xf32> to vector<32x1xf32>
    %24 = vector.extract_strided_slice %18 {offsets = [16, 1], sizes = [32, 1], strides = [1, 1]} : vector<80x2xf32> to vector<32x1xf32>
    %25 = vector.extract_strided_slice %18 {offsets = [48, 0], sizes = [32, 1], strides = [1, 1]} : vector<80x2xf32> to vector<32x1xf32>
    %26 = vector.extract_strided_slice %18 {offsets = [48, 1], sizes = [32, 1], strides = [1, 1]} : vector<80x2xf32> to vector<32x1xf32>
    %cst_23 = arith.constant dense<0.000000e+00> : vector<16x512xf32>
    %27 = tpu.matmul %15, %20, %cst_23 {dimension_numbers = #tpu.dot_dimension_numbers<[1], [0], [0], [1], [0, 0, 1, 1], [], []>} : vector<16x16xf32>, vector<16x512xf32>, vector<16x512xf32> -> vector<16x512xf32>
    %cst_24 = arith.constant dense<0.000000e+00> : vector<16xf32>
    %28 = vector.multi_reduction <add>, %27, %cst_24 [1] : vector<16x512xf32> to vector<16xf32>
    %29 = vector.shape_cast %28 : vector<16xf32> to vector<16x1xf32>
    %cst_25 = arith.constant 5.120000e+02 : f32
    %30 = vector.broadcast %cst_25 : f32 to vector<16x1xf32>
    %31 = arith.divf %29, %30 : vector<16x1xf32>
    %32 = vector.broadcast %31 : vector<16x1xf32> to vector<16x512xf32>
    %33 = arith.subf %27, %32 : vector<16x512xf32>
    %34 = arith.mulf %33, %33 : vector<16x512xf32>
    %cst_26 = arith.constant dense<0.000000e+00> : vector<16xf32>
    %35 = vector.multi_reduction <add>, %34, %cst_26 [1] : vector<16x512xf32> to vector<16xf32>
    %36 = vector.shape_cast %35 : vector<16xf32> to vector<16x1xf32>
    %cst_27 = arith.constant 5.120000e+02 : f32
    %37 = vector.broadcast %cst_27 : f32 to vector<16x1xf32>
    %38 = arith.divf %36, %37 : vector<16x1xf32>
    %cst_28 = arith.constant 9.99999974E-6 : f32
    %39 = vector.broadcast %cst_28 : f32 to vector<16x1xf32>
    %40 = arith.addf %38, %39 : vector<16x1xf32>
    %41 = math.rsqrt %40 : vector<16x1xf32>
    %42 = arith.mulf %21, %41 : vector<16x1xf32>
    %43 = vector.broadcast %42 : vector<16x1xf32> to vector<16x512xf32>
    %44 = arith.mulf %33, %43 : vector<16x512xf32>
    %45 = vector.broadcast %22 : vector<16x1xf32> to vector<16x512xf32>
    %46 = arith.addf %44, %45 : vector<16x512xf32>
    %47 = arith.negf %46 : vector<16x512xf32>
    %48 = math.exp %47 : vector<16x512xf32>
    %cst_29 = arith.constant 1.000000e+00 : f32
    %49 = vector.broadcast %cst_29 : f32 to vector<16x512xf32>
    %50 = arith.addf %49, %48 : vector<16x512xf32>
    %51 = arith.divf %49, %50 : vector<16x512xf32>
    %52 = arith.mulf %46, %51 : vector<16x512xf32>
    %53 = tpu.concatenate %19, %52 in 0 : vector<16x512xf32>, vector<16x512xf32> -> vector<32x512xf32>
    %54 = vector.extract_strided_slice %16 {offsets = [0, 4], sizes = [32, 1], strides = [1, 1]} : vector<32x9xf32> to vector<32x1xf32>
    %55 = vector.broadcast %54 : vector<32x1xf32> to vector<32x512xf32>
    %56 = arith.mulf %53, %55 : vector<32x512xf32>
    %57 = vector.extract_strided_slice %53 {offsets = [0, 495], sizes = [32, 17], strides = [1, 1]} : vector<32x512xf32> to vector<32x17xf32>
    %58 = vector.extract_strided_slice %53 {offsets = [0, 0], sizes = [32, 495], strides = [1, 1]} : vector<32x512xf32> to vector<32x495xf32>
    %59 = tpu.concatenate %57, %58 in 1 : vector<32x17xf32>, vector<32x495xf32> -> vector<32x512xf32>
    %60 = vector.extract_strided_slice %16 {offsets = [0, 0], sizes = [32, 1], strides = [1, 1]} : vector<32x9xf32> to vector<32x1xf32>
    %61 = vector.broadcast %60 : vector<32x1xf32> to vector<32x512xf32>
    %62 = arith.mulf %59, %61 : vector<32x512xf32>
    %63 = vector.extract_strided_slice %0 {offsets = [0, 0], sizes = [1, 512], strides = [1, 1]} : vector<9x512xf32> to vector<1x512xf32>
    %64 = vector.broadcast %63 : vector<1x512xf32> to vector<32x512xf32>
    %65 = arith.mulf %62, %64 : vector<32x512xf32>
    %66 = arith.addf %56, %65 : vector<32x512xf32>
    %67 = vector.extract_strided_slice %53 {offsets = [0, 496], sizes = [32, 16], strides = [1, 1]} : vector<32x512xf32> to vector<32x16xf32>
    %68 = vector.extract_strided_slice %53 {offsets = [0, 0], sizes = [32, 496], strides = [1, 1]} : vector<32x512xf32> to vector<32x496xf32>
    %69 = tpu.concatenate %67, %68 in 1 : vector<32x16xf32>, vector<32x496xf32> -> vector<32x512xf32>
    %70 = vector.extract_strided_slice %16 {offsets = [0, 1], sizes = [32, 1], strides = [1, 1]} : vector<32x9xf32> to vector<32x1xf32>
    %71 = vector.broadcast %70 : vector<32x1xf32> to vector<32x512xf32>
    %72 = arith.mulf %69, %71 : vector<32x512xf32>
    %73 = vector.extract_strided_slice %0 {offsets = [1, 0], sizes = [1, 512], strides = [1, 1]} : vector<9x512xf32> to vector<1x512xf32>
    %74 = vector.broadcast %73 : vector<1x512xf32> to vector<32x512xf32>
    %75 = arith.mulf %72, %74 : vector<32x512xf32>
    %76 = arith.addf %66, %75 : vector<32x512xf32>
    %77 = vector.extract_strided_slice %53 {offsets = [0, 497], sizes = [32, 15], strides = [1, 1]} : vector<32x512xf32> to vector<32x15xf32>
    %78 = vector.extract_strided_slice %53 {offsets = [0, 0], sizes = [32, 497], strides = [1, 1]} : vector<32x512xf32> to vector<32x497xf32>
    %79 = tpu.concatenate %77, %78 in 1 : vector<32x15xf32>, vector<32x497xf32> -> vector<32x512xf32>
    %80 = vector.extract_strided_slice %16 {offsets = [0, 2], sizes = [32, 1], strides = [1, 1]} : vector<32x9xf32> to vector<32x1xf32>
    %81 = vector.broadcast %80 : vector<32x1xf32> to vector<32x512xf32>
    %82 = arith.mulf %79, %81 : vector<32x512xf32>
    %83 = vector.extract_strided_slice %0 {offsets = [2, 0], sizes = [1, 512], strides = [1, 1]} : vector<9x512xf32> to vector<1x512xf32>
    %84 = vector.broadcast %83 : vector<1x512xf32> to vector<32x512xf32>
    %85 = arith.mulf %82, %84 : vector<32x512xf32>
    %86 = arith.addf %76, %85 : vector<32x512xf32>
    %87 = vector.extract_strided_slice %53 {offsets = [0, 511], sizes = [32, 1], strides = [1, 1]} : vector<32x512xf32> to vector<32x1xf32>
    %88 = vector.extract_strided_slice %53 {offsets = [0, 0], sizes = [32, 511], strides = [1, 1]} : vector<32x512xf32> to vector<32x511xf32>
    %89 = tpu.concatenate %87, %88 in 1 : vector<32x1xf32>, vector<32x511xf32> -> vector<32x512xf32>
    %90 = vector.extract_strided_slice %16 {offsets = [0, 3], sizes = [32, 1], strides = [1, 1]} : vector<32x9xf32> to vector<32x1xf32>
    %91 = vector.broadcast %90 : vector<32x1xf32> to vector<32x512xf32>
    %92 = arith.mulf %89, %91 : vector<32x512xf32>
    %93 = vector.extract_strided_slice %0 {offsets = [3, 0], sizes = [1, 512], strides = [1, 1]} : vector<9x512xf32> to vector<1x512xf32>
    %94 = vector.broadcast %93 : vector<1x512xf32> to vector<32x512xf32>
    %95 = arith.mulf %92, %94 : vector<32x512xf32>
    %96 = arith.addf %86, %95 : vector<32x512xf32>
    %97 = vector.extract_strided_slice %53 {offsets = [0, 1], sizes = [32, 511], strides = [1, 1]} : vector<32x512xf32> to vector<32x511xf32>
    %98 = vector.extract_strided_slice %53 {offsets = [0, 0], sizes = [32, 1], strides = [1, 1]} : vector<32x512xf32> to vector<32x1xf32>
    %99 = tpu.concatenate %97, %98 in 1 : vector<32x511xf32>, vector<32x1xf32> -> vector<32x512xf32>
    %100 = vector.extract_strided_slice %16 {offsets = [0, 5], sizes = [32, 1], strides = [1, 1]} : vector<32x9xf32> to vector<32x1xf32>
    %101 = vector.broadcast %100 : vector<32x1xf32> to vector<32x512xf32>
    %102 = arith.mulf %99, %101 : vector<32x512xf32>
    %103 = vector.extract_strided_slice %0 {offsets = [5, 0], sizes = [1, 512], strides = [1, 1]} : vector<9x512xf32> to vector<1x512xf32>
    %104 = vector.broadcast %103 : vector<1x512xf32> to vector<32x512xf32>
    %105 = arith.mulf %102, %104 : vector<32x512xf32>
    %106 = arith.addf %96, %105 : vector<32x512xf32>
    %107 = vector.extract_strided_slice %53 {offsets = [0, 15], sizes = [32, 497], strides = [1, 1]} : vector<32x512xf32> to vector<32x497xf32>
    %108 = vector.extract_strided_slice %53 {offsets = [0, 0], sizes = [32, 15], strides = [1, 1]} : vector<32x512xf32> to vector<32x15xf32>
    %109 = tpu.concatenate %107, %108 in 1 : vector<32x497xf32>, vector<32x15xf32> -> vector<32x512xf32>
    %110 = vector.extract_strided_slice %16 {offsets = [0, 6], sizes = [32, 1], strides = [1, 1]} : vector<32x9xf32> to vector<32x1xf32>
    %111 = vector.broadcast %110 : vector<32x1xf32> to vector<32x512xf32>
    %112 = arith.mulf %109, %111 : vector<32x512xf32>
    %113 = vector.extract_strided_slice %0 {offsets = [6, 0], sizes = [1, 512], strides = [1, 1]} : vector<9x512xf32> to vector<1x512xf32>
    %114 = vector.broadcast %113 : vector<1x512xf32> to vector<32x512xf32>
    %115 = arith.mulf %112, %114 : vector<32x512xf32>
    %116 = arith.addf %106, %115 : vector<32x512xf32>
    %117 = vector.extract_strided_slice %53 {offsets = [0, 16], sizes = [32, 496], strides = [1, 1]} : vector<32x512xf32> to vector<32x496xf32>
    %118 = vector.extract_strided_slice %53 {offsets = [0, 0], sizes = [32, 16], strides = [1, 1]} : vector<32x512xf32> to vector<32x16xf32>
    %119 = tpu.concatenate %117, %118 in 1 : vector<32x496xf32>, vector<32x16xf32> -> vector<32x512xf32>
    %120 = vector.extract_strided_slice %16 {offsets = [0, 7], sizes = [32, 1], strides = [1, 1]} : vector<32x9xf32> to vector<32x1xf32>
    %121 = vector.broadcast %120 : vector<32x1xf32> to vector<32x512xf32>
    %122 = arith.mulf %119, %121 : vector<32x512xf32>
    %123 = vector.extract_strided_slice %0 {offsets = [7, 0], sizes = [1, 512], strides = [1, 1]} : vector<9x512xf32> to vector<1x512xf32>
    %124 = vector.broadcast %123 : vector<1x512xf32> to vector<32x512xf32>
    %125 = arith.mulf %122, %124 : vector<32x512xf32>
    %126 = arith.addf %116, %125 : vector<32x512xf32>
    %127 = vector.extract_strided_slice %53 {offsets = [0, 17], sizes = [32, 495], strides = [1, 1]} : vector<32x512xf32> to vector<32x495xf32>
    %128 = vector.extract_strided_slice %53 {offsets = [0, 0], sizes = [32, 17], strides = [1, 1]} : vector<32x512xf32> to vector<32x17xf32>
    %129 = tpu.concatenate %127, %128 in 1 : vector<32x495xf32>, vector<32x17xf32> -> vector<32x512xf32>
    %130 = vector.extract_strided_slice %16 {offsets = [0, 8], sizes = [32, 1], strides = [1, 1]} : vector<32x9xf32> to vector<32x1xf32>
    %131 = vector.broadcast %130 : vector<32x1xf32> to vector<32x512xf32>
    %132 = arith.mulf %129, %131 : vector<32x512xf32>
    %133 = vector.extract_strided_slice %0 {offsets = [8, 0], sizes = [1, 512], strides = [1, 1]} : vector<9x512xf32> to vector<1x512xf32>
    %134 = vector.broadcast %133 : vector<1x512xf32> to vector<32x512xf32>
    %135 = arith.mulf %132, %134 : vector<32x512xf32>
    %136 = arith.addf %126, %135 : vector<32x512xf32>
    %cst_30 = arith.constant dense<0.000000e+00> : vector<32xf32>
    %137 = vector.multi_reduction <add>, %136, %cst_30 [1] : vector<32x512xf32> to vector<32xf32>
    %138 = vector.shape_cast %137 : vector<32xf32> to vector<32x1xf32>
    %cst_31 = arith.constant 5.120000e+02 : f32
    %139 = vector.broadcast %cst_31 : f32 to vector<32x1xf32>
    %140 = arith.divf %138, %139 : vector<32x1xf32>
    %141 = vector.broadcast %140 : vector<32x1xf32> to vector<32x512xf32>
    %142 = arith.subf %136, %141 : vector<32x512xf32>
    %143 = arith.mulf %142, %142 : vector<32x512xf32>
    %cst_32 = arith.constant dense<0.000000e+00> : vector<32xf32>
    %144 = vector.multi_reduction <add>, %143, %cst_32 [1] : vector<32x512xf32> to vector<32xf32>
    %145 = vector.shape_cast %144 : vector<32xf32> to vector<32x1xf32>
    %cst_33 = arith.constant 5.120000e+02 : f32
    %146 = vector.broadcast %cst_33 : f32 to vector<32x1xf32>
    %147 = arith.divf %145, %146 : vector<32x1xf32>
    %cst_34 = arith.constant 9.99999974E-6 : f32
    %148 = vector.broadcast %cst_34 : f32 to vector<32x1xf32>
    %149 = arith.addf %147, %148 : vector<32x1xf32>
    %150 = math.rsqrt %149 : vector<32x1xf32>
    %151 = arith.mulf %23, %150 : vector<32x1xf32>
    %152 = vector.broadcast %151 : vector<32x1xf32> to vector<32x512xf32>
    %153 = arith.mulf %142, %152 : vector<32x512xf32>
    %154 = vector.broadcast %24 : vector<32x1xf32> to vector<32x512xf32>
    %155 = arith.addf %153, %154 : vector<32x512xf32>
    %cst_35 = arith.constant dense<0.000000e+00> : vector<32x512xf32>
    %156 = tpu.matmul %17, %155, %cst_35 {dimension_numbers = #tpu.dot_dimension_numbers<[1], [0], [0], [1], [0, 0, 1, 1], [], []>} : vector<32x32xf32>, vector<32x512xf32>, vector<32x512xf32> -> vector<32x512xf32>
    %cst_36 = arith.constant dense<0.000000e+00> : vector<32xf32>
    %157 = vector.multi_reduction <add>, %156, %cst_36 [1] : vector<32x512xf32> to vector<32xf32>
    %158 = vector.shape_cast %157 : vector<32xf32> to vector<32x1xf32>
    %cst_37 = arith.constant 5.120000e+02 : f32
    %159 = vector.broadcast %cst_37 : f32 to vector<32x1xf32>
    %160 = arith.divf %158, %159 : vector<32x1xf32>
    %161 = vector.broadcast %160 : vector<32x1xf32> to vector<32x512xf32>
    %162 = arith.subf %156, %161 : vector<32x512xf32>
    %163 = arith.mulf %162, %162 : vector<32x512xf32>
    %cst_38 = arith.constant dense<0.000000e+00> : vector<32xf32>
    %164 = vector.multi_reduction <add>, %163, %cst_38 [1] : vector<32x512xf32> to vector<32xf32>
    %165 = vector.shape_cast %164 : vector<32xf32> to vector<32x1xf32>
    %cst_39 = arith.constant 5.120000e+02 : f32
    %166 = vector.broadcast %cst_39 : f32 to vector<32x1xf32>
    %167 = arith.divf %165, %166 : vector<32x1xf32>
    %cst_40 = arith.constant 9.99999974E-6 : f32
    %168 = vector.broadcast %cst_40 : f32 to vector<32x1xf32>
    %169 = arith.addf %167, %168 : vector<32x1xf32>
    %170 = math.rsqrt %169 : vector<32x1xf32>
    %171 = arith.mulf %25, %170 : vector<32x1xf32>
    %172 = vector.broadcast %171 : vector<32x1xf32> to vector<32x512xf32>
    %173 = arith.mulf %162, %172 : vector<32x512xf32>
    %174 = vector.broadcast %26 : vector<32x1xf32> to vector<32x512xf32>
    %175 = arith.addf %173, %174 : vector<32x512xf32>
    %176 = arith.negf %175 : vector<32x512xf32>
    %177 = math.exp %176 : vector<32x512xf32>
    %cst_41 = arith.constant 1.000000e+00 : f32
    %178 = vector.broadcast %cst_41 : f32 to vector<32x512xf32>
    %179 = arith.addf %178, %177 : vector<32x512xf32>
    %180 = arith.divf %178, %179 : vector<32x512xf32>
    %181 = arith.mulf %175, %180 : vector<32x512xf32>
    %c0_42 = arith.constant 0 : index
    %c0_43 = arith.constant 0 : index
    %182 = vector.load %arg11[%c0_42, %c0_43] : memref<16x16xf32, #tpu.memory_space<vmem>>, vector<16x16xf32>
    %c0_44 = arith.constant 0 : index
    %c0_45 = arith.constant 0 : index
    %183 = vector.load %arg12[%c0_44, %c0_45] : memref<32x9xf32, #tpu.memory_space<vmem>>, vector<32x9xf32>
    %c0_46 = arith.constant 0 : index
    %c0_47 = arith.constant 0 : index
    %184 = vector.load %arg13[%c0_46, %c0_47] : memref<32x32xf32, #tpu.memory_space<vmem>>, vector<32x32xf32>
    %c0_48 = arith.constant 0 : index
    %c0_49 = arith.constant 0 : index
    %185 = vector.load %arg14[%c0_48, %c0_49] : memref<80x2xf32, #tpu.memory_space<vmem>>, vector<80x2xf32>
    %186 = vector.extract_strided_slice %181 {offsets = [0, 0], sizes = [16, 512], strides = [1, 1]} : vector<32x512xf32> to vector<16x512xf32>
    %187 = vector.extract_strided_slice %181 {offsets = [16, 0], sizes = [16, 512], strides = [1, 1]} : vector<32x512xf32> to vector<16x512xf32>
    %188 = vector.extract_strided_slice %185 {offsets = [0, 0], sizes = [16, 1], strides = [1, 1]} : vector<80x2xf32> to vector<16x1xf32>
    %189 = vector.extract_strided_slice %185 {offsets = [0, 1], sizes = [16, 1], strides = [1, 1]} : vector<80x2xf32> to vector<16x1xf32>
    %190 = vector.extract_strided_slice %185 {offsets = [16, 0], sizes = [32, 1], strides = [1, 1]} : vector<80x2xf32> to vector<32x1xf32>
    %191 = vector.extract_strided_slice %185 {offsets = [16, 1], sizes = [32, 1], strides = [1, 1]} : vector<80x2xf32> to vector<32x1xf32>
    %192 = vector.extract_strided_slice %185 {offsets = [48, 0], sizes = [32, 1], strides = [1, 1]} : vector<80x2xf32> to vector<32x1xf32>
    %193 = vector.extract_strided_slice %185 {offsets = [48, 1], sizes = [32, 1], strides = [1, 1]} : vector<80x2xf32> to vector<32x1xf32>
    %cst_50 = arith.constant dense<0.000000e+00> : vector<16x512xf32>
    %194 = tpu.matmul %182, %187, %cst_50 {dimension_numbers = #tpu.dot_dimension_numbers<[1], [0], [0], [1], [0, 0, 1, 1], [], []>} : vector<16x16xf32>, vector<16x512xf32>, vector<16x512xf32> -> vector<16x512xf32>
    %cst_51 = arith.constant dense<0.000000e+00> : vector<16xf32>
    %195 = vector.multi_reduction <add>, %194, %cst_51 [1] : vector<16x512xf32> to vector<16xf32>
    %196 = vector.shape_cast %195 : vector<16xf32> to vector<16x1xf32>
    %cst_52 = arith.constant 5.120000e+02 : f32
    %197 = vector.broadcast %cst_52 : f32 to vector<16x1xf32>
    %198 = arith.divf %196, %197 : vector<16x1xf32>
    %199 = vector.broadcast %198 : vector<16x1xf32> to vector<16x512xf32>
    %200 = arith.subf %194, %199 : vector<16x512xf32>
    %201 = arith.mulf %200, %200 : vector<16x512xf32>
    %cst_53 = arith.constant dense<0.000000e+00> : vector<16xf32>
    %202 = vector.multi_reduction <add>, %201, %cst_53 [1] : vector<16x512xf32> to vector<16xf32>
    %203 = vector.shape_cast %202 : vector<16xf32> to vector<16x1xf32>
    %cst_54 = arith.constant 5.120000e+02 : f32
    %204 = vector.broadcast %cst_54 : f32 to vector<16x1xf32>
    %205 = arith.divf %203, %204 : vector<16x1xf32>
    %cst_55 = arith.constant 9.99999974E-6 : f32
    %206 = vector.broadcast %cst_55 : f32 to vector<16x1xf32>
    %207 = arith.addf %205, %206 : vector<16x1xf32>
    %208 = math.rsqrt %207 : vector<16x1xf32>
    %209 = arith.mulf %188, %208 : vector<16x1xf32>
    %210 = vector.broadcast %209 : vector<16x1xf32> to vector<16x512xf32>
    %211 = arith.mulf %200, %210 : vector<16x512xf32>
    %212 = vector.broadcast %189 : vector<16x1xf32> to vector<16x512xf32>
    %213 = arith.addf %211, %212 : vector<16x512xf32>
    %214 = arith.negf %213 : vector<16x512xf32>
    %215 = math.exp %214 : vector<16x512xf32>
    %cst_56 = arith.constant 1.000000e+00 : f32
    %216 = vector.broadcast %cst_56 : f32 to vector<16x512xf32>
    %217 = arith.addf %216, %215 : vector<16x512xf32>
    %218 = arith.divf %216, %217 : vector<16x512xf32>
    %219 = arith.mulf %213, %218 : vector<16x512xf32>
    %220 = tpu.concatenate %186, %219 in 0 : vector<16x512xf32>, vector<16x512xf32> -> vector<32x512xf32>
    %221 = vector.extract_strided_slice %183 {offsets = [0, 4], sizes = [32, 1], strides = [1, 1]} : vector<32x9xf32> to vector<32x1xf32>
    %222 = vector.broadcast %221 : vector<32x1xf32> to vector<32x512xf32>
    %223 = arith.mulf %220, %222 : vector<32x512xf32>
    %224 = vector.extract_strided_slice %220 {offsets = [0, 495], sizes = [32, 17], strides = [1, 1]} : vector<32x512xf32> to vector<32x17xf32>
    %225 = vector.extract_strided_slice %220 {offsets = [0, 0], sizes = [32, 495], strides = [1, 1]} : vector<32x512xf32> to vector<32x495xf32>
    %226 = tpu.concatenate %224, %225 in 1 : vector<32x17xf32>, vector<32x495xf32> -> vector<32x512xf32>
    %227 = vector.extract_strided_slice %183 {offsets = [0, 0], sizes = [32, 1], strides = [1, 1]} : vector<32x9xf32> to vector<32x1xf32>
    %228 = vector.broadcast %227 : vector<32x1xf32> to vector<32x512xf32>
    %229 = arith.mulf %226, %228 : vector<32x512xf32>
    %230 = vector.extract_strided_slice %0 {offsets = [0, 0], sizes = [1, 512], strides = [1, 1]} : vector<9x512xf32> to vector<1x512xf32>
    %231 = vector.broadcast %230 : vector<1x512xf32> to vector<32x512xf32>
    %232 = arith.mulf %229, %231 : vector<32x512xf32>
    %233 = arith.addf %223, %232 : vector<32x512xf32>
    %234 = vector.extract_strided_slice %220 {offsets = [0, 496], sizes = [32, 16], strides = [1, 1]} : vector<32x512xf32> to vector<32x16xf32>
    %235 = vector.extract_strided_slice %220 {offsets = [0, 0], sizes = [32, 496], strides = [1, 1]} : vector<32x512xf32> to vector<32x496xf32>
    %236 = tpu.concatenate %234, %235 in 1 : vector<32x16xf32>, vector<32x496xf32> -> vector<32x512xf32>
    %237 = vector.extract_strided_slice %183 {offsets = [0, 1], sizes = [32, 1], strides = [1, 1]} : vector<32x9xf32> to vector<32x1xf32>
    %238 = vector.broadcast %237 : vector<32x1xf32> to vector<32x512xf32>
    %239 = arith.mulf %236, %238 : vector<32x512xf32>
    %240 = vector.extract_strided_slice %0 {offsets = [1, 0], sizes = [1, 512], strides = [1, 1]} : vector<9x512xf32> to vector<1x512xf32>
    %241 = vector.broadcast %240 : vector<1x512xf32> to vector<32x512xf32>
    %242 = arith.mulf %239, %241 : vector<32x512xf32>
    %243 = arith.addf %233, %242 : vector<32x512xf32>
    %244 = vector.extract_strided_slice %220 {offsets = [0, 497], sizes = [32, 15], strides = [1, 1]} : vector<32x512xf32> to vector<32x15xf32>
    %245 = vector.extract_strided_slice %220 {offsets = [0, 0], sizes = [32, 497], strides = [1, 1]} : vector<32x512xf32> to vector<32x497xf32>
    %246 = tpu.concatenate %244, %245 in 1 : vector<32x15xf32>, vector<32x497xf32> -> vector<32x512xf32>
    %247 = vector.extract_strided_slice %183 {offsets = [0, 2], sizes = [32, 1], strides = [1, 1]} : vector<32x9xf32> to vector<32x1xf32>
    %248 = vector.broadcast %247 : vector<32x1xf32> to vector<32x512xf32>
    %249 = arith.mulf %246, %248 : vector<32x512xf32>
    %250 = vector.extract_strided_slice %0 {offsets = [2, 0], sizes = [1, 512], strides = [1, 1]} : vector<9x512xf32> to vector<1x512xf32>
    %251 = vector.broadcast %250 : vector<1x512xf32> to vector<32x512xf32>
    %252 = arith.mulf %249, %251 : vector<32x512xf32>
    %253 = arith.addf %243, %252 : vector<32x512xf32>
    %254 = vector.extract_strided_slice %220 {offsets = [0, 511], sizes = [32, 1], strides = [1, 1]} : vector<32x512xf32> to vector<32x1xf32>
    %255 = vector.extract_strided_slice %220 {offsets = [0, 0], sizes = [32, 511], strides = [1, 1]} : vector<32x512xf32> to vector<32x511xf32>
    %256 = tpu.concatenate %254, %255 in 1 : vector<32x1xf32>, vector<32x511xf32> -> vector<32x512xf32>
    %257 = vector.extract_strided_slice %183 {offsets = [0, 3], sizes = [32, 1], strides = [1, 1]} : vector<32x9xf32> to vector<32x1xf32>
    %258 = vector.broadcast %257 : vector<32x1xf32> to vector<32x512xf32>
    %259 = arith.mulf %256, %258 : vector<32x512xf32>
    %260 = vector.extract_strided_slice %0 {offsets = [3, 0], sizes = [1, 512], strides = [1, 1]} : vector<9x512xf32> to vector<1x512xf32>
    %261 = vector.broadcast %260 : vector<1x512xf32> to vector<32x512xf32>
    %262 = arith.mulf %259, %261 : vector<32x512xf32>
    %263 = arith.addf %253, %262 : vector<32x512xf32>
    %264 = vector.extract_strided_slice %220 {offsets = [0, 1], sizes = [32, 511], strides = [1, 1]} : vector<32x512xf32> to vector<32x511xf32>
    %265 = vector.extract_strided_slice %220 {offsets = [0, 0], sizes = [32, 1], strides = [1, 1]} : vector<32x512xf32> to vector<32x1xf32>
    %266 = tpu.concatenate %264, %265 in 1 : vector<32x511xf32>, vector<32x1xf32> -> vector<32x512xf32>
    %267 = vector.extract_strided_slice %183 {offsets = [0, 5], sizes = [32, 1], strides = [1, 1]} : vector<32x9xf32> to vector<32x1xf32>
    %268 = vector.broadcast %267 : vector<32x1xf32> to vector<32x512xf32>
    %269 = arith.mulf %266, %268 : vector<32x512xf32>
    %270 = vector.extract_strided_slice %0 {offsets = [5, 0], sizes = [1, 512], strides = [1, 1]} : vector<9x512xf32> to vector<1x512xf32>
    %271 = vector.broadcast %270 : vector<1x512xf32> to vector<32x512xf32>
    %272 = arith.mulf %269, %271 : vector<32x512xf32>
    %273 = arith.addf %263, %272 : vector<32x512xf32>
    %274 = vector.extract_strided_slice %220 {offsets = [0, 15], sizes = [32, 497], strides = [1, 1]} : vector<32x512xf32> to vector<32x497xf32>
    %275 = vector.extract_strided_slice %220 {offsets = [0, 0], sizes = [32, 15], strides = [1, 1]} : vector<32x512xf32> to vector<32x15xf32>
    %276 = tpu.concatenate %274, %275 in 1 : vector<32x497xf32>, vector<32x15xf32> -> vector<32x512xf32>
    %277 = vector.extract_strided_slice %183 {offsets = [0, 6], sizes = [32, 1], strides = [1, 1]} : vector<32x9xf32> to vector<32x1xf32>
    %278 = vector.broadcast %277 : vector<32x1xf32> to vector<32x512xf32>
    %279 = arith.mulf %276, %278 : vector<32x512xf32>
    %280 = vector.extract_strided_slice %0 {offsets = [6, 0], sizes = [1, 512], strides = [1, 1]} : vector<9x512xf32> to vector<1x512xf32>
    %281 = vector.broadcast %280 : vector<1x512xf32> to vector<32x512xf32>
    %282 = arith.mulf %279, %281 : vector<32x512xf32>
    %283 = arith.addf %273, %282 : vector<32x512xf32>
    %284 = vector.extract_strided_slice %220 {offsets = [0, 16], sizes = [32, 496], strides = [1, 1]} : vector<32x512xf32> to vector<32x496xf32>
    %285 = vector.extract_strided_slice %220 {offsets = [0, 0], sizes = [32, 16], strides = [1, 1]} : vector<32x512xf32> to vector<32x16xf32>
    %286 = tpu.concatenate %284, %285 in 1 : vector<32x496xf32>, vector<32x16xf32> -> vector<32x512xf32>
    %287 = vector.extract_strided_slice %183 {offsets = [0, 7], sizes = [32, 1], strides = [1, 1]} : vector<32x9xf32> to vector<32x1xf32>
    %288 = vector.broadcast %287 : vector<32x1xf32> to vector<32x512xf32>
    %289 = arith.mulf %286, %288 : vector<32x512xf32>
    %290 = vector.extract_strided_slice %0 {offsets = [7, 0], sizes = [1, 512], strides = [1, 1]} : vector<9x512xf32> to vector<1x512xf32>
    %291 = vector.broadcast %290 : vector<1x512xf32> to vector<32x512xf32>
    %292 = arith.mulf %289, %291 : vector<32x512xf32>
    %293 = arith.addf %283, %292 : vector<32x512xf32>
    %294 = vector.extract_strided_slice %220 {offsets = [0, 17], sizes = [32, 495], strides = [1, 1]} : vector<32x512xf32> to vector<32x495xf32>
    %295 = vector.extract_strided_slice %220 {offsets = [0, 0], sizes = [32, 17], strides = [1, 1]} : vector<32x512xf32> to vector<32x17xf32>
    %296 = tpu.concatenate %294, %295 in 1 : vector<32x495xf32>, vector<32x17xf32> -> vector<32x512xf32>
    %297 = vector.extract_strided_slice %183 {offsets = [0, 8], sizes = [32, 1], strides = [1, 1]} : vector<32x9xf32> to vector<32x1xf32>
    %298 = vector.broadcast %297 : vector<32x1xf32> to vector<32x512xf32>
    %299 = arith.mulf %296, %298 : vector<32x512xf32>
    %300 = vector.extract_strided_slice %0 {offsets = [8, 0], sizes = [1, 512], strides = [1, 1]} : vector<9x512xf32> to vector<1x512xf32>
    %301 = vector.broadcast %300 : vector<1x512xf32> to vector<32x512xf32>
    %302 = arith.mulf %299, %301 : vector<32x512xf32>
    %303 = arith.addf %293, %302 : vector<32x512xf32>
    %cst_57 = arith.constant dense<0.000000e+00> : vector<32xf32>
    %304 = vector.multi_reduction <add>, %303, %cst_57 [1] : vector<32x512xf32> to vector<32xf32>
    %305 = vector.shape_cast %304 : vector<32xf32> to vector<32x1xf32>
    %cst_58 = arith.constant 5.120000e+02 : f32
    %306 = vector.broadcast %cst_58 : f32 to vector<32x1xf32>
    %307 = arith.divf %305, %306 : vector<32x1xf32>
    %308 = vector.broadcast %307 : vector<32x1xf32> to vector<32x512xf32>
    %309 = arith.subf %303, %308 : vector<32x512xf32>
    %310 = arith.mulf %309, %309 : vector<32x512xf32>
    %cst_59 = arith.constant dense<0.000000e+00> : vector<32xf32>
    %311 = vector.multi_reduction <add>, %310, %cst_59 [1] : vector<32x512xf32> to vector<32xf32>
    %312 = vector.shape_cast %311 : vector<32xf32> to vector<32x1xf32>
    %cst_60 = arith.constant 5.120000e+02 : f32
    %313 = vector.broadcast %cst_60 : f32 to vector<32x1xf32>
    %314 = arith.divf %312, %313 : vector<32x1xf32>
    %cst_61 = arith.constant 9.99999974E-6 : f32
    %315 = vector.broadcast %cst_61 : f32 to vector<32x1xf32>
    %316 = arith.addf %314, %315 : vector<32x1xf32>
    %317 = math.rsqrt %316 : vector<32x1xf32>
    %318 = arith.mulf %190, %317 : vector<32x1xf32>
    %319 = vector.broadcast %318 : vector<32x1xf32> to vector<32x512xf32>
    %320 = arith.mulf %309, %319 : vector<32x512xf32>
    %321 = vector.broadcast %191 : vector<32x1xf32> to vector<32x512xf32>
    %322 = arith.addf %320, %321 : vector<32x512xf32>
    %cst_62 = arith.constant dense<0.000000e+00> : vector<32x512xf32>
    %323 = tpu.matmul %184, %322, %cst_62 {dimension_numbers = #tpu.dot_dimension_numbers<[1], [0], [0], [1], [0, 0, 1, 1], [], []>} : vector<32x32xf32>, vector<32x512xf32>, vector<32x512xf32> -> vector<32x512xf32>
    %cst_63 = arith.constant dense<0.000000e+00> : vector<32xf32>
    %324 = vector.multi_reduction <add>, %323, %cst_63 [1] : vector<32x512xf32> to vector<32xf32>
    %325 = vector.shape_cast %324 : vector<32xf32> to vector<32x1xf32>
    %cst_64 = arith.constant 5.120000e+02 : f32
    %326 = vector.broadcast %cst_64 : f32 to vector<32x1xf32>
    %327 = arith.divf %325, %326 : vector<32x1xf32>
    %328 = vector.broadcast %327 : vector<32x1xf32> to vector<32x512xf32>
    %329 = arith.subf %323, %328 : vector<32x512xf32>
    %330 = arith.mulf %329, %329 : vector<32x512xf32>
    %cst_65 = arith.constant dense<0.000000e+00> : vector<32xf32>
    %331 = vector.multi_reduction <add>, %330, %cst_65 [1] : vector<32x512xf32> to vector<32xf32>
    %332 = vector.shape_cast %331 : vector<32xf32> to vector<32x1xf32>
    %cst_66 = arith.constant 5.120000e+02 : f32
    %333 = vector.broadcast %cst_66 : f32 to vector<32x1xf32>
    %334 = arith.divf %332, %333 : vector<32x1xf32>
    %cst_67 = arith.constant 9.99999974E-6 : f32
    %335 = vector.broadcast %cst_67 : f32 to vector<32x1xf32>
    %336 = arith.addf %334, %335 : vector<32x1xf32>
    %337 = math.rsqrt %336 : vector<32x1xf32>
    %338 = arith.mulf %192, %337 : vector<32x1xf32>
    %339 = vector.broadcast %338 : vector<32x1xf32> to vector<32x512xf32>
    %340 = arith.mulf %329, %339 : vector<32x512xf32>
    %341 = vector.broadcast %193 : vector<32x1xf32> to vector<32x512xf32>
    %342 = arith.addf %340, %341 : vector<32x512xf32>
    %343 = arith.negf %342 : vector<32x512xf32>
    %344 = math.exp %343 : vector<32x512xf32>
    %cst_68 = arith.constant 1.000000e+00 : f32
    %345 = vector.broadcast %cst_68 : f32 to vector<32x512xf32>
    %346 = arith.addf %345, %344 : vector<32x512xf32>
    %347 = arith.divf %345, %346 : vector<32x512xf32>
    %348 = arith.mulf %342, %347 : vector<32x512xf32>
    %c0_69 = arith.constant 0 : index
    %c0_70 = arith.constant 0 : index
    %349 = vector.load %arg15[%c0_69, %c0_70] : memref<16x16xf32, #tpu.memory_space<vmem>>, vector<16x16xf32>
    %c0_71 = arith.constant 0 : index
    %c0_72 = arith.constant 0 : index
    %350 = vector.load %arg16[%c0_71, %c0_72] : memref<32x9xf32, #tpu.memory_space<vmem>>, vector<32x9xf32>
    %c0_73 = arith.constant 0 : index
    %c0_74 = arith.constant 0 : index
    %351 = vector.load %arg17[%c0_73, %c0_74] : memref<32x32xf32, #tpu.memory_space<vmem>>, vector<32x32xf32>
    %c0_75 = arith.constant 0 : index
    %c0_76 = arith.constant 0 : index
    %352 = vector.load %arg18[%c0_75, %c0_76] : memref<80x2xf32, #tpu.memory_space<vmem>>, vector<80x2xf32>
    %353 = vector.extract_strided_slice %348 {offsets = [0, 0], sizes = [16, 512], strides = [1, 1]} : vector<32x512xf32> to vector<16x512xf32>
    %354 = vector.extract_strided_slice %348 {offsets = [16, 0], sizes = [16, 512], strides = [1, 1]} : vector<32x512xf32> to vector<16x512xf32>
    %355 = vector.extract_strided_slice %352 {offsets = [0, 0], sizes = [16, 1], strides = [1, 1]} : vector<80x2xf32> to vector<16x1xf32>
    %356 = vector.extract_strided_slice %352 {offsets = [0, 1], sizes = [16, 1], strides = [1, 1]} : vector<80x2xf32> to vector<16x1xf32>
    %357 = vector.extract_strided_slice %352 {offsets = [16, 0], sizes = [32, 1], strides = [1, 1]} : vector<80x2xf32> to vector<32x1xf32>
    %358 = vector.extract_strided_slice %352 {offsets = [16, 1], sizes = [32, 1], strides = [1, 1]} : vector<80x2xf32> to vector<32x1xf32>
    %359 = vector.extract_strided_slice %352 {offsets = [48, 0], sizes = [32, 1], strides = [1, 1]} : vector<80x2xf32> to vector<32x1xf32>
    %360 = vector.extract_strided_slice %352 {offsets = [48, 1], sizes = [32, 1], strides = [1, 1]} : vector<80x2xf32> to vector<32x1xf32>
    %cst_77 = arith.constant dense<0.000000e+00> : vector<16x512xf32>
    %361 = tpu.matmul %349, %354, %cst_77 {dimension_numbers = #tpu.dot_dimension_numbers<[1], [0], [0], [1], [0, 0, 1, 1], [], []>} : vector<16x16xf32>, vector<16x512xf32>, vector<16x512xf32> -> vector<16x512xf32>
    %cst_78 = arith.constant dense<0.000000e+00> : vector<16xf32>
    %362 = vector.multi_reduction <add>, %361, %cst_78 [1] : vector<16x512xf32> to vector<16xf32>
    %363 = vector.shape_cast %362 : vector<16xf32> to vector<16x1xf32>
    %cst_79 = arith.constant 5.120000e+02 : f32
    %364 = vector.broadcast %cst_79 : f32 to vector<16x1xf32>
    %365 = arith.divf %363, %364 : vector<16x1xf32>
    %366 = vector.broadcast %365 : vector<16x1xf32> to vector<16x512xf32>
    %367 = arith.subf %361, %366 : vector<16x512xf32>
    %368 = arith.mulf %367, %367 : vector<16x512xf32>
    %cst_80 = arith.constant dense<0.000000e+00> : vector<16xf32>
    %369 = vector.multi_reduction <add>, %368, %cst_80 [1] : vector<16x512xf32> to vector<16xf32>
    %370 = vector.shape_cast %369 : vector<16xf32> to vector<16x1xf32>
    %cst_81 = arith.constant 5.120000e+02 : f32
    %371 = vector.broadcast %cst_81 : f32 to vector<16x1xf32>
    %372 = arith.divf %370, %371 : vector<16x1xf32>
    %cst_82 = arith.constant 9.99999974E-6 : f32
    %373 = vector.broadcast %cst_82 : f32 to vector<16x1xf32>
    %374 = arith.addf %372, %373 : vector<16x1xf32>
    %375 = math.rsqrt %374 : vector<16x1xf32>
    %376 = arith.mulf %355, %375 : vector<16x1xf32>
    %377 = vector.broadcast %376 : vector<16x1xf32> to vector<16x512xf32>
    %378 = arith.mulf %367, %377 : vector<16x512xf32>
    %379 = vector.broadcast %356 : vector<16x1xf32> to vector<16x512xf32>
    %380 = arith.addf %378, %379 : vector<16x512xf32>
    %381 = arith.negf %380 : vector<16x512xf32>
    %382 = math.exp %381 : vector<16x512xf32>
    %cst_83 = arith.constant 1.000000e+00 : f32
    %383 = vector.broadcast %cst_83 : f32 to vector<16x512xf32>
    %384 = arith.addf %383, %382 : vector<16x512xf32>
    %385 = arith.divf %383, %384 : vector<16x512xf32>
    %386 = arith.mulf %380, %385 : vector<16x512xf32>
    %387 = tpu.concatenate %353, %386 in 0 : vector<16x512xf32>, vector<16x512xf32> -> vector<32x512xf32>
    %388 = vector.extract_strided_slice %350 {offsets = [0, 4], sizes = [32, 1], strides = [1, 1]} : vector<32x9xf32> to vector<32x1xf32>
    %389 = vector.broadcast %388 : vector<32x1xf32> to vector<32x512xf32>
    %390 = arith.mulf %387, %389 : vector<32x512xf32>
    %391 = vector.extract_strided_slice %387 {offsets = [0, 495], sizes = [32, 17], strides = [1, 1]} : vector<32x512xf32> to vector<32x17xf32>
    %392 = vector.extract_strided_slice %387 {offsets = [0, 0], sizes = [32, 495], strides = [1, 1]} : vector<32x512xf32> to vector<32x495xf32>
    %393 = tpu.concatenate %391, %392 in 1 : vector<32x17xf32>, vector<32x495xf32> -> vector<32x512xf32>
    %394 = vector.extract_strided_slice %350 {offsets = [0, 0], sizes = [32, 1], strides = [1, 1]} : vector<32x9xf32> to vector<32x1xf32>
    %395 = vector.broadcast %394 : vector<32x1xf32> to vector<32x512xf32>
    %396 = arith.mulf %393, %395 : vector<32x512xf32>
    %397 = vector.extract_strided_slice %0 {offsets = [0, 0], sizes = [1, 512], strides = [1, 1]} : vector<9x512xf32> to vector<1x512xf32>
    %398 = vector.broadcast %397 : vector<1x512xf32> to vector<32x512xf32>
    %399 = arith.mulf %396, %398 : vector<32x512xf32>
    %400 = arith.addf %390, %399 : vector<32x512xf32>
    %401 = vector.extract_strided_slice %387 {offsets = [0, 496], sizes = [32, 16], strides = [1, 1]} : vector<32x512xf32> to vector<32x16xf32>
    %402 = vector.extract_strided_slice %387 {offsets = [0, 0], sizes = [32, 496], strides = [1, 1]} : vector<32x512xf32> to vector<32x496xf32>
    %403 = tpu.concatenate %401, %402 in 1 : vector<32x16xf32>, vector<32x496xf32> -> vector<32x512xf32>
    %404 = vector.extract_strided_slice %350 {offsets = [0, 1], sizes = [32, 1], strides = [1, 1]} : vector<32x9xf32> to vector<32x1xf32>
    %405 = vector.broadcast %404 : vector<32x1xf32> to vector<32x512xf32>
    %406 = arith.mulf %403, %405 : vector<32x512xf32>
    %407 = vector.extract_strided_slice %0 {offsets = [1, 0], sizes = [1, 512], strides = [1, 1]} : vector<9x512xf32> to vector<1x512xf32>
    %408 = vector.broadcast %407 : vector<1x512xf32> to vector<32x512xf32>
    %409 = arith.mulf %406, %408 : vector<32x512xf32>
    %410 = arith.addf %400, %409 : vector<32x512xf32>
    %411 = vector.extract_strided_slice %387 {offsets = [0, 497], sizes = [32, 15], strides = [1, 1]} : vector<32x512xf32> to vector<32x15xf32>
    %412 = vector.extract_strided_slice %387 {offsets = [0, 0], sizes = [32, 497], strides = [1, 1]} : vector<32x512xf32> to vector<32x497xf32>
    %413 = tpu.concatenate %411, %412 in 1 : vector<32x15xf32>, vector<32x497xf32> -> vector<32x512xf32>
    %414 = vector.extract_strided_slice %350 {offsets = [0, 2], sizes = [32, 1], strides = [1, 1]} : vector<32x9xf32> to vector<32x1xf32>
    %415 = vector.broadcast %414 : vector<32x1xf32> to vector<32x512xf32>
    %416 = arith.mulf %413, %415 : vector<32x512xf32>
    %417 = vector.extract_strided_slice %0 {offsets = [2, 0], sizes = [1, 512], strides = [1, 1]} : vector<9x512xf32> to vector<1x512xf32>
    %418 = vector.broadcast %417 : vector<1x512xf32> to vector<32x512xf32>
    %419 = arith.mulf %416, %418 : vector<32x512xf32>
    %420 = arith.addf %410, %419 : vector<32x512xf32>
    %421 = vector.extract_strided_slice %387 {offsets = [0, 511], sizes = [32, 1], strides = [1, 1]} : vector<32x512xf32> to vector<32x1xf32>
    %422 = vector.extract_strided_slice %387 {offsets = [0, 0], sizes = [32, 511], strides = [1, 1]} : vector<32x512xf32> to vector<32x511xf32>
    %423 = tpu.concatenate %421, %422 in 1 : vector<32x1xf32>, vector<32x511xf32> -> vector<32x512xf32>
    %424 = vector.extract_strided_slice %350 {offsets = [0, 3], sizes = [32, 1], strides = [1, 1]} : vector<32x9xf32> to vector<32x1xf32>
    %425 = vector.broadcast %424 : vector<32x1xf32> to vector<32x512xf32>
    %426 = arith.mulf %423, %425 : vector<32x512xf32>
    %427 = vector.extract_strided_slice %0 {offsets = [3, 0], sizes = [1, 512], strides = [1, 1]} : vector<9x512xf32> to vector<1x512xf32>
    %428 = vector.broadcast %427 : vector<1x512xf32> to vector<32x512xf32>
    %429 = arith.mulf %426, %428 : vector<32x512xf32>
    %430 = arith.addf %420, %429 : vector<32x512xf32>
    %431 = vector.extract_strided_slice %387 {offsets = [0, 1], sizes = [32, 511], strides = [1, 1]} : vector<32x512xf32> to vector<32x511xf32>
    %432 = vector.extract_strided_slice %387 {offsets = [0, 0], sizes = [32, 1], strides = [1, 1]} : vector<32x512xf32> to vector<32x1xf32>
    %433 = tpu.concatenate %431, %432 in 1 : vector<32x511xf32>, vector<32x1xf32> -> vector<32x512xf32>
    %434 = vector.extract_strided_slice %350 {offsets = [0, 5], sizes = [32, 1], strides = [1, 1]} : vector<32x9xf32> to vector<32x1xf32>
    %435 = vector.broadcast %434 : vector<32x1xf32> to vector<32x512xf32>
    %436 = arith.mulf %433, %435 : vector<32x512xf32>
    %437 = vector.extract_strided_slice %0 {offsets = [5, 0], sizes = [1, 512], strides = [1, 1]} : vector<9x512xf32> to vector<1x512xf32>
    %438 = vector.broadcast %437 : vector<1x512xf32> to vector<32x512xf32>
    %439 = arith.mulf %436, %438 : vector<32x512xf32>
    %440 = arith.addf %430, %439 : vector<32x512xf32>
    %441 = vector.extract_strided_slice %387 {offsets = [0, 15], sizes = [32, 497], strides = [1, 1]} : vector<32x512xf32> to vector<32x497xf32>
    %442 = vector.extract_strided_slice %387 {offsets = [0, 0], sizes = [32, 15], strides = [1, 1]} : vector<32x512xf32> to vector<32x15xf32>
    %443 = tpu.concatenate %441, %442 in 1 : vector<32x497xf32>, vector<32x15xf32> -> vector<32x512xf32>
    %444 = vector.extract_strided_slice %350 {offsets = [0, 6], sizes = [32, 1], strides = [1, 1]} : vector<32x9xf32> to vector<32x1xf32>
    %445 = vector.broadcast %444 : vector<32x1xf32> to vector<32x512xf32>
    %446 = arith.mulf %443, %445 : vector<32x512xf32>
    %447 = vector.extract_strided_slice %0 {offsets = [6, 0], sizes = [1, 512], strides = [1, 1]} : vector<9x512xf32> to vector<1x512xf32>
    %448 = vector.broadcast %447 : vector<1x512xf32> to vector<32x512xf32>
    %449 = arith.mulf %446, %448 : vector<32x512xf32>
    %450 = arith.addf %440, %449 : vector<32x512xf32>
    %451 = vector.extract_strided_slice %387 {offsets = [0, 16], sizes = [32, 496], strides = [1, 1]} : vector<32x512xf32> to vector<32x496xf32>
    %452 = vector.extract_strided_slice %387 {offsets = [0, 0], sizes = [32, 16], strides = [1, 1]} : vector<32x512xf32> to vector<32x16xf32>
    %453 = tpu.concatenate %451, %452 in 1 : vector<32x496xf32>, vector<32x16xf32> -> vector<32x512xf32>
    %454 = vector.extract_strided_slice %350 {offsets = [0, 7], sizes = [32, 1], strides = [1, 1]} : vector<32x9xf32> to vector<32x1xf32>
    %455 = vector.broadcast %454 : vector<32x1xf32> to vector<32x512xf32>
    %456 = arith.mulf %453, %455 : vector<32x512xf32>
    %457 = vector.extract_strided_slice %0 {offsets = [7, 0], sizes = [1, 512], strides = [1, 1]} : vector<9x512xf32> to vector<1x512xf32>
    %458 = vector.broadcast %457 : vector<1x512xf32> to vector<32x512xf32>
    %459 = arith.mulf %456, %458 : vector<32x512xf32>
    %460 = arith.addf %450, %459 : vector<32x512xf32>
    %461 = vector.extract_strided_slice %387 {offsets = [0, 17], sizes = [32, 495], strides = [1, 1]} : vector<32x512xf32> to vector<32x495xf32>
    %462 = vector.extract_strided_slice %387 {offsets = [0, 0], sizes = [32, 17], strides = [1, 1]} : vector<32x512xf32> to vector<32x17xf32>
    %463 = tpu.concatenate %461, %462 in 1 : vector<32x495xf32>, vector<32x17xf32> -> vector<32x512xf32>
    %464 = vector.extract_strided_slice %350 {offsets = [0, 8], sizes = [32, 1], strides = [1, 1]} : vector<32x9xf32> to vector<32x1xf32>
    %465 = vector.broadcast %464 : vector<32x1xf32> to vector<32x512xf32>
    %466 = arith.mulf %463, %465 : vector<32x512xf32>
    %467 = vector.extract_strided_slice %0 {offsets = [8, 0], sizes = [1, 512], strides = [1, 1]} : vector<9x512xf32> to vector<1x512xf32>
    %468 = vector.broadcast %467 : vector<1x512xf32> to vector<32x512xf32>
    %469 = arith.mulf %466, %468 : vector<32x512xf32>
    %470 = arith.addf %460, %469 : vector<32x512xf32>
    %cst_84 = arith.constant dense<0.000000e+00> : vector<32xf32>
    %471 = vector.multi_reduction <add>, %470, %cst_84 [1] : vector<32x512xf32> to vector<32xf32>
    %472 = vector.shape_cast %471 : vector<32xf32> to vector<32x1xf32>
    %cst_85 = arith.constant 5.120000e+02 : f32
    %473 = vector.broadcast %cst_85 : f32 to vector<32x1xf32>
    %474 = arith.divf %472, %473 : vector<32x1xf32>
    %475 = vector.broadcast %474 : vector<32x1xf32> to vector<32x512xf32>
    %476 = arith.subf %470, %475 : vector<32x512xf32>
    %477 = arith.mulf %476, %476 : vector<32x512xf32>
    %cst_86 = arith.constant dense<0.000000e+00> : vector<32xf32>
    %478 = vector.multi_reduction <add>, %477, %cst_86 [1] : vector<32x512xf32> to vector<32xf32>
    %479 = vector.shape_cast %478 : vector<32xf32> to vector<32x1xf32>
    %cst_87 = arith.constant 5.120000e+02 : f32
    %480 = vector.broadcast %cst_87 : f32 to vector<32x1xf32>
    %481 = arith.divf %479, %480 : vector<32x1xf32>
    %cst_88 = arith.constant 9.99999974E-6 : f32
    %482 = vector.broadcast %cst_88 : f32 to vector<32x1xf32>
    %483 = arith.addf %481, %482 : vector<32x1xf32>
    %484 = math.rsqrt %483 : vector<32x1xf32>
    %485 = arith.mulf %357, %484 : vector<32x1xf32>
    %486 = vector.broadcast %485 : vector<32x1xf32> to vector<32x512xf32>
    %487 = arith.mulf %476, %486 : vector<32x512xf32>
    %488 = vector.broadcast %358 : vector<32x1xf32> to vector<32x512xf32>
    %489 = arith.addf %487, %488 : vector<32x512xf32>
    %cst_89 = arith.constant dense<0.000000e+00> : vector<32x512xf32>
    %490 = tpu.matmul %351, %489, %cst_89 {dimension_numbers = #tpu.dot_dimension_numbers<[1], [0], [0], [1], [0, 0, 1, 1], [], []>} : vector<32x32xf32>, vector<32x512xf32>, vector<32x512xf32> -> vector<32x512xf32>
    %cst_90 = arith.constant dense<0.000000e+00> : vector<32xf32>
    %491 = vector.multi_reduction <add>, %490, %cst_90 [1] : vector<32x512xf32> to vector<32xf32>
    %492 = vector.shape_cast %491 : vector<32xf32> to vector<32x1xf32>
    %cst_91 = arith.constant 5.120000e+02 : f32
    %493 = vector.broadcast %cst_91 : f32 to vector<32x1xf32>
    %494 = arith.divf %492, %493 : vector<32x1xf32>
    %495 = vector.broadcast %494 : vector<32x1xf32> to vector<32x512xf32>
    %496 = arith.subf %490, %495 : vector<32x512xf32>
    %497 = arith.mulf %496, %496 : vector<32x512xf32>
    %cst_92 = arith.constant dense<0.000000e+00> : vector<32xf32>
    %498 = vector.multi_reduction <add>, %497, %cst_92 [1] : vector<32x512xf32> to vector<32xf32>
    %499 = vector.shape_cast %498 : vector<32xf32> to vector<32x1xf32>
    %cst_93 = arith.constant 5.120000e+02 : f32
    %500 = vector.broadcast %cst_93 : f32 to vector<32x1xf32>
    %501 = arith.divf %499, %500 : vector<32x1xf32>
    %cst_94 = arith.constant 9.99999974E-6 : f32
    %502 = vector.broadcast %cst_94 : f32 to vector<32x1xf32>
    %503 = arith.addf %501, %502 : vector<32x1xf32>
    %504 = math.rsqrt %503 : vector<32x1xf32>
    %505 = arith.mulf %359, %504 : vector<32x1xf32>
    %506 = vector.broadcast %505 : vector<32x1xf32> to vector<32x512xf32>
    %507 = arith.mulf %496, %506 : vector<32x512xf32>
    %508 = vector.broadcast %360 : vector<32x1xf32> to vector<32x512xf32>
    %509 = arith.addf %507, %508 : vector<32x512xf32>
    %510 = arith.negf %509 : vector<32x512xf32>
    %511 = math.exp %510 : vector<32x512xf32>
    %cst_95 = arith.constant 1.000000e+00 : f32
    %512 = vector.broadcast %cst_95 : f32 to vector<32x512xf32>
    %513 = arith.addf %512, %511 : vector<32x512xf32>
    %514 = arith.divf %512, %513 : vector<32x512xf32>
    %515 = arith.mulf %509, %514 : vector<32x512xf32>
    %c0_96 = arith.constant 0 : index
    %c0_97 = arith.constant 0 : index
    %516 = vector.load %arg19[%c0_96, %c0_97] : memref<16x16xf32, #tpu.memory_space<vmem>>, vector<16x16xf32>
    %c0_98 = arith.constant 0 : index
    %c0_99 = arith.constant 0 : index
    %517 = vector.load %arg20[%c0_98, %c0_99] : memref<32x9xf32, #tpu.memory_space<vmem>>, vector<32x9xf32>
    %c0_100 = arith.constant 0 : index
    %c0_101 = arith.constant 0 : index
    %518 = vector.load %arg21[%c0_100, %c0_101] : memref<16x32xf32, #tpu.memory_space<vmem>>, vector<16x32xf32>
    %c0_102 = arith.constant 0 : index
    %c0_103 = arith.constant 0 : index
    %519 = vector.load %arg22[%c0_102, %c0_103] : memref<64x2xf32, #tpu.memory_space<vmem>>, vector<64x2xf32>
    %520 = vector.extract_strided_slice %515 {offsets = [0, 0], sizes = [16, 512], strides = [1, 1]} : vector<32x512xf32> to vector<16x512xf32>
    %521 = vector.extract_strided_slice %515 {offsets = [16, 0], sizes = [16, 512], strides = [1, 1]} : vector<32x512xf32> to vector<16x512xf32>
    %522 = vector.extract_strided_slice %519 {offsets = [0, 0], sizes = [16, 1], strides = [1, 1]} : vector<64x2xf32> to vector<16x1xf32>
    %523 = vector.extract_strided_slice %519 {offsets = [0, 1], sizes = [16, 1], strides = [1, 1]} : vector<64x2xf32> to vector<16x1xf32>
    %524 = vector.extract_strided_slice %519 {offsets = [16, 0], sizes = [32, 1], strides = [1, 1]} : vector<64x2xf32> to vector<32x1xf32>
    %525 = vector.extract_strided_slice %519 {offsets = [16, 1], sizes = [32, 1], strides = [1, 1]} : vector<64x2xf32> to vector<32x1xf32>
    %526 = vector.extract_strided_slice %519 {offsets = [48, 0], sizes = [16, 1], strides = [1, 1]} : vector<64x2xf32> to vector<16x1xf32>
    %527 = vector.extract_strided_slice %519 {offsets = [48, 1], sizes = [16, 1], strides = [1, 1]} : vector<64x2xf32> to vector<16x1xf32>
    %cst_104 = arith.constant dense<0.000000e+00> : vector<16x512xf32>
    %528 = tpu.matmul %516, %521, %cst_104 {dimension_numbers = #tpu.dot_dimension_numbers<[1], [0], [0], [1], [0, 0, 1, 1], [], []>} : vector<16x16xf32>, vector<16x512xf32>, vector<16x512xf32> -> vector<16x512xf32>
    %cst_105 = arith.constant dense<0.000000e+00> : vector<16xf32>
    %529 = vector.multi_reduction <add>, %528, %cst_105 [1] : vector<16x512xf32> to vector<16xf32>
    %530 = vector.shape_cast %529 : vector<16xf32> to vector<16x1xf32>
    %cst_106 = arith.constant 5.120000e+02 : f32
    %531 = vector.broadcast %cst_106 : f32 to vector<16x1xf32>
    %532 = arith.divf %530, %531 : vector<16x1xf32>
    %533 = vector.broadcast %532 : vector<16x1xf32> to vector<16x512xf32>
    %534 = arith.subf %528, %533 : vector<16x512xf32>
    %535 = arith.mulf %534, %534 : vector<16x512xf32>
    %cst_107 = arith.constant dense<0.000000e+00> : vector<16xf32>
    %536 = vector.multi_reduction <add>, %535, %cst_107 [1] : vector<16x512xf32> to vector<16xf32>
    %537 = vector.shape_cast %536 : vector<16xf32> to vector<16x1xf32>
    %cst_108 = arith.constant 5.120000e+02 : f32
    %538 = vector.broadcast %cst_108 : f32 to vector<16x1xf32>
    %539 = arith.divf %537, %538 : vector<16x1xf32>
    %cst_109 = arith.constant 9.99999974E-6 : f32
    %540 = vector.broadcast %cst_109 : f32 to vector<16x1xf32>
    %541 = arith.addf %539, %540 : vector<16x1xf32>
    %542 = math.rsqrt %541 : vector<16x1xf32>
    %543 = arith.mulf %522, %542 : vector<16x1xf32>
    %544 = vector.broadcast %543 : vector<16x1xf32> to vector<16x512xf32>
    %545 = arith.mulf %534, %544 : vector<16x512xf32>
    %546 = vector.broadcast %523 : vector<16x1xf32> to vector<16x512xf32>
    %547 = arith.addf %545, %546 : vector<16x512xf32>
    %548 = arith.negf %547 : vector<16x512xf32>
    %549 = math.exp %548 : vector<16x512xf32>
    %cst_110 = arith.constant 1.000000e+00 : f32
    %550 = vector.broadcast %cst_110 : f32 to vector<16x512xf32>
    %551 = arith.addf %550, %549 : vector<16x512xf32>
    %552 = arith.divf %550, %551 : vector<16x512xf32>
    %553 = arith.mulf %547, %552 : vector<16x512xf32>
    %554 = tpu.concatenate %520, %553 in 0 : vector<16x512xf32>, vector<16x512xf32> -> vector<32x512xf32>
    %555 = vector.extract_strided_slice %517 {offsets = [0, 4], sizes = [32, 1], strides = [1, 1]} : vector<32x9xf32> to vector<32x1xf32>
    %556 = vector.broadcast %555 : vector<32x1xf32> to vector<32x512xf32>
    %557 = arith.mulf %554, %556 : vector<32x512xf32>
    %558 = vector.extract_strided_slice %554 {offsets = [0, 495], sizes = [32, 17], strides = [1, 1]} : vector<32x512xf32> to vector<32x17xf32>
    %559 = vector.extract_strided_slice %554 {offsets = [0, 0], sizes = [32, 495], strides = [1, 1]} : vector<32x512xf32> to vector<32x495xf32>
    %560 = tpu.concatenate %558, %559 in 1 : vector<32x17xf32>, vector<32x495xf32> -> vector<32x512xf32>
    %561 = vector.extract_strided_slice %517 {offsets = [0, 0], sizes = [32, 1], strides = [1, 1]} : vector<32x9xf32> to vector<32x1xf32>
    %562 = vector.broadcast %561 : vector<32x1xf32> to vector<32x512xf32>
    %563 = arith.mulf %560, %562 : vector<32x512xf32>
    %564 = vector.extract_strided_slice %0 {offsets = [0, 0], sizes = [1, 512], strides = [1, 1]} : vector<9x512xf32> to vector<1x512xf32>
    %565 = vector.broadcast %564 : vector<1x512xf32> to vector<32x512xf32>
    %566 = arith.mulf %563, %565 : vector<32x512xf32>
    %567 = arith.addf %557, %566 : vector<32x512xf32>
    %568 = vector.extract_strided_slice %554 {offsets = [0, 496], sizes = [32, 16], strides = [1, 1]} : vector<32x512xf32> to vector<32x16xf32>
    %569 = vector.extract_strided_slice %554 {offsets = [0, 0], sizes = [32, 496], strides = [1, 1]} : vector<32x512xf32> to vector<32x496xf32>
    %570 = tpu.concatenate %568, %569 in 1 : vector<32x16xf32>, vector<32x496xf32> -> vector<32x512xf32>
    %571 = vector.extract_strided_slice %517 {offsets = [0, 1], sizes = [32, 1], strides = [1, 1]} : vector<32x9xf32> to vector<32x1xf32>
    %572 = vector.broadcast %571 : vector<32x1xf32> to vector<32x512xf32>
    %573 = arith.mulf %570, %572 : vector<32x512xf32>
    %574 = vector.extract_strided_slice %0 {offsets = [1, 0], sizes = [1, 512], strides = [1, 1]} : vector<9x512xf32> to vector<1x512xf32>
    %575 = vector.broadcast %574 : vector<1x512xf32> to vector<32x512xf32>
    %576 = arith.mulf %573, %575 : vector<32x512xf32>
    %577 = arith.addf %567, %576 : vector<32x512xf32>
    %578 = vector.extract_strided_slice %554 {offsets = [0, 497], sizes = [32, 15], strides = [1, 1]} : vector<32x512xf32> to vector<32x15xf32>
    %579 = vector.extract_strided_slice %554 {offsets = [0, 0], sizes = [32, 497], strides = [1, 1]} : vector<32x512xf32> to vector<32x497xf32>
    %580 = tpu.concatenate %578, %579 in 1 : vector<32x15xf32>, vector<32x497xf32> -> vector<32x512xf32>
    %581 = vector.extract_strided_slice %517 {offsets = [0, 2], sizes = [32, 1], strides = [1, 1]} : vector<32x9xf32> to vector<32x1xf32>
    %582 = vector.broadcast %581 : vector<32x1xf32> to vector<32x512xf32>
    %583 = arith.mulf %580, %582 : vector<32x512xf32>
    %584 = vector.extract_strided_slice %0 {offsets = [2, 0], sizes = [1, 512], strides = [1, 1]} : vector<9x512xf32> to vector<1x512xf32>
    %585 = vector.broadcast %584 : vector<1x512xf32> to vector<32x512xf32>
    %586 = arith.mulf %583, %585 : vector<32x512xf32>
    %587 = arith.addf %577, %586 : vector<32x512xf32>
    %588 = vector.extract_strided_slice %554 {offsets = [0, 511], sizes = [32, 1], strides = [1, 1]} : vector<32x512xf32> to vector<32x1xf32>
    %589 = vector.extract_strided_slice %554 {offsets = [0, 0], sizes = [32, 511], strides = [1, 1]} : vector<32x512xf32> to vector<32x511xf32>
    %590 = tpu.concatenate %588, %589 in 1 : vector<32x1xf32>, vector<32x511xf32> -> vector<32x512xf32>
    %591 = vector.extract_strided_slice %517 {offsets = [0, 3], sizes = [32, 1], strides = [1, 1]} : vector<32x9xf32> to vector<32x1xf32>
    %592 = vector.broadcast %591 : vector<32x1xf32> to vector<32x512xf32>
    %593 = arith.mulf %590, %592 : vector<32x512xf32>
    %594 = vector.extract_strided_slice %0 {offsets = [3, 0], sizes = [1, 512], strides = [1, 1]} : vector<9x512xf32> to vector<1x512xf32>
    %595 = vector.broadcast %594 : vector<1x512xf32> to vector<32x512xf32>
    %596 = arith.mulf %593, %595 : vector<32x512xf32>
    %597 = arith.addf %587, %596 : vector<32x512xf32>
    %598 = vector.extract_strided_slice %554 {offsets = [0, 1], sizes = [32, 511], strides = [1, 1]} : vector<32x512xf32> to vector<32x511xf32>
    %599 = vector.extract_strided_slice %554 {offsets = [0, 0], sizes = [32, 1], strides = [1, 1]} : vector<32x512xf32> to vector<32x1xf32>
    %600 = tpu.concatenate %598, %599 in 1 : vector<32x511xf32>, vector<32x1xf32> -> vector<32x512xf32>
    %601 = vector.extract_strided_slice %517 {offsets = [0, 5], sizes = [32, 1], strides = [1, 1]} : vector<32x9xf32> to vector<32x1xf32>
    %602 = vector.broadcast %601 : vector<32x1xf32> to vector<32x512xf32>
    %603 = arith.mulf %600, %602 : vector<32x512xf32>
    %604 = vector.extract_strided_slice %0 {offsets = [5, 0], sizes = [1, 512], strides = [1, 1]} : vector<9x512xf32> to vector<1x512xf32>
    %605 = vector.broadcast %604 : vector<1x512xf32> to vector<32x512xf32>
    %606 = arith.mulf %603, %605 : vector<32x512xf32>
    %607 = arith.addf %597, %606 : vector<32x512xf32>
    %608 = vector.extract_strided_slice %554 {offsets = [0, 15], sizes = [32, 497], strides = [1, 1]} : vector<32x512xf32> to vector<32x497xf32>
    %609 = vector.extract_strided_slice %554 {offsets = [0, 0], sizes = [32, 15], strides = [1, 1]} : vector<32x512xf32> to vector<32x15xf32>
    %610 = tpu.concatenate %608, %609 in 1 : vector<32x497xf32>, vector<32x15xf32> -> vector<32x512xf32>
    %611 = vector.extract_strided_slice %517 {offsets = [0, 6], sizes = [32, 1], strides = [1, 1]} : vector<32x9xf32> to vector<32x1xf32>
    %612 = vector.broadcast %611 : vector<32x1xf32> to vector<32x512xf32>
    %613 = arith.mulf %610, %612 : vector<32x512xf32>
    %614 = vector.extract_strided_slice %0 {offsets = [6, 0], sizes = [1, 512], strides = [1, 1]} : vector<9x512xf32> to vector<1x512xf32>
    %615 = vector.broadcast %614 : vector<1x512xf32> to vector<32x512xf32>
    %616 = arith.mulf %613, %615 : vector<32x512xf32>
    %617 = arith.addf %607, %616 : vector<32x512xf32>
    %618 = vector.extract_strided_slice %554 {offsets = [0, 16], sizes = [32, 496], strides = [1, 1]} : vector<32x512xf32> to vector<32x496xf32>
    %619 = vector.extract_strided_slice %554 {offsets = [0, 0], sizes = [32, 16], strides = [1, 1]} : vector<32x512xf32> to vector<32x16xf32>
    %620 = tpu.concatenate %618, %619 in 1 : vector<32x496xf32>, vector<32x16xf32> -> vector<32x512xf32>
    %621 = vector.extract_strided_slice %517 {offsets = [0, 7], sizes = [32, 1], strides = [1, 1]} : vector<32x9xf32> to vector<32x1xf32>
    %622 = vector.broadcast %621 : vector<32x1xf32> to vector<32x512xf32>
    %623 = arith.mulf %620, %622 : vector<32x512xf32>
    %624 = vector.extract_strided_slice %0 {offsets = [7, 0], sizes = [1, 512], strides = [1, 1]} : vector<9x512xf32> to vector<1x512xf32>
    %625 = vector.broadcast %624 : vector<1x512xf32> to vector<32x512xf32>
    %626 = arith.mulf %623, %625 : vector<32x512xf32>
    %627 = arith.addf %617, %626 : vector<32x512xf32>
    %628 = vector.extract_strided_slice %554 {offsets = [0, 17], sizes = [32, 495], strides = [1, 1]} : vector<32x512xf32> to vector<32x495xf32>
    %629 = vector.extract_strided_slice %554 {offsets = [0, 0], sizes = [32, 17], strides = [1, 1]} : vector<32x512xf32> to vector<32x17xf32>
    %630 = tpu.concatenate %628, %629 in 1 : vector<32x495xf32>, vector<32x17xf32> -> vector<32x512xf32>
    %631 = vector.extract_strided_slice %517 {offsets = [0, 8], sizes = [32, 1], strides = [1, 1]} : vector<32x9xf32> to vector<32x1xf32>
    %632 = vector.broadcast %631 : vector<32x1xf32> to vector<32x512xf32>
    %633 = arith.mulf %630, %632 : vector<32x512xf32>
    %634 = vector.extract_strided_slice %0 {offsets = [8, 0], sizes = [1, 512], strides = [1, 1]} : vector<9x512xf32> to vector<1x512xf32>
    %635 = vector.broadcast %634 : vector<1x512xf32> to vector<32x512xf32>
    %636 = arith.mulf %633, %635 : vector<32x512xf32>
    %637 = arith.addf %627, %636 : vector<32x512xf32>
    %cst_111 = arith.constant dense<0.000000e+00> : vector<32xf32>
    %638 = vector.multi_reduction <add>, %637, %cst_111 [1] : vector<32x512xf32> to vector<32xf32>
    %639 = vector.shape_cast %638 : vector<32xf32> to vector<32x1xf32>
    %cst_112 = arith.constant 5.120000e+02 : f32
    %640 = vector.broadcast %cst_112 : f32 to vector<32x1xf32>
    %641 = arith.divf %639, %640 : vector<32x1xf32>
    %642 = vector.broadcast %641 : vector<32x1xf32> to vector<32x512xf32>
    %643 = arith.subf %637, %642 : vector<32x512xf32>
    %644 = arith.mulf %643, %643 : vector<32x512xf32>
    %cst_113 = arith.constant dense<0.000000e+00> : vector<32xf32>
    %645 = vector.multi_reduction <add>, %644, %cst_113 [1] : vector<32x512xf32> to vector<32xf32>
    %646 = vector.shape_cast %645 : vector<32xf32> to vector<32x1xf32>
    %cst_114 = arith.constant 5.120000e+02 : f32
    %647 = vector.broadcast %cst_114 : f32 to vector<32x1xf32>
    %648 = arith.divf %646, %647 : vector<32x1xf32>
    %cst_115 = arith.constant 9.99999974E-6 : f32
    %649 = vector.broadcast %cst_115 : f32 to vector<32x1xf32>
    %650 = arith.addf %648, %649 : vector<32x1xf32>
    %651 = math.rsqrt %650 : vector<32x1xf32>
    %652 = arith.mulf %524, %651 : vector<32x1xf32>
    %653 = vector.broadcast %652 : vector<32x1xf32> to vector<32x512xf32>
    %654 = arith.mulf %643, %653 : vector<32x512xf32>
    %655 = vector.broadcast %525 : vector<32x1xf32> to vector<32x512xf32>
    %656 = arith.addf %654, %655 : vector<32x512xf32>
    %cst_116 = arith.constant dense<0.000000e+00> : vector<16x512xf32>
    %657 = tpu.matmul %518, %656, %cst_116 {dimension_numbers = #tpu.dot_dimension_numbers<[1], [0], [0], [1], [0, 0, 1, 1], [], []>} : vector<16x32xf32>, vector<32x512xf32>, vector<16x512xf32> -> vector<16x512xf32>
    %cst_117 = arith.constant dense<0.000000e+00> : vector<16xf32>
    %658 = vector.multi_reduction <add>, %657, %cst_117 [1] : vector<16x512xf32> to vector<16xf32>
    %659 = vector.shape_cast %658 : vector<16xf32> to vector<16x1xf32>
    %cst_118 = arith.constant 5.120000e+02 : f32
    %660 = vector.broadcast %cst_118 : f32 to vector<16x1xf32>
    %661 = arith.divf %659, %660 : vector<16x1xf32>
    %662 = vector.broadcast %661 : vector<16x1xf32> to vector<16x512xf32>
    %663 = arith.subf %657, %662 : vector<16x512xf32>
    %664 = arith.mulf %663, %663 : vector<16x512xf32>
    %cst_119 = arith.constant dense<0.000000e+00> : vector<16xf32>
    %665 = vector.multi_reduction <add>, %664, %cst_119 [1] : vector<16x512xf32> to vector<16xf32>
    %666 = vector.shape_cast %665 : vector<16xf32> to vector<16x1xf32>
    %cst_120 = arith.constant 5.120000e+02 : f32
    %667 = vector.broadcast %cst_120 : f32 to vector<16x1xf32>
    %668 = arith.divf %666, %667 : vector<16x1xf32>
    %cst_121 = arith.constant 9.99999974E-6 : f32
    %669 = vector.broadcast %cst_121 : f32 to vector<16x1xf32>
    %670 = arith.addf %668, %669 : vector<16x1xf32>
    %671 = math.rsqrt %670 : vector<16x1xf32>
    %672 = arith.mulf %526, %671 : vector<16x1xf32>
    %673 = vector.broadcast %672 : vector<16x1xf32> to vector<16x512xf32>
    %674 = arith.mulf %663, %673 : vector<16x512xf32>
    %675 = vector.broadcast %527 : vector<16x1xf32> to vector<16x512xf32>
    %676 = arith.addf %674, %675 : vector<16x512xf32>
    %677 = arith.negf %676 : vector<16x512xf32>
    %678 = math.exp %677 : vector<16x512xf32>
    %cst_122 = arith.constant 1.000000e+00 : f32
    %679 = vector.broadcast %cst_122 : f32 to vector<16x512xf32>
    %680 = arith.addf %679, %678 : vector<16x512xf32>
    %681 = arith.divf %679, %680 : vector<16x512xf32>
    %682 = arith.mulf %676, %681 : vector<16x512xf32>
    %c0_123 = arith.constant 0 : index
    %c0_124 = arith.constant 0 : index
    %683 = vector.load %arg27[%c0_123, %c0_124] : memref<32x32xf32, #tpu.memory_space<vmem>>, vector<32x32xf32>
    %c0_125 = arith.constant 0 : index
    %c0_126 = arith.constant 0 : index
    %684 = vector.load %arg3[%c0_125, %c0_126] : memref<32x2xf32, #tpu.memory_space<vmem>>, vector<32x2xf32>
    %cst_127 = arith.constant dense<0.000000e+00> : vector<32x2xf32>
    %685 = tpu.matmul %683, %684, %cst_127 {dimension_numbers = #tpu.dot_dimension_numbers<[1], [0], [0], [1], [0, 0, 1, 1], [], []>} : vector<32x32xf32>, vector<32x2xf32>, vector<32x2xf32> -> vector<32x2xf32>
    %c0_128 = arith.constant 0 : index
    %c0_129 = arith.constant 0 : index
    %686 = vector.load %arg28[%c0_128, %c0_129] : memref<32x1xf32, #tpu.memory_space<vmem>>, vector<32x1xf32>
    %687 = vector.broadcast %686 : vector<32x1xf32> to vector<32x2xf32>
    %688 = arith.addf %685, %687 : vector<32x2xf32>
    %689 = arith.negf %688 : vector<32x2xf32>
    %690 = math.exp %689 : vector<32x2xf32>
    %cst_130 = arith.constant 1.000000e+00 : f32
    %691 = vector.broadcast %cst_130 : f32 to vector<32x2xf32>
    %692 = arith.addf %691, %690 : vector<32x2xf32>
    %693 = arith.divf %691, %692 : vector<32x2xf32>
    %694 = arith.mulf %688, %693 : vector<32x2xf32>
    %c0_131 = arith.constant 0 : index
    %c0_132 = arith.constant 0 : index
    %695 = vector.load %arg29[%c0_131, %c0_132] : memref<16x32xf32, #tpu.memory_space<vmem>>, vector<16x32xf32>
    %cst_133 = arith.constant dense<0.000000e+00> : vector<16x2xf32>
    %696 = tpu.matmul %695, %694, %cst_133 {dimension_numbers = #tpu.dot_dimension_numbers<[1], [0], [0], [1], [0, 0, 1, 1], [], []>} : vector<16x32xf32>, vector<32x2xf32>, vector<16x2xf32> -> vector<16x2xf32>
    %c0_134 = arith.constant 0 : index
    %c0_135 = arith.constant 0 : index
    %697 = vector.load %arg30[%c0_134, %c0_135] : memref<16x1xf32, #tpu.memory_space<vmem>>, vector<16x1xf32>
    %698 = vector.broadcast %697 : vector<16x1xf32> to vector<16x2xf32>
    %699 = arith.addf %696, %698 : vector<16x2xf32>
    %c0_136 = arith.constant 0 : index
    %c0_137 = arith.constant 0 : index
    %700 = vector.load %arg5[%c0_136, %c0_137] : memref<2x512xf32, #tpu.memory_space<vmem>>, vector<2x512xf32>
    %cst_138 = arith.constant dense<0.000000e+00> : vector<16x512xf32>
    %701 = tpu.matmul %699, %700, %cst_138 {dimension_numbers = #tpu.dot_dimension_numbers<[1], [0], [0], [1], [0, 0, 1, 1], [], []>} : vector<16x2xf32>, vector<2x512xf32>, vector<16x512xf32> -> vector<16x512xf32>
    %702 = arith.addf %682, %701 : vector<16x512xf32>
    %703 = arith.negf %702 : vector<16x512xf32>
    %704 = math.exp %703 : vector<16x512xf32>
    %cst_139 = arith.constant 1.000000e+00 : f32
    %705 = vector.broadcast %cst_139 : f32 to vector<16x512xf32>
    %706 = arith.addf %705, %704 : vector<16x512xf32>
    %707 = arith.divf %705, %706 : vector<16x512xf32>
    %708 = arith.mulf %702, %707 : vector<16x512xf32>
    %c0_140 = arith.constant 0 : index
    %c0_141 = arith.constant 0 : index
    %709 = vector.load %arg23[%c0_140, %c0_141] : memref<8x8xf32, #tpu.memory_space<vmem>>, vector<8x8xf32>
    %c0_142 = arith.constant 0 : index
    %c0_143 = arith.constant 0 : index
    %710 = vector.load %arg24[%c0_142, %c0_143] : memref<16x9xf32, #tpu.memory_space<vmem>>, vector<16x9xf32>
    %c0_144 = arith.constant 0 : index
    %c0_145 = arith.constant 0 : index
    %711 = vector.load %arg25[%c0_144, %c0_145] : memref<16x16xf32, #tpu.memory_space<vmem>>, vector<16x16xf32>
    %c0_146 = arith.constant 0 : index
    %c0_147 = arith.constant 0 : index
    %712 = vector.load %arg26[%c0_146, %c0_147] : memref<40x2xf32, #tpu.memory_space<vmem>>, vector<40x2xf32>
    %713 = vector.extract_strided_slice %708 {offsets = [0, 0], sizes = [8, 512], strides = [1, 1]} : vector<16x512xf32> to vector<8x512xf32>
    %714 = vector.extract_strided_slice %708 {offsets = [8, 0], sizes = [8, 512], strides = [1, 1]} : vector<16x512xf32> to vector<8x512xf32>
    %715 = vector.extract_strided_slice %712 {offsets = [0, 0], sizes = [8, 1], strides = [1, 1]} : vector<40x2xf32> to vector<8x1xf32>
    %716 = vector.extract_strided_slice %712 {offsets = [0, 1], sizes = [8, 1], strides = [1, 1]} : vector<40x2xf32> to vector<8x1xf32>
    %717 = vector.extract_strided_slice %712 {offsets = [8, 0], sizes = [16, 1], strides = [1, 1]} : vector<40x2xf32> to vector<16x1xf32>
    %718 = vector.extract_strided_slice %712 {offsets = [8, 1], sizes = [16, 1], strides = [1, 1]} : vector<40x2xf32> to vector<16x1xf32>
    %719 = vector.extract_strided_slice %712 {offsets = [24, 0], sizes = [16, 1], strides = [1, 1]} : vector<40x2xf32> to vector<16x1xf32>
    %720 = vector.extract_strided_slice %712 {offsets = [24, 1], sizes = [16, 1], strides = [1, 1]} : vector<40x2xf32> to vector<16x1xf32>
    %cst_148 = arith.constant dense<0.000000e+00> : vector<8x512xf32>
    %721 = tpu.matmul %709, %714, %cst_148 {dimension_numbers = #tpu.dot_dimension_numbers<[1], [0], [0], [1], [0, 0, 1, 1], [], []>} : vector<8x8xf32>, vector<8x512xf32>, vector<8x512xf32> -> vector<8x512xf32>
    %cst_149 = arith.constant dense<0.000000e+00> : vector<8xf32>
    %722 = vector.multi_reduction <add>, %721, %cst_149 [1] : vector<8x512xf32> to vector<8xf32>
    %723 = vector.shape_cast %722 : vector<8xf32> to vector<8x1xf32>
    %cst_150 = arith.constant 5.120000e+02 : f32
    %724 = vector.broadcast %cst_150 : f32 to vector<8x1xf32>
    %725 = arith.divf %723, %724 : vector<8x1xf32>
    %726 = vector.broadcast %725 : vector<8x1xf32> to vector<8x512xf32>
    %727 = arith.subf %721, %726 : vector<8x512xf32>
    %728 = arith.mulf %727, %727 : vector<8x512xf32>
    %cst_151 = arith.constant dense<0.000000e+00> : vector<8xf32>
    %729 = vector.multi_reduction <add>, %728, %cst_151 [1] : vector<8x512xf32> to vector<8xf32>
    %730 = vector.shape_cast %729 : vector<8xf32> to vector<8x1xf32>
    %cst_152 = arith.constant 5.120000e+02 : f32
    %731 = vector.broadcast %cst_152 : f32 to vector<8x1xf32>
    %732 = arith.divf %730, %731 : vector<8x1xf32>
    %cst_153 = arith.constant 9.99999974E-6 : f32
    %733 = vector.broadcast %cst_153 : f32 to vector<8x1xf32>
    %734 = arith.addf %732, %733 : vector<8x1xf32>
    %735 = math.rsqrt %734 : vector<8x1xf32>
    %736 = arith.mulf %715, %735 : vector<8x1xf32>
    %737 = vector.broadcast %736 : vector<8x1xf32> to vector<8x512xf32>
    %738 = arith.mulf %727, %737 : vector<8x512xf32>
    %739 = vector.broadcast %716 : vector<8x1xf32> to vector<8x512xf32>
    %740 = arith.addf %738, %739 : vector<8x512xf32>
    %741 = arith.negf %740 : vector<8x512xf32>
    %742 = math.exp %741 : vector<8x512xf32>
    %cst_154 = arith.constant 1.000000e+00 : f32
    %743 = vector.broadcast %cst_154 : f32 to vector<8x512xf32>
    %744 = arith.addf %743, %742 : vector<8x512xf32>
    %745 = arith.divf %743, %744 : vector<8x512xf32>
    %746 = arith.mulf %740, %745 : vector<8x512xf32>
    %747 = tpu.concatenate %713, %746 in 0 : vector<8x512xf32>, vector<8x512xf32> -> vector<16x512xf32>
    %748 = vector.extract_strided_slice %710 {offsets = [0, 4], sizes = [16, 1], strides = [1, 1]} : vector<16x9xf32> to vector<16x1xf32>
    %749 = vector.broadcast %748 : vector<16x1xf32> to vector<16x512xf32>
    %750 = arith.mulf %747, %749 : vector<16x512xf32>
    %751 = vector.extract_strided_slice %747 {offsets = [0, 495], sizes = [16, 17], strides = [1, 1]} : vector<16x512xf32> to vector<16x17xf32>
    %752 = vector.extract_strided_slice %747 {offsets = [0, 0], sizes = [16, 495], strides = [1, 1]} : vector<16x512xf32> to vector<16x495xf32>
    %753 = tpu.concatenate %751, %752 in 1 : vector<16x17xf32>, vector<16x495xf32> -> vector<16x512xf32>
    %754 = vector.extract_strided_slice %710 {offsets = [0, 0], sizes = [16, 1], strides = [1, 1]} : vector<16x9xf32> to vector<16x1xf32>
    %755 = vector.broadcast %754 : vector<16x1xf32> to vector<16x512xf32>
    %756 = arith.mulf %753, %755 : vector<16x512xf32>
    %757 = vector.extract_strided_slice %0 {offsets = [0, 0], sizes = [1, 512], strides = [1, 1]} : vector<9x512xf32> to vector<1x512xf32>
    %758 = vector.broadcast %757 : vector<1x512xf32> to vector<16x512xf32>
    %759 = arith.mulf %756, %758 : vector<16x512xf32>
    %760 = arith.addf %750, %759 : vector<16x512xf32>
    %761 = vector.extract_strided_slice %747 {offsets = [0, 496], sizes = [16, 16], strides = [1, 1]} : vector<16x512xf32> to vector<16x16xf32>
    %762 = vector.extract_strided_slice %747 {offsets = [0, 0], sizes = [16, 496], strides = [1, 1]} : vector<16x512xf32> to vector<16x496xf32>
    %763 = tpu.concatenate %761, %762 in 1 : vector<16x16xf32>, vector<16x496xf32> -> vector<16x512xf32>
    %764 = vector.extract_strided_slice %710 {offsets = [0, 1], sizes = [16, 1], strides = [1, 1]} : vector<16x9xf32> to vector<16x1xf32>
    %765 = vector.broadcast %764 : vector<16x1xf32> to vector<16x512xf32>
    %766 = arith.mulf %763, %765 : vector<16x512xf32>
    %767 = vector.extract_strided_slice %0 {offsets = [1, 0], sizes = [1, 512], strides = [1, 1]} : vector<9x512xf32> to vector<1x512xf32>
    %768 = vector.broadcast %767 : vector<1x512xf32> to vector<16x512xf32>
    %769 = arith.mulf %766, %768 : vector<16x512xf32>
    %770 = arith.addf %760, %769 : vector<16x512xf32>
    %771 = vector.extract_strided_slice %747 {offsets = [0, 497], sizes = [16, 15], strides = [1, 1]} : vector<16x512xf32> to vector<16x15xf32>
    %772 = vector.extract_strided_slice %747 {offsets = [0, 0], sizes = [16, 497], strides = [1, 1]} : vector<16x512xf32> to vector<16x497xf32>
    %773 = tpu.concatenate %771, %772 in 1 : vector<16x15xf32>, vector<16x497xf32> -> vector<16x512xf32>
    %774 = vector.extract_strided_slice %710 {offsets = [0, 2], sizes = [16, 1], strides = [1, 1]} : vector<16x9xf32> to vector<16x1xf32>
    %775 = vector.broadcast %774 : vector<16x1xf32> to vector<16x512xf32>
    %776 = arith.mulf %773, %775 : vector<16x512xf32>
    %777 = vector.extract_strided_slice %0 {offsets = [2, 0], sizes = [1, 512], strides = [1, 1]} : vector<9x512xf32> to vector<1x512xf32>
    %778 = vector.broadcast %777 : vector<1x512xf32> to vector<16x512xf32>
    %779 = arith.mulf %776, %778 : vector<16x512xf32>
    %780 = arith.addf %770, %779 : vector<16x512xf32>
    %781 = vector.extract_strided_slice %747 {offsets = [0, 511], sizes = [16, 1], strides = [1, 1]} : vector<16x512xf32> to vector<16x1xf32>
    %782 = vector.extract_strided_slice %747 {offsets = [0, 0], sizes = [16, 511], strides = [1, 1]} : vector<16x512xf32> to vector<16x511xf32>
    %783 = tpu.concatenate %781, %782 in 1 : vector<16x1xf32>, vector<16x511xf32> -> vector<16x512xf32>
    %784 = vector.extract_strided_slice %710 {offsets = [0, 3], sizes = [16, 1], strides = [1, 1]} : vector<16x9xf32> to vector<16x1xf32>
    %785 = vector.broadcast %784 : vector<16x1xf32> to vector<16x512xf32>
    %786 = arith.mulf %783, %785 : vector<16x512xf32>
    %787 = vector.extract_strided_slice %0 {offsets = [3, 0], sizes = [1, 512], strides = [1, 1]} : vector<9x512xf32> to vector<1x512xf32>
    %788 = vector.broadcast %787 : vector<1x512xf32> to vector<16x512xf32>
    %789 = arith.mulf %786, %788 : vector<16x512xf32>
    %790 = arith.addf %780, %789 : vector<16x512xf32>
    %791 = vector.extract_strided_slice %747 {offsets = [0, 1], sizes = [16, 511], strides = [1, 1]} : vector<16x512xf32> to vector<16x511xf32>
    %792 = vector.extract_strided_slice %747 {offsets = [0, 0], sizes = [16, 1], strides = [1, 1]} : vector<16x512xf32> to vector<16x1xf32>
    %793 = tpu.concatenate %791, %792 in 1 : vector<16x511xf32>, vector<16x1xf32> -> vector<16x512xf32>
    %794 = vector.extract_strided_slice %710 {offsets = [0, 5], sizes = [16, 1], strides = [1, 1]} : vector<16x9xf32> to vector<16x1xf32>
    %795 = vector.broadcast %794 : vector<16x1xf32> to vector<16x512xf32>
    %796 = arith.mulf %793, %795 : vector<16x512xf32>
    %797 = vector.extract_strided_slice %0 {offsets = [5, 0], sizes = [1, 512], strides = [1, 1]} : vector<9x512xf32> to vector<1x512xf32>
    %798 = vector.broadcast %797 : vector<1x512xf32> to vector<16x512xf32>
    %799 = arith.mulf %796, %798 : vector<16x512xf32>
    %800 = arith.addf %790, %799 : vector<16x512xf32>
    %801 = vector.extract_strided_slice %747 {offsets = [0, 15], sizes = [16, 497], strides = [1, 1]} : vector<16x512xf32> to vector<16x497xf32>
    %802 = vector.extract_strided_slice %747 {offsets = [0, 0], sizes = [16, 15], strides = [1, 1]} : vector<16x512xf32> to vector<16x15xf32>
    %803 = tpu.concatenate %801, %802 in 1 : vector<16x497xf32>, vector<16x15xf32> -> vector<16x512xf32>
    %804 = vector.extract_strided_slice %710 {offsets = [0, 6], sizes = [16, 1], strides = [1, 1]} : vector<16x9xf32> to vector<16x1xf32>
    %805 = vector.broadcast %804 : vector<16x1xf32> to vector<16x512xf32>
    %806 = arith.mulf %803, %805 : vector<16x512xf32>
    %807 = vector.extract_strided_slice %0 {offsets = [6, 0], sizes = [1, 512], strides = [1, 1]} : vector<9x512xf32> to vector<1x512xf32>
    %808 = vector.broadcast %807 : vector<1x512xf32> to vector<16x512xf32>
    %809 = arith.mulf %806, %808 : vector<16x512xf32>
    %810 = arith.addf %800, %809 : vector<16x512xf32>
    %811 = vector.extract_strided_slice %747 {offsets = [0, 16], sizes = [16, 496], strides = [1, 1]} : vector<16x512xf32> to vector<16x496xf32>
    %812 = vector.extract_strided_slice %747 {offsets = [0, 0], sizes = [16, 16], strides = [1, 1]} : vector<16x512xf32> to vector<16x16xf32>
    %813 = tpu.concatenate %811, %812 in 1 : vector<16x496xf32>, vector<16x16xf32> -> vector<16x512xf32>
    %814 = vector.extract_strided_slice %710 {offsets = [0, 7], sizes = [16, 1], strides = [1, 1]} : vector<16x9xf32> to vector<16x1xf32>
    %815 = vector.broadcast %814 : vector<16x1xf32> to vector<16x512xf32>
    %816 = arith.mulf %813, %815 : vector<16x512xf32>
    %817 = vector.extract_strided_slice %0 {offsets = [7, 0], sizes = [1, 512], strides = [1, 1]} : vector<9x512xf32> to vector<1x512xf32>
    %818 = vector.broadcast %817 : vector<1x512xf32> to vector<16x512xf32>
    %819 = arith.mulf %816, %818 : vector<16x512xf32>
    %820 = arith.addf %810, %819 : vector<16x512xf32>
    %821 = vector.extract_strided_slice %747 {offsets = [0, 17], sizes = [16, 495], strides = [1, 1]} : vector<16x512xf32> to vector<16x495xf32>
    %822 = vector.extract_strided_slice %747 {offsets = [0, 0], sizes = [16, 17], strides = [1, 1]} : vector<16x512xf32> to vector<16x17xf32>
    %823 = tpu.concatenate %821, %822 in 1 : vector<16x495xf32>, vector<16x17xf32> -> vector<16x512xf32>
    %824 = vector.extract_strided_slice %710 {offsets = [0, 8], sizes = [16, 1], strides = [1, 1]} : vector<16x9xf32> to vector<16x1xf32>
    %825 = vector.broadcast %824 : vector<16x1xf32> to vector<16x512xf32>
    %826 = arith.mulf %823, %825 : vector<16x512xf32>
    %827 = vector.extract_strided_slice %0 {offsets = [8, 0], sizes = [1, 512], strides = [1, 1]} : vector<9x512xf32> to vector<1x512xf32>
    %828 = vector.broadcast %827 : vector<1x512xf32> to vector<16x512xf32>
    %829 = arith.mulf %826, %828 : vector<16x512xf32>
    %830 = arith.addf %820, %829 : vector<16x512xf32>
    %cst_155 = arith.constant dense<0.000000e+00> : vector<16xf32>
    %831 = vector.multi_reduction <add>, %830, %cst_155 [1] : vector<16x512xf32> to vector<16xf32>
    %832 = vector.shape_cast %831 : vector<16xf32> to vector<16x1xf32>
    %cst_156 = arith.constant 5.120000e+02 : f32
    %833 = vector.broadcast %cst_156 : f32 to vector<16x1xf32>
    %834 = arith.divf %832, %833 : vector<16x1xf32>
    %835 = vector.broadcast %834 : vector<16x1xf32> to vector<16x512xf32>
    %836 = arith.subf %830, %835 : vector<16x512xf32>
    %837 = arith.mulf %836, %836 : vector<16x512xf32>
    %cst_157 = arith.constant dense<0.000000e+00> : vector<16xf32>
    %838 = vector.multi_reduction <add>, %837, %cst_157 [1] : vector<16x512xf32> to vector<16xf32>
    %839 = vector.shape_cast %838 : vector<16xf32> to vector<16x1xf32>
    %cst_158 = arith.constant 5.120000e+02 : f32
    %840 = vector.broadcast %cst_158 : f32 to vector<16x1xf32>
    %841 = arith.divf %839, %840 : vector<16x1xf32>
    %cst_159 = arith.constant 9.99999974E-6 : f32
    %842 = vector.broadcast %cst_159 : f32 to vector<16x1xf32>
    %843 = arith.addf %841, %842 : vector<16x1xf32>
    %844 = math.rsqrt %843 : vector<16x1xf32>
    %845 = arith.mulf %717, %844 : vector<16x1xf32>
    %846 = vector.broadcast %845 : vector<16x1xf32> to vector<16x512xf32>
    %847 = arith.mulf %836, %846 : vector<16x512xf32>
    %848 = vector.broadcast %718 : vector<16x1xf32> to vector<16x512xf32>
    %849 = arith.addf %847, %848 : vector<16x512xf32>
    %cst_160 = arith.constant dense<0.000000e+00> : vector<16x512xf32>
    %850 = tpu.matmul %711, %849, %cst_160 {dimension_numbers = #tpu.dot_dimension_numbers<[1], [0], [0], [1], [0, 0, 1, 1], [], []>} : vector<16x16xf32>, vector<16x512xf32>, vector<16x512xf32> -> vector<16x512xf32>
    %cst_161 = arith.constant dense<0.000000e+00> : vector<16xf32>
    %851 = vector.multi_reduction <add>, %850, %cst_161 [1] : vector<16x512xf32> to vector<16xf32>
    %852 = vector.shape_cast %851 : vector<16xf32> to vector<16x1xf32>
    %cst_162 = arith.constant 5.120000e+02 : f32
    %853 = vector.broadcast %cst_162 : f32 to vector<16x1xf32>
    %854 = arith.divf %852, %853 : vector<16x1xf32>
    %855 = vector.broadcast %854 : vector<16x1xf32> to vector<16x512xf32>
    %856 = arith.subf %850, %855 : vector<16x512xf32>
    %857 = arith.mulf %856, %856 : vector<16x512xf32>
    %cst_163 = arith.constant dense<0.000000e+00> : vector<16xf32>
    %858 = vector.multi_reduction <add>, %857, %cst_163 [1] : vector<16x512xf32> to vector<16xf32>
    %859 = vector.shape_cast %858 : vector<16xf32> to vector<16x1xf32>
    %cst_164 = arith.constant 5.120000e+02 : f32
    %860 = vector.broadcast %cst_164 : f32 to vector<16x1xf32>
    %861 = arith.divf %859, %860 : vector<16x1xf32>
    %cst_165 = arith.constant 9.99999974E-6 : f32
    %862 = vector.broadcast %cst_165 : f32 to vector<16x1xf32>
    %863 = arith.addf %861, %862 : vector<16x1xf32>
    %864 = math.rsqrt %863 : vector<16x1xf32>
    %865 = arith.mulf %719, %864 : vector<16x1xf32>
    %866 = vector.broadcast %865 : vector<16x1xf32> to vector<16x512xf32>
    %867 = arith.mulf %856, %866 : vector<16x512xf32>
    %868 = vector.broadcast %720 : vector<16x1xf32> to vector<16x512xf32>
    %869 = arith.addf %867, %868 : vector<16x512xf32>
    %870 = arith.negf %869 : vector<16x512xf32>
    %871 = math.exp %870 : vector<16x512xf32>
    %cst_166 = arith.constant 1.000000e+00 : f32
    %872 = vector.broadcast %cst_166 : f32 to vector<16x512xf32>
    %873 = arith.addf %872, %871 : vector<16x512xf32>
    %874 = arith.divf %872, %873 : vector<16x512xf32>
    %875 = arith.mulf %869, %874 : vector<16x512xf32>
    %876 = vector.extract_strided_slice %875 {offsets = [0, 0], sizes = [16, 256], strides = [1, 1]} : vector<16x512xf32> to vector<16x256xf32>
    %c0_167 = arith.constant 0 : index
    %c0_168 = arith.constant 0 : index
    %c0_169 = arith.constant 0 : index
    %877 = vector.load %arg31[%c0_167, %c0_168, %c0_169] : memref<2x16x256xf32, #tpu.memory_space<vmem>>, vector<1x16x256xf32>
    %878 = vector.shape_cast %877 : vector<1x16x256xf32> to vector<16x256xf32>
    %879 = vector.shape_cast %876 : vector<16x256xf32> to vector<1x16x256xf32>
    tpu.vector_store %arg31[%c0_167, %c0_168, %c0_169], %879 {strides = array<i32>} : memref<2x16x256xf32, #tpu.memory_space<vmem>>, vector<1x16x256xf32>,
    %880 = vector.extract_strided_slice %875 {offsets = [0, 256], sizes = [16, 256], strides = [1, 1]} : vector<16x512xf32> to vector<16x256xf32>
    %c1_170 = arith.constant 1 : index
    %c0_171 = arith.constant 0 : index
    %c0_172 = arith.constant 0 : index
    %881 = vector.load %arg31[%c1_170, %c0_171, %c0_172] : memref<2x16x256xf32, #tpu.memory_space<vmem>>, vector<1x16x256xf32>
    %882 = vector.shape_cast %881 : vector<1x16x256xf32> to vector<16x256xf32>
    %883 = vector.shape_cast %880 : vector<16x256xf32> to vector<1x16x256xf32>
    tpu.vector_store %arg31[%c1_170, %c0_171, %c0_172], %883 {strides = array<i32>} : memref<2x16x256xf32, #tpu.memory_space<vmem>>, vector<1x16x256xf32>,
    return
  }
  func.func @transform_0(%arg0: i32) -> (i32, i32, i32) {
    %c0_i32 = arith.constant 0 : i32
    %c0_i32_0 = arith.constant 0 : i32
    %c0_i32_1 = arith.constant 0 : i32
    %c0_i32_2 = arith.constant 0 : i32
    return %c0_i32, %c0_i32_0, %c0_i32_1 : i32, i32, i32
  }
  func.func @transform_1(%arg0: i32) -> (i32, i32, i32) {
    %c0_i32 = arith.constant 0 : i32
    %c0_i32_0 = arith.constant 0 : i32
    %c0_i32_1 = arith.constant 0 : i32
    %c0_i32_2 = arith.constant 0 : i32
    return %c0_i32, %c0_i32_0, %c0_i32_1 : i32, i32, i32
  }
  func.func @transform_2(%arg0: i32) -> (i32, i32) {
    %c0_i32 = arith.constant 0 : i32
    %c0_i32_0 = arith.constant 0 : i32
    %c0_i32_1 = arith.constant 0 : i32
    return %c0_i32, %c0_i32_0 : i32, i32
  }
  func.func @transform_3(%arg0: i32) -> (i32, i32) {
    %c0_i32 = arith.constant 0 : i32
    %c0_i32_0 = arith.constant 0 : i32
    %c0_i32_1 = arith.constant 0 : i32
    return %c0_i32, %c0_i32_0 : i32, i32
  }
  func.func @transform_4(%arg0: i32) -> (i32, i32) {
    %c0_i32 = arith.constant 0 : i32
    %c0_i32_0 = arith.constant 0 : i32
    %c0_i32_1 = arith.constant 0 : i32
    return %c0_i32, %c0_i32_0 : i32, i32
  }
  func.func @transform_5(%arg0: i32) -> (i32, i32) {
    %c0_i32 = arith.constant 0 : i32
    %c0_i32_0 = arith.constant 0 : i32
    %c0_i32_1 = arith.constant 0 : i32
    return %c0_i32, %c0_i32_0 : i32, i32
  }
  func.func @transform_6(%arg0: i32) -> (i32, i32) {
    %c0_i32 = arith.constant 0 : i32
    %c0_i32_0 = arith.constant 0 : i32
    %c0_i32_1 = arith.constant 0 : i32
    return %c0_i32, %c0_i32_0 : i32, i32
  }
  func.func @transform_7(%arg0: i32) -> (i32, i32) {
    %c0_i32 = arith.constant 0 : i32
    %c0_i32_0 = arith.constant 0 : i32
    %c0_i32_1 = arith.constant 0 : i32
    return %c0_i32, %c0_i32_0 : i32, i32
  }
  func.func @transform_8(%arg0: i32) -> (i32, i32) {
    %c0_i32 = arith.constant 0 : i32
    %c0_i32_0 = arith.constant 0 : i32
    %c0_i32_1 = arith.constant 0 : i32
    return %c0_i32, %c0_i32_0 : i32, i32
  }
  func.func @transform_9(%arg0: i32) -> (i32, i32) {
    %c0_i32 = arith.constant 0 : i32
    %c0_i32_0 = arith.constant 0 : i32
    %c0_i32_1 = arith.constant 0 : i32
    return %c0_i32, %c0_i32_0 : i32, i32
  }
  func.func @transform_10(%arg0: i32) -> (i32, i32) {
    %c0_i32 = arith.constant 0 : i32
    %c0_i32_0 = arith.constant 0 : i32
    %c0_i32_1 = arith.constant 0 : i32
    return %c0_i32, %c0_i32_0 : i32, i32
  }
  func.func @transform_11(%arg0: i32) -> (i32, i32) {
    %c0_i32 = arith.constant 0 : i32
    %c0_i32_0 = arith.constant 0 : i32
    %c0_i32_1 = arith.constant 0 : i32
    return %c0_i32, %c0_i32_0 : i32, i32
  }
  func.func @transform_12(%arg0: i32) -> (i32, i32) {
    %c0_i32 = arith.constant 0 : i32
    %c0_i32_0 = arith.constant 0 : i32
    %c0_i32_1 = arith.constant 0 : i32
    return %c0_i32, %c0_i32_0 : i32, i32
  }
  func.func @transform_13(%arg0: i32) -> (i32, i32) {
    %c0_i32 = arith.constant 0 : i32
    %c0_i32_0 = arith.constant 0 : i32
    %c0_i32_1 = arith.constant 0 : i32
    return %c0_i32, %c0_i32_0 : i32, i32
  }
  func.func @transform_14(%arg0: i32) -> (i32, i32) {
    %c0_i32 = arith.constant 0 : i32
    %c0_i32_0 = arith.constant 0 : i32
    %c0_i32_1 = arith.constant 0 : i32
    return %c0_i32, %c0_i32_0 : i32, i32
  }
  func.func @transform_15(%arg0: i32) -> (i32, i32) {
    %c0_i32 = arith.constant 0 : i32
    %c0_i32_0 = arith.constant 0 : i32
    %c0_i32_1 = arith.constant 0 : i32
    return %c0_i32, %c0_i32_0 : i32, i32
  }
  func.func @transform_16(%arg0: i32) -> (i32, i32) {
    %c0_i32 = arith.constant 0 : i32
    %c0_i32_0 = arith.constant 0 : i32
    %c0_i32_1 = arith.constant 0 : i32
    return %c0_i32, %c0_i32_0 : i32, i32
  }
  func.func @transform_17(%arg0: i32) -> (i32, i32) {
    %c0_i32 = arith.constant 0 : i32
    %c0_i32_0 = arith.constant 0 : i32
    %c0_i32_1 = arith.constant 0 : i32
    return %c0_i32, %c0_i32_0 : i32, i32
  }
  func.func @transform_18(%arg0: i32) -> (i32, i32) {
    %c0_i32 = arith.constant 0 : i32
    %c0_i32_0 = arith.constant 0 : i32
    %c0_i32_1 = arith.constant 0 : i32
    return %c0_i32, %c0_i32_0 : i32, i32
  }
  func.func @transform_19(%arg0: i32) -> (i32, i32) {
    %c0_i32 = arith.constant 0 : i32
    %c0_i32_0 = arith.constant 0 : i32
    %c0_i32_1 = arith.constant 0 : i32
    return %c0_i32, %c0_i32_0 : i32, i32
  }
  func.func @transform_20(%arg0: i32) -> (i32, i32) {
    %c0_i32 = arith.constant 0 : i32
    %c0_i32_0 = arith.constant 0 : i32
    %c0_i32_1 = arith.constant 0 : i32
    return %c0_i32, %c0_i32_0 : i32, i32
  }
  func.func @transform_21(%arg0: i32) -> (i32, i32) {
    %c0_i32 = arith.constant 0 : i32
    %c0_i32_0 = arith.constant 0 : i32
    %c0_i32_1 = arith.constant 0 : i32
    return %c0_i32, %c0_i32_0 : i32, i32
  }
  func.func @transform_22(%arg0: i32) -> (i32, i32) {
    %c0_i32 = arith.constant 0 : i32
    %c0_i32_0 = arith.constant 0 : i32
    %c0_i32_1 = arith.constant 0 : i32
    return %c0_i32, %c0_i32_0 : i32, i32
  }
  func.func @transform_23(%arg0: i32) -> (i32, i32) {
    %c0_i32 = arith.constant 0 : i32
    %c0_i32_0 = arith.constant 0 : i32
    %c0_i32_1 = arith.constant 0 : i32
    return %c0_i32, %c0_i32_0 : i32, i32
  }
  func.func @transform_24(%arg0: i32) -> (i32, i32) {
    %c0_i32 = arith.constant 0 : i32
    %c0_i32_0 = arith.constant 0 : i32
    %c0_i32_1 = arith.constant 0 : i32
    return %c0_i32, %c0_i32_0 : i32, i32
  }
  func.func @transform_25(%arg0: i32) -> (i32, i32) {
    %c0_i32 = arith.constant 0 : i32
    %c0_i32_0 = arith.constant 0 : i32
    %c0_i32_1 = arith.constant 0 : i32
    return %c0_i32, %c0_i32_0 : i32, i32
  }
  func.func @transform_26(%arg0: i32) -> (i32, i32) {
    %c0_i32 = arith.constant 0 : i32
    %c0_i32_0 = arith.constant 0 : i32
    %c0_i32_1 = arith.constant 0 : i32
    return %c0_i32, %c0_i32_0 : i32, i32
  }
  func.func @transform_27(%arg0: i32) -> (i32, i32) {
    %c0_i32 = arith.constant 0 : i32
    %c0_i32_0 = arith.constant 0 : i32
    %c0_i32_1 = arith.constant 0 : i32
    return %c0_i32, %c0_i32_0 : i32, i32
  }
  func.func @transform_28(%arg0: i32) -> (i32, i32) {
    %c0_i32 = arith.constant 0 : i32
    %c0_i32_0 = arith.constant 0 : i32
    %c0_i32_1 = arith.constant 0 : i32
    return %c0_i32, %c0_i32_0 : i32, i32
  }
  func.func @transform_29(%arg0: i32) -> (i32, i32) {
    %c0_i32 = arith.constant 0 : i32
    %c0_i32_0 = arith.constant 0 : i32
    %c0_i32_1 = arith.constant 0 : i32
    return %c0_i32, %c0_i32_0 : i32, i32
  }
  func.func @transform_30(%arg0: i32) -> (i32, i32, i32) {
    %c0_i32 = arith.constant 0 : i32
    %c0_i32_0 = arith.constant 0 : i32
    %c0_i32_1 = arith.constant 0 : i32
    %c0_i32_2 = arith.constant 0 : i32
    return %c0_i32, %c0_i32_0, %c0_i32_1 : i32, i32, i32
  }
}

</mosaic_0001>

<llo_original>
// kernel: tpu_custom_call.1
$region0: #{tpu_custom_call.1}
  #allocation0 [shape = 'u32[]', space=smem, size = 0x4, offset = 0x4, fixed_abs, tag = 'smem constant byte address 0x4 - core index']
  #allocation1 [shape = 'u32[144,128]{1,0:T(1,128)}', space=vmem, size = 0x12000, scoped, tag = 'internal scratch']
  %s0 = inlined_call_operand.hbm [shape: f32[8,256], index: 0, kind: input, shape index: {}]
  %s1 = inlined_call_operand.hbm [shape: f32[8,256], index: 1, kind: output, shape index: {}]
  %s2 = sld [smem:[#allocation0]]
  $region18: #{tpu_custom_call.1} parent=0
    _
  %s4 = ssub.s32 1, %s2
  %s5 = scalar_select 0, %s4, %s2
  $region1: #{tpu_custom_call.1} parent=0
    #allocation2 [shape = 'u8[8192]{0}', space=vmem, size = 0x2000, scoped, tag = 'input window, operand 0, single buffered']
    #allocation3 [shape = 's32[1]{0}', space=sflag, size = 0x4, scoped, tag = 'scoped memory for tpu_custom_call.1']
    #allocation4 [shape = 's32[1]{0}', space=sflag, size = 0x4, scoped, tag = 'scoped memory for tpu_custom_call.1']
    #allocation5 [shape = 'u8[8192]{0}', space=vmem, size = 0x2000, scoped, tag = 'output window, operand 0, single buffered']
    %6 = vsyncpa [#allocation3], 0
    %7 = vsyncpa [#allocation4], 0
    // Predicated region
    $region2: #{tpu_custom_call.1} parent=1 // pred_check
      _
    $region3: #{tpu_custom_call.1} parent=1 // pred_check_branch
      %9 = sbr.rel (0) target = $region5
    $region4: #{tpu_custom_call.1} parent=1 // pred_region
      %s11 = ssub.s32 256, 256
      %12 = vsyncadd [#allocation3], %s11
      %s14 = sshll.u32 [#allocation2], 4
      %s15 = int_to_ptr.vmem [resolvable:$true] %s14
      %17 = dma.hbm_to_vmem [thread:$0]  %s0, 256, %s15, [#allocation3]
    $region5: #{tpu_custom_call.1} parent=1 // pred_fallthru
      _
    // Predicated region
    $region6: #{tpu_custom_call.1} parent=1 // pred_check
      _
    $region7: #{tpu_custom_call.1} parent=1 // pred_check_branch
      %19 = sbr.rel (0) target = $region9
    $region8: #{tpu_custom_call.1} parent=1 // pred_region
      %20 = dma.done [#allocation3], 256
    $region9: #{tpu_custom_call.1} parent=1 // pred_fallthru
      _
    %v21 = vld [vmem:[#allocation2] sm:$0xff]
    %v22 = vld [vmem:[#allocation2 + $0x8] sm:$0xff]
    %23 = vrot.lane.b32.xlu0 %v21, 1
    %v24 = vpop.permute.xlu0 %23
    %25 = vrot.lane.b32.xlu0 %v22, 1
    %v26 = vpop.permute.xlu0 %25
    %v27 = vlaneseq
    %v28 = vand.u32 %v27, 127
    %vm29 = vcmp.lt.s32.totalorder %v28, 1
    %v30 = vsel %vm29, %v24, %v26
    %v31 = vsel %vm29, %v26, %v24
    %32 = vst [vmem:[#allocation5] sm:$0xff] %v31
    %33 = vst [vmem:[#allocation5 + $0x8] sm:$0xff] %v30
    // Predicated region
    $region10: #{tpu_custom_call.1} parent=1 // pred_check
      _
    $region11: #{tpu_custom_call.1} parent=1 // pred_check_branch
      %35 = sbr.rel (0) target = $region13
    $region12: #{tpu_custom_call.1} parent=1 // pred_region
      %s37 = ssub.s32 256, 256
      %38 = vsyncadd [#allocation4], %s37
      %s40 = sshll.u32 [#allocation5], 4
      %s41 = int_to_ptr.vmem [resolvable:$true] %s40
      %43 = dma.vmem_to_hbm [thread:$0]  %s41, 256, %s1, [#allocation4]
    $region13: #{tpu_custom_call.1} parent=1 // pred_fallthru
      _
    // Predicated region
    $region14: #{tpu_custom_call.1} parent=1 // pred_check
      _
    $region15: #{tpu_custom_call.1} parent=1 // pred_check_branch
      %45 = sbr.rel (0) target = $region17
    $region16: #{tpu_custom_call.1} parent=1 // pred_region
      %46 = dma.done [#allocation4], 256
    $region17: #{tpu_custom_call.1} parent=1 // pred_fallthru
      _
    %47 = vsyncpa [#allocation3], 1
    %48 = vsyncpa [#allocation4], 1

// kernel: decoder_block_pallas.1
$region0: #{decoder_block_pallas.1}
  #allocation0 [shape = 'u32[]', space=smem, size = 0x4, offset = 0x4, fixed_abs, tag = 'smem constant byte address 0x4 - core index']
  #allocation1 [shape = 'u32[144,128]{1,0:T(1,128)}', space=vmem, size = 0x12000, scoped, tag = 'internal scratch']
  %s0 = inlined_call_operand.smem [shape: u32[31], index: -1, kind: input, shape index: {}]
  %s1 = sld [smem:[%s0]]
  %s2 = scalar_lea.smem %s0, 1
  %s3 = sld [smem:[%s2]]
  %s4 = scalar_lea.smem %s0, 2
  %s5 = sld [smem:[%s4]]
  %s6 = scalar_lea.smem %s0, 3
  %s7 = sld [smem:[%s6]]
  %s8 = scalar_lea.smem %s0, 4
  %s9 = sld [smem:[%s8]]
  %s10 = scalar_lea.smem %s0, 5
  %s11 = sld [smem:[%s10]]
  %s12 = scalar_lea.smem %s0, 6
  %s13 = sld [smem:[%s12]]
  %s14 = scalar_lea.smem %s0, 7
  %s15 = sld [smem:[%s14]]
  %s16 = scalar_lea.smem %s0, 8
  %s17 = sld [smem:[%s16]]
  %s18 = scalar_lea.smem %s0, 9
  %s19 = sld [smem:[%s18]]
  %s20 = scalar_lea.smem %s0, 10
  %s21 = sld [smem:[%s20]]
  %s22 = scalar_lea.smem %s0, 11
  %s23 = sld [smem:[%s22]]
  %s24 = scalar_lea.smem %s0, 12
  %s25 = sld [smem:[%s24]]
  %s26 = scalar_lea.smem %s0, 13
  %s27 = sld [smem:[%s26]]
  %s28 = scalar_lea.smem %s0, 14
  %s29 = sld [smem:[%s28]]
  %s30 = scalar_lea.smem %s0, 15
  %s31 = sld [smem:[%s30]]
  %s32 = scalar_lea.smem %s0, 16
  %s33 = sld [smem:[%s32]]
  %s34 = scalar_lea.smem %s0, 17
  %s35 = sld [smem:[%s34]]
  %s36 = scalar_lea.smem %s0, 18
  %s37 = sld [smem:[%s36]]
  %s38 = scalar_lea.smem %s0, 19
  %s39 = sld [smem:[%s38]]
  %s40 = scalar_lea.smem %s0, 20
  %s41 = sld [smem:[%s40]]
  %s42 = scalar_lea.smem %s0, 21
  %s43 = sld [smem:[%s42]]
  %s44 = scalar_lea.smem %s0, 22
  %s45 = sld [smem:[%s44]]
  %s46 = scalar_lea.smem %s0, 23
  %s47 = sld [smem:[%s46]]
  %s48 = scalar_lea.smem %s0, 24
  %s49 = sld [smem:[%s48]]
  %s50 = scalar_lea.smem %s0, 25
  %s51 = sld [smem:[%s50]]
  %s52 = scalar_lea.smem %s0, 26
  %s53 = sld [smem:[%s52]]
  %s54 = scalar_lea.smem %s0, 27
  %s55 = sld [smem:[%s54]]
  %s56 = scalar_lea.smem %s0, 28
  %s57 = sld [smem:[%s56]]
  %s58 = scalar_lea.smem %s0, 29
  %s59 = sld [smem:[%s58]]
  %s60 = scalar_lea.smem %s0, 30
  %s61 = sld [smem:[%s60]]
  %s62 = sld [smem:[#allocation0]]
  $region130: #{decoder_block_pallas.1} parent=0
    _
  %s64 = ssub.s32 1, %s62
  %s65 = scalar_select 0, %s64, %s62
  // Predicated region
  $region2: #{decoder_block_pallas.1} parent=0 // pred_check
    _
  $region3: #{decoder_block_pallas.1} parent=0 // pred_check_branch
    %67 = sbr.rel (0) target = $region5
  $region4: #{decoder_block_pallas.1} parent=0 // pred_region
    _
  $region5: #{decoder_block_pallas.1} parent=0 // pred_fallthru
    _
  // Predicated region
  $region6: #{decoder_block_pallas.1} parent=0 // pred_check
    _
  $region7: #{decoder_block_pallas.1} parent=0 // pred_check_branch
    %69 = sbr.rel (0) target = $region9
  $region8: #{decoder_block_pallas.1} parent=0 // pred_region
    _
  $region9: #{decoder_block_pallas.1} parent=0 // pred_fallthru
    _
  // Predicated region
  $region10: #{decoder_block_pallas.1} parent=0 // pred_check
    _
  $region11: #{decoder_block_pallas.1} parent=0 // pred_check_branch
    %71 = sbr.rel (0) target = $region13
  $region12: #{decoder_block_pallas.1} parent=0 // pred_region
    _
  $region13: #{decoder_block_pallas.1} parent=0 // pred_fallthru
    _
  // Predicated region
  $region14: #{decoder_block_pallas.1} parent=0 // pred_check
    _
  $region15: #{decoder_block_pallas.1} parent=0 // pred_check_branch
    %73 = sbr.rel (0) target = $region17
  $region16: #{decoder_block_pallas.1} parent=0 // pred_region
    _
  $region17: #{decoder_block_pallas.1} parent=0 // pred_fallthru
    _
  // Predicated region
  $region18: #{decoder_block_pallas.1} parent=0 // pred_check
    _
  $region19: #{decoder_block_pallas.1} parent=0 // pred_check_branch
    %75 = sbr.rel (0) target = $region21
  $region20: #{decoder_block_pallas.1} parent=0 // pred_region
    _
  $region21: #{decoder_block_pallas.1} parent=0 // pred_fallthru
    _
  // Predicated region
  $region22: #{decoder_block_pallas.1} parent=0 // pred_check
    _
  $region23: #{decoder_block_pallas.1} parent=0 // pred_check_branch
    %77 = sbr.rel (0) target = $region25
  $region24: #{decoder_block_pallas.1} parent=0 // pred_region
    _
  $region25: #{decoder_block_pallas.1} parent=0 // pred_fallthru
    _
  // Predicated region
  $region26: #{decoder_block_pallas.1} parent=0 // pred_check
    _
  $region27: #{decoder_block_pallas.1} parent=0 // pred_check_branch
    %79 = sbr.rel (0) target = $region29
  $region28: #{decoder_block_pallas.1} parent=0 // pred_region
    _
  $region29: #{decoder_block_pallas.1} parent=0 // pred_fallthru
    _
  // Predicated region
  $region30: #{decoder_block_pallas.1} parent=0 // pred_check
    _
  $region31: #{decoder_block_pallas.1} parent=0 // pred_check_branch
    %81 = sbr.rel (0) target = $region33
  $region32: #{decoder_block_pallas.1} parent=0 // pred_region
    _
  $region33: #{decoder_block_pallas.1} parent=0 // pred_fallthru
    _
  // Predicated region
  $region34: #{decoder_block_pallas.1} parent=0 // pred_check
    _
  $region35: #{decoder_block_pallas.1} parent=0 // pred_check_branch
    %83 = sbr.rel (0) target = $region37
  $region36: #{decoder_block_pallas.1} parent=0 // pred_region
    _
  $region37: #{decoder_block_pallas.1} parent=0 // pred_fallthru
    _
  // Predicated region
  $region38: #{decoder_block_pallas.1} parent=0 // pred_check
    _
  $region39: #{decoder_block_pallas.1} parent=0 // pred_check_branch
    %85 = sbr.rel (0) target = $region41
  $region40: #{decoder_block_pallas.1} parent=0 // pred_region
    _
  $region41: #{decoder_block_pallas.1} parent=0 // pred_fallthru
    _
  // Predicated region
  $region42: #{decoder_block_pallas.1} parent=0 // pred_check
    _
  $region43: #{decoder_block_pallas.1} parent=0 // pred_check_branch
    %87 = sbr.rel (0) target = $region45
  $region44: #{decoder_block_pallas.1} parent=0 // pred_region
    _
  $region45: #{decoder_block_pallas.1} parent=0 // pred_fallthru
    _
  // Predicated region
  $region46: #{decoder_block_pallas.1} parent=0 // pred_check
    _
  $region47: #{decoder_block_pallas.1} parent=0 // pred_check_branch
    %89 = sbr.rel (0) target = $region49
  $region48: #{decoder_block_pallas.1} parent=0 // pred_region
    _
  $region49: #{decoder_block_pallas.1} parent=0 // pred_fallthru
    _
  // Predicated region
  $region50: #{decoder_block_pallas.1} parent=0 // pred_check
    _
  $region51: #{decoder_block_pallas.1} parent=0 // pred_check_branch
    %91 = sbr.rel (0) target = $region53
  $region52: #{decoder_block_pallas.1} parent=0 // pred_region
    _
  $region53: #{decoder_block_pallas.1} parent=0 // pred_fallthru
    _
  // Predicated region
  $region54: #{decoder_block_pallas.1} parent=0 // pred_check
    _
  $region55: #{decoder_block_pallas.1} parent=0 // pred_check_branch
    %93 = sbr.rel (0) target = $region57
  $region56: #{decoder_block_pallas.1} parent=0 // pred_region
    _
  $region57: #{decoder_block_pallas.1} parent=0 // pred_fallthru
    _
  // Predicated region
  $region58: #{decoder_block_pallas.1} parent=0 // pred_check
    _
  $region59: #{decoder_block_pallas.1} parent=0 // pred_check_branch
    %95 = sbr.rel (0) target = $region61
  $region60: #{decoder_block_pallas.1} parent=0 // pred_region
    _
  $region61: #{decoder_block_pallas.1} parent=0 // pred_fallthru
    _
  // Predicated region
  $region62: #{decoder_block_pallas.1} parent=0 // pred_check
    _
  $region63: #{decoder_block_pallas.1} parent=0 // pred_check_branch
    %97 = sbr.rel (0) target = $region65
  $region64: #{decoder_block_pallas.1} parent=0 // pred_region
    _
  $region65: #{decoder_block_pallas.1} parent=0 // pred_fallthru
    _
  // Predicated region
  $region66: #{decoder_block_pallas.1} parent=0 // pred_check
    _
  $region67: #{decoder_block_pallas.1} parent=0 // pred_check_branch
    %99 = sbr.rel (0) target = $region69
  $region68: #{decoder_block_pallas.1} parent=0 // pred_region
    _
  $region69: #{decoder_block_pallas.1} parent=0 // pred_fallthru
    _
  // Predicated region
  $region70: #{decoder_block_pallas.1} parent=0 // pred_check
    _
  $region71: #{decoder_block_pallas.1} parent=0 // pred_check_branch
    %101 = sbr.rel (0) target = $region73
  $region72: #{decoder_block_pallas.1} parent=0 // pred_region
    _
  $region73: #{decoder_block_pallas.1} parent=0 // pred_fallthru
    _
  // Predicated region
  $region74: #{decoder_block_pallas.1} parent=0 // pred_check
    _
  $region75: #{decoder_block_pallas.1} parent=0 // pred_check_branch
    %103 = sbr.rel (0) target = $region77
  $region76: #{decoder_block_pallas.1} parent=0 // pred_region
    _
  $region77: #{decoder_block_pallas.1} parent=0 // pred_fallthru
    _
  // Predicated region
  $region78: #{decoder_block_pallas.1} parent=0 // pred_check
    _
  $region79: #{decoder_block_pallas.1} parent=0 // pred_check_branch
    %105 = sbr.rel (0) target = $region81
  $region80: #{decoder_block_pallas.1} parent=0 // pred_region
    _
  $region81: #{decoder_block_pallas.1} parent=0 // pred_fallthru
    _
  // Predicated region
  $region82: #{decoder_block_pallas.1} parent=0 // pred_check
    _
  $region83: #{decoder_block_pallas.1} parent=0 // pred_check_branch
    %107 = sbr.rel (0) target = $region85
  $region84: #{decoder_block_pallas.1} parent=0 // pred_region
    _
  $region85: #{decoder_block_pallas.1} parent=0 // pred_fallthru
    _
  // Predicated region
  $region86: #{decoder_block_pallas.1} parent=0 // pred_check
    _
  $region87: #{decoder_block_pallas.1} parent=0 // pred_check_branch
    %109 = sbr.rel (0) target = $region89
  $region88: #{decoder_block_pallas.1} parent=0 // pred_region
    _
  $region89: #{decoder_block_pallas.1} parent=0 // pred_fallthru
    _
  // Predicated region
  $region90: #{decoder_block_pallas.1} parent=0 // pred_check
    _
  $region91: #{decoder_block_pallas.1} parent=0 // pred_check_branch
    %111 = sbr.rel (0) target = $region93
  $region92: #{decoder_block_pallas.1} parent=0 // pred_region
    _
  $region93: #{decoder_block_pallas.1} parent=0 // pred_fallthru
    _
  // Predicated region
  $region94: #{decoder_block_pallas.1} parent=0 // pred_check
    _
  $region95: #{decoder_block_pallas.1} parent=0 // pred_check_branch
    %113 = sbr.rel (0) target = $region97
  $region96: #{decoder_block_pallas.1} parent=0 // pred_region
    _
  $region97: #{decoder_block_pallas.1} parent=0 // pred_fallthru
    _
  // Predicated region
  $region98: #{decoder_block_pallas.1} parent=0 // pred_check
    _
  $region99: #{decoder_block_pallas.1} parent=0 // pred_check_branch
    %115 = sbr.rel (0) target = $region101
  $region100: #{decoder_block_pallas.1} parent=0 // pred_region
    _
  $region101: #{decoder_block_pallas.1} parent=0 // pred_fallthru
    _
  // Predicated region
  $region102: #{decoder_block_pallas.1} parent=0 // pred_check
    _
  $region103: #{decoder_block_pallas.1} parent=0 // pred_check_branch
    %117 = sbr.rel (0) target = $region105
  $region104: #{decoder_block_pallas.1} parent=0 // pred_region
    _
  $region105: #{decoder_block_pallas.1} parent=0 // pred_fallthru
    _
  // Predicated region
  $region106: #{decoder_block_pallas.1} parent=0 // pred_check
    _
  $region107: #{decoder_block_pallas.1} parent=0 // pred_check_branch
    %119 = sbr.rel (0) target = $region109
  $region108: #{decoder_block_pallas.1} parent=0 // pred_region
    _
  $region109: #{decoder_block_pallas.1} parent=0 // pred_fallthru
    _
  // Predicated region
  $region110: #{decoder_block_pallas.1} parent=0 // pred_check
    _
  $region111: #{decoder_block_pallas.1} parent=0 // pred_check_branch
    %121 = sbr.rel (0) target = $region113
  $region112: #{decoder_block_pallas.1} parent=0 // pred_region
    _
  $region113: #{decoder_block_pallas.1} parent=0 // pred_fallthru
    _
  // Predicated region
  $region114: #{decoder_block_pallas.1} parent=0 // pred_check
    _
  $region115: #{decoder_block_pallas.1} parent=0 // pred_check_branch
    %123 = sbr.rel (0) target = $region117
  $region116: #{decoder_block_pallas.1} parent=0 // pred_region
    _
  $region117: #{decoder_block_pallas.1} parent=0 // pred_fallthru
    _
  // Predicated region
  $region118: #{decoder_block_pallas.1} parent=0 // pred_check
    _
  $region119: #{decoder_block_pallas.1} parent=0 // pred_check_branch
    %125 = sbr.rel (0) target = $region121
  $region120: #{decoder_block_pallas.1} parent=0 // pred_region
    _
  $region121: #{decoder_block_pallas.1} parent=0 // pred_fallthru
    _
  %v126 = vld [vmem:[%s11] sm:$0xff]
  %v127 = vld [vmem:[%s11 + $0x8] sm:$0xff]
  %v128 = vld [vmem:[%s11 + $0x10] sm:$0xff]
  %v129 = vld [vmem:[%s11 + $0x18] sm:$0xff]
  %v130 = vld [vmem:[%s11 + $0x20] sm:$0x1]
  %v131 = vld [vmem:[%s11 + $0x28] sm:$0x1]
  %v132 = vld [vmem:[%s11 + $0x30] sm:$0x1]
  %v133 = vld [vmem:[%s11 + $0x38] sm:$0x1]
  %v134 = vld [vmem:[%s7] sm:$0xff]
  %v135 = vld [vmem:[%s7 + $0x8] sm:$0xff]
  %v136 = vld [vmem:[%s7 + $0x10] sm:$0xff]
  %v137 = vld [vmem:[%s7 + $0x18] sm:$0xff]
  %v138 = vld [vmem:[%s7 + $0x20] sm:$0xff]
  %v139 = vld [vmem:[%s7 + $0x28] sm:$0xff]
  %v140 = vld [vmem:[%s7 + $0x30] sm:$0xff]
  %v141 = vld [vmem:[%s7 + $0x38] sm:$0xff]
  %v142 = vld [vmem:[%s7 + $0x40] sm:$0xff]
  %v143 = vld [vmem:[%s7 + $0x48] sm:$0xff]
  %v144 = vld [vmem:[%s7 + $0x50] sm:$0xff]
  %v145 = vld [vmem:[%s7 + $0x58] sm:$0xff]
  %v146 = vld [vmem:[%s7 + $0x60] sm:$0xff]
  %v147 = vld [vmem:[%s7 + $0x68] sm:$0xff]
  %v148 = vld [vmem:[%s7 + $0x70] sm:$0xff]
  %v149 = vld [vmem:[%s7 + $0x78] sm:$0xff]
  %v150 = vld [vmem:[%s1] sm:$0xff]
  %v151 = vld [vmem:[%s1 + $0x8] sm:$0xff]
  %vm152 = vcmask 523264
  %v154 = vsel %vm152, %v150, 0
  %v157 = vsel %vm152, %v151, 0
  %159 = vmatprep.subr.mxu0 %v135
  %160 = vmatpush1.msra.mxu0 %v134
  %161 = vmatprep.subr.mxu0 %v137
  %162 = vmatpush1.msra.mxu0 %v136
  %163 = vmatprep.subr.mxu0 %v139
  %164 = vmatpush1.msra.mxu0 %v138
  %165 = vmatprep.subr.mxu0 %v141
  %166 = vmatpush1.msra.mxu0 %v140
  %167 = vmatprep.subr.mxu0 %v143
  %168 = vmatpush1.msra.mxu0 %v142
  %169 = vmatprep.subr.mxu0 %v145
  %170 = vmatpush1.msra.mxu0 %v144
  %171 = vmatprep.subr.mxu0 %v147
  %172 = vmatpush1.msra.mxu0 %v146
  %173 = vmatprep.subr.mxu0 %v149
  %174 = vmatpush1.msra.mxu0 %v148
  %175 = vmatprep.subr.mxu0 0.0
  %176 = vmatpush1.msra.mxu0 0.0
  %177 = vmatprep.subr.mxu0 0.0
  %178 = vmatpush1.msra.mxu0 0.0
  %179 = vmatprep.subr.mxu0 0.0
  %180 = vmatpush1.msra.mxu0 0.0
  %181 = vmatprep.subr.mxu0 0.0
  %182 = vmatpush1.msra.mxu0 0.0
  %183 = vmatprep.subr.mxu0 0.0
  %184 = vmatpush1.msra.mxu0 0.0
  %185 = vmatprep.subr.mxu0 0.0
  %186 = vmatpush1.msra.mxu0 0.0
  %187 = vmatprep.subr.mxu0 0.0
  %188 = vmatpush1.msra.mxu0 0.0
  %189 = vmatprep.subr.mxu0 0.0
  %190 = vmatpush1.msra.mxu0 0.0
  %191 = vmatprep.subr.mxu0 0.0
  %192 = vmatpush1.msra.mxu0 0.0
  %193 = vmatprep.subr.mxu0 0.0
  %194 = vmatpush1.msra.mxu0 0.0
  %195 = vmatprep.subr.mxu0 0.0
  %196 = vmatpush1.msra.mxu0 0.0
  %197 = vmatprep.subr.mxu0 0.0
  %198 = vmatpush1.msra.mxu0 0.0
  %199 = vmatprep.subr.mxu0 0.0
  %200 = vmatpush1.msra.mxu0 0.0
  %201 = vmatprep.subr.mxu0 0.0
  %202 = vmatpush1.msra.mxu0 0.0
  %203 = vmatprep.subr.mxu0 0.0
  %204 = vmatpush1.msra.mxu0 0.0
  %205 = vmatprep.subr.mxu0 0.0
  %206 = vmatpush1.msra.mxu0 0.0
  %207 = vmatprep.subr.mxu0 0.0
  %208 = vmatpush1.msra.mxu0 0.0
  %209 = vmatprep.subr.mxu0 0.0
  %210 = vmatpush1.msra.mxu0 0.0
  %211 = vmatprep.subr.mxu0 0.0
  %212 = vmatpush1.msra.mxu0 0.0
  %213 = vmatprep.subr.mxu0 0.0
  %214 = vmatpush1.msra.mxu0 0.0
  %215 = vmatprep.subr.mxu0 0.0
  %216 = vmatpush1.msra.mxu0 0.0
  %217 = vmatprep.subr.mxu0 0.0
  %218 = vmatpush1.msra.mxu0 0.0
  %219 = vmatprep.subr.mxu0 0.0
  %220 = vmatpush1.msra.mxu0 0.0
  %221 = vmatprep.subr.mxu0 0.0
  %222 = vmatpush1.msra.mxu0 0.0
  %223 = vmatprep.mubr.f32.mxu0 0.0
  %224 = vmatmul.mubr.f32.gmra.mrb[0].mxu0 %v154
  %v225 = vpop.f32.mrb[0].mxu0
  %v226 = vadd.f32 0.0, %v225
  %v227 = vpop.f32.mrb[0].mxu0
  %v228 = vadd.f32 0.0, %v227
  %229 = vmatprep.mubr.f32.mxu0 0.0
  %230 = vmatmul.mubr.f32.gmra.mrb[0].mxu0 %v157
  %v231 = vpop.f32.mrb[0].mxu0
  %v232 = vadd.f32 0.0, %v231
  %v233 = vpop.f32.mrb[0].mxu0
  %v234 = vadd.f32 0.0, %v233
  %235 = vdwg.mxu0
  %s236 = scalar_lea.vmem %s1, 16
  %v237 = vld [vmem:[%s236] sm:$0xff]
  %v238 = vld [vmem:[%s236 + $0x8] sm:$0xff]
  %v240 = vsel %vm152, %v237, 0
  %v243 = vsel %vm152, %v238, 0
  %245 = vmatprep.subr.mxu0 %v135
  %246 = vmatpush1.msra.mxu0 %v134
  %247 = vmatprep.subr.mxu0 %v137
  %248 = vmatpush1.msra.mxu0 %v136
  %249 = vmatprep.subr.mxu0 %v139
  %250 = vmatpush1.msra.mxu0 %v138
  %251 = vmatprep.subr.mxu0 %v141
  %252 = vmatpush1.msra.mxu0 %v140
  %253 = vmatprep.subr.mxu0 %v143
  %254 = vmatpush1.msra.mxu0 %v142
  %255 = vmatprep.subr.mxu0 %v145
  %256 = vmatpush1.msra.mxu0 %v144
  %257 = vmatprep.subr.mxu0 %v147
  %258 = vmatpush1.msra.mxu0 %v146
  %259 = vmatprep.subr.mxu0 %v149
  %260 = vmatpush1.msra.mxu0 %v148
  %261 = vmatprep.subr.mxu0 0.0
  %262 = vmatpush1.msra.mxu0 0.0
  %263 = vmatprep.subr.mxu0 0.0
  %264 = vmatpush1.msra.mxu0 0.0
  %265 = vmatprep.subr.mxu0 0.0
  %266 = vmatpush1.msra.mxu0 0.0
  %267 = vmatprep.subr.mxu0 0.0
  %268 = vmatpush1.msra.mxu0 0.0
  %269 = vmatprep.subr.mxu0 0.0
  %270 = vmatpush1.msra.mxu0 0.0
  %271 = vmatprep.subr.mxu0 0.0
  %272 = vmatpush1.msra.mxu0 0.0
  %273 = vmatprep.subr.mxu0 0.0
  %274 = vmatpush1.msra.mxu0 0.0
  %275 = vmatprep.subr.mxu0 0.0
  %276 = vmatpush1.msra.mxu0 0.0
  %277 = vmatprep.subr.mxu0 0.0
  %278 = vmatpush1.msra.mxu0 0.0
  %279 = vmatprep.subr.mxu0 0.0
  %280 = vmatpush1.msra.mxu0 0.0
  %281 = vmatprep.subr.mxu0 0.0
  %282 = vmatpush1.msra.mxu0 0.0
  %283 = vmatprep.subr.mxu0 0.0
  %284 = vmatpush1.msra.mxu0 0.0
  %285 = vmatprep.subr.mxu0 0.0
  %286 = vmatpush1.msra.mxu0 0.0
  %287 = vmatprep.subr.mxu0 0.0
  %288 = vmatpush1.msra.mxu0 0.0
  %289 = vmatprep.subr.mxu0 0.0
  %290 = vmatpush1.msra.mxu0 0.0
  %291 = vmatprep.subr.mxu0 0.0
  %292 = vmatpush1.msra.mxu0 0.0
  %293 = vmatprep.subr.mxu0 0.0
  %294 = vmatpush1.msra.mxu0 0.0
  %295 = vmatprep.subr.mxu0 0.0
  %296 = vmatpush1.msra.mxu0 0.0
  %297 = vmatprep.subr.mxu0 0.0
  %298 = vmatpush1.msra.mxu0 0.0
  %299 = vmatprep.subr.mxu0 0.0
  %300 = vmatpush1.msra.mxu0 0.0
  %301 = vmatprep.subr.mxu0 0.0
  %302 = vmatpush1.msra.mxu0 0.0
  %303 = vmatprep.subr.mxu0 0.0
  %304 = vmatpush1.msra.mxu0 0.0
  %305 = vmatprep.subr.mxu0 0.0
  %306 = vmatpush1.msra.mxu0 0.0
  %307 = vmatprep.subr.mxu0 0.0
  %308 = vmatpush1.msra.mxu0 0.0
  %309 = vmatprep.mubr.f32.mxu0 0.0
  %310 = vmatmul.mubr.f32.gmra.mrb[0].mxu0 %v240
  %v311 = vpop.f32.mrb[0].mxu0
  %v312 = vadd.f32 0.0, %v311
  %v313 = vpop.f32.mrb[0].mxu0
  %v314 = vadd.f32 0.0, %v313
  %315 = vmatprep.mubr.f32.mxu0 0.0
  %316 = vmatmul.mubr.f32.gmra.mrb[0].mxu0 %v243
  %v317 = vpop.f32.mrb[0].mxu0
  %v318 = vadd.f32 0.0, %v317
  %v319 = vpop.f32.mrb[0].mxu0
  %v320 = vadd.f32 0.0, %v319
  %321 = vdwg.mxu0
  %v322 = vld [vmem:[%s3] sm:$0xff]
  %v323 = vld [vmem:[%s3 + $0x8] sm:$0xff]
  %v324 = vld [vmem:[%s3 + $0x10] sm:$0xff]
  %v325 = vld [vmem:[%s3 + $0x18] sm:$0xff]
  %s326 = scalar_lea.vmem %s3, 32
  %v327 = vld [vmem:[%s326] sm:$0xff]
  %v328 = vld [vmem:[%s326 + $0x8] sm:$0xff]
  %v329 = vld [vmem:[%s326 + $0x10] sm:$0xff]
  %v330 = vld [vmem:[%s326 + $0x18] sm:$0xff]
  %v331 = vld [vmem:[%s13] sm:$0xff]
  %v332 = vld [vmem:[%s13 + $0x8] sm:$0xff]
  %v333 = vld [vmem:[%s15] sm:$0xff]
  %v334 = vld [vmem:[%s15 + $0x8] sm:$0xff]
  %v335 = vld [vmem:[%s15 + $0x10] sm:$0xff]
  %v336 = vld [vmem:[%s15 + $0x18] sm:$0xff]
  %v337 = vld [vmem:[%s17] sm:$0xff]
  %v338 = vld [vmem:[%s17 + $0x8] sm:$0xff]
  %v339 = vld [vmem:[%s17 + $0x10] sm:$0xff]
  %v340 = vld [vmem:[%s17 + $0x18] sm:$0xff]
  %v341 = vld [vmem:[%s19] sm:$0xff]
  %v342 = vld [vmem:[%s19 + $0x8] sm:$0xff]
  %v343 = vld [vmem:[%s19 + $0x10] sm:$0xff]
  %v344 = vld [vmem:[%s19 + $0x18] sm:$0xff]
  %v345 = vld [vmem:[%s19 + $0x20] sm:$0xff]
  %v346 = vld [vmem:[%s19 + $0x28] sm:$0xff]
  %v347 = vld [vmem:[%s19 + $0x30] sm:$0xff]
  %v348 = vld [vmem:[%s19 + $0x38] sm:$0xff]
  %v349 = vld [vmem:[%s19 + $0x40] sm:$0xff]
  %v350 = vld [vmem:[%s19 + $0x48] sm:$0xff]
  %vm351 = vcmask 130048
  %v353 = vsel %vm351, %v331, 0
  %v356 = vsel %vm351, %v332, 0
  %358 = vmatprep.subr.mxu0 %v323
  %359 = vmatpush1.msra.mxu0 %v322
  %360 = vmatprep.subr.mxu0 %v325
  %361 = vmatpush1.msra.mxu0 %v324
  %362 = vmatprep.subr.mxu0 0.0
  %363 = vmatpush1.msra.mxu0 0.0
  %364 = vmatprep.subr.mxu0 0.0
  %365 = vmatpush1.msra.mxu0 0.0
  %366 = vmatprep.subr.mxu0 0.0
  %367 = vmatpush1.msra.mxu0 0.0
  %368 = vmatprep.subr.mxu0 0.0
  %369 = vmatpush1.msra.mxu0 0.0
  %370 = vmatprep.subr.mxu0 0.0
  %371 = vmatpush1.msra.mxu0 0.0
  %372 = vmatprep.subr.mxu0 0.0
  %373 = vmatpush1.msra.mxu0 0.0
  %374 = vmatprep.subr.mxu0 0.0
  %375 = vmatpush1.msra.mxu0 0.0
  %376 = vmatprep.subr.mxu0 0.0
  %377 = vmatpush1.msra.mxu0 0.0
  %378 = vmatprep.subr.mxu0 0.0
  %379 = vmatpush1.msra.mxu0 0.0
  %380 = vmatprep.subr.mxu0 0.0
  %381 = vmatpush1.msra.mxu0 0.0
  %382 = vmatprep.subr.mxu0 0.0
  %383 = vmatpush1.msra.mxu0 0.0
  %384 = vmatprep.subr.mxu0 0.0
  %385 = vmatpush1.msra.mxu0 0.0
  %386 = vmatprep.subr.mxu0 0.0
  %387 = vmatpush1.msra.mxu0 0.0
  %388 = vmatprep.subr.mxu0 0.0
  %389 = vmatpush1.msra.mxu0 0.0
  %390 = vmatprep.subr.mxu0 0.0
  %391 = vmatpush1.msra.mxu0 0.0
  %392 = vmatprep.subr.mxu0 0.0
  %393 = vmatpush1.msra.mxu0 0.0
  %394 = vmatprep.subr.mxu0 0.0
  %395 = vmatpush1.msra.mxu0 0.0
  %396 = vmatprep.subr.mxu0 0.0
  %397 = vmatpush1.msra.mxu0 0.0
  %398 = vmatprep.subr.mxu0 0.0
  %399 = vmatpush1.msra.mxu0 0.0
  %400 = vmatprep.subr.mxu0 0.0
  %401 = vmatpush1.msra.mxu0 0.0
  %402 = vmatprep.subr.mxu0 0.0
  %403 = vmatpush1.msra.mxu0 0.0
  %404 = vmatprep.subr.mxu0 0.0
  %405 = vmatpush1.msra.mxu0 0.0
  %406 = vmatprep.subr.mxu0 0.0
  %407 = vmatpush1.msra.mxu0 0.0
  %408 = vmatprep.subr.mxu0 0.0
  %409 = vmatpush1.msra.mxu0 0.0
  %410 = vmatprep.subr.mxu0 0.0
  %411 = vmatpush1.msra.mxu0 0.0
  %412 = vmatprep.subr.mxu0 0.0
  %413 = vmatpush1.msra.mxu0 0.0
  %414 = vmatprep.subr.mxu0 0.0
  %415 = vmatpush1.msra.mxu0 0.0
  %416 = vmatprep.subr.mxu0 0.0
  %417 = vmatpush1.msra.mxu0 0.0
  %418 = vmatprep.subr.mxu0 0.0
  %419 = vmatpush1.msra.mxu0 0.0
  %420 = vmatprep.subr.mxu0 0.0
  %421 = vmatpush1.msra.mxu0 0.0
  %422 = vmatprep.mubr.f32.mxu0 0.0
  %423 = vmatmul.mubr.f32.gmra.mrb[0].mxu0 %v353
  %v424 = vpop.f32.mrb[0].mxu0
  %v425 = vadd.f32 0.0, %v424
  %v426 = vpop.f32.mrb[0].mxu0
  %v427 = vadd.f32 0.0, %v426
  %428 = vmatprep.mubr.f32.mxu0 0.0
  %429 = vmatmul.mubr.f32.gmra.mrb[0].mxu0 %v356
  %v430 = vpop.f32.mrb[0].mxu0
  %v431 = vadd.f32 0.0, %v430
  %v432 = vpop.f32.mrb[0].mxu0
  %v433 = vadd.f32 0.0, %v432
  %434 = vdwg.mxu0
  %435 = vmatprep.subr.mxu0 %v328
  %436 = vmatpush1.msra.mxu0 %v327
  %437 = vmatprep.subr.mxu0 %v330
  %438 = vmatpush1.msra.mxu0 %v329
  %439 = vmatprep.subr.mxu0 0.0
  %440 = vmatpush1.msra.mxu0 0.0
  %441 = vmatprep.subr.mxu0 0.0
  %442 = vmatpush1.msra.mxu0 0.0
  %443 = vmatprep.subr.mxu0 0.0
  %444 = vmatpush1.msra.mxu0 0.0
  %445 = vmatprep.subr.mxu0 0.0
  %446 = vmatpush1.msra.mxu0 0.0
  %447 = vmatprep.subr.mxu0 0.0
  %448 = vmatpush1.msra.mxu0 0.0
  %449 = vmatprep.subr.mxu0 0.0
  %450 = vmatpush1.msra.mxu0 0.0
  %451 = vmatprep.subr.mxu0 0.0
  %452 = vmatpush1.msra.mxu0 0.0
  %453 = vmatprep.subr.mxu0 0.0
  %454 = vmatpush1.msra.mxu0 0.0
  %455 = vmatprep.subr.mxu0 0.0
  %456 = vmatpush1.msra.mxu0 0.0
  %457 = vmatprep.subr.mxu0 0.0
  %458 = vmatpush1.msra.mxu0 0.0
  %459 = vmatprep.subr.mxu0 0.0
  %460 = vmatpush1.msra.mxu0 0.0
  %461 = vmatprep.subr.mxu0 0.0
  %462 = vmatpush1.msra.mxu0 0.0
  %463 = vmatprep.subr.mxu0 0.0
  %464 = vmatpush1.msra.mxu0 0.0
  %465 = vmatprep.subr.mxu0 0.0
  %466 = vmatpush1.msra.mxu0 0.0
  %467 = vmatprep.subr.mxu0 0.0
  %468 = vmatpush1.msra.mxu0 0.0
  %469 = vmatprep.subr.mxu0 0.0
  %470 = vmatpush1.msra.mxu0 0.0
  %471 = vmatprep.subr.mxu0 0.0
  %472 = vmatpush1.msra.mxu0 0.0
  %473 = vmatprep.subr.mxu0 0.0
  %474 = vmatpush1.msra.mxu0 0.0
  %475 = vmatprep.subr.mxu0 0.0
  %476 = vmatpush1.msra.mxu0 0.0
  %477 = vmatprep.subr.mxu0 0.0
  %478 = vmatpush1.msra.mxu0 0.0
  %479 = vmatprep.subr.mxu0 0.0
  %480 = vmatpush1.msra.mxu0 0.0
  %481 = vmatprep.subr.mxu0 0.0
  %482 = vmatpush1.msra.mxu0 0.0
  %483 = vmatprep.subr.mxu0 0.0
  %484 = vmatpush1.msra.mxu0 0.0
  %485 = vmatprep.subr.mxu0 0.0
  %486 = vmatpush1.msra.mxu0 0.0
  %487 = vmatprep.subr.mxu0 0.0
  %488 = vmatpush1.msra.mxu0 0.0
  %489 = vmatprep.subr.mxu0 0.0
  %490 = vmatpush1.msra.mxu0 0.0
  %491 = vmatprep.subr.mxu0 0.0
  %492 = vmatpush1.msra.mxu0 0.0
  %493 = vmatprep.subr.mxu0 0.0
  %494 = vmatpush1.msra.mxu0 0.0
  %495 = vmatprep.subr.mxu0 0.0
  %496 = vmatpush1.msra.mxu0 0.0
  %497 = vmatprep.subr.mxu0 0.0
  %498 = vmatpush1.msra.mxu0 0.0
  %499 = vmatprep.mubr.f32.mxu0 0.0
  %500 = vmatmul.mubr.f32.gmra.mrb[0].mxu0 %v353
  %v501 = vpop.f32.mrb[0].mxu0
  %v502 = vadd.f32 0.0, %v501
  %v503 = vpop.f32.mrb[0].mxu0
  %v504 = vadd.f32 0.0, %v503
  %505 = vmatprep.mubr.f32.mxu0 0.0
  %506 = vmatmul.mubr.f32.gmra.mrb[0].mxu0 %v356
  %v507 = vpop.f32.mrb[0].mxu0
  %v508 = vadd.f32 0.0, %v507
  %v509 = vpop.f32.mrb[0].mxu0
  %v510 = vadd.f32 0.0, %v509
  %511 = vdwg.mxu0
  %v512 = vadd.f32 %v425, %v427
  %v513 = vadd.f32 %v512, %v502
  %v514 = vadd.f32 %v513, %v504
  %515 = vadd.xlane.f32.xlu0 %v514
  %v516 = vpop.xlane.xlu0 %515
  %v517 = vadd.f32 %v431, %v433
  %v518 = vadd.f32 %v517, %v508
  %v519 = vadd.f32 %v518, %v510
  %520 = vadd.xlane.f32.xlu0 %v519
  %v521 = vpop.xlane.xlu0 %520
  %v522 = vrcp.pop 512.0
  %v523 = vmul.f32 %v516, %v522
  %v524 = vmul.f32 %v521, %v522
  %v525 = vsub.f32 %v425, %v523
  %v526 = vsub.f32 %v427, %v523
  %v527 = vsub.f32 %v502, %v523
  %v528 = vsub.f32 %v504, %v523
  %v529 = vsub.f32 %v431, %v524
  %v530 = vsub.f32 %v433, %v524
  %v531 = vsub.f32 %v508, %v524
  %v532 = vsub.f32 %v510, %v524
  %v533 = vmul.f32 %v525, %v525
  %v534 = vmul.f32 %v526, %v526
  %v535 = vmul.f32 %v527, %v527
  %v536 = vmul.f32 %v528, %v528
  %v537 = vmul.f32 %v529, %v529
  %v538 = vmul.f32 %v530, %v530
  %v539 = vmul.f32 %v531, %v531
  %v540 = vmul.f32 %v532, %v532
  %v541 = vadd.f32 %v533, %v534
  %v542 = vadd.f32 %v541, %v535
  %v543 = vadd.f32 %v542, %v536
  %544 = vadd.xlane.f32.xlu0 %v543
  %v545 = vpop.xlane.xlu0 %544
  %v546 = vadd.f32 %v537, %v538
  %v547 = vadd.f32 %v546, %v539
  %v548 = vadd.f32 %v547, %v540
  %549 = vadd.xlane.f32.xlu0 %v548
  %v550 = vpop.xlane.xlu0 %549
  %v551 = vmul.f32 %v545, %v522
  %v552 = vmul.f32 %v550, %v522
  %v553 = vadd.f32 %v551, 1e-05
  %v554 = vadd.f32 %v552, 1e-05
  %v555 = vrsqrt.pop %v553
  %v556 = vrsqrt.pop %v554
  %v557 = vmul.f32 %v341, %v555
  %v558 = vmul.f32 %v342, %v556
  %560 = vset.pattern.permute.xlu0 0
  %561 = vperm.xlu0 %560, %v557
  %v562 = vpop.permute.xlu0 %561
  %565 = vset.pattern.permute.xlu0 0
  %566 = vperm.xlu0 %565, %v558
  %v567 = vpop.permute.xlu0 %566
  %v569 = vmul.f32 %v525, %v562
  %v570 = vmul.f32 %v526, %v562
  %v571 = vmul.f32 %v527, %v562
  %v572 = vmul.f32 %v528, %v562
  %v573 = vmul.f32 %v529, %v567
  %v574 = vmul.f32 %v530, %v567
  %v575 = vmul.f32 %v531, %v567
  %v576 = vmul.f32 %v532, %v567
  %578 = vset.pattern.permute.xlu0 1
  %579 = vperm.xlu0 %578, %v341
  %v580 = vpop.permute.xlu0 %579
  %583 = vset.pattern.permute.xlu0 1
  %584 = vperm.xlu0 %583, %v342
  %v585 = vpop.permute.xlu0 %584
  %v587 = vadd.f32 %v569, %v580
  %v588 = vadd.f32 %v570, %v580
  %v589 = vadd.f32 %v571, %v580
  %v590 = vadd.f32 %v572, %v580
  %v591 = vadd.f32 %v573, %v585
  %v592 = vadd.f32 %v574, %v585
  %v593 = vadd.f32 %v575, %v585
  %v594 = vadd.f32 %v576, %v585
  %v595 = vxor.u32 %v587, 2147483648
  %v596 = vxor.u32 %v588, 2147483648
  %v597 = vxor.u32 %v589, 2147483648
  %v598 = vxor.u32 %v590, 2147483648
  %v599 = vxor.u32 %v591, 2147483648
  %v600 = vxor.u32 %v592, 2147483648
  %v601 = vxor.u32 %v593, 2147483648
  %v602 = vxor.u32 %v594, 2147483648
  %v603 = vmul.f32 %v595, 1.442695
  %v604 = vpow.pop %v603
  %v605 = vmul.f32 %v596, 1.442695
  %v606 = vpow.pop %v605
  %v607 = vmul.f32 %v597, 1.442695
  %v608 = vpow.pop %v607
  %v609 = vmul.f32 %v598, 1.442695
  %v610 = vpow.pop %v609
  %v611 = vmul.f32 %v599, 1.442695
  %v612 = vpow.pop %v611
  %v613 = vmul.f32 %v600, 1.442695
  %v614 = vpow.pop %v613
  %v615 = vmul.f32 %v601, 1.442695
  %v616 = vpow.pop %v615
  %v617 = vmul.f32 %v602, 1.442695
  %v618 = vpow.pop %v617
  %v619 = vadd.f32 %v604, 1.0
  %v620 = vadd.f32 %v606, 1.0
  %v621 = vadd.f32 %v608, 1.0
  %v622 = vadd.f32 %v610, 1.0
  %v623 = vadd.f32 %v612, 1.0
  %v624 = vadd.f32 %v614, 1.0
  %v625 = vadd.f32 %v616, 1.0
  %v626 = vadd.f32 %v618, 1.0
  %v627 = vrcp.pop %v619
  %v628 = vmul.f32 1.0, %v627
  %v629 = vrcp.pop %v620
  %v630 = vmul.f32 1.0, %v629
  %v631 = vrcp.pop %v621
  %v632 = vmul.f32 1.0, %v631
  %v633 = vrcp.pop %v622
  %v634 = vmul.f32 1.0, %v633
  %v635 = vrcp.pop %v623
  %v636 = vmul.f32 1.0, %v635
  %v637 = vrcp.pop %v624
  %v638 = vmul.f32 1.0, %v637
  %v639 = vrcp.pop %v625
  %v640 = vmul.f32 1.0, %v639
  %v641 = vrcp.pop %v626
  %v642 = vmul.f32 1.0, %v641
  %v643 = vmul.f32 %v587, %v628
  %v644 = vmul.f32 %v588, %v630
  %v645 = vmul.f32 %v589, %v632
  %v646 = vmul.f32 %v590, %v634
  %v647 = vmul.f32 %v591, %v636
  %v648 = vmul.f32 %v592, %v638
  %v649 = vmul.f32 %v593, %v640
  %v650 = vmul.f32 %v594, %v642
  %652 = vset.pattern.permute.xlu0 4
  %653 = vperm.xlu0 %652, %v333
  %v654 = vpop.permute.xlu0 %653
  %657 = vset.pattern.permute.xlu0 4
  %658 = vperm.xlu0 %657, %v334
  %v659 = vpop.permute.xlu0 %658
  %662 = vset.pattern.permute.xlu0 4
  %663 = vperm.xlu0 %662, %v335
  %v664 = vpop.permute.xlu0 %663
  %667 = vset.pattern.permute.xlu0 4
  %668 = vperm.xlu0 %667, %v336
  %v669 = vpop.permute.xlu0 %668
  %v671 = vmul.f32 %v226, %v654
  %v672 = vmul.f32 %v228, %v654
  %v673 = vmul.f32 %v312, %v654
  %v674 = vmul.f32 %v314, %v654
  %v675 = vmul.f32 %v232, %v659
  %v676 = vmul.f32 %v234, %v659
  %v677 = vmul.f32 %v318, %v659
  %v678 = vmul.f32 %v320, %v659
  %v679 = vmul.f32 %v643, %v664
  %v680 = vmul.f32 %v644, %v664
  %v681 = vmul.f32 %v645, %v664
  %v682 = vmul.f32 %v646, %v664
  %v683 = vmul.f32 %v647, %v669
  %v684 = vmul.f32 %v648, %v669
  %v685 = vmul.f32 %v649, %v669
  %v686 = vmul.f32 %v650, %v669
  %691 = vrot.lane.b32.xlu0 %v314, 17
  %v692 = vpop.permute.xlu0 %691
  %693 = vrot.lane.b32.xlu0 %v320, 17
  %v694 = vpop.permute.xlu0 %693
  %695 = vrot.lane.b32.xlu0 %v646, 17
  %v696 = vpop.permute.xlu0 %695
  %697 = vrot.lane.b32.xlu0 %v650, 17
  %v698 = vpop.permute.xlu0 %697
  %715 = vrot.lane.b32.xlu0 %v226, 17
  %v716 = vpop.permute.xlu0 %715
  %717 = vrot.lane.b32.xlu0 %v228, 17
  %v718 = vpop.permute.xlu0 %717
  %719 = vrot.lane.b32.xlu0 %v312, 17
  %v720 = vpop.permute.xlu0 %719
  %721 = vrot.lane.b32.xlu0 %v232, 17
  %v722 = vpop.permute.xlu0 %721
  %723 = vrot.lane.b32.xlu0 %v234, 17
  %v724 = vpop.permute.xlu0 %723
  %725 = vrot.lane.b32.xlu0 %v318, 17
  %v726 = vpop.permute.xlu0 %725
  %727 = vrot.lane.b32.xlu0 %v643, 17
  %v728 = vpop.permute.xlu0 %727
  %729 = vrot.lane.b32.xlu0 %v644, 17
  %v730 = vpop.permute.xlu0 %729
  %731 = vrot.lane.b32.xlu0 %v645, 17
  %v732 = vpop.permute.xlu0 %731
  %733 = vrot.lane.b32.xlu0 %v647, 17
  %v734 = vpop.permute.xlu0 %733
  %735 = vrot.lane.b32.xlu0 %v648, 17
  %v736 = vpop.permute.xlu0 %735
  %737 = vrot.lane.b32.xlu0 %v649, 17
  %v738 = vpop.permute.xlu0 %737
  %vm739 = vcmask 138240
  %v740 = vsel %vm739, %v716, %v718
  %v741 = vsel %vm739, %v718, %v720
  %v742 = vsel %vm739, %v720, %v692
  %v743 = vsel %vm739, %v722, %v724
  %v744 = vsel %vm739, %v724, %v726
  %v745 = vsel %vm739, %v726, %v694
  %v746 = vsel %vm739, %v728, %v730
  %v747 = vsel %vm739, %v730, %v732
  %v748 = vsel %vm739, %v732, %v696
  %v749 = vsel %vm739, %v734, %v736
  %v750 = vsel %vm739, %v736, %v738
  %v751 = vsel %vm739, %v738, %v698
  %v768 = vsel %vm739, %v692, %v716
  %v769 = vsel %vm739, %v694, %v722
  %v770 = vsel %vm739, %v696, %v728
  %v771 = vsel %vm739, %v698, %v734
  %772 = vset.pattern.permute.xlu0 0
  %773 = vperm.xlu0 %772, %v333
  %v774 = vpop.permute.xlu0 %773
  %776 = vset.pattern.permute.xlu0 0
  %777 = vperm.xlu0 %776, %v334
  %v778 = vpop.permute.xlu0 %777
  %780 = vset.pattern.permute.xlu0 0
  %781 = vperm.xlu0 %780, %v335
  %v782 = vpop.permute.xlu0 %781
  %784 = vset.pattern.permute.xlu0 0
  %785 = vperm.xlu0 %784, %v336
  %v786 = vpop.permute.xlu0 %785
  %v788 = vmul.f32 %v768, %v774
  %v789 = vmul.f32 %v740, %v774
  %v790 = vmul.f32 %v741, %v774
  %v791 = vmul.f32 %v742, %v774
  %v792 = vmul.f32 %v769, %v778
  %v793 = vmul.f32 %v743, %v778
  %v794 = vmul.f32 %v744, %v778
  %v795 = vmul.f32 %v745, %v778
  %v796 = vmul.f32 %v770, %v782
  %v797 = vmul.f32 %v746, %v782
  %v798 = vmul.f32 %v747, %v782
  %v799 = vmul.f32 %v748, %v782
  %v800 = vmul.f32 %v771, %v786
  %v801 = vmul.f32 %v749, %v786
  %v802 = vmul.f32 %v750, %v786
  %v803 = vmul.f32 %v751, %v786
  %v804 = vlaneseq
  %v805 = vshrl.u32 %v804, 7
  %v806 = vsub.s32 0, %v805
  %v807 = vrot.slane %v126, %v806
  %v808 = vlaneseq
  %v809 = vshrl.u32 %v808, 7
  %v810 = vsub.s32 0, %v809
  %v811 = vrot.slane %v127, %v810
  %v812 = vlaneseq
  %v813 = vshrl.u32 %v812, 7
  %v814 = vsub.s32 0, %v813
  %v815 = vrot.slane %v128, %v814
  %v816 = vlaneseq
  %v817 = vshrl.u32 %v816, 7
  %v818 = vsub.s32 0, %v817
  %v819 = vrot.slane %v129, %v818
  %v820 = vmul.f32 %v788, %v807
  %v821 = vmul.f32 %v789, %v811
  %v822 = vmul.f32 %v790, %v815
  %v823 = vmul.f32 %v791, %v819
  %v824 = vmul.f32 %v792, %v807
  %v825 = vmul.f32 %v793, %v811
  %v826 = vmul.f32 %v794, %v815
  %v827 = vmul.f32 %v795, %v819
  %v828 = vmul.f32 %v796, %v807
  %v829 = vmul.f32 %v797, %v811
  %v830 = vmul.f32 %v798, %v815
  %v831 = vmul.f32 %v799, %v819
  %v832 = vmul.f32 %v800, %v807
  %v833 = vmul.f32 %v801, %v811
  %v834 = vmul.f32 %v802, %v815
  %v835 = vmul.f32 %v803, %v819
  %v836 = vadd.f32 %v671, %v820
  %v837 = vadd.f32 %v672, %v821
  %v838 = vadd.f32 %v673, %v822
  %v839 = vadd.f32 %v674, %v823
  %v840 = vadd.f32 %v675, %v824
  %v841 = vadd.f32 %v676, %v825
  %v842 = vadd.f32 %v677, %v826
  %v843 = vadd.f32 %v678, %v827
  %v844 = vadd.f32 %v679, %v828
  %v845 = vadd.f32 %v680, %v829
  %v846 = vadd.f32 %v681, %v830
  %v847 = vadd.f32 %v682, %v831
  %v848 = vadd.f32 %v683, %v832
  %v849 = vadd.f32 %v684, %v833
  %v850 = vadd.f32 %v685, %v834
  %v851 = vadd.f32 %v686, %v835
  %852 = vrot.lane.b32.xlu0 %v314, 16
  %v853 = vpop.permute.xlu0 %852
  %854 = vrot.lane.b32.xlu0 %v320, 16
  %v855 = vpop.permute.xlu0 %854
  %856 = vrot.lane.b32.xlu0 %v646, 16
  %v857 = vpop.permute.xlu0 %856
  %858 = vrot.lane.b32.xlu0 %v650, 16
  %v859 = vpop.permute.xlu0 %858
  %864 = vrot.lane.b32.xlu0 %v226, 16
  %v865 = vpop.permute.xlu0 %864
  %866 = vrot.lane.b32.xlu0 %v228, 16
  %v867 = vpop.permute.xlu0 %866
  %868 = vrot.lane.b32.xlu0 %v312, 16
  %v869 = vpop.permute.xlu0 %868
  %870 = vrot.lane.b32.xlu0 %v232, 16
  %v871 = vpop.permute.xlu0 %870
  %872 = vrot.lane.b32.xlu0 %v234, 16
  %v873 = vpop.permute.xlu0 %872
  %874 = vrot.lane.b32.xlu0 %v318, 16
  %v875 = vpop.permute.xlu0 %874
  %876 = vrot.lane.b32.xlu0 %v643, 16
  %v877 = vpop.permute.xlu0 %876
  %878 = vrot.lane.b32.xlu0 %v644, 16
  %v879 = vpop.permute.xlu0 %878
  %880 = vrot.lane.b32.xlu0 %v645, 16
  %v881 = vpop.permute.xlu0 %880
  %882 = vrot.lane.b32.xlu0 %v647, 16
  %v883 = vpop.permute.xlu0 %882
  %884 = vrot.lane.b32.xlu0 %v648, 16
  %v885 = vpop.permute.xlu0 %884
  %886 = vrot.lane.b32.xlu0 %v649, 16
  %v887 = vpop.permute.xlu0 %886
  %v888 = vsel %vm351, %v865, %v867
  %v889 = vsel %vm351, %v867, %v869
  %v890 = vsel %vm351, %v869, %v853
  %v891 = vsel %vm351, %v871, %v873
  %v892 = vsel %vm351, %v873, %v875
  %v893 = vsel %vm351, %v875, %v855
  %v894 = vsel %vm351, %v877, %v879
  %v895 = vsel %vm351, %v879, %v881
  %v896 = vsel %vm351, %v881, %v857
  %v897 = vsel %vm351, %v883, %v885
  %v898 = vsel %vm351, %v885, %v887
  %v899 = vsel %vm351, %v887, %v859
  %v916 = vsel %vm351, %v853, %v865
  %v917 = vsel %vm351, %v855, %v871
  %v918 = vsel %vm351, %v857, %v877
  %v919 = vsel %vm351, %v859, %v883
  %920 = vset.pattern.permute.xlu0 1
  %921 = vperm.xlu0 %920, %v333
  %v922 = vpop.permute.xlu0 %921
  %924 = vset.pattern.permute.xlu0 1
  %925 = vperm.xlu0 %924, %v334
  %v926 = vpop.permute.xlu0 %925
  %928 = vset.pattern.permute.xlu0 1
  %929 = vperm.xlu0 %928, %v335
  %v930 = vpop.permute.xlu0 %929
  %932 = vset.pattern.permute.xlu0 1
  %933 = vperm.xlu0 %932, %v336
  %v934 = vpop.permute.xlu0 %933
  %v936 = vmul.f32 %v916, %v922
  %v937 = vmul.f32 %v888, %v922
  %v938 = vmul.f32 %v889, %v922
  %v939 = vmul.f32 %v890, %v922
  %v940 = vmul.f32 %v917, %v926
  %v941 = vmul.f32 %v891, %v926
  %v942 = vmul.f32 %v892, %v926
  %v943 = vmul.f32 %v893, %v926
  %v944 = vmul.f32 %v918, %v930
  %v945 = vmul.f32 %v894, %v930
  %v946 = vmul.f32 %v895, %v930
  %v947 = vmul.f32 %v896, %v930
  %v948 = vmul.f32 %v919, %v934
  %v949 = vmul.f32 %v897, %v934
  %v950 = vmul.f32 %v898, %v934
  %v951 = vmul.f32 %v899, %v934
  %v952 = vlaneseq
  %v953 = vshrl.u32 %v952, 7
  %v954 = vsub.s32 1, %v953
  %v955 = vrot.slane %v126, %v954
  %v956 = vlaneseq
  %v957 = vshrl.u32 %v956, 7
  %v958 = vsub.s32 1, %v957
  %v959 = vrot.slane %v127, %v958
  %v960 = vlaneseq
  %v961 = vshrl.u32 %v960, 7
  %v962 = vsub.s32 1, %v961
  %v963 = vrot.slane %v128, %v962
  %v964 = vlaneseq
  %v965 = vshrl.u32 %v964, 7
  %v966 = vsub.s32 1, %v965
  %v967 = vrot.slane %v129, %v966
  %v968 = vmul.f32 %v936, %v955
  %v969 = vmul.f32 %v937, %v959
  %v970 = vmul.f32 %v938, %v963
  %v971 = vmul.f32 %v939, %v967
  %v972 = vmul.f32 %v940, %v955
  %v973 = vmul.f32 %v941, %v959
  %v974 = vmul.f32 %v942, %v963
  %v975 = vmul.f32 %v943, %v967
  %v976 = vmul.f32 %v944, %v955
  %v977 = vmul.f32 %v945, %v959
  %v978 = vmul.f32 %v946, %v963
  %v979 = vmul.f32 %v947, %v967
  %v980 = vmul.f32 %v948, %v955
  %v981 = vmul.f32 %v949, %v959
  %v982 = vmul.f32 %v950, %v963
  %v983 = vmul.f32 %v951, %v967
  %v984 = vadd.f32 %v836, %v968
  %v985 = vadd.f32 %v837, %v969
  %v986 = vadd.f32 %v838, %v970
  %v987 = vadd.f32 %v839, %v971
  %v988 = vadd.f32 %v840, %v972
  %v989 = vadd.f32 %v841, %v973
  %v990 = vadd.f32 %v842, %v974
  %v991 = vadd.f32 %v843, %v975
  %v992 = vadd.f32 %v844, %v976
  %v993 = vadd.f32 %v845, %v977
  %v994 = vadd.f32 %v846, %v978
  %v995 = vadd.f32 %v847, %v979
  %v996 = vadd.f32 %v848, %v980
  %v997 = vadd.f32 %v849, %v981
  %v998 = vadd.f32 %v850, %v982
  %v999 = vadd.f32 %v851, %v983
  %1000 = vrot.lane.b32.xlu0 %v314, 15
  %v1001 = vpop.permute.xlu0 %1000
  %1002 = vrot.lane.b32.xlu0 %v320, 15
  %v1003 = vpop.permute.xlu0 %1002
  %1004 = vrot.lane.b32.xlu0 %v646, 15
  %v1005 = vpop.permute.xlu0 %1004
  %1006 = vrot.lane.b32.xlu0 %v650, 15
  %v1007 = vpop.permute.xlu0 %1006
  %1012 = vrot.lane.b32.xlu0 %v226, 15
  %v1013 = vpop.permute.xlu0 %1012
  %1014 = vrot.lane.b32.xlu0 %v228, 15
  %v1015 = vpop.permute.xlu0 %1014
  %1016 = vrot.lane.b32.xlu0 %v312, 15
  %v1017 = vpop.permute.xlu0 %1016
  %1018 = vrot.lane.b32.xlu0 %v232, 15
  %v1019 = vpop.permute.xlu0 %1018
  %1020 = vrot.lane.b32.xlu0 %v234, 15
  %v1021 = vpop.permute.xlu0 %1020
  %1022 = vrot.lane.b32.xlu0 %v318, 15
  %v1023 = vpop.permute.xlu0 %1022
  %1024 = vrot.lane.b32.xlu0 %v643, 15
  %v1025 = vpop.permute.xlu0 %1024
  %1026 = vrot.lane.b32.xlu0 %v644, 15
  %v1027 = vpop.permute.xlu0 %1026
  %1028 = vrot.lane.b32.xlu0 %v645, 15
  %v1029 = vpop.permute.xlu0 %1028
  %1030 = vrot.lane.b32.xlu0 %v647, 15
  %v1031 = vpop.permute.xlu0 %1030
  %1032 = vrot.lane.b32.xlu0 %v648, 15
  %v1033 = vpop.permute.xlu0 %1032
  %1034 = vrot.lane.b32.xlu0 %v649, 15
  %v1035 = vpop.permute.xlu0 %1034
  %vm1036 = vcmask 121856
  %v1037 = vsel %vm1036, %v1013, %v1015
  %v1038 = vsel %vm1036, %v1015, %v1017
  %v1039 = vsel %vm1036, %v1017, %v1001
  %v1040 = vsel %vm1036, %v1019, %v1021
  %v1041 = vsel %vm1036, %v1021, %v1023
  %v1042 = vsel %vm1036, %v1023, %v1003
  %v1043 = vsel %vm1036, %v1025, %v1027
  %v1044 = vsel %vm1036, %v1027, %v1029
  %v1045 = vsel %vm1036, %v1029, %v1005
  %v1046 = vsel %vm1036, %v1031, %v1033
  %v1047 = vsel %vm1036, %v1033, %v1035
  %v1048 = vsel %vm1036, %v1035, %v1007
  %v1065 = vsel %vm1036, %v1001, %v1013
  %v1066 = vsel %vm1036, %v1003, %v1019
  %v1067 = vsel %vm1036, %v1005, %v1025
  %v1068 = vsel %vm1036, %v1007, %v1031
  %1069 = vset.pattern.permute.xlu0 2
  %1070 = vperm.xlu0 %1069, %v333
  %v1071 = vpop.permute.xlu0 %1070
  %1073 = vset.pattern.permute.xlu0 2
  %1074 = vperm.xlu0 %1073, %v334
  %v1075 = vpop.permute.xlu0 %1074
  %1077 = vset.pattern.permute.xlu0 2
  %1078 = vperm.xlu0 %1077, %v335
  %v1079 = vpop.permute.xlu0 %1078
  %1081 = vset.pattern.permute.xlu0 2
  %1082 = vperm.xlu0 %1081, %v336
  %v1083 = vpop.permute.xlu0 %1082
  %v1085 = vmul.f32 %v1065, %v1071
  %v1086 = vmul.f32 %v1037, %v1071
  %v1087 = vmul.f32 %v1038, %v1071
  %v1088 = vmul.f32 %v1039, %v1071
  %v1089 = vmul.f32 %v1066, %v1075
  %v1090 = vmul.f32 %v1040, %v1075
  %v1091 = vmul.f32 %v1041, %v1075
  %v1092 = vmul.f32 %v1042, %v1075
  %v1093 = vmul.f32 %v1067, %v1079
  %v1094 = vmul.f32 %v1043, %v1079
  %v1095 = vmul.f32 %v1044, %v1079
  %v1096 = vmul.f32 %v1045, %v1079
  %v1097 = vmul.f32 %v1068, %v1083
  %v1098 = vmul.f32 %v1046, %v1083
  %v1099 = vmul.f32 %v1047, %v1083
  %v1100 = vmul.f32 %v1048, %v1083
  %v1101 = vlaneseq
  %v1102 = vshrl.u32 %v1101, 7
  %v1103 = vsub.s32 2, %v1102
  %v1104 = vrot.slane %v126, %v1103
  %v1105 = vlaneseq
  %v1106 = vshrl.u32 %v1105, 7
  %v1107 = vsub.s32 2, %v1106
  %v1108 = vrot.slane %v127, %v1107
  %v1109 = vlaneseq
  %v1110 = vshrl.u32 %v1109, 7
  %v1111 = vsub.s32 2, %v1110
  %v1112 = vrot.slane %v128, %v1111
  %v1113 = vlaneseq
  %v1114 = vshrl.u32 %v1113, 7
  %v1115 = vsub.s32 2, %v1114
  %v1116 = vrot.slane %v129, %v1115
  %v1117 = vmul.f32 %v1085, %v1104
  %v1118 = vmul.f32 %v1086, %v1108
  %v1119 = vmul.f32 %v1087, %v1112
  %v1120 = vmul.f32 %v1088, %v1116
  %v1121 = vmul.f32 %v1089, %v1104
  %v1122 = vmul.f32 %v1090, %v1108
  %v1123 = vmul.f32 %v1091, %v1112
  %v1124 = vmul.f32 %v1092, %v1116
  %v1125 = vmul.f32 %v1093, %v1104
  %v1126 = vmul.f32 %v1094, %v1108
  %v1127 = vmul.f32 %v1095, %v1112
  %v1128 = vmul.f32 %v1096, %v1116
  %v1129 = vmul.f32 %v1097, %v1104
  %v1130 = vmul.f32 %v1098, %v1108
  %v1131 = vmul.f32 %v1099, %v1112
  %v1132 = vmul.f32 %v1100, %v1116
  %v1133 = vadd.f32 %v984, %v1117
  %v1134 = vadd.f32 %v985, %v1118
  %v1135 = vadd.f32 %v986, %v1119
  %v1136 = vadd.f32 %v987, %v1120
  %v1137 = vadd.f32 %v988, %v1121
  %v1138 = vadd.f32 %v989, %v1122
  %v1139 = vadd.f32 %v990, %v1123
  %v1140 = vadd.f32 %v991, %v1124
  %v1141 = vadd.f32 %v992, %v1125
  %v1142 = vadd.f32 %v993, %v1126
  %v1143 = vadd.f32 %v994, %v1127
  %v1144 = vadd.f32 %v995, %v1128
  %v1145 = vadd.f32 %v996, %v1129
  %v1146 = vadd.f32 %v997, %v1130
  %v1147 = vadd.f32 %v998, %v1131
  %v1148 = vadd.f32 %v999, %v1132
  %1149 = vrot.lane.b32.xlu0 %v314, 1
  %v1150 = vpop.permute.xlu0 %1149
  %1151 = vrot.lane.b32.xlu0 %v320, 1
  %v1152 = vpop.permute.xlu0 %1151
  %1153 = vrot.lane.b32.xlu0 %v646, 1
  %v1154 = vpop.permute.xlu0 %1153
  %1155 = vrot.lane.b32.xlu0 %v650, 1
  %v1156 = vpop.permute.xlu0 %1155
  %1161 = vrot.lane.b32.xlu0 %v226, 1
  %v1162 = vpop.permute.xlu0 %1161
  %1163 = vrot.lane.b32.xlu0 %v228, 1
  %v1164 = vpop.permute.xlu0 %1163
  %1165 = vrot.lane.b32.xlu0 %v312, 1
  %v1166 = vpop.permute.xlu0 %1165
  %1167 = vrot.lane.b32.xlu0 %v232, 1
  %v1168 = vpop.permute.xlu0 %1167
  %1169 = vrot.lane.b32.xlu0 %v234, 1
  %v1170 = vpop.permute.xlu0 %1169
  %1171 = vrot.lane.b32.xlu0 %v318, 1
  %v1172 = vpop.permute.xlu0 %1171
  %1173 = vrot.lane.b32.xlu0 %v643, 1
  %v1174 = vpop.permute.xlu0 %1173
  %1175 = vrot.lane.b32.xlu0 %v644, 1
  %v1176 = vpop.permute.xlu0 %1175
  %1177 = vrot.lane.b32.xlu0 %v645, 1
  %v1178 = vpop.permute.xlu0 %1177
  %1179 = vrot.lane.b32.xlu0 %v647, 1
  %v1180 = vpop.permute.xlu0 %1179
  %1181 = vrot.lane.b32.xlu0 %v648, 1
  %v1182 = vpop.permute.xlu0 %1181
  %1183 = vrot.lane.b32.xlu0 %v649, 1
  %v1184 = vpop.permute.xlu0 %1183
  %vm1185 = vcmask 7168
  %v1186 = vsel %vm1185, %v1162, %v1164
  %v1187 = vsel %vm1185, %v1164, %v1166
  %v1188 = vsel %vm1185, %v1166, %v1150
  %v1189 = vsel %vm1185, %v1168, %v1170
  %v1190 = vsel %vm1185, %v1170, %v1172
  %v1191 = vsel %vm1185, %v1172, %v1152
  %v1192 = vsel %vm1185, %v1174, %v1176
  %v1193 = vsel %vm1185, %v1176, %v1178
  %v1194 = vsel %vm1185, %v1178, %v1154
  %v1195 = vsel %vm1185, %v1180, %v1182
  %v1196 = vsel %vm1185, %v1182, %v1184
  %v1197 = vsel %vm1185, %v1184, %v1156
  %v1214 = vsel %vm1185, %v1150, %v1162
  %v1215 = vsel %vm1185, %v1152, %v1168
  %v1216 = vsel %vm1185, %v1154, %v1174
  %v1217 = vsel %vm1185, %v1156, %v1180
  %1218 = vset.pattern.permute.xlu0 3
  %1219 = vperm.xlu0 %1218, %v333
  %v1220 = vpop.permute.xlu0 %1219
  %1222 = vset.pattern.permute.xlu0 3
  %1223 = vperm.xlu0 %1222, %v334
  %v1224 = vpop.permute.xlu0 %1223
  %1226 = vset.pattern.permute.xlu0 3
  %1227 = vperm.xlu0 %1226, %v335
  %v1228 = vpop.permute.xlu0 %1227
  %1230 = vset.pattern.permute.xlu0 3
  %1231 = vperm.xlu0 %1230, %v336
  %v1232 = vpop.permute.xlu0 %1231
  %v1234 = vmul.f32 %v1214, %v1220
  %v1235 = vmul.f32 %v1186, %v1220
  %v1236 = vmul.f32 %v1187, %v1220
  %v1237 = vmul.f32 %v1188, %v1220
  %v1238 = vmul.f32 %v1215, %v1224
  %v1239 = vmul.f32 %v1189, %v1224
  %v1240 = vmul.f32 %v1190, %v1224
  %v1241 = vmul.f32 %v1191, %v1224
  %v1242 = vmul.f32 %v1216, %v1228
  %v1243 = vmul.f32 %v1192, %v1228
  %v1244 = vmul.f32 %v1193, %v1228
  %v1245 = vmul.f32 %v1194, %v1228
  %v1246 = vmul.f32 %v1217, %v1232
  %v1247 = vmul.f32 %v1195, %v1232
  %v1248 = vmul.f32 %v1196, %v1232
  %v1249 = vmul.f32 %v1197, %v1232
  %v1250 = vlaneseq
  %v1251 = vshrl.u32 %v1250, 7
  %v1252 = vsub.s32 3, %v1251
  %v1253 = vrot.slane %v126, %v1252
  %v1254 = vlaneseq
  %v1255 = vshrl.u32 %v1254, 7
  %v1256 = vsub.s32 3, %v1255
  %v1257 = vrot.slane %v127, %v1256
  %v1258 = vlaneseq
  %v1259 = vshrl.u32 %v1258, 7
  %v1260 = vsub.s32 3, %v1259
  %v1261 = vrot.slane %v128, %v1260
  %v1262 = vlaneseq
  %v1263 = vshrl.u32 %v1262, 7
  %v1264 = vsub.s32 3, %v1263
  %v1265 = vrot.slane %v129, %v1264
  %v1266 = vmul.f32 %v1234, %v1253
  %v1267 = vmul.f32 %v1235, %v1257
  %v1268 = vmul.f32 %v1236, %v1261
  %v1269 = vmul.f32 %v1237, %v1265
  %v1270 = vmul.f32 %v1238, %v1253
  %v1271 = vmul.f32 %v1239, %v1257
  %v1272 = vmul.f32 %v1240, %v1261
  %v1273 = vmul.f32 %v1241, %v1265
  %v1274 = vmul.f32 %v1242, %v1253
  %v1275 = vmul.f32 %v1243, %v1257
  %v1276 = vmul.f32 %v1244, %v1261
  %v1277 = vmul.f32 %v1245, %v1265
  %v1278 = vmul.f32 %v1246, %v1253
  %v1279 = vmul.f32 %v1247, %v1257
  %v1280 = vmul.f32 %v1248, %v1261
  %v1281 = vmul.f32 %v1249, %v1265
  %v1282 = vadd.f32 %v1133, %v1266
  %v1283 = vadd.f32 %v1134, %v1267
  %v1284 = vadd.f32 %v1135, %v1268
  %v1285 = vadd.f32 %v1136, %v1269
  %v1286 = vadd.f32 %v1137, %v1270
  %v1287 = vadd.f32 %v1138, %v1271
  %v1288 = vadd.f32 %v1139, %v1272
  %v1289 = vadd.f32 %v1140, %v1273
  %v1290 = vadd.f32 %v1141, %v1274
  %v1291 = vadd.f32 %v1142, %v1275
  %v1292 = vadd.f32 %v1143, %v1276
  %v1293 = vadd.f32 %v1144, %v1277
  %v1294 = vadd.f32 %v1145, %v1278
  %v1295 = vadd.f32 %v1146, %v1279
  %v1296 = vadd.f32 %v1147, %v1280
  %v1297 = vadd.f32 %v1148, %v1281
  %1298 = vrot.lane.b32.xlu0 %v226, 127
  %v1299 = vpop.permute.xlu0 %1298
  %1300 = vrot.lane.b32.xlu0 %v228, 127
  %v1301 = vpop.permute.xlu0 %1300
  %1302 = vrot.lane.b32.xlu0 %v312, 127
  %v1303 = vpop.permute.xlu0 %1302
  %1304 = vrot.lane.b32.xlu0 %v314, 127
  %v1305 = vpop.permute.xlu0 %1304
  %1306 = vrot.lane.b32.xlu0 %v232, 127
  %v1307 = vpop.permute.xlu0 %1306
  %1308 = vrot.lane.b32.xlu0 %v234, 127
  %v1309 = vpop.permute.xlu0 %1308
  %1310 = vrot.lane.b32.xlu0 %v318, 127
  %v1311 = vpop.permute.xlu0 %1310
  %1312 = vrot.lane.b32.xlu0 %v320, 127
  %v1313 = vpop.permute.xlu0 %1312
  %1314 = vrot.lane.b32.xlu0 %v643, 127
  %v1315 = vpop.permute.xlu0 %1314
  %1316 = vrot.lane.b32.xlu0 %v644, 127
  %v1317 = vpop.permute.xlu0 %1316
  %1318 = vrot.lane.b32.xlu0 %v645, 127
  %v1319 = vpop.permute.xlu0 %1318
  %1320 = vrot.lane.b32.xlu0 %v646, 127
  %v1321 = vpop.permute.xlu0 %1320
  %1322 = vrot.lane.b32.xlu0 %v647, 127
  %v1323 = vpop.permute.xlu0 %1322
  %1324 = vrot.lane.b32.xlu0 %v648, 127
  %v1325 = vpop.permute.xlu0 %1324
  %1326 = vrot.lane.b32.xlu0 %v649, 127
  %v1327 = vpop.permute.xlu0 %1326
  %1328 = vrot.lane.b32.xlu0 %v650, 127
  %v1329 = vpop.permute.xlu0 %1328
  %vm1330 = vcmask 1039360
  %v1331 = vsel %vm1330, %v1299, %v1301
  %v1332 = vsel %vm1330, %v1301, %v1303
  %v1333 = vsel %vm1330, %v1303, %v1305
  %v1334 = vsel %vm1330, %v1307, %v1309
  %v1335 = vsel %vm1330, %v1309, %v1311
  %v1336 = vsel %vm1330, %v1311, %v1313
  %v1337 = vsel %vm1330, %v1315, %v1317
  %v1338 = vsel %vm1330, %v1317, %v1319
  %v1339 = vsel %vm1330, %v1319, %v1321
  %v1340 = vsel %vm1330, %v1323, %v1325
  %v1341 = vsel %vm1330, %v1325, %v1327
  %v1342 = vsel %vm1330, %v1327, %v1329
  %v1363 = vsel %vm1330, %v1305, %v1299
  %v1364 = vsel %vm1330, %v1313, %v1307
  %v1365 = vsel %vm1330, %v1321, %v1315
  %v1366 = vsel %vm1330, %v1329, %v1323
  %1367 = vset.pattern.permute.xlu0 5
  %1368 = vperm.xlu0 %1367, %v333
  %v1369 = vpop.permute.xlu0 %1368
  %1371 = vset.pattern.permute.xlu0 5
  %1372 = vperm.xlu0 %1371, %v334
  %v1373 = vpop.permute.xlu0 %1372
  %1375 = vset.pattern.permute.xlu0 5
  %1376 = vperm.xlu0 %1375, %v335
  %v1377 = vpop.permute.xlu0 %1376
  %1379 = vset.pattern.permute.xlu0 5
  %1380 = vperm.xlu0 %1379, %v336
  %v1381 = vpop.permute.xlu0 %1380
  %v1383 = vmul.f32 %v1331, %v1369
  %v1384 = vmul.f32 %v1332, %v1369
  %v1385 = vmul.f32 %v1333, %v1369
  %v1386 = vmul.f32 %v1363, %v1369
  %v1387 = vmul.f32 %v1334, %v1373
  %v1388 = vmul.f32 %v1335, %v1373
  %v1389 = vmul.f32 %v1336, %v1373
  %v1390 = vmul.f32 %v1364, %v1373
  %v1391 = vmul.f32 %v1337, %v1377
  %v1392 = vmul.f32 %v1338, %v1377
  %v1393 = vmul.f32 %v1339, %v1377
  %v1394 = vmul.f32 %v1365, %v1377
  %v1395 = vmul.f32 %v1340, %v1381
  %v1396 = vmul.f32 %v1341, %v1381
  %v1397 = vmul.f32 %v1342, %v1381
  %v1398 = vmul.f32 %v1366, %v1381
  %v1399 = vlaneseq
  %v1400 = vshrl.u32 %v1399, 7
  %v1401 = vsub.s32 5, %v1400
  %v1402 = vrot.slane %v126, %v1401
  %v1403 = vlaneseq
  %v1404 = vshrl.u32 %v1403, 7
  %v1405 = vsub.s32 5, %v1404
  %v1406 = vrot.slane %v127, %v1405
  %v1407 = vlaneseq
  %v1408 = vshrl.u32 %v1407, 7
  %v1409 = vsub.s32 5, %v1408
  %v1410 = vrot.slane %v128, %v1409
  %v1411 = vlaneseq
  %v1412 = vshrl.u32 %v1411, 7
  %v1413 = vsub.s32 5, %v1412
  %v1414 = vrot.slane %v129, %v1413
  %v1415 = vmul.f32 %v1383, %v1402
  %v1416 = vmul.f32 %v1384, %v1406
  %v1417 = vmul.f32 %v1385, %v1410
  %v1418 = vmul.f32 %v1386, %v1414
  %v1419 = vmul.f32 %v1387, %v1402
  %v1420 = vmul.f32 %v1388, %v1406
  %v1421 = vmul.f32 %v1389, %v1410
  %v1422 = vmul.f32 %v1390, %v1414
  %v1423 = vmul.f32 %v1391, %v1402
  %v1424 = vmul.f32 %v1392, %v1406
  %v1425 = vmul.f32 %v1393, %v1410
  %v1426 = vmul.f32 %v1394, %v1414
  %v1427 = vmul.f32 %v1395, %v1402
  %v1428 = vmul.f32 %v1396, %v1406
  %v1429 = vmul.f32 %v1397, %v1410
  %v1430 = vmul.f32 %v1398, %v1414
  %v1431 = vadd.f32 %v1282, %v1415
  %v1432 = vadd.f32 %v1283, %v1416
  %v1433 = vadd.f32 %v1284, %v1417
  %v1434 = vadd.f32 %v1285, %v1418
  %v1435 = vadd.f32 %v1286, %v1419
  %v1436 = vadd.f32 %v1287, %v1420
  %v1437 = vadd.f32 %v1288, %v1421
  %v1438 = vadd.f32 %v1289, %v1422
  %v1439 = vadd.f32 %v1290, %v1423
  %v1440 = vadd.f32 %v1291, %v1424
  %v1441 = vadd.f32 %v1292, %v1425
  %v1442 = vadd.f32 %v1293, %v1426
  %v1443 = vadd.f32 %v1294, %v1427
  %v1444 = vadd.f32 %v1295, %v1428
  %v1445 = vadd.f32 %v1296, %v1429
  %v1446 = vadd.f32 %v1297, %v1430
  %1447 = vrot.lane.b32.xlu0 %v226, 113
  %v1448 = vpop.permute.xlu0 %1447
  %1449 = vrot.lane.b32.xlu0 %v228, 113
  %v1450 = vpop.permute.xlu0 %1449
  %1451 = vrot.lane.b32.xlu0 %v312, 113
  %v1452 = vpop.permute.xlu0 %1451
  %1453 = vrot.lane.b32.xlu0 %v314, 113
  %v1454 = vpop.permute.xlu0 %1453
  %1455 = vrot.lane.b32.xlu0 %v232, 113
  %v1456 = vpop.permute.xlu0 %1455
  %1457 = vrot.lane.b32.xlu0 %v234, 113
  %v1458 = vpop.permute.xlu0 %1457
  %1459 = vrot.lane.b32.xlu0 %v318, 113
  %v1460 = vpop.permute.xlu0 %1459
  %1461 = vrot.lane.b32.xlu0 %v320, 113
  %v1462 = vpop.permute.xlu0 %1461
  %1463 = vrot.lane.b32.xlu0 %v643, 113
  %v1464 = vpop.permute.xlu0 %1463
  %1465 = vrot.lane.b32.xlu0 %v644, 113
  %v1466 = vpop.permute.xlu0 %1465
  %1467 = vrot.lane.b32.xlu0 %v645, 113
  %v1468 = vpop.permute.xlu0 %1467
  %1469 = vrot.lane.b32.xlu0 %v646, 113
  %v1470 = vpop.permute.xlu0 %1469
  %1471 = vrot.lane.b32.xlu0 %v647, 113
  %v1472 = vpop.permute.xlu0 %1471
  %1473 = vrot.lane.b32.xlu0 %v648, 113
  %v1474 = vpop.permute.xlu0 %1473
  %1475 = vrot.lane.b32.xlu0 %v649, 113
  %v1476 = vpop.permute.xlu0 %1475
  %1477 = vrot.lane.b32.xlu0 %v650, 113
  %v1478 = vpop.permute.xlu0 %1477
  %vm1479 = vcmask 924672
  %v1480 = vsel %vm1479, %v1448, %v1450
  %v1481 = vsel %vm1479, %v1450, %v1452
  %v1482 = vsel %vm1479, %v1452, %v1454
  %v1483 = vsel %vm1479, %v1456, %v1458
  %v1484 = vsel %vm1479, %v1458, %v1460
  %v1485 = vsel %vm1479, %v1460, %v1462
  %v1486 = vsel %vm1479, %v1464, %v1466
  %v1487 = vsel %vm1479, %v1466, %v1468
  %v1488 = vsel %vm1479, %v1468, %v1470
  %v1489 = vsel %vm1479, %v1472, %v1474
  %v1490 = vsel %vm1479, %v1474, %v1476
  %v1491 = vsel %vm1479, %v1476, %v1478
  %v1512 = vsel %vm1479, %v1454, %v1448
  %v1513 = vsel %vm1479, %v1462, %v1456
  %v1514 = vsel %vm1479, %v1470, %v1464
  %v1515 = vsel %vm1479, %v1478, %v1472
  %1516 = vset.pattern.permute.xlu0 6
  %1517 = vperm.xlu0 %1516, %v333
  %v1518 = vpop.permute.xlu0 %1517
  %1520 = vset.pattern.permute.xlu0 6
  %1521 = vperm.xlu0 %1520, %v334
  %v1522 = vpop.permute.xlu0 %1521
  %1524 = vset.pattern.permute.xlu0 6
  %1525 = vperm.xlu0 %1524, %v335
  %v1526 = vpop.permute.xlu0 %1525
  %1528 = vset.pattern.permute.xlu0 6
  %1529 = vperm.xlu0 %1528, %v336
  %v1530 = vpop.permute.xlu0 %1529
  %v1532 = vmul.f32 %v1480, %v1518
  %v1533 = vmul.f32 %v1481, %v1518
  %v1534 = vmul.f32 %v1482, %v1518
  %v1535 = vmul.f32 %v1512, %v1518
  %v1536 = vmul.f32 %v1483, %v1522
  %v1537 = vmul.f32 %v1484, %v1522
  %v1538 = vmul.f32 %v1485, %v1522
  %v1539 = vmul.f32 %v1513, %v1522
  %v1540 = vmul.f32 %v1486, %v1526
  %v1541 = vmul.f32 %v1487, %v1526
  %v1542 = vmul.f32 %v1488, %v1526
  %v1543 = vmul.f32 %v1514, %v1526
  %v1544 = vmul.f32 %v1489, %v1530
  %v1545 = vmul.f32 %v1490, %v1530
  %v1546 = vmul.f32 %v1491, %v1530
  %v1547 = vmul.f32 %v1515, %v1530
  %v1548 = vlaneseq
  %v1549 = vshrl.u32 %v1548, 7
  %v1550 = vsub.s32 6, %v1549
  %v1551 = vrot.slane %v126, %v1550
  %v1552 = vlaneseq
  %v1553 = vshrl.u32 %v1552, 7
  %v1554 = vsub.s32 6, %v1553
  %v1555 = vrot.slane %v127, %v1554
  %v1556 = vlaneseq
  %v1557 = vshrl.u32 %v1556, 7
  %v1558 = vsub.s32 6, %v1557
  %v1559 = vrot.slane %v128, %v1558
  %v1560 = vlaneseq
  %v1561 = vshrl.u32 %v1560, 7
  %v1562 = vsub.s32 6, %v1561
  %v1563 = vrot.slane %v129, %v1562
  %v1564 = vmul.f32 %v1532, %v1551
  %v1565 = vmul.f32 %v1533, %v1555
  %v1566 = vmul.f32 %v1534, %v1559
  %v1567 = vmul.f32 %v1535, %v1563
  %v1568 = vmul.f32 %v1536, %v1551
  %v1569 = vmul.f32 %v1537, %v1555
  %v1570 = vmul.f32 %v1538, %v1559
  %v1571 = vmul.f32 %v1539, %v1563
  %v1572 = vmul.f32 %v1540, %v1551
  %v1573 = vmul.f32 %v1541, %v1555
  %v1574 = vmul.f32 %v1542, %v1559
  %v1575 = vmul.f32 %v1543, %v1563
  %v1576 = vmul.f32 %v1544, %v1551
  %v1577 = vmul.f32 %v1545, %v1555
  %v1578 = vmul.f32 %v1546, %v1559
  %v1579 = vmul.f32 %v1547, %v1563
  %v1580 = vadd.f32 %v1431, %v1564
  %v1581 = vadd.f32 %v1432, %v1565
  %v1582 = vadd.f32 %v1433, %v1566
  %v1583 = vadd.f32 %v1434, %v1567
  %v1584 = vadd.f32 %v1435, %v1568
  %v1585 = vadd.f32 %v1436, %v1569
  %v1586 = vadd.f32 %v1437, %v1570
  %v1587 = vadd.f32 %v1438, %v1571
  %v1588 = vadd.f32 %v1439, %v1572
  %v1589 = vadd.f32 %v1440, %v1573
  %v1590 = vadd.f32 %v1441, %v1574
  %v1591 = vadd.f32 %v1442, %v1575
  %v1592 = vadd.f32 %v1443, %v1576
  %v1593 = vadd.f32 %v1444, %v1577
  %v1594 = vadd.f32 %v1445, %v1578
  %v1595 = vadd.f32 %v1446, %v1579
  %1596 = vrot.lane.b32.xlu0 %v226, 112
  %v1597 = vpop.permute.xlu0 %1596
  %1598 = vrot.lane.b32.xlu0 %v228, 112
  %v1599 = vpop.permute.xlu0 %1598
  %1600 = vrot.lane.b32.xlu0 %v312, 112
  %v1601 = vpop.permute.xlu0 %1600
  %1602 = vrot.lane.b32.xlu0 %v314, 112
  %v1603 = vpop.permute.xlu0 %1602
  %1604 = vrot.lane.b32.xlu0 %v232, 112
  %v1605 = vpop.permute.xlu0 %1604
  %1606 = vrot.lane.b32.xlu0 %v234, 112
  %v1607 = vpop.permute.xlu0 %1606
  %1608 = vrot.lane.b32.xlu0 %v318, 112
  %v1609 = vpop.permute.xlu0 %1608
  %1610 = vrot.lane.b32.xlu0 %v320, 112
  %v1611 = vpop.permute.xlu0 %1610
  %1612 = vrot.lane.b32.xlu0 %v643, 112
  %v1613 = vpop.permute.xlu0 %1612
  %1614 = vrot.lane.b32.xlu0 %v644, 112
  %v1615 = vpop.permute.xlu0 %1614
  %1616 = vrot.lane.b32.xlu0 %v645, 112
  %v1617 = vpop.permute.xlu0 %1616
  %1618 = vrot.lane.b32.xlu0 %v646, 112
  %v1619 = vpop.permute.xlu0 %1618
  %1620 = vrot.lane.b32.xlu0 %v647, 112
  %v1621 = vpop.permute.xlu0 %1620
  %1622 = vrot.lane.b32.xlu0 %v648, 112
  %v1623 = vpop.permute.xlu0 %1622
  %1624 = vrot.lane.b32.xlu0 %v649, 112
  %v1625 = vpop.permute.xlu0 %1624
  %1626 = vrot.lane.b32.xlu0 %v650, 112
  %v1627 = vpop.permute.xlu0 %1626
  %vm1628 = vcmask 916480
  %v1629 = vsel %vm1628, %v1597, %v1599
  %v1630 = vsel %vm1628, %v1599, %v1601
  %v1631 = vsel %vm1628, %v1601, %v1603
  %v1632 = vsel %vm1628, %v1605, %v1607
  %v1633 = vsel %vm1628, %v1607, %v1609
  %v1634 = vsel %vm1628, %v1609, %v1611
  %v1635 = vsel %vm1628, %v1613, %v1615
  %v1636 = vsel %vm1628, %v1615, %v1617
  %v1637 = vsel %vm1628, %v1617, %v1619
  %v1638 = vsel %vm1628, %v1621, %v1623
  %v1639 = vsel %vm1628, %v1623, %v1625
  %v1640 = vsel %vm1628, %v1625, %v1627
  %v1661 = vsel %vm1628, %v1603, %v1597
  %v1662 = vsel %vm1628, %v1611, %v1605
  %v1663 = vsel %vm1628, %v1619, %v1613
  %v1664 = vsel %vm1628, %v1627, %v1621
  %1665 = vset.pattern.permute.xlu0 7
  %1666 = vperm.xlu0 %1665, %v333
  %v1667 = vpop.permute.xlu0 %1666
  %1669 = vset.pattern.permute.xlu0 7
  %1670 = vperm.xlu0 %1669, %v334
  %v1671 = vpop.permute.xlu0 %1670
  %1673 = vset.pattern.permute.xlu0 7
  %1674 = vperm.xlu0 %1673, %v335
  %v1675 = vpop.permute.xlu0 %1674
  %1677 = vset.pattern.permute.xlu0 7
  %1678 = vperm.xlu0 %1677, %v336
  %v1679 = vpop.permute.xlu0 %1678
  %v1681 = vmul.f32 %v1629, %v1667
  %v1682 = vmul.f32 %v1630, %v1667
  %v1683 = vmul.f32 %v1631, %v1667
  %v1684 = vmul.f32 %v1661, %v1667
  %v1685 = vmul.f32 %v1632, %v1671
  %v1686 = vmul.f32 %v1633, %v1671
  %v1687 = vmul.f32 %v1634, %v1671
  %v1688 = vmul.f32 %v1662, %v1671
  %v1689 = vmul.f32 %v1635, %v1675
  %v1690 = vmul.f32 %v1636, %v1675
  %v1691 = vmul.f32 %v1637, %v1675
  %v1692 = vmul.f32 %v1663, %v1675
  %v1693 = vmul.f32 %v1638, %v1679
  %v1694 = vmul.f32 %v1639, %v1679
  %v1695 = vmul.f32 %v1640, %v1679
  %v1696 = vmul.f32 %v1664, %v1679
  %v1697 = vlaneseq
  %v1698 = vshrl.u32 %v1697, 7
  %v1699 = vsub.s32 7, %v1698
  %v1700 = vrot.slane %v126, %v1699
  %v1701 = vlaneseq
  %v1702 = vshrl.u32 %v1701, 7
  %v1703 = vsub.s32 7, %v1702
  %v1704 = vrot.slane %v127, %v1703
  %v1705 = vlaneseq
  %v1706 = vshrl.u32 %v1705, 7
  %v1707 = vsub.s32 7, %v1706
  %v1708 = vrot.slane %v128, %v1707
  %v1709 = vlaneseq
  %v1710 = vshrl.u32 %v1709, 7
  %v1711 = vsub.s32 7, %v1710
  %v1712 = vrot.slane %v129, %v1711
  %v1713 = vmul.f32 %v1681, %v1700
  %v1714 = vmul.f32 %v1682, %v1704
  %v1715 = vmul.f32 %v1683, %v1708
  %v1716 = vmul.f32 %v1684, %v1712
  %v1717 = vmul.f32 %v1685, %v1700
  %v1718 = vmul.f32 %v1686, %v1704
  %v1719 = vmul.f32 %v1687, %v1708
  %v1720 = vmul.f32 %v1688, %v1712
  %v1721 = vmul.f32 %v1689, %v1700
  %v1722 = vmul.f32 %v1690, %v1704
  %v1723 = vmul.f32 %v1691, %v1708
  %v1724 = vmul.f32 %v1692, %v1712
  %v1725 = vmul.f32 %v1693, %v1700
  %v1726 = vmul.f32 %v1694, %v1704
  %v1727 = vmul.f32 %v1695, %v1708
  %v1728 = vmul.f32 %v1696, %v1712
  %v1729 = vadd.f32 %v1580, %v1713
  %v1730 = vadd.f32 %v1581, %v1714
  %v1731 = vadd.f32 %v1582, %v1715
  %v1732 = vadd.f32 %v1583, %v1716
  %v1733 = vadd.f32 %v1584, %v1717
  %v1734 = vadd.f32 %v1585, %v1718
  %v1735 = vadd.f32 %v1586, %v1719
  %v1736 = vadd.f32 %v1587, %v1720
  %v1737 = vadd.f32 %v1588, %v1721
  %v1738 = vadd.f32 %v1589, %v1722
  %v1739 = vadd.f32 %v1590, %v1723
  %v1740 = vadd.f32 %v1591, %v1724
  %v1741 = vadd.f32 %v1592, %v1725
  %v1742 = vadd.f32 %v1593, %v1726
  %v1743 = vadd.f32 %v1594, %v1727
  %v1744 = vadd.f32 %v1595, %v1728
  %1745 = vrot.lane.b32.xlu0 %v226, 111
  %v1746 = vpop.permute.xlu0 %1745
  %1747 = vrot.lane.b32.xlu0 %v228, 111
  %v1748 = vpop.permute.xlu0 %1747
  %1749 = vrot.lane.b32.xlu0 %v312, 111
  %v1750 = vpop.permute.xlu0 %1749
  %1751 = vrot.lane.b32.xlu0 %v314, 111
  %v1752 = vpop.permute.xlu0 %1751
  %1753 = vrot.lane.b32.xlu0 %v232, 111
  %v1754 = vpop.permute.xlu0 %1753
  %1755 = vrot.lane.b32.xlu0 %v234, 111
  %v1756 = vpop.permute.xlu0 %1755
  %1757 = vrot.lane.b32.xlu0 %v318, 111
  %v1758 = vpop.permute.xlu0 %1757
  %1759 = vrot.lane.b32.xlu0 %v320, 111
  %v1760 = vpop.permute.xlu0 %1759
  %1761 = vrot.lane.b32.xlu0 %v643, 111
  %v1762 = vpop.permute.xlu0 %1761
  %1763 = vrot.lane.b32.xlu0 %v644, 111
  %v1764 = vpop.permute.xlu0 %1763
  %1765 = vrot.lane.b32.xlu0 %v645, 111
  %v1766 = vpop.permute.xlu0 %1765
  %1767 = vrot.lane.b32.xlu0 %v646, 111
  %v1768 = vpop.permute.xlu0 %1767
  %1769 = vrot.lane.b32.xlu0 %v647, 111
  %v1770 = vpop.permute.xlu0 %1769
  %1771 = vrot.lane.b32.xlu0 %v648, 111
  %v1772 = vpop.permute.xlu0 %1771
  %1773 = vrot.lane.b32.xlu0 %v649, 111
  %v1774 = vpop.permute.xlu0 %1773
  %1775 = vrot.lane.b32.xlu0 %v650, 111
  %v1776 = vpop.permute.xlu0 %1775
  %vm1777 = vcmask 908288
  %v1778 = vsel %vm1777, %v1746, %v1748
  %v1779 = vsel %vm1777, %v1748, %v1750
  %v1780 = vsel %vm1777, %v1750, %v1752
  %v1781 = vsel %vm1777, %v1754, %v1756
  %v1782 = vsel %vm1777, %v1756, %v1758
  %v1783 = vsel %vm1777, %v1758, %v1760
  %v1784 = vsel %vm1777, %v1762, %v1764
  %v1785 = vsel %vm1777, %v1764, %v1766
  %v1786 = vsel %vm1777, %v1766, %v1768
  %v1787 = vsel %vm1777, %v1770, %v1772
  %v1788 = vsel %vm1777, %v1772, %v1774
  %v1789 = vsel %vm1777, %v1774, %v1776
  %v1810 = vsel %vm1777, %v1752, %v1746
  %v1811 = vsel %vm1777, %v1760, %v1754
  %v1812 = vsel %vm1777, %v1768, %v1762
  %v1813 = vsel %vm1777, %v1776, %v1770
  %1814 = vset.pattern.permute.xlu0 8
  %1815 = vperm.xlu0 %1814, %v333
  %v1816 = vpop.permute.xlu0 %1815
  %1818 = vset.pattern.permute.xlu0 8
  %1819 = vperm.xlu0 %1818, %v334
  %v1820 = vpop.permute.xlu0 %1819
  %1822 = vset.pattern.permute.xlu0 8
  %1823 = vperm.xlu0 %1822, %v335
  %v1824 = vpop.permute.xlu0 %1823
  %1826 = vset.pattern.permute.xlu0 8
  %1827 = vperm.xlu0 %1826, %v336
  %v1828 = vpop.permute.xlu0 %1827
  %v1830 = vmul.f32 %v1778, %v1816
  %v1831 = vmul.f32 %v1779, %v1816
  %v1832 = vmul.f32 %v1780, %v1816
  %v1833 = vmul.f32 %v1810, %v1816
  %v1834 = vmul.f32 %v1781, %v1820
  %v1835 = vmul.f32 %v1782, %v1820
  %v1836 = vmul.f32 %v1783, %v1820
  %v1837 = vmul.f32 %v1811, %v1820
  %v1838 = vmul.f32 %v1784, %v1824
  %v1839 = vmul.f32 %v1785, %v1824
  %v1840 = vmul.f32 %v1786, %v1824
  %v1841 = vmul.f32 %v1812, %v1824
  %v1842 = vmul.f32 %v1787, %v1828
  %v1843 = vmul.f32 %v1788, %v1828
  %v1844 = vmul.f32 %v1789, %v1828
  %v1845 = vmul.f32 %v1813, %v1828
  %v1846 = vlaneseq
  %v1847 = vshrl.u32 %v1846, 7
  %v1848 = vsub.s32 0, %v1847
  %v1849 = vrot.slane %v130, %v1848
  %v1850 = vlaneseq
  %v1851 = vshrl.u32 %v1850, 7
  %v1852 = vsub.s32 0, %v1851
  %v1853 = vrot.slane %v131, %v1852
  %v1854 = vlaneseq
  %v1855 = vshrl.u32 %v1854, 7
  %v1856 = vsub.s32 0, %v1855
  %v1857 = vrot.slane %v132, %v1856
  %v1858 = vlaneseq
  %v1859 = vshrl.u32 %v1858, 7
  %v1860 = vsub.s32 0, %v1859
  %v1861 = vrot.slane %v133, %v1860
  %v1862 = vmul.f32 %v1830, %v1849
  %v1863 = vmul.f32 %v1831, %v1853
  %v1864 = vmul.f32 %v1832, %v1857
  %v1865 = vmul.f32 %v1833, %v1861
  %v1866 = vmul.f32 %v1834, %v1849
  %v1867 = vmul.f32 %v1835, %v1853
  %v1868 = vmul.f32 %v1836, %v1857
  %v1869 = vmul.f32 %v1837, %v1861
  %v1870 = vmul.f32 %v1838, %v1849
  %v1871 = vmul.f32 %v1839, %v1853
  %v1872 = vmul.f32 %v1840, %v1857
  %v1873 = vmul.f32 %v1841, %v1861
  %v1874 = vmul.f32 %v1842, %v1849
  %v1875 = vmul.f32 %v1843, %v1853
  %v1876 = vmul.f32 %v1844, %v1857
  %v1877 = vmul.f32 %v1845, %v1861
  %v1878 = vadd.f32 %v1729, %v1862
  %v1879 = vadd.f32 %v1730, %v1863
  %v1880 = vadd.f32 %v1731, %v1864
  %v1881 = vadd.f32 %v1732, %v1865
  %v1882 = vadd.f32 %v1733, %v1866
  %v1883 = vadd.f32 %v1734, %v1867
  %v1884 = vadd.f32 %v1735, %v1868
  %v1885 = vadd.f32 %v1736, %v1869
  %v1886 = vadd.f32 %v1737, %v1870
  %v1887 = vadd.f32 %v1738, %v1871
  %v1888 = vadd.f32 %v1739, %v1872
  %v1889 = vadd.f32 %v1740, %v1873
  %v1890 = vadd.f32 %v1741, %v1874
  %v1891 = vadd.f32 %v1742, %v1875
  %v1892 = vadd.f32 %v1743, %v1876
  %v1893 = vadd.f32 %v1744, %v1877
  %v1894 = vadd.f32 %v1878, %v1879
  %v1895 = vadd.f32 %v1894, %v1880
  %v1896 = vadd.f32 %v1895, %v1881
  %1897 = vadd.xlane.f32.xlu0 %v1896
  %v1898 = vpop.xlane.xlu0 %1897
  %v1899 = vadd.f32 %v1882, %v1883
  %v1900 = vadd.f32 %v1899, %v1884
  %v1901 = vadd.f32 %v1900, %v1885
  %1902 = vadd.xlane.f32.xlu0 %v1901
  %v1903 = vpop.xlane.xlu0 %1902
  %v1904 = vadd.f32 %v1886, %v1887
  %v1905 = vadd.f32 %v1904, %v1888
  %v1906 = vadd.f32 %v1905, %v1889
  %1907 = vadd.xlane.f32.xlu0 %v1906
  %v1908 = vpop.xlane.xlu0 %1907
  %v1909 = vadd.f32 %v1890, %v1891
  %v1910 = vadd.f32 %v1909, %v1892
  %v1911 = vadd.f32 %v1910, %v1893
  %1912 = vadd.xlane.f32.xlu0 %v1911
  %v1913 = vpop.xlane.xlu0 %1912
  %v1914 = vmul.f32 %v1898, %v522
  %v1915 = vmul.f32 %v1903, %v522
  %v1916 = vmul.f32 %v1908, %v522
  %v1917 = vmul.f32 %v1913, %v522
  %v1918 = vsub.f32 %v1878, %v1914
  %v1919 = vsub.f32 %v1879, %v1914
  %v1920 = vsub.f32 %v1880, %v1914
  %v1921 = vsub.f32 %v1881, %v1914
  %v1922 = vsub.f32 %v1882, %v1915
  %v1923 = vsub.f32 %v1883, %v1915
  %v1924 = vsub.f32 %v1884, %v1915
  %v1925 = vsub.f32 %v1885, %v1915
  %v1926 = vsub.f32 %v1886, %v1916
  %v1927 = vsub.f32 %v1887, %v1916
  %v1928 = vsub.f32 %v1888, %v1916
  %v1929 = vsub.f32 %v1889, %v1916
  %v1930 = vsub.f32 %v1890, %v1917
  %v1931 = vsub.f32 %v1891, %v1917
  %v1932 = vsub.f32 %v1892, %v1917
  %v1933 = vsub.f32 %v1893, %v1917
  %v1934 = vmul.f32 %v1918, %v1918
  %v1935 = vmul.f32 %v1919, %v1919
  %v1936 = vmul.f32 %v1920, %v1920
  %v1937 = vmul.f32 %v1921, %v1921
  %v1938 = vmul.f32 %v1922, %v1922
  %v1939 = vmul.f32 %v1923, %v1923
  %v1940 = vmul.f32 %v1924, %v1924
  %v1941 = vmul.f32 %v1925, %v1925
  %v1942 = vmul.f32 %v1926, %v1926
  %v1943 = vmul.f32 %v1927, %v1927
  %v1944 = vmul.f32 %v1928, %v1928
  %v1945 = vmul.f32 %v1929, %v1929
  %v1946 = vmul.f32 %v1930, %v1930
  %v1947 = vmul.f32 %v1931, %v1931
  %v1948 = vmul.f32 %v1932, %v1932
  %v1949 = vmul.f32 %v1933, %v1933
  %v1950 = vadd.f32 %v1934, %v1935
  %v1951 = vadd.f32 %v1950, %v1936
  %v1952 = vadd.f32 %v1951, %v1937
  %1953 = vadd.xlane.f32.xlu0 %v1952
  %v1954 = vpop.xlane.xlu0 %1953
  %v1955 = vadd.f32 %v1938, %v1939
  %v1956 = vadd.f32 %v1955, %v1940
  %v1957 = vadd.f32 %v1956, %v1941
  %1958 = vadd.xlane.f32.xlu0 %v1957
  %v1959 = vpop.xlane.xlu0 %1958
  %v1960 = vadd.f32 %v1942, %v1943
  %v1961 = vadd.f32 %v1960, %v1944
  %v1962 = vadd.f32 %v1961, %v1945
  %1963 = vadd.xlane.f32.xlu0 %v1962
  %v1964 = vpop.xlane.xlu0 %1963
  %v1965 = vadd.f32 %v1946, %v1947
  %v1966 = vadd.f32 %v1965, %v1948
  %v1967 = vadd.f32 %v1966, %v1949
  %1968 = vadd.xlane.f32.xlu0 %v1967
  %v1969 = vpop.xlane.xlu0 %1968
  %v1970 = vmul.f32 %v1954, %v522
  %v1971 = vmul.f32 %v1959, %v522
  %v1972 = vmul.f32 %v1964, %v522
  %v1973 = vmul.f32 %v1969, %v522
  %v1974 = vadd.f32 %v1970, 1e-05
  %v1975 = vadd.f32 %v1971, 1e-05
  %v1976 = vadd.f32 %v1972, 1e-05
  %v1977 = vadd.f32 %v1973, 1e-05
  %v1978 = vrsqrt.pop %v1974
  %v1979 = vrsqrt.pop %v1975
  %v1980 = vrsqrt.pop %v1976
  %v1981 = vrsqrt.pop %v1977
  %v1982 = vmul.f32 %v343, %v1978
  %v1983 = vmul.f32 %v344, %v1979
  %v1984 = vmul.f32 %v345, %v1980
  %v1985 = vmul.f32 %v346, %v1981
  %1987 = vset.pattern.permute.xlu0 0
  %1988 = vperm.xlu0 %1987, %v1982
  %v1989 = vpop.permute.xlu0 %1988
  %1992 = vset.pattern.permute.xlu0 0
  %1993 = vperm.xlu0 %1992, %v1983
  %v1994 = vpop.permute.xlu0 %1993
  %1997 = vset.pattern.permute.xlu0 0
  %1998 = vperm.xlu0 %1997, %v1984
  %v1999 = vpop.permute.xlu0 %1998
  %2002 = vset.pattern.permute.xlu0 0
  %2003 = vperm.xlu0 %2002, %v1985
  %v2004 = vpop.permute.xlu0 %2003
  %v2006 = vmul.f32 %v1918, %v1989
  %v2007 = vmul.f32 %v1919, %v1989
  %v2008 = vmul.f32 %v1920, %v1989
  %v2009 = vmul.f32 %v1921, %v1989
  %v2010 = vmul.f32 %v1922, %v1994
  %v2011 = vmul.f32 %v1923, %v1994
  %v2012 = vmul.f32 %v1924, %v1994
  %v2013 = vmul.f32 %v1925, %v1994
  %v2014 = vmul.f32 %v1926, %v1999
  %v2015 = vmul.f32 %v1927, %v1999
  %v2016 = vmul.f32 %v1928, %v1999
  %v2017 = vmul.f32 %v1929, %v1999
  %v2018 = vmul.f32 %v1930, %v2004
  %v2019 = vmul.f32 %v1931, %v2004
  %v2020 = vmul.f32 %v1932, %v2004
  %v2021 = vmul.f32 %v1933, %v2004
  %2023 = vset.pattern.permute.xlu0 1
  %2024 = vperm.xlu0 %2023, %v343
  %v2025 = vpop.permute.xlu0 %2024
  %2028 = vset.pattern.permute.xlu0 1
  %2029 = vperm.xlu0 %2028, %v344
  %v2030 = vpop.permute.xlu0 %2029
  %2033 = vset.pattern.permute.xlu0 1
  %2034 = vperm.xlu0 %2033, %v345
  %v2035 = vpop.permute.xlu0 %2034
  %2038 = vset.pattern.permute.xlu0 1
  %2039 = vperm.xlu0 %2038, %v346
  %v2040 = vpop.permute.xlu0 %2039
  %v2042 = vadd.f32 %v2006, %v2025
  %v2043 = vadd.f32 %v2007, %v2025
  %v2044 = vadd.f32 %v2008, %v2025
  %v2045 = vadd.f32 %v2009, %v2025
  %v2046 = vadd.f32 %v2010, %v2030
  %v2047 = vadd.f32 %v2011, %v2030
  %v2048 = vadd.f32 %v2012, %v2030
  %v2049 = vadd.f32 %v2013, %v2030
  %v2050 = vadd.f32 %v2014, %v2035
  %v2051 = vadd.f32 %v2015, %v2035
  %v2052 = vadd.f32 %v2016, %v2035
  %v2053 = vadd.f32 %v2017, %v2035
  %v2054 = vadd.f32 %v2018, %v2040
  %v2055 = vadd.f32 %v2019, %v2040
  %v2056 = vadd.f32 %v2020, %v2040
  %v2057 = vadd.f32 %v2021, %v2040
  %vm2058 = vcmask 261120
  %v2060 = vsel %vm2058, %v337, 0
  %v2063 = vsel %vm2058, %v338, 0
  %v2066 = vsel %vm2058, %v339, 0
  %v2069 = vsel %vm2058, %v340, 0
  %2071 = vmatprep.subr.mxu0 %v2043
  %2072 = vmatpush1.msra.mxu0 %v2042
  %2073 = vmatprep.subr.mxu0 %v2047
  %2074 = vmatpush1.msra.mxu0 %v2046
  %2075 = vmatprep.subr.mxu0 %v2051
  %2076 = vmatpush1.msra.mxu0 %v2050
  %2077 = vmatprep.subr.mxu0 %v2055
  %2078 = vmatpush1.msra.mxu0 %v2054
  %2079 = vmatprep.subr.mxu0 0.0
  %2080 = vmatpush1.msra.mxu0 0.0
  %2081 = vmatprep.subr.mxu0 0.0
  %2082 = vmatpush1.msra.mxu0 0.0
  %2083 = vmatprep.subr.mxu0 0.0
  %2084 = vmatpush1.msra.mxu0 0.0
  %2085 = vmatprep.subr.mxu0 0.0
  %2086 = vmatpush1.msra.mxu0 0.0
  %2087 = vmatprep.subr.mxu0 0.0
  %2088 = vmatpush1.msra.mxu0 0.0
  %2089 = vmatprep.subr.mxu0 0.0
  %2090 = vmatpush1.msra.mxu0 0.0
  %2091 = vmatprep.subr.mxu0 0.0
  %2092 = vmatpush1.msra.mxu0 0.0
  %2093 = vmatprep.subr.mxu0 0.0
  %2094 = vmatpush1.msra.mxu0 0.0
  %2095 = vmatprep.subr.mxu0 0.0
  %2096 = vmatpush1.msra.mxu0 0.0
  %2097 = vmatprep.subr.mxu0 0.0
  %2098 = vmatpush1.msra.mxu0 0.0
  %2099 = vmatprep.subr.mxu0 0.0
  %2100 = vmatpush1.msra.mxu0 0.0
  %2101 = vmatprep.subr.mxu0 0.0
  %2102 = vmatpush1.msra.mxu0 0.0
  %2103 = vmatprep.subr.mxu0 0.0
  %2104 = vmatpush1.msra.mxu0 0.0
  %2105 = vmatprep.subr.mxu0 0.0
  %2106 = vmatpush1.msra.mxu0 0.0
  %2107 = vmatprep.subr.mxu0 0.0
  %2108 = vmatpush1.msra.mxu0 0.0
  %2109 = vmatprep.subr.mxu0 0.0
  %2110 = vmatpush1.msra.mxu0 0.0
  %2111 = vmatprep.subr.mxu0 0.0
  %2112 = vmatpush1.msra.mxu0 0.0
  %2113 = vmatprep.subr.mxu0 0.0
  %2114 = vmatpush1.msra.mxu0 0.0
  %2115 = vmatprep.subr.mxu0 0.0
  %2116 = vmatpush1.msra.mxu0 0.0
  %2117 = vmatprep.subr.mxu0 0.0
  %2118 = vmatpush1.msra.mxu0 0.0
  %2119 = vmatprep.subr.mxu0 0.0
  %2120 = vmatpush1.msra.mxu0 0.0
  %2121 = vmatprep.subr.mxu0 0.0
  %2122 = vmatpush1.msra.mxu0 0.0
  %2123 = vmatprep.subr.mxu0 0.0
  %2124 = vmatpush1.msra.mxu0 0.0
  %2125 = vmatprep.subr.mxu0 0.0
  %2126 = vmatpush1.msra.mxu0 0.0
  %2127 = vmatprep.subr.mxu0 0.0
  %2128 = vmatpush1.msra.mxu0 0.0
  %2129 = vmatprep.subr.mxu0 0.0
  %2130 = vmatpush1.msra.mxu0 0.0
  %2131 = vmatprep.subr.mxu0 0.0
  %2132 = vmatpush1.msra.mxu0 0.0
  %2133 = vmatprep.subr.mxu0 0.0
  %2134 = vmatpush1.msra.mxu0 0.0
  %2135 = vmatprep.mubr.f32.mxu0 0.0
  %2136 = vmatmul.mubr.f32.gmra.mrb[0].mxu0 %v2060
  %v2137 = vpop.f32.mrb[0].mxu0
  %v2138 = vadd.f32 0.0, %v2137
  %v2139 = vpop.f32.mrb[0].mxu0
  %v2140 = vadd.f32 0.0, %v2139
  %2141 = vmatprep.mubr.f32.mxu0 0.0
  %2142 = vmatmul.mubr.f32.gmra.mrb[0].mxu0 %v2063
  %v2143 = vpop.f32.mrb[0].mxu0
  %v2144 = vadd.f32 0.0, %v2143
  %v2145 = vpop.f32.mrb[0].mxu0
  %v2146 = vadd.f32 0.0, %v2145
  %2147 = vmatprep.mubr.f32.mxu0 0.0
  %2148 = vmatmul.mubr.f32.gmra.mrb[0].mxu0 %v2066
  %v2149 = vpop.f32.mrb[0].mxu0
  %v2150 = vadd.f32 0.0, %v2149
  %v2151 = vpop.f32.mrb[0].mxu0
  %v2152 = vadd.f32 0.0, %v2151
  %2153 = vmatprep.mubr.f32.mxu0 0.0
  %2154 = vmatmul.mubr.f32.gmra.mrb[0].mxu0 %v2069
  %v2155 = vpop.f32.mrb[0].mxu0
  %v2156 = vadd.f32 0.0, %v2155
  %v2157 = vpop.f32.mrb[0].mxu0
  %v2158 = vadd.f32 0.0, %v2157
  %2159 = vdwg.mxu0
  %2160 = vmatprep.subr.mxu0 %v2045
  %2161 = vmatpush1.msra.mxu0 %v2044
  %2162 = vmatprep.subr.mxu0 %v2049
  %2163 = vmatpush1.msra.mxu0 %v2048
  %2164 = vmatprep.subr.mxu0 %v2053
  %2165 = vmatpush1.msra.mxu0 %v2052
  %2166 = vmatprep.subr.mxu0 %v2057
  %2167 = vmatpush1.msra.mxu0 %v2056
  %2168 = vmatprep.subr.mxu0 0.0
  %2169 = vmatpush1.msra.mxu0 0.0
  %2170 = vmatprep.subr.mxu0 0.0
  %2171 = vmatpush1.msra.mxu0 0.0
  %2172 = vmatprep.subr.mxu0 0.0
  %2173 = vmatpush1.msra.mxu0 0.0
  %2174 = vmatprep.subr.mxu0 0.0
  %2175 = vmatpush1.msra.mxu0 0.0
  %2176 = vmatprep.subr.mxu0 0.0
  %2177 = vmatpush1.msra.mxu0 0.0
  %2178 = vmatprep.subr.mxu0 0.0
  %2179 = vmatpush1.msra.mxu0 0.0
  %2180 = vmatprep.subr.mxu0 0.0
  %2181 = vmatpush1.msra.mxu0 0.0
  %2182 = vmatprep.subr.mxu0 0.0
  %2183 = vmatpush1.msra.mxu0 0.0
  %2184 = vmatprep.subr.mxu0 0.0
  %2185 = vmatpush1.msra.mxu0 0.0
  %2186 = vmatprep.subr.mxu0 0.0
  %2187 = vmatpush1.msra.mxu0 0.0
  %2188 = vmatprep.subr.mxu0 0.0
  %2189 = vmatpush1.msra.mxu0 0.0
  %2190 = vmatprep.subr.mxu0 0.0
  %2191 = vmatpush1.msra.mxu0 0.0
  %2192 = vmatprep.subr.mxu0 0.0
  %2193 = vmatpush1.msra.mxu0 0.0
  %2194 = vmatprep.subr.mxu0 0.0
  %2195 = vmatpush1.msra.mxu0 0.0
  %2196 = vmatprep.subr.mxu0 0.0
  %2197 = vmatpush1.msra.mxu0 0.0
  %2198 = vmatprep.subr.mxu0 0.0
  %2199 = vmatpush1.msra.mxu0 0.0
  %2200 = vmatprep.subr.mxu0 0.0
  %2201 = vmatpush1.msra.mxu0 0.0
  %2202 = vmatprep.subr.mxu0 0.0
  %2203 = vmatpush1.msra.mxu0 0.0
  %2204 = vmatprep.subr.mxu0 0.0
  %2205 = vmatpush1.msra.mxu0 0.0
  %2206 = vmatprep.subr.mxu0 0.0
  %2207 = vmatpush1.msra.mxu0 0.0
  %2208 = vmatprep.subr.mxu0 0.0
  %2209 = vmatpush1.msra.mxu0 0.0
  %2210 = vmatprep.subr.mxu0 0.0
  %2211 = vmatpush1.msra.mxu0 0.0
  %2212 = vmatprep.subr.mxu0 0.0
  %2213 = vmatpush1.msra.mxu0 0.0
  %2214 = vmatprep.subr.mxu0 0.0
  %2215 = vmatpush1.msra.mxu0 0.0
  %2216 = vmatprep.subr.mxu0 0.0
  %2217 = vmatpush1.msra.mxu0 0.0
  %2218 = vmatprep.subr.mxu0 0.0
  %2219 = vmatpush1.msra.mxu0 0.0
  %2220 = vmatprep.subr.mxu0 0.0
  %2221 = vmatpush1.msra.mxu0 0.0
  %2222 = vmatprep.subr.mxu0 0.0
  %2223 = vmatpush1.msra.mxu0 0.0
  %2224 = vmatprep.mubr.f32.mxu0 0.0
  %2225 = vmatmul.mubr.f32.gmra.mrb[0].mxu0 %v2060
  %v2226 = vpop.f32.mrb[0].mxu0
  %v2227 = vadd.f32 0.0, %v2226
  %v2228 = vpop.f32.mrb[0].mxu0
  %v2229 = vadd.f32 0.0, %v2228
  %2230 = vmatprep.mubr.f32.mxu0 0.0
  %2231 = vmatmul.mubr.f32.gmra.mrb[0].mxu0 %v2063
  %v2232 = vpop.f32.mrb[0].mxu0
  %v2233 = vadd.f32 0.0, %v2232
  %v2234 = vpop.f32.mrb[0].mxu0
  %v2235 = vadd.f32 0.0, %v2234
  %2236 = vmatprep.mubr.f32.mxu0 0.0
  %2237 = vmatmul.mubr.f32.gmra.mrb[0].mxu0 %v2066
  %v2238 = vpop.f32.mrb[0].mxu0
  %v2239 = vadd.f32 0.0, %v2238
  %v2240 = vpop.f32.mrb[0].mxu0
  %v2241 = vadd.f32 0.0, %v2240
  %2242 = vmatprep.mubr.f32.mxu0 0.0
  %2243 = vmatmul.mubr.f32.gmra.mrb[0].mxu0 %v2069
  %v2244 = vpop.f32.mrb[0].mxu0
  %v2245 = vadd.f32 0.0, %v2244
  %v2246 = vpop.f32.mrb[0].mxu0
  %v2247 = vadd.f32 0.0, %v2246
  %2248 = vdwg.mxu0
  %v2249 = vadd.f32 %v2138, %v2140
  %v2250 = vadd.f32 %v2249, %v2227
  %v2251 = vadd.f32 %v2250, %v2229
  %2252 = vadd.xlane.f32.xlu0 %v2251
  %v2253 = vpop.xlane.xlu0 %2252
  %v2254 = vadd.f32 %v2144, %v2146
  %v2255 = vadd.f32 %v2254, %v2233
  %v2256 = vadd.f32 %v2255, %v2235
  %2257 = vadd.xlane.f32.xlu0 %v2256
  %v2258 = vpop.xlane.xlu0 %2257
  %v2259 = vadd.f32 %v2150, %v2152
  %v2260 = vadd.f32 %v2259, %v2239
  %v2261 = vadd.f32 %v2260, %v2241
  %2262 = vadd.xlane.f32.xlu0 %v2261
  %v2263 = vpop.xlane.xlu0 %2262
  %v2264 = vadd.f32 %v2156, %v2158
  %v2265 = vadd.f32 %v2264, %v2245
  %v2266 = vadd.f32 %v2265, %v2247
  %2267 = vadd.xlane.f32.xlu0 %v2266
  %v2268 = vpop.xlane.xlu0 %2267
  %v2269 = vmul.f32 %v2253, %v522
  %v2270 = vmul.f32 %v2258, %v522
  %v2271 = vmul.f32 %v2263, %v522
  %v2272 = vmul.f32 %v2268, %v522
  %v2273 = vsub.f32 %v2138, %v2269
  %v2274 = vsub.f32 %v2140, %v2269
  %v2275 = vsub.f32 %v2227, %v2269
  %v2276 = vsub.f32 %v2229, %v2269
  %v2277 = vsub.f32 %v2144, %v2270
  %v2278 = vsub.f32 %v2146, %v2270
  %v2279 = vsub.f32 %v2233, %v2270
  %v2280 = vsub.f32 %v2235, %v2270
  %v2281 = vsub.f32 %v2150, %v2271
  %v2282 = vsub.f32 %v2152, %v2271
  %v2283 = vsub.f32 %v2239, %v2271
  %v2284 = vsub.f32 %v2241, %v2271
  %v2285 = vsub.f32 %v2156, %v2272
  %v2286 = vsub.f32 %v2158, %v2272
  %v2287 = vsub.f32 %v2245, %v2272
  %v2288 = vsub.f32 %v2247, %v2272
  %v2289 = vmul.f32 %v2273, %v2273
  %v2290 = vmul.f32 %v2274, %v2274
  %v2291 = vmul.f32 %v2275, %v2275
  %v2292 = vmul.f32 %v2276, %v2276
  %v2293 = vmul.f32 %v2277, %v2277
  %v2294 = vmul.f32 %v2278, %v2278
  %v2295 = vmul.f32 %v2279, %v2279
  %v2296 = vmul.f32 %v2280, %v2280
  %v2297 = vmul.f32 %v2281, %v2281
  %v2298 = vmul.f32 %v2282, %v2282
  %v2299 = vmul.f32 %v2283, %v2283
  %v2300 = vmul.f32 %v2284, %v2284
  %v2301 = vmul.f32 %v2285, %v2285
  %v2302 = vmul.f32 %v2286, %v2286
  %v2303 = vmul.f32 %v2287, %v2287
  %v2304 = vmul.f32 %v2288, %v2288
  %v2305 = vadd.f32 %v2289, %v2290
  %v2306 = vadd.f32 %v2305, %v2291
  %v2307 = vadd.f32 %v2306, %v2292
  %2308 = vadd.xlane.f32.xlu0 %v2307
  %v2309 = vpop.xlane.xlu0 %2308
  %v2310 = vadd.f32 %v2293, %v2294
  %v2311 = vadd.f32 %v2310, %v2295
  %v2312 = vadd.f32 %v2311, %v2296
  %2313 = vadd.xlane.f32.xlu0 %v2312
  %v2314 = vpop.xlane.xlu0 %2313
  %v2315 = vadd.f32 %v2297, %v2298
  %v2316 = vadd.f32 %v2315, %v2299
  %v2317 = vadd.f32 %v2316, %v2300
  %2318 = vadd.xlane.f32.xlu0 %v2317
  %v2319 = vpop.xlane.xlu0 %2318
  %v2320 = vadd.f32 %v2301, %v2302
  %v2321 = vadd.f32 %v2320, %v2303
  %v2322 = vadd.f32 %v2321, %v2304
  %2323 = vadd.xlane.f32.xlu0 %v2322
  %v2324 = vpop.xlane.xlu0 %2323
  %v2325 = vmul.f32 %v2309, %v522
  %v2326 = vmul.f32 %v2314, %v522
  %v2327 = vmul.f32 %v2319, %v522
  %v2328 = vmul.f32 %v2324, %v522
  %v2329 = vadd.f32 %v2325, 1e-05
  %v2330 = vadd.f32 %v2326, 1e-05
  %v2331 = vadd.f32 %v2327, 1e-05
  %v2332 = vadd.f32 %v2328, 1e-05
  %v2333 = vrsqrt.pop %v2329
  %v2334 = vrsqrt.pop %v2330
  %v2335 = vrsqrt.pop %v2331
  %v2336 = vrsqrt.pop %v2332
  %v2337 = vmul.f32 %v347, %v2333
  %v2338 = vmul.f32 %v348, %v2334
  %v2339 = vmul.f32 %v349, %v2335
  %v2340 = vmul.f32 %v350, %v2336
  %2342 = vset.pattern.permute.xlu0 0
  %2343 = vperm.xlu0 %2342, %v2337
  %v2344 = vpop.permute.xlu0 %2343
  %2347 = vset.pattern.permute.xlu0 0
  %2348 = vperm.xlu0 %2347, %v2338
  %v2349 = vpop.permute.xlu0 %2348
  %2352 = vset.pattern.permute.xlu0 0
  %2353 = vperm.xlu0 %2352, %v2339
  %v2354 = vpop.permute.xlu0 %2353
  %2357 = vset.pattern.permute.xlu0 0
  %2358 = vperm.xlu0 %2357, %v2340
  %v2359 = vpop.permute.xlu0 %2358
  %v2361 = vmul.f32 %v2273, %v2344
  %v2362 = vmul.f32 %v2274, %v2344
  %v2363 = vmul.f32 %v2275, %v2344
  %v2364 = vmul.f32 %v2276, %v2344
  %v2365 = vmul.f32 %v2277, %v2349
  %v2366 = vmul.f32 %v2278, %v2349
  %v2367 = vmul.f32 %v2279, %v2349
  %v2368 = vmul.f32 %v2280, %v2349
  %v2369 = vmul.f32 %v2281, %v2354
  %v2370 = vmul.f32 %v2282, %v2354
  %v2371 = vmul.f32 %v2283, %v2354
  %v2372 = vmul.f32 %v2284, %v2354
  %v2373 = vmul.f32 %v2285, %v2359
  %v2374 = vmul.f32 %v2286, %v2359
  %v2375 = vmul.f32 %v2287, %v2359
  %v2376 = vmul.f32 %v2288, %v2359
  %2378 = vset.pattern.permute.xlu0 1
  %2379 = vperm.xlu0 %2378, %v347
  %v2380 = vpop.permute.xlu0 %2379
  %2383 = vset.pattern.permute.xlu0 1
  %2384 = vperm.xlu0 %2383, %v348
  %v2385 = vpop.permute.xlu0 %2384
  %2388 = vset.pattern.permute.xlu0 1
  %2389 = vperm.xlu0 %2388, %v349
  %v2390 = vpop.permute.xlu0 %2389
  %2393 = vset.pattern.permute.xlu0 1
  %2394 = vperm.xlu0 %2393, %v350
  %v2395 = vpop.permute.xlu0 %2394
  %v2397 = vadd.f32 %v2361, %v2380
  %v2398 = vadd.f32 %v2362, %v2380
  %v2399 = vadd.f32 %v2363, %v2380
  %v2400 = vadd.f32 %v2364, %v2380
  %v2401 = vadd.f32 %v2365, %v2385
  %v2402 = vadd.f32 %v2366, %v2385
  %v2403 = vadd.f32 %v2367, %v2385
  %v2404 = vadd.f32 %v2368, %v2385
  %v2405 = vadd.f32 %v2369, %v2390
  %v2406 = vadd.f32 %v2370, %v2390
  %v2407 = vadd.f32 %v2371, %v2390
  %v2408 = vadd.f32 %v2372, %v2390
  %v2409 = vadd.f32 %v2373, %v2395
  %v2410 = vadd.f32 %v2374, %v2395
  %v2411 = vadd.f32 %v2375, %v2395
  %v2412 = vadd.f32 %v2376, %v2395
  %v2413 = vxor.u32 %v2397, 2147483648
  %v2414 = vxor.u32 %v2398, 2147483648
  %v2415 = vxor.u32 %v2399, 2147483648
  %v2416 = vxor.u32 %v2400, 2147483648
  %v2417 = vxor.u32 %v2401, 2147483648
  %v2418 = vxor.u32 %v2402, 2147483648
  %v2419 = vxor.u32 %v2403, 2147483648
  %v2420 = vxor.u32 %v2404, 2147483648
  %v2421 = vxor.u32 %v2405, 2147483648
  %v2422 = vxor.u32 %v2406, 2147483648
  %v2423 = vxor.u32 %v2407, 2147483648
  %v2424 = vxor.u32 %v2408, 2147483648
  %v2425 = vxor.u32 %v2409, 2147483648
  %v2426 = vxor.u32 %v2410, 2147483648
  %v2427 = vxor.u32 %v2411, 2147483648
  %v2428 = vxor.u32 %v2412, 2147483648
  %v2429 = vmul.f32 %v2413, 1.442695
  %v2430 = vpow.pop %v2429
  %v2431 = vmul.f32 %v2414, 1.442695
  %v2432 = vpow.pop %v2431
  %v2433 = vmul.f32 %v2415, 1.442695
  %v2434 = vpow.pop %v2433
  %v2435 = vmul.f32 %v2416, 1.442695
  %v2436 = vpow.pop %v2435
  %v2437 = vmul.f32 %v2417, 1.442695
  %v2438 = vpow.pop %v2437
  %v2439 = vmul.f32 %v2418, 1.442695
  %v2440 = vpow.pop %v2439
  %v2441 = vmul.f32 %v2419, 1.442695
  %v2442 = vpow.pop %v2441
  %v2443 = vmul.f32 %v2420, 1.442695
  %v2444 = vpow.pop %v2443
  %v2445 = vmul.f32 %v2421, 1.442695
  %v2446 = vpow.pop %v2445
  %v2447 = vmul.f32 %v2422, 1.442695
  %v2448 = vpow.pop %v2447
  %v2449 = vmul.f32 %v2423, 1.442695
  %v2450 = vpow.pop %v2449
  %v2451 = vmul.f32 %v2424, 1.442695
  %v2452 = vpow.pop %v2451
  %v2453 = vmul.f32 %v2425, 1.442695
  %v2454 = vpow.pop %v2453
  %v2455 = vmul.f32 %v2426, 1.442695
  %v2456 = vpow.pop %v2455
  %v2457 = vmul.f32 %v2427, 1.442695
  %v2458 = vpow.pop %v2457
  %v2459 = vmul.f32 %v2428, 1.442695
  %v2460 = vpow.pop %v2459
  %v2461 = vadd.f32 %v2430, 1.0
  %v2462 = vadd.f32 %v2432, 1.0
  %v2463 = vadd.f32 %v2434, 1.0
  %v2464 = vadd.f32 %v2436, 1.0
  %v2465 = vadd.f32 %v2438, 1.0
  %v2466 = vadd.f32 %v2440, 1.0
  %v2467 = vadd.f32 %v2442, 1.0
  %v2468 = vadd.f32 %v2444, 1.0
  %v2469 = vadd.f32 %v2446, 1.0
  %v2470 = vadd.f32 %v2448, 1.0
  %v2471 = vadd.f32 %v2450, 1.0
  %v2472 = vadd.f32 %v2452, 1.0
  %v2473 = vadd.f32 %v2454, 1.0
  %v2474 = vadd.f32 %v2456, 1.0
  %v2475 = vadd.f32 %v2458, 1.0
  %v2476 = vadd.f32 %v2460, 1.0
  %v2477 = vrcp.pop %v2461
  %v2478 = vmul.f32 1.0, %v2477
  %v2479 = vrcp.pop %v2462
  %v2480 = vmul.f32 1.0, %v2479
  %v2481 = vrcp.pop %v2463
  %v2482 = vmul.f32 1.0, %v2481
  %v2483 = vrcp.pop %v2464
  %v2484 = vmul.f32 1.0, %v2483
  %v2485 = vrcp.pop %v2465
  %v2486 = vmul.f32 1.0, %v2485
  %v2487 = vrcp.pop %v2466
  %v2488 = vmul.f32 1.0, %v2487
  %v2489 = vrcp.pop %v2467
  %v2490 = vmul.f32 1.0, %v2489
  %v2491 = vrcp.pop %v2468
  %v2492 = vmul.f32 1.0, %v2491
  %v2493 = vrcp.pop %v2469
  %v2494 = vmul.f32 1.0, %v2493
  %v2495 = vrcp.pop %v2470
  %v2496 = vmul.f32 1.0, %v2495
  %v2497 = vrcp.pop %v2471
  %v2498 = vmul.f32 1.0, %v2497
  %v2499 = vrcp.pop %v2472
  %v2500 = vmul.f32 1.0, %v2499
  %v2501 = vrcp.pop %v2473
  %v2502 = vmul.f32 1.0, %v2501
  %v2503 = vrcp.pop %v2474
  %v2504 = vmul.f32 1.0, %v2503
  %v2505 = vrcp.pop %v2475
  %v2506 = vmul.f32 1.0, %v2505
  %v2507 = vrcp.pop %v2476
  %v2508 = vmul.f32 1.0, %v2507
  %v2509 = vmul.f32 %v2397, %v2478
  %v2510 = vmul.f32 %v2398, %v2480
  %v2511 = vmul.f32 %v2399, %v2482
  %v2512 = vmul.f32 %v2400, %v2484
  %v2513 = vmul.f32 %v2401, %v2486
  %v2514 = vmul.f32 %v2402, %v2488
  %v2515 = vmul.f32 %v2403, %v2490
  %v2516 = vmul.f32 %v2404, %v2492
  %v2517 = vmul.f32 %v2405, %v2494
  %v2518 = vmul.f32 %v2406, %v2496
  %v2519 = vmul.f32 %v2407, %v2498
  %v2520 = vmul.f32 %v2408, %v2500
  %v2521 = vmul.f32 %v2409, %v2502
  %v2522 = vmul.f32 %v2410, %v2504
  %v2523 = vmul.f32 %v2411, %v2506
  %v2524 = vmul.f32 %v2412, %v2508
  %v2525 = vld [vmem:[%s21] sm:$0xff]
  %v2526 = vld [vmem:[%s21 + $0x8] sm:$0xff]
  %v2527 = vld [vmem:[%s23] sm:$0xff]
  %v2528 = vld [vmem:[%s23 + $0x8] sm:$0xff]
  %v2529 = vld [vmem:[%s23 + $0x10] sm:$0xff]
  %v2530 = vld [vmem:[%s23 + $0x18] sm:$0xff]
  %v2531 = vld [vmem:[%s25] sm:$0xff]
  %v2532 = vld [vmem:[%s25 + $0x8] sm:$0xff]
  %v2533 = vld [vmem:[%s25 + $0x10] sm:$0xff]
  %v2534 = vld [vmem:[%s25 + $0x18] sm:$0xff]
  %v2535 = vld [vmem:[%s27] sm:$0xff]
  %v2536 = vld [vmem:[%s27 + $0x8] sm:$0xff]
  %v2537 = vld [vmem:[%s27 + $0x10] sm:$0xff]
  %v2538 = vld [vmem:[%s27 + $0x18] sm:$0xff]
  %v2539 = vld [vmem:[%s27 + $0x20] sm:$0xff]
  %v2540 = vld [vmem:[%s27 + $0x28] sm:$0xff]
  %v2541 = vld [vmem:[%s27 + $0x30] sm:$0xff]
  %v2542 = vld [vmem:[%s27 + $0x38] sm:$0xff]
  %v2543 = vld [vmem:[%s27 + $0x40] sm:$0xff]
  %v2544 = vld [vmem:[%s27 + $0x48] sm:$0xff]
  %v2546 = vsel %vm351, %v2525, 0
  %v2549 = vsel %vm351, %v2526, 0
  %2551 = vmatprep.subr.mxu0 %v2518
  %2552 = vmatpush1.msra.mxu0 %v2517
  %2553 = vmatprep.subr.mxu0 %v2522
  %2554 = vmatpush1.msra.mxu0 %v2521
  %2555 = vmatprep.subr.mxu0 0.0
  %2556 = vmatpush1.msra.mxu0 0.0
  %2557 = vmatprep.subr.mxu0 0.0
  %2558 = vmatpush1.msra.mxu0 0.0
  %2559 = vmatprep.subr.mxu0 0.0
  %2560 = vmatpush1.msra.mxu0 0.0
  %2561 = vmatprep.subr.mxu0 0.0
  %2562 = vmatpush1.msra.mxu0 0.0
  %2563 = vmatprep.subr.mxu0 0.0
  %2564 = vmatpush1.msra.mxu0 0.0
  %2565 = vmatprep.subr.mxu0 0.0
  %2566 = vmatpush1.msra.mxu0 0.0
  %2567 = vmatprep.subr.mxu0 0.0
  %2568 = vmatpush1.msra.mxu0 0.0
  %2569 = vmatprep.subr.mxu0 0.0
  %2570 = vmatpush1.msra.mxu0 0.0
  %2571 = vmatprep.subr.mxu0 0.0
  %2572 = vmatpush1.msra.mxu0 0.0
  %2573 = vmatprep.subr.mxu0 0.0
  %2574 = vmatpush1.msra.mxu0 0.0
  %2575 = vmatprep.subr.mxu0 0.0
  %2576 = vmatpush1.msra.mxu0 0.0
  %2577 = vmatprep.subr.mxu0 0.0
  %2578 = vmatpush1.msra.mxu0 0.0
  %2579 = vmatprep.subr.mxu0 0.0
  %2580 = vmatpush1.msra.mxu0 0.0
  %2581 = vmatprep.subr.mxu0 0.0
  %2582 = vmatpush1.msra.mxu0 0.0
  %2583 = vmatprep.subr.mxu0 0.0
  %2584 = vmatpush1.msra.mxu0 0.0
  %2585 = vmatprep.subr.mxu0 0.0
  %2586 = vmatpush1.msra.mxu0 0.0
  %2587 = vmatprep.subr.mxu0 0.0
  %2588 = vmatpush1.msra.mxu0 0.0
  %2589 = vmatprep.subr.mxu0 0.0
  %2590 = vmatpush1.msra.mxu0 0.0
  %2591 = vmatprep.subr.mxu0 0.0
  %2592 = vmatpush1.msra.mxu0 0.0
  %2593 = vmatprep.subr.mxu0 0.0
  %2594 = vmatpush1.msra.mxu0 0.0
  %2595 = vmatprep.subr.mxu0 0.0
  %2596 = vmatpush1.msra.mxu0 0.0
  %2597 = vmatprep.subr.mxu0 0.0
  %2598 = vmatpush1.msra.mxu0 0.0
  %2599 = vmatprep.subr.mxu0 0.0
  %2600 = vmatpush1.msra.mxu0 0.0
  %2601 = vmatprep.subr.mxu0 0.0
  %2602 = vmatpush1.msra.mxu0 0.0
  %2603 = vmatprep.subr.mxu0 0.0
  %2604 = vmatpush1.msra.mxu0 0.0
  %2605 = vmatprep.subr.mxu0 0.0
  %2606 = vmatpush1.msra.mxu0 0.0
  %2607 = vmatprep.subr.mxu0 0.0
  %2608 = vmatpush1.msra.mxu0 0.0
  %2609 = vmatprep.subr.mxu0 0.0
  %2610 = vmatpush1.msra.mxu0 0.0
  %2611 = vmatprep.subr.mxu0 0.0
  %2612 = vmatpush1.msra.mxu0 0.0
  %2613 = vmatprep.subr.mxu0 0.0
  %2614 = vmatpush1.msra.mxu0 0.0
  %2615 = vmatprep.mubr.f32.mxu0 0.0
  %2616 = vmatmul.mubr.f32.gmra.mrb[0].mxu0 %v2546
  %v2617 = vpop.f32.mrb[0].mxu0
  %v2618 = vadd.f32 0.0, %v2617
  %v2619 = vpop.f32.mrb[0].mxu0
  %v2620 = vadd.f32 0.0, %v2619
  %2621 = vmatprep.mubr.f32.mxu0 0.0
  %2622 = vmatmul.mubr.f32.gmra.mrb[0].mxu0 %v2549
  %v2623 = vpop.f32.mrb[0].mxu0
  %v2624 = vadd.f32 0.0, %v2623
  %v2625 = vpop.f32.mrb[0].mxu0
  %v2626 = vadd.f32 0.0, %v2625
  %2627 = vdwg.mxu0
  %2628 = vmatprep.subr.mxu0 %v2520
  %2629 = vmatpush1.msra.mxu0 %v2519
  %2630 = vmatprep.subr.mxu0 %v2524
  %2631 = vmatpush1.msra.mxu0 %v2523
  %2632 = vmatprep.subr.mxu0 0.0
  %2633 = vmatpush1.msra.mxu0 0.0
  %2634 = vmatprep.subr.mxu0 0.0
  %2635 = vmatpush1.msra.mxu0 0.0
  %2636 = vmatprep.subr.mxu0 0.0
  %2637 = vmatpush1.msra.mxu0 0.0
  %2638 = vmatprep.subr.mxu0 0.0
  %2639 = vmatpush1.msra.mxu0 0.0
  %2640 = vmatprep.subr.mxu0 0.0
  %2641 = vmatpush1.msra.mxu0 0.0
  %2642 = vmatprep.subr.mxu0 0.0
  %2643 = vmatpush1.msra.mxu0 0.0
  %2644 = vmatprep.subr.mxu0 0.0
  %2645 = vmatpush1.msra.mxu0 0.0
  %2646 = vmatprep.subr.mxu0 0.0
  %2647 = vmatpush1.msra.mxu0 0.0
  %2648 = vmatprep.subr.mxu0 0.0
  %2649 = vmatpush1.msra.mxu0 0.0
  %2650 = vmatprep.subr.mxu0 0.0
  %2651 = vmatpush1.msra.mxu0 0.0
  %2652 = vmatprep.subr.mxu0 0.0
  %2653 = vmatpush1.msra.mxu0 0.0
  %2654 = vmatprep.subr.mxu0 0.0
  %2655 = vmatpush1.msra.mxu0 0.0
  %2656 = vmatprep.subr.mxu0 0.0
  %2657 = vmatpush1.msra.mxu0 0.0
  %2658 = vmatprep.subr.mxu0 0.0
  %2659 = vmatpush1.msra.mxu0 0.0
  %2660 = vmatprep.subr.mxu0 0.0
  %2661 = vmatpush1.msra.mxu0 0.0
  %2662 = vmatprep.subr.mxu0 0.0
  %2663 = vmatpush1.msra.mxu0 0.0
  %2664 = vmatprep.subr.mxu0 0.0
  %2665 = vmatpush1.msra.mxu0 0.0
  %2666 = vmatprep.subr.mxu0 0.0
  %2667 = vmatpush1.msra.mxu0 0.0
  %2668 = vmatprep.subr.mxu0 0.0
  %2669 = vmatpush1.msra.mxu0 0.0
  %2670 = vmatprep.subr.mxu0 0.0
  %2671 = vmatpush1.msra.mxu0 0.0
  %2672 = vmatprep.subr.mxu0 0.0
  %2673 = vmatpush1.msra.mxu0 0.0
  %2674 = vmatprep.subr.mxu0 0.0
  %2675 = vmatpush1.msra.mxu0 0.0
  %2676 = vmatprep.subr.mxu0 0.0
  %2677 = vmatpush1.msra.mxu0 0.0
  %2678 = vmatprep.subr.mxu0 0.0
  %2679 = vmatpush1.msra.mxu0 0.0
  %2680 = vmatprep.subr.mxu0 0.0
  %2681 = vmatpush1.msra.mxu0 0.0
  %2682 = vmatprep.subr.mxu0 0.0
  %2683 = vmatpush1.msra.mxu0 0.0
  %2684 = vmatprep.subr.mxu0 0.0
  %2685 = vmatpush1.msra.mxu0 0.0
  %2686 = vmatprep.subr.mxu0 0.0
  %2687 = vmatpush1.msra.mxu0 0.0
  %2688 = vmatprep.subr.mxu0 0.0
  %2689 = vmatpush1.msra.mxu0 0.0
  %2690 = vmatprep.subr.mxu0 0.0
  %2691 = vmatpush1.msra.mxu0 0.0
  %2692 = vmatprep.mubr.f32.mxu0 0.0
  %2693 = vmatmul.mubr.f32.gmra.mrb[0].mxu0 %v2546
  %v2694 = vpop.f32.mrb[0].mxu0
  %v2695 = vadd.f32 0.0, %v2694
  %v2696 = vpop.f32.mrb[0].mxu0
  %v2697 = vadd.f32 0.0, %v2696
  %2698 = vmatprep.mubr.f32.mxu0 0.0
  %2699 = vmatmul.mubr.f32.gmra.mrb[0].mxu0 %v2549
  %v2700 = vpop.f32.mrb[0].mxu0
  %v2701 = vadd.f32 0.0, %v2700
  %v2702 = vpop.f32.mrb[0].mxu0
  %v2703 = vadd.f32 0.0, %v2702
  %2704 = vdwg.mxu0
  %v2705 = vadd.f32 %v2618, %v2620
  %v2706 = vadd.f32 %v2705, %v2695
  %v2707 = vadd.f32 %v2706, %v2697
  %2708 = vadd.xlane.f32.xlu0 %v2707
  %v2709 = vpop.xlane.xlu0 %2708
  %v2710 = vadd.f32 %v2624, %v2626
  %v2711 = vadd.f32 %v2710, %v2701
  %v2712 = vadd.f32 %v2711, %v2703
  %2713 = vadd.xlane.f32.xlu0 %v2712
  %v2714 = vpop.xlane.xlu0 %2713
  %v2715 = vmul.f32 %v2709, %v522
  %v2716 = vmul.f32 %v2714, %v522
  %v2717 = vsub.f32 %v2618, %v2715
  %v2718 = vsub.f32 %v2620, %v2715
  %v2719 = vsub.f32 %v2695, %v2715
  %v2720 = vsub.f32 %v2697, %v2715
  %v2721 = vsub.f32 %v2624, %v2716
  %v2722 = vsub.f32 %v2626, %v2716
  %v2723 = vsub.f32 %v2701, %v2716
  %v2724 = vsub.f32 %v2703, %v2716
  %v2725 = vmul.f32 %v2717, %v2717
  %v2726 = vmul.f32 %v2718, %v2718
  %v2727 = vmul.f32 %v2719, %v2719
  %v2728 = vmul.f32 %v2720, %v2720
  %v2729 = vmul.f32 %v2721, %v2721
  %v2730 = vmul.f32 %v2722, %v2722
  %v2731 = vmul.f32 %v2723, %v2723
  %v2732 = vmul.f32 %v2724, %v2724
  %v2733 = vadd.f32 %v2725, %v2726
  %v2734 = vadd.f32 %v2733, %v2727
  %v2735 = vadd.f32 %v2734, %v2728
  %2736 = vadd.xlane.f32.xlu0 %v2735
  %v2737 = vpop.xlane.xlu0 %2736
  %v2738 = vadd.f32 %v2729, %v2730
  %v2739 = vadd.f32 %v2738, %v2731
  %v2740 = vadd.f32 %v2739, %v2732
  %2741 = vadd.xlane.f32.xlu0 %v2740
  %v2742 = vpop.xlane.xlu0 %2741
  %v2743 = vmul.f32 %v2737, %v522
  %v2744 = vmul.f32 %v2742, %v522
  %v2745 = vadd.f32 %v2743, 1e-05
  %v2746 = vadd.f32 %v2744, 1e-05
  %v2747 = vrsqrt.pop %v2745
  %v2748 = vrsqrt.pop %v2746
  %v2749 = vmul.f32 %v2535, %v2747
  %v2750 = vmul.f32 %v2536, %v2748
  %2752 = vset.pattern.permute.xlu0 0
  %2753 = vperm.xlu0 %2752, %v2749
  %v2754 = vpop.permute.xlu0 %2753
  %2757 = vset.pattern.permute.xlu0 0
  %2758 = vperm.xlu0 %2757, %v2750
  %v2759 = vpop.permute.xlu0 %2758
  %v2761 = vmul.f32 %v2717, %v2754
  %v2762 = vmul.f32 %v2718, %v2754
  %v2763 = vmul.f32 %v2719, %v2754
  %v2764 = vmul.f32 %v2720, %v2754
  %v2765 = vmul.f32 %v2721, %v2759
  %v2766 = vmul.f32 %v2722, %v2759
  %v2767 = vmul.f32 %v2723, %v2759
  %v2768 = vmul.f32 %v2724, %v2759
  %2770 = vset.pattern.permute.xlu0 1
  %2771 = vperm.xlu0 %2770, %v2535
  %v2772 = vpop.permute.xlu0 %2771
  %2775 = vset.pattern.permute.xlu0 1
  %2776 = vperm.xlu0 %2775, %v2536
  %v2777 = vpop.permute.xlu0 %2776
  %v2779 = vadd.f32 %v2761, %v2772
  %v2780 = vadd.f32 %v2762, %v2772
  %v2781 = vadd.f32 %v2763, %v2772
  %v2782 = vadd.f32 %v2764, %v2772
  %v2783 = vadd.f32 %v2765, %v2777
  %v2784 = vadd.f32 %v2766, %v2777
  %v2785 = vadd.f32 %v2767, %v2777
  %v2786 = vadd.f32 %v2768, %v2777
  %v2787 = vxor.u32 %v2779, 2147483648
  %v2788 = vxor.u32 %v2780, 2147483648
  %v2789 = vxor.u32 %v2781, 2147483648
  %v2790 = vxor.u32 %v2782, 2147483648
  %v2791 = vxor.u32 %v2783, 2147483648
  %v2792 = vxor.u32 %v2784, 2147483648
  %v2793 = vxor.u32 %v2785, 2147483648
  %v2794 = vxor.u32 %v2786, 2147483648
  %v2795 = vmul.f32 %v2787, 1.442695
  %v2796 = vpow.pop %v2795
  %v2797 = vmul.f32 %v2788, 1.442695
  %v2798 = vpow.pop %v2797
  %v2799 = vmul.f32 %v2789, 1.442695
  %v2800 = vpow.pop %v2799
  %v2801 = vmul.f32 %v2790, 1.442695
  %v2802 = vpow.pop %v2801
  %v2803 = vmul.f32 %v2791, 1.442695
  %v2804 = vpow.pop %v2803
  %v2805 = vmul.f32 %v2792, 1.442695
  %v2806 = vpow.pop %v2805
  %v2807 = vmul.f32 %v2793, 1.442695
  %v2808 = vpow.pop %v2807
  %v2809 = vmul.f32 %v2794, 1.442695
  %v2810 = vpow.pop %v2809
  %v2811 = vadd.f32 %v2796, 1.0
  %v2812 = vadd.f32 %v2798, 1.0
  %v2813 = vadd.f32 %v2800, 1.0
  %v2814 = vadd.f32 %v2802, 1.0
  %v2815 = vadd.f32 %v2804, 1.0
  %v2816 = vadd.f32 %v2806, 1.0
  %v2817 = vadd.f32 %v2808, 1.0
  %v2818 = vadd.f32 %v2810, 1.0
  %v2819 = vrcp.pop %v2811
  %v2820 = vmul.f32 1.0, %v2819
  %v2821 = vrcp.pop %v2812
  %v2822 = vmul.f32 1.0, %v2821
  %v2823 = vrcp.pop %v2813
  %v2824 = vmul.f32 1.0, %v2823
  %v2825 = vrcp.pop %v2814
  %v2826 = vmul.f32 1.0, %v2825
  %v2827 = vrcp.pop %v2815
  %v2828 = vmul.f32 1.0, %v2827
  %v2829 = vrcp.pop %v2816
  %v2830 = vmul.f32 1.0, %v2829
  %v2831 = vrcp.pop %v2817
  %v2832 = vmul.f32 1.0, %v2831
  %v2833 = vrcp.pop %v2818
  %v2834 = vmul.f32 1.0, %v2833
  %v2835 = vmul.f32 %v2779, %v2820
  %v2836 = vmul.f32 %v2780, %v2822
  %v2837 = vmul.f32 %v2781, %v2824
  %v2838 = vmul.f32 %v2782, %v2826
  %v2839 = vmul.f32 %v2783, %v2828
  %v2840 = vmul.f32 %v2784, %v2830
  %v2841 = vmul.f32 %v2785, %v2832
  %v2842 = vmul.f32 %v2786, %v2834
  %2844 = vset.pattern.permute.xlu0 4
  %2845 = vperm.xlu0 %2844, %v2527
  %v2846 = vpop.permute.xlu0 %2845
  %2849 = vset.pattern.permute.xlu0 4
  %2850 = vperm.xlu0 %2849, %v2528
  %v2851 = vpop.permute.xlu0 %2850
  %2854 = vset.pattern.permute.xlu0 4
  %2855 = vperm.xlu0 %2854, %v2529
  %v2856 = vpop.permute.xlu0 %2855
  %2859 = vset.pattern.permute.xlu0 4
  %2860 = vperm.xlu0 %2859, %v2530
  %v2861 = vpop.permute.xlu0 %2860
  %v2863 = vmul.f32 %v2509, %v2846
  %v2864 = vmul.f32 %v2510, %v2846
  %v2865 = vmul.f32 %v2511, %v2846
  %v2866 = vmul.f32 %v2512, %v2846
  %v2867 = vmul.f32 %v2513, %v2851
  %v2868 = vmul.f32 %v2514, %v2851
  %v2869 = vmul.f32 %v2515, %v2851
  %v2870 = vmul.f32 %v2516, %v2851
  %v2871 = vmul.f32 %v2835, %v2856
  %v2872 = vmul.f32 %v2836, %v2856
  %v2873 = vmul.f32 %v2837, %v2856
  %v2874 = vmul.f32 %v2838, %v2856
  %v2875 = vmul.f32 %v2839, %v2861
  %v2876 = vmul.f32 %v2840, %v2861
  %v2877 = vmul.f32 %v2841, %v2861
  %v2878 = vmul.f32 %v2842, %v2861
  %2883 = vrot.lane.b32.xlu0 %v2512, 17
  %v2884 = vpop.permute.xlu0 %2883
  %2885 = vrot.lane.b32.xlu0 %v2516, 17
  %v2886 = vpop.permute.xlu0 %2885
  %2887 = vrot.lane.b32.xlu0 %v2838, 17
  %v2888 = vpop.permute.xlu0 %2887
  %2889 = vrot.lane.b32.xlu0 %v2842, 17
  %v2890 = vpop.permute.xlu0 %2889
  %2907 = vrot.lane.b32.xlu0 %v2509, 17
  %v2908 = vpop.permute.xlu0 %2907
  %2909 = vrot.lane.b32.xlu0 %v2510, 17
  %v2910 = vpop.permute.xlu0 %2909
  %2911 = vrot.lane.b32.xlu0 %v2511, 17
  %v2912 = vpop.permute.xlu0 %2911
  %2913 = vrot.lane.b32.xlu0 %v2513, 17
  %v2914 = vpop.permute.xlu0 %2913
  %2915 = vrot.lane.b32.xlu0 %v2514, 17
  %v2916 = vpop.permute.xlu0 %2915
  %2917 = vrot.lane.b32.xlu0 %v2515, 17
  %v2918 = vpop.permute.xlu0 %2917
  %2919 = vrot.lane.b32.xlu0 %v2835, 17
  %v2920 = vpop.permute.xlu0 %2919
  %2921 = vrot.lane.b32.xlu0 %v2836, 17
  %v2922 = vpop.permute.xlu0 %2921
  %2923 = vrot.lane.b32.xlu0 %v2837, 17
  %v2924 = vpop.permute.xlu0 %2923
  %2925 = vrot.lane.b32.xlu0 %v2839, 17
  %v2926 = vpop.permute.xlu0 %2925
  %2927 = vrot.lane.b32.xlu0 %v2840, 17
  %v2928 = vpop.permute.xlu0 %2927
  %2929 = vrot.lane.b32.xlu0 %v2841, 17
  %v2930 = vpop.permute.xlu0 %2929
  %v2931 = vsel %vm739, %v2908, %v2910
  %v2932 = vsel %vm739, %v2910, %v2912
  %v2933 = vsel %vm739, %v2912, %v2884
  %v2934 = vsel %vm739, %v2914, %v2916
  %v2935 = vsel %vm739, %v2916, %v2918
  %v2936 = vsel %vm739, %v2918, %v2886
  %v2937 = vsel %vm739, %v2920, %v2922
  %v2938 = vsel %vm739, %v2922, %v2924
  %v2939 = vsel %vm739, %v2924, %v2888
  %v2940 = vsel %vm739, %v2926, %v2928
  %v2941 = vsel %vm739, %v2928, %v2930
  %v2942 = vsel %vm739, %v2930, %v2890
  %v2959 = vsel %vm739, %v2884, %v2908
  %v2960 = vsel %vm739, %v2886, %v2914
  %v2961 = vsel %vm739, %v2888, %v2920
  %v2962 = vsel %vm739, %v2890, %v2926
  %2963 = vset.pattern.permute.xlu0 0
  %2964 = vperm.xlu0 %2963, %v2527
  %v2965 = vpop.permute.xlu0 %2964
  %2967 = vset.pattern.permute.xlu0 0
  %2968 = vperm.xlu0 %2967, %v2528
  %v2969 = vpop.permute.xlu0 %2968
  %2971 = vset.pattern.permute.xlu0 0
  %2972 = vperm.xlu0 %2971, %v2529
  %v2973 = vpop.permute.xlu0 %2972
  %2975 = vset.pattern.permute.xlu0 0
  %2976 = vperm.xlu0 %2975, %v2530
  %v2977 = vpop.permute.xlu0 %2976
  %v2979 = vmul.f32 %v2959, %v2965
  %v2980 = vmul.f32 %v2931, %v2965
  %v2981 = vmul.f32 %v2932, %v2965
  %v2982 = vmul.f32 %v2933, %v2965
  %v2983 = vmul.f32 %v2960, %v2969
  %v2984 = vmul.f32 %v2934, %v2969
  %v2985 = vmul.f32 %v2935, %v2969
  %v2986 = vmul.f32 %v2936, %v2969
  %v2987 = vmul.f32 %v2961, %v2973
  %v2988 = vmul.f32 %v2937, %v2973
  %v2989 = vmul.f32 %v2938, %v2973
  %v2990 = vmul.f32 %v2939, %v2973
  %v2991 = vmul.f32 %v2962, %v2977
  %v2992 = vmul.f32 %v2940, %v2977
  %v2993 = vmul.f32 %v2941, %v2977
  %v2994 = vmul.f32 %v2942, %v2977
  %v2995 = vmul.f32 %v2979, %v807
  %v2996 = vmul.f32 %v2980, %v811
  %v2997 = vmul.f32 %v2981, %v815
  %v2998 = vmul.f32 %v2982, %v819
  %v2999 = vmul.f32 %v2983, %v807
  %v3000 = vmul.f32 %v2984, %v811
  %v3001 = vmul.f32 %v2985, %v815
  %v3002 = vmul.f32 %v2986, %v819
  %v3003 = vmul.f32 %v2987, %v807
  %v3004 = vmul.f32 %v2988, %v811
  %v3005 = vmul.f32 %v2989, %v815
  %v3006 = vmul.f32 %v2990, %v819
  %v3007 = vmul.f32 %v2991, %v807
  %v3008 = vmul.f32 %v2992, %v811
  %v3009 = vmul.f32 %v2993, %v815
  %v3010 = vmul.f32 %v2994, %v819
  %v3011 = vadd.f32 %v2863, %v2995
  %v3012 = vadd.f32 %v2864, %v2996
  %v3013 = vadd.f32 %v2865, %v2997
  %v3014 = vadd.f32 %v2866, %v2998
  %v3015 = vadd.f32 %v2867, %v2999
  %v3016 = vadd.f32 %v2868, %v3000
  %v3017 = vadd.f32 %v2869, %v3001
  %v3018 = vadd.f32 %v2870, %v3002
  %v3019 = vadd.f32 %v2871, %v3003
  %v3020 = vadd.f32 %v2872, %v3004
  %v3021 = vadd.f32 %v2873, %v3005
  %v3022 = vadd.f32 %v2874, %v3006
  %v3023 = vadd.f32 %v2875, %v3007
  %v3024 = vadd.f32 %v2876, %v3008
  %v3025 = vadd.f32 %v2877, %v3009
  %v3026 = vadd.f32 %v2878, %v3010
  %3027 = vrot.lane.b32.xlu0 %v2512, 16
  %v3028 = vpop.permute.xlu0 %3027
  %3029 = vrot.lane.b32.xlu0 %v2516, 16
  %v3030 = vpop.permute.xlu0 %3029
  %3031 = vrot.lane.b32.xlu0 %v2838, 16
  %v3032 = vpop.permute.xlu0 %3031
  %3033 = vrot.lane.b32.xlu0 %v2842, 16
  %v3034 = vpop.permute.xlu0 %3033
  %3039 = vrot.lane.b32.xlu0 %v2509, 16
  %v3040 = vpop.permute.xlu0 %3039
  %3041 = vrot.lane.b32.xlu0 %v2510, 16
  %v3042 = vpop.permute.xlu0 %3041
  %3043 = vrot.lane.b32.xlu0 %v2511, 16
  %v3044 = vpop.permute.xlu0 %3043
  %3045 = vrot.lane.b32.xlu0 %v2513, 16
  %v3046 = vpop.permute.xlu0 %3045
  %3047 = vrot.lane.b32.xlu0 %v2514, 16
  %v3048 = vpop.permute.xlu0 %3047
  %3049 = vrot.lane.b32.xlu0 %v2515, 16
  %v3050 = vpop.permute.xlu0 %3049
  %3051 = vrot.lane.b32.xlu0 %v2835, 16
  %v3052 = vpop.permute.xlu0 %3051
  %3053 = vrot.lane.b32.xlu0 %v2836, 16
  %v3054 = vpop.permute.xlu0 %3053
  %3055 = vrot.lane.b32.xlu0 %v2837, 16
  %v3056 = vpop.permute.xlu0 %3055
  %3057 = vrot.lane.b32.xlu0 %v2839, 16
  %v3058 = vpop.permute.xlu0 %3057
  %3059 = vrot.lane.b32.xlu0 %v2840, 16
  %v3060 = vpop.permute.xlu0 %3059
  %3061 = vrot.lane.b32.xlu0 %v2841, 16
  %v3062 = vpop.permute.xlu0 %3061
  %v3063 = vsel %vm351, %v3040, %v3042
  %v3064 = vsel %vm351, %v3042, %v3044
  %v3065 = vsel %vm351, %v3044, %v3028
  %v3066 = vsel %vm351, %v3046, %v3048
  %v3067 = vsel %vm351, %v3048, %v3050
  %v3068 = vsel %vm351, %v3050, %v3030
  %v3069 = vsel %vm351, %v3052, %v3054
  %v3070 = vsel %vm351, %v3054, %v3056
  %v3071 = vsel %vm351, %v3056, %v3032
  %v3072 = vsel %vm351, %v3058, %v3060
  %v3073 = vsel %vm351, %v3060, %v3062
  %v3074 = vsel %vm351, %v3062, %v3034
  %v3091 = vsel %vm351, %v3028, %v3040
  %v3092 = vsel %vm351, %v3030, %v3046
  %v3093 = vsel %vm351, %v3032, %v3052
  %v3094 = vsel %vm351, %v3034, %v3058
  %3095 = vset.pattern.permute.xlu0 1
  %3096 = vperm.xlu0 %3095, %v2527
  %v3097 = vpop.permute.xlu0 %3096
  %3099 = vset.pattern.permute.xlu0 1
  %3100 = vperm.xlu0 %3099, %v2528
  %v3101 = vpop.permute.xlu0 %3100
  %3103 = vset.pattern.permute.xlu0 1
  %3104 = vperm.xlu0 %3103, %v2529
  %v3105 = vpop.permute.xlu0 %3104
  %3107 = vset.pattern.permute.xlu0 1
  %3108 = vperm.xlu0 %3107, %v2530
  %v3109 = vpop.permute.xlu0 %3108
  %v3111 = vmul.f32 %v3091, %v3097
  %v3112 = vmul.f32 %v3063, %v3097
  %v3113 = vmul.f32 %v3064, %v3097
  %v3114 = vmul.f32 %v3065, %v3097
  %v3115 = vmul.f32 %v3092, %v3101
  %v3116 = vmul.f32 %v3066, %v3101
  %v3117 = vmul.f32 %v3067, %v3101
  %v3118 = vmul.f32 %v3068, %v3101
  %v3119 = vmul.f32 %v3093, %v3105
  %v3120 = vmul.f32 %v3069, %v3105
  %v3121 = vmul.f32 %v3070, %v3105
  %v3122 = vmul.f32 %v3071, %v3105
  %v3123 = vmul.f32 %v3094, %v3109
  %v3124 = vmul.f32 %v3072, %v3109
  %v3125 = vmul.f32 %v3073, %v3109
  %v3126 = vmul.f32 %v3074, %v3109
  %v3127 = vmul.f32 %v3111, %v955
  %v3128 = vmul.f32 %v3112, %v959
  %v3129 = vmul.f32 %v3113, %v963
  %v3130 = vmul.f32 %v3114, %v967
  %v3131 = vmul.f32 %v3115, %v955
  %v3132 = vmul.f32 %v3116, %v959
  %v3133 = vmul.f32 %v3117, %v963
  %v3134 = vmul.f32 %v3118, %v967
  %v3135 = vmul.f32 %v3119, %v955
  %v3136 = vmul.f32 %v3120, %v959
  %v3137 = vmul.f32 %v3121, %v963
  %v3138 = vmul.f32 %v3122, %v967
  %v3139 = vmul.f32 %v3123, %v955
  %v3140 = vmul.f32 %v3124, %v959
  %v3141 = vmul.f32 %v3125, %v963
  %v3142 = vmul.f32 %v3126, %v967
  %v3143 = vadd.f32 %v3011, %v3127
  %v3144 = vadd.f32 %v3012, %v3128
  %v3145 = vadd.f32 %v3013, %v3129
  %v3146 = vadd.f32 %v3014, %v3130
  %v3147 = vadd.f32 %v3015, %v3131
  %v3148 = vadd.f32 %v3016, %v3132
  %v3149 = vadd.f32 %v3017, %v3133
  %v3150 = vadd.f32 %v3018, %v3134
  %v3151 = vadd.f32 %v3019, %v3135
  %v3152 = vadd.f32 %v3020, %v3136
  %v3153 = vadd.f32 %v3021, %v3137
  %v3154 = vadd.f32 %v3022, %v3138
  %v3155 = vadd.f32 %v3023, %v3139
  %v3156 = vadd.f32 %v3024, %v3140
  %v3157 = vadd.f32 %v3025, %v3141
  %v3158 = vadd.f32 %v3026, %v3142
  %3159 = vrot.lane.b32.xlu0 %v2512, 15
  %v3160 = vpop.permute.xlu0 %3159
  %3161 = vrot.lane.b32.xlu0 %v2516, 15
  %v3162 = vpop.permute.xlu0 %3161
  %3163 = vrot.lane.b32.xlu0 %v2838, 15
  %v3164 = vpop.permute.xlu0 %3163
  %3165 = vrot.lane.b32.xlu0 %v2842, 15
  %v3166 = vpop.permute.xlu0 %3165
  %3171 = vrot.lane.b32.xlu0 %v2509, 15
  %v3172 = vpop.permute.xlu0 %3171
  %3173 = vrot.lane.b32.xlu0 %v2510, 15
  %v3174 = vpop.permute.xlu0 %3173
  %3175 = vrot.lane.b32.xlu0 %v2511, 15
  %v3176 = vpop.permute.xlu0 %3175
  %3177 = vrot.lane.b32.xlu0 %v2513, 15
  %v3178 = vpop.permute.xlu0 %3177
  %3179 = vrot.lane.b32.xlu0 %v2514, 15
  %v3180 = vpop.permute.xlu0 %3179
  %3181 = vrot.lane.b32.xlu0 %v2515, 15
  %v3182 = vpop.permute.xlu0 %3181
  %3183 = vrot.lane.b32.xlu0 %v2835, 15
  %v3184 = vpop.permute.xlu0 %3183
  %3185 = vrot.lane.b32.xlu0 %v2836, 15
  %v3186 = vpop.permute.xlu0 %3185
  %3187 = vrot.lane.b32.xlu0 %v2837, 15
  %v3188 = vpop.permute.xlu0 %3187
  %3189 = vrot.lane.b32.xlu0 %v2839, 15
  %v3190 = vpop.permute.xlu0 %3189
  %3191 = vrot.lane.b32.xlu0 %v2840, 15
  %v3192 = vpop.permute.xlu0 %3191
  %3193 = vrot.lane.b32.xlu0 %v2841, 15
  %v3194 = vpop.permute.xlu0 %3193
  %v3195 = vsel %vm1036, %v3172, %v3174
  %v3196 = vsel %vm1036, %v3174, %v3176
  %v3197 = vsel %vm1036, %v3176, %v3160
  %v3198 = vsel %vm1036, %v3178, %v3180
  %v3199 = vsel %vm1036, %v3180, %v3182
  %v3200 = vsel %vm1036, %v3182, %v3162
  %v3201 = vsel %vm1036, %v3184, %v3186
  %v3202 = vsel %vm1036, %v3186, %v3188
  %v3203 = vsel %vm1036, %v3188, %v3164
  %v3204 = vsel %vm1036, %v3190, %v3192
  %v3205 = vsel %vm1036, %v3192, %v3194
  %v3206 = vsel %vm1036, %v3194, %v3166
  %v3223 = vsel %vm1036, %v3160, %v3172
  %v3224 = vsel %vm1036, %v3162, %v3178
  %v3225 = vsel %vm1036, %v3164, %v3184
  %v3226 = vsel %vm1036, %v3166, %v3190
  %3227 = vset.pattern.permute.xlu0 2
  %3228 = vperm.xlu0 %3227, %v2527
  %v3229 = vpop.permute.xlu0 %3228
  %3231 = vset.pattern.permute.xlu0 2
  %3232 = vperm.xlu0 %3231, %v2528
  %v3233 = vpop.permute.xlu0 %3232
  %3235 = vset.pattern.permute.xlu0 2
  %3236 = vperm.xlu0 %3235, %v2529
  %v3237 = vpop.permute.xlu0 %3236
  %3239 = vset.pattern.permute.xlu0 2
  %3240 = vperm.xlu0 %3239, %v2530
  %v3241 = vpop.permute.xlu0 %3240
  %v3243 = vmul.f32 %v3223, %v3229
  %v3244 = vmul.f32 %v3195, %v3229
  %v3245 = vmul.f32 %v3196, %v3229
  %v3246 = vmul.f32 %v3197, %v3229
  %v3247 = vmul.f32 %v3224, %v3233
  %v3248 = vmul.f32 %v3198, %v3233
  %v3249 = vmul.f32 %v3199, %v3233
  %v3250 = vmul.f32 %v3200, %v3233
  %v3251 = vmul.f32 %v3225, %v3237
  %v3252 = vmul.f32 %v3201, %v3237
  %v3253 = vmul.f32 %v3202, %v3237
  %v3254 = vmul.f32 %v3203, %v3237
  %v3255 = vmul.f32 %v3226, %v3241
  %v3256 = vmul.f32 %v3204, %v3241
  %v3257 = vmul.f32 %v3205, %v3241
  %v3258 = vmul.f32 %v3206, %v3241
  %v3259 = vmul.f32 %v3243, %v1104
  %v3260 = vmul.f32 %v3244, %v1108
  %v3261 = vmul.f32 %v3245, %v1112
  %v3262 = vmul.f32 %v3246, %v1116
  %v3263 = vmul.f32 %v3247, %v1104
  %v3264 = vmul.f32 %v3248, %v1108
  %v3265 = vmul.f32 %v3249, %v1112
  %v3266 = vmul.f32 %v3250, %v1116
  %v3267 = vmul.f32 %v3251, %v1104
  %v3268 = vmul.f32 %v3252, %v1108
  %v3269 = vmul.f32 %v3253, %v1112
  %v3270 = vmul.f32 %v3254, %v1116
  %v3271 = vmul.f32 %v3255, %v1104
  %v3272 = vmul.f32 %v3256, %v1108
  %v3273 = vmul.f32 %v3257, %v1112
  %v3274 = vmul.f32 %v3258, %v1116
  %v3275 = vadd.f32 %v3143, %v3259
  %v3276 = vadd.f32 %v3144, %v3260
  %v3277 = vadd.f32 %v3145, %v3261
  %v3278 = vadd.f32 %v3146, %v3262
  %v3279 = vadd.f32 %v3147, %v3263
  %v3280 = vadd.f32 %v3148, %v3264
  %v3281 = vadd.f32 %v3149, %v3265
  %v3282 = vadd.f32 %v3150, %v3266
  %v3283 = vadd.f32 %v3151, %v3267
  %v3284 = vadd.f32 %v3152, %v3268
  %v3285 = vadd.f32 %v3153, %v3269
  %v3286 = vadd.f32 %v3154, %v3270
  %v3287 = vadd.f32 %v3155, %v3271
  %v3288 = vadd.f32 %v3156, %v3272
  %v3289 = vadd.f32 %v3157, %v3273
  %v3290 = vadd.f32 %v3158, %v3274
  %3291 = vrot.lane.b32.xlu0 %v2512, 1
  %v3292 = vpop.permute.xlu0 %3291
  %3293 = vrot.lane.b32.xlu0 %v2516, 1
  %v3294 = vpop.permute.xlu0 %3293
  %3295 = vrot.lane.b32.xlu0 %v2838, 1
  %v3296 = vpop.permute.xlu0 %3295
  %3297 = vrot.lane.b32.xlu0 %v2842, 1
  %v3298 = vpop.permute.xlu0 %3297
  %3303 = vrot.lane.b32.xlu0 %v2509, 1
  %v3304 = vpop.permute.xlu0 %3303
  %3305 = vrot.lane.b32.xlu0 %v2510, 1
  %v3306 = vpop.permute.xlu0 %3305
  %3307 = vrot.lane.b32.xlu0 %v2511, 1
  %v3308 = vpop.permute.xlu0 %3307
  %3309 = vrot.lane.b32.xlu0 %v2513, 1
  %v3310 = vpop.permute.xlu0 %3309
  %3311 = vrot.lane.b32.xlu0 %v2514, 1
  %v3312 = vpop.permute.xlu0 %3311
  %3313 = vrot.lane.b32.xlu0 %v2515, 1
  %v3314 = vpop.permute.xlu0 %3313
  %3315 = vrot.lane.b32.xlu0 %v2835, 1
  %v3316 = vpop.permute.xlu0 %3315
  %3317 = vrot.lane.b32.xlu0 %v2836, 1
  %v3318 = vpop.permute.xlu0 %3317
  %3319 = vrot.lane.b32.xlu0 %v2837, 1
  %v3320 = vpop.permute.xlu0 %3319
  %3321 = vrot.lane.b32.xlu0 %v2839, 1
  %v3322 = vpop.permute.xlu0 %3321
  %3323 = vrot.lane.b32.xlu0 %v2840, 1
  %v3324 = vpop.permute.xlu0 %3323
  %3325 = vrot.lane.b32.xlu0 %v2841, 1
  %v3326 = vpop.permute.xlu0 %3325
  %v3327 = vsel %vm1185, %v3304, %v3306
  %v3328 = vsel %vm1185, %v3306, %v3308
  %v3329 = vsel %vm1185, %v3308, %v3292
  %v3330 = vsel %vm1185, %v3310, %v3312
  %v3331 = vsel %vm1185, %v3312, %v3314
  %v3332 = vsel %vm1185, %v3314, %v3294
  %v3333 = vsel %vm1185, %v3316, %v3318
  %v3334 = vsel %vm1185, %v3318, %v3320
  %v3335 = vsel %vm1185, %v3320, %v3296
  %v3336 = vsel %vm1185, %v3322, %v3324
  %v3337 = vsel %vm1185, %v3324, %v3326
  %v3338 = vsel %vm1185, %v3326, %v3298
  %v3355 = vsel %vm1185, %v3292, %v3304
  %v3356 = vsel %vm1185, %v3294, %v3310
  %v3357 = vsel %vm1185, %v3296, %v3316
  %v3358 = vsel %vm1185, %v3298, %v3322
  %3359 = vset.pattern.permute.xlu0 3
  %3360 = vperm.xlu0 %3359, %v2527
  %v3361 = vpop.permute.xlu0 %3360
  %3363 = vset.pattern.permute.xlu0 3
  %3364 = vperm.xlu0 %3363, %v2528
  %v3365 = vpop.permute.xlu0 %3364
  %3367 = vset.pattern.permute.xlu0 3
  %3368 = vperm.xlu0 %3367, %v2529
  %v3369 = vpop.permute.xlu0 %3368
  %3371 = vset.pattern.permute.xlu0 3
  %3372 = vperm.xlu0 %3371, %v2530
  %v3373 = vpop.permute.xlu0 %3372
  %v3375 = vmul.f32 %v3355, %v3361
  %v3376 = vmul.f32 %v3327, %v3361
  %v3377 = vmul.f32 %v3328, %v3361
  %v3378 = vmul.f32 %v3329, %v3361
  %v3379 = vmul.f32 %v3356, %v3365
  %v3380 = vmul.f32 %v3330, %v3365
  %v3381 = vmul.f32 %v3331, %v3365
  %v3382 = vmul.f32 %v3332, %v3365
  %v3383 = vmul.f32 %v3357, %v3369
  %v3384 = vmul.f32 %v3333, %v3369
  %v3385 = vmul.f32 %v3334, %v3369
  %v3386 = vmul.f32 %v3335, %v3369
  %v3387 = vmul.f32 %v3358, %v3373
  %v3388 = vmul.f32 %v3336, %v3373
  %v3389 = vmul.f32 %v3337, %v3373
  %v3390 = vmul.f32 %v3338, %v3373
  %v3391 = vmul.f32 %v3375, %v1253
  %v3392 = vmul.f32 %v3376, %v1257
  %v3393 = vmul.f32 %v3377, %v1261
  %v3394 = vmul.f32 %v3378, %v1265
  %v3395 = vmul.f32 %v3379, %v1253
  %v3396 = vmul.f32 %v3380, %v1257
  %v3397 = vmul.f32 %v3381, %v1261
  %v3398 = vmul.f32 %v3382, %v1265
  %v3399 = vmul.f32 %v3383, %v1253
  %v3400 = vmul.f32 %v3384, %v1257
  %v3401 = vmul.f32 %v3385, %v1261
  %v3402 = vmul.f32 %v3386, %v1265
  %v3403 = vmul.f32 %v3387, %v1253
  %v3404 = vmul.f32 %v3388, %v1257
  %v3405 = vmul.f32 %v3389, %v1261
  %v3406 = vmul.f32 %v3390, %v1265
  %v3407 = vadd.f32 %v3275, %v3391
  %v3408 = vadd.f32 %v3276, %v3392
  %v3409 = vadd.f32 %v3277, %v3393
  %v3410 = vadd.f32 %v3278, %v3394
  %v3411 = vadd.f32 %v3279, %v3395
  %v3412 = vadd.f32 %v3280, %v3396
  %v3413 = vadd.f32 %v3281, %v3397
  %v3414 = vadd.f32 %v3282, %v3398
  %v3415 = vadd.f32 %v3283, %v3399
  %v3416 = vadd.f32 %v3284, %v3400
  %v3417 = vadd.f32 %v3285, %v3401
  %v3418 = vadd.f32 %v3286, %v3402
  %v3419 = vadd.f32 %v3287, %v3403
  %v3420 = vadd.f32 %v3288, %v3404
  %v3421 = vadd.f32 %v3289, %v3405
  %v3422 = vadd.f32 %v3290, %v3406
  %3423 = vrot.lane.b32.xlu0 %v2509, 127
  %v3424 = vpop.permute.xlu0 %3423
  %3425 = vrot.lane.b32.xlu0 %v2510, 127
  %v3426 = vpop.permute.xlu0 %3425
  %3427 = vrot.lane.b32.xlu0 %v2511, 127
  %v3428 = vpop.permute.xlu0 %3427
  %3429 = vrot.lane.b32.xlu0 %v2512, 127
  %v3430 = vpop.permute.xlu0 %3429
  %3431 = vrot.lane.b32.xlu0 %v2513, 127
  %v3432 = vpop.permute.xlu0 %3431
  %3433 = vrot.lane.b32.xlu0 %v2514, 127
  %v3434 = vpop.permute.xlu0 %3433
  %3435 = vrot.lane.b32.xlu0 %v2515, 127
  %v3436 = vpop.permute.xlu0 %3435
  %3437 = vrot.lane.b32.xlu0 %v2516, 127
  %v3438 = vpop.permute.xlu0 %3437
  %3439 = vrot.lane.b32.xlu0 %v2835, 127
  %v3440 = vpop.permute.xlu0 %3439
  %3441 = vrot.lane.b32.xlu0 %v2836, 127
  %v3442 = vpop.permute.xlu0 %3441
  %3443 = vrot.lane.b32.xlu0 %v2837, 127
  %v3444 = vpop.permute.xlu0 %3443
  %3445 = vrot.lane.b32.xlu0 %v2838, 127
  %v3446 = vpop.permute.xlu0 %3445
  %3447 = vrot.lane.b32.xlu0 %v2839, 127
  %v3448 = vpop.permute.xlu0 %3447
  %3449 = vrot.lane.b32.xlu0 %v2840, 127
  %v3450 = vpop.permute.xlu0 %3449
  %3451 = vrot.lane.b32.xlu0 %v2841, 127
  %v3452 = vpop.permute.xlu0 %3451
  %3453 = vrot.lane.b32.xlu0 %v2842, 127
  %v3454 = vpop.permute.xlu0 %3453
  %v3455 = vsel %vm1330, %v3424, %v3426
  %v3456 = vsel %vm1330, %v3426, %v3428
  %v3457 = vsel %vm1330, %v3428, %v3430
  %v3458 = vsel %vm1330, %v3432, %v3434
  %v3459 = vsel %vm1330, %v3434, %v3436
  %v3460 = vsel %vm1330, %v3436, %v3438
  %v3461 = vsel %vm1330, %v3440, %v3442
  %v3462 = vsel %vm1330, %v3442, %v3444
  %v3463 = vsel %vm1330, %v3444, %v3446
  %v3464 = vsel %vm1330, %v3448, %v3450
  %v3465 = vsel %vm1330, %v3450, %v3452
  %v3466 = vsel %vm1330, %v3452, %v3454
  %v3487 = vsel %vm1330, %v3430, %v3424
  %v3488 = vsel %vm1330, %v3438, %v3432
  %v3489 = vsel %vm1330, %v3446, %v3440
  %v3490 = vsel %vm1330, %v3454, %v3448
  %3491 = vset.pattern.permute.xlu0 5
  %3492 = vperm.xlu0 %3491, %v2527
  %v3493 = vpop.permute.xlu0 %3492
  %3495 = vset.pattern.permute.xlu0 5
  %3496 = vperm.xlu0 %3495, %v2528
  %v3497 = vpop.permute.xlu0 %3496
  %3499 = vset.pattern.permute.xlu0 5
  %3500 = vperm.xlu0 %3499, %v2529
  %v3501 = vpop.permute.xlu0 %3500
  %3503 = vset.pattern.permute.xlu0 5
  %3504 = vperm.xlu0 %3503, %v2530
  %v3505 = vpop.permute.xlu0 %3504
  %v3507 = vmul.f32 %v3455, %v3493
  %v3508 = vmul.f32 %v3456, %v3493
  %v3509 = vmul.f32 %v3457, %v3493
  %v3510 = vmul.f32 %v3487, %v3493
  %v3511 = vmul.f32 %v3458, %v3497
  %v3512 = vmul.f32 %v3459, %v3497
  %v3513 = vmul.f32 %v3460, %v3497
  %v3514 = vmul.f32 %v3488, %v3497
  %v3515 = vmul.f32 %v3461, %v3501
  %v3516 = vmul.f32 %v3462, %v3501
  %v3517 = vmul.f32 %v3463, %v3501
  %v3518 = vmul.f32 %v3489, %v3501
  %v3519 = vmul.f32 %v3464, %v3505
  %v3520 = vmul.f32 %v3465, %v3505
  %v3521 = vmul.f32 %v3466, %v3505
  %v3522 = vmul.f32 %v3490, %v3505
  %v3523 = vmul.f32 %v3507, %v1402
  %v3524 = vmul.f32 %v3508, %v1406
  %v3525 = vmul.f32 %v3509, %v1410
  %v3526 = vmul.f32 %v3510, %v1414
  %v3527 = vmul.f32 %v3511, %v1402
  %v3528 = vmul.f32 %v3512, %v1406
  %v3529 = vmul.f32 %v3513, %v1410
  %v3530 = vmul.f32 %v3514, %v1414
  %v3531 = vmul.f32 %v3515, %v1402
  %v3532 = vmul.f32 %v3516, %v1406
  %v3533 = vmul.f32 %v3517, %v1410
  %v3534 = vmul.f32 %v3518, %v1414
  %v3535 = vmul.f32 %v3519, %v1402
  %v3536 = vmul.f32 %v3520, %v1406
  %v3537 = vmul.f32 %v3521, %v1410
  %v3538 = vmul.f32 %v3522, %v1414
  %v3539 = vadd.f32 %v3407, %v3523
  %v3540 = vadd.f32 %v3408, %v3524
  %v3541 = vadd.f32 %v3409, %v3525
  %v3542 = vadd.f32 %v3410, %v3526
  %v3543 = vadd.f32 %v3411, %v3527
  %v3544 = vadd.f32 %v3412, %v3528
  %v3545 = vadd.f32 %v3413, %v3529
  %v3546 = vadd.f32 %v3414, %v3530
  %v3547 = vadd.f32 %v3415, %v3531
  %v3548 = vadd.f32 %v3416, %v3532
  %v3549 = vadd.f32 %v3417, %v3533
  %v3550 = vadd.f32 %v3418, %v3534
  %v3551 = vadd.f32 %v3419, %v3535
  %v3552 = vadd.f32 %v3420, %v3536
  %v3553 = vadd.f32 %v3421, %v3537
  %v3554 = vadd.f32 %v3422, %v3538
  %3555 = vrot.lane.b32.xlu0 %v2509, 113
  %v3556 = vpop.permute.xlu0 %3555
  %3557 = vrot.lane.b32.xlu0 %v2510, 113
  %v3558 = vpop.permute.xlu0 %3557
  %3559 = vrot.lane.b32.xlu0 %v2511, 113
  %v3560 = vpop.permute.xlu0 %3559
  %3561 = vrot.lane.b32.xlu0 %v2512, 113
  %v3562 = vpop.permute.xlu0 %3561
  %3563 = vrot.lane.b32.xlu0 %v2513, 113
  %v3564 = vpop.permute.xlu0 %3563
  %3565 = vrot.lane.b32.xlu0 %v2514, 113
  %v3566 = vpop.permute.xlu0 %3565
  %3567 = vrot.lane.b32.xlu0 %v2515, 113
  %v3568 = vpop.permute.xlu0 %3567
  %3569 = vrot.lane.b32.xlu0 %v2516, 113
  %v3570 = vpop.permute.xlu0 %3569
  %3571 = vrot.lane.b32.xlu0 %v2835, 113
  %v3572 = vpop.permute.xlu0 %3571
  %3573 = vrot.lane.b32.xlu0 %v2836, 113
  %v3574 = vpop.permute.xlu0 %3573
  %3575 = vrot.lane.b32.xlu0 %v2837, 113
  %v3576 = vpop.permute.xlu0 %3575
  %3577 = vrot.lane.b32.xlu0 %v2838, 113
  %v3578 = vpop.permute.xlu0 %3577
  %3579 = vrot.lane.b32.xlu0 %v2839, 113
  %v3580 = vpop.permute.xlu0 %3579
  %3581 = vrot.lane.b32.xlu0 %v2840, 113
  %v3582 = vpop.permute.xlu0 %3581
  %3583 = vrot.lane.b32.xlu0 %v2841, 113
  %v3584 = vpop.permute.xlu0 %3583
  %3585 = vrot.lane.b32.xlu0 %v2842, 113
  %v3586 = vpop.permute.xlu0 %3585
  %v3587 = vsel %vm1479, %v3556, %v3558
  %v3588 = vsel %vm1479, %v3558, %v3560
  %v3589 = vsel %vm1479, %v3560, %v3562
  %v3590 = vsel %vm1479, %v3564, %v3566
  %v3591 = vsel %vm1479, %v3566, %v3568
  %v3592 = vsel %vm1479, %v3568, %v3570
  %v3593 = vsel %vm1479, %v3572, %v3574
  %v3594 = vsel %vm1479, %v3574, %v3576
  %v3595 = vsel %vm1479, %v3576, %v3578
  %v3596 = vsel %vm1479, %v3580, %v3582
  %v3597 = vsel %vm1479, %v3582, %v3584
  %v3598 = vsel %vm1479, %v3584, %v3586
  %v3619 = vsel %vm1479, %v3562, %v3556
  %v3620 = vsel %vm1479, %v3570, %v3564
  %v3621 = vsel %vm1479, %v3578, %v3572
  %v3622 = vsel %vm1479, %v3586, %v3580
  %3623 = vset.pattern.permute.xlu0 6
  %3624 = vperm.xlu0 %3623, %v2527
  %v3625 = vpop.permute.xlu0 %3624
  %3627 = vset.pattern.permute.xlu0 6
  %3628 = vperm.xlu0 %3627, %v2528
  %v3629 = vpop.permute.xlu0 %3628
  %3631 = vset.pattern.permute.xlu0 6
  %3632 = vperm.xlu0 %3631, %v2529
  %v3633 = vpop.permute.xlu0 %3632
  %3635 = vset.pattern.permute.xlu0 6
  %3636 = vperm.xlu0 %3635, %v2530
  %v3637 = vpop.permute.xlu0 %3636
  %v3639 = vmul.f32 %v3587, %v3625
  %v3640 = vmul.f32 %v3588, %v3625
  %v3641 = vmul.f32 %v3589, %v3625
  %v3642 = vmul.f32 %v3619, %v3625
  %v3643 = vmul.f32 %v3590, %v3629
  %v3644 = vmul.f32 %v3591, %v3629
  %v3645 = vmul.f32 %v3592, %v3629
  %v3646 = vmul.f32 %v3620, %v3629
  %v3647 = vmul.f32 %v3593, %v3633
  %v3648 = vmul.f32 %v3594, %v3633
  %v3649 = vmul.f32 %v3595, %v3633
  %v3650 = vmul.f32 %v3621, %v3633
  %v3651 = vmul.f32 %v3596, %v3637
  %v3652 = vmul.f32 %v3597, %v3637
  %v3653 = vmul.f32 %v3598, %v3637
  %v3654 = vmul.f32 %v3622, %v3637
  %v3655 = vmul.f32 %v3639, %v1551
  %v3656 = vmul.f32 %v3640, %v1555
  %v3657 = vmul.f32 %v3641, %v1559
  %v3658 = vmul.f32 %v3642, %v1563
  %v3659 = vmul.f32 %v3643, %v1551
  %v3660 = vmul.f32 %v3644, %v1555
  %v3661 = vmul.f32 %v3645, %v1559
  %v3662 = vmul.f32 %v3646, %v1563
  %v3663 = vmul.f32 %v3647, %v1551
  %v3664 = vmul.f32 %v3648, %v1555
  %v3665 = vmul.f32 %v3649, %v1559
  %v3666 = vmul.f32 %v3650, %v1563
  %v3667 = vmul.f32 %v3651, %v1551
  %v3668 = vmul.f32 %v3652, %v1555
  %v3669 = vmul.f32 %v3653, %v1559
  %v3670 = vmul.f32 %v3654, %v1563
  %v3671 = vadd.f32 %v3539, %v3655
  %v3672 = vadd.f32 %v3540, %v3656
  %v3673 = vadd.f32 %v3541, %v3657
  %v3674 = vadd.f32 %v3542, %v3658
  %v3675 = vadd.f32 %v3543, %v3659
  %v3676 = vadd.f32 %v3544, %v3660
  %v3677 = vadd.f32 %v3545, %v3661
  %v3678 = vadd.f32 %v3546, %v3662
  %v3679 = vadd.f32 %v3547, %v3663
  %v3680 = vadd.f32 %v3548, %v3664
  %v3681 = vadd.f32 %v3549, %v3665
  %v3682 = vadd.f32 %v3550, %v3666
  %v3683 = vadd.f32 %v3551, %v3667
  %v3684 = vadd.f32 %v3552, %v3668
  %v3685 = vadd.f32 %v3553, %v3669
  %v3686 = vadd.f32 %v3554, %v3670
  %3687 = vrot.lane.b32.xlu0 %v2509, 112
  %v3688 = vpop.permute.xlu0 %3687
  %3689 = vrot.lane.b32.xlu0 %v2510, 112
  %v3690 = vpop.permute.xlu0 %3689
  %3691 = vrot.lane.b32.xlu0 %v2511, 112
  %v3692 = vpop.permute.xlu0 %3691
  %3693 = vrot.lane.b32.xlu0 %v2512, 112
  %v3694 = vpop.permute.xlu0 %3693
  %3695 = vrot.lane.b32.xlu0 %v2513, 112
  %v3696 = vpop.permute.xlu0 %3695
  %3697 = vrot.lane.b32.xlu0 %v2514, 112
  %v3698 = vpop.permute.xlu0 %3697
  %3699 = vrot.lane.b32.xlu0 %v2515, 112
  %v3700 = vpop.permute.xlu0 %3699
  %3701 = vrot.lane.b32.xlu0 %v2516, 112
  %v3702 = vpop.permute.xlu0 %3701
  %3703 = vrot.lane.b32.xlu0 %v2835, 112
  %v3704 = vpop.permute.xlu0 %3703
  %3705 = vrot.lane.b32.xlu0 %v2836, 112
  %v3706 = vpop.permute.xlu0 %3705
  %3707 = vrot.lane.b32.xlu0 %v2837, 112
  %v3708 = vpop.permute.xlu0 %3707
  %3709 = vrot.lane.b32.xlu0 %v2838, 112
  %v3710 = vpop.permute.xlu0 %3709
  %3711 = vrot.lane.b32.xlu0 %v2839, 112
  %v3712 = vpop.permute.xlu0 %3711
  %3713 = vrot.lane.b32.xlu0 %v2840, 112
  %v3714 = vpop.permute.xlu0 %3713
  %3715 = vrot.lane.b32.xlu0 %v2841, 112
  %v3716 = vpop.permute.xlu0 %3715
  %3717 = vrot.lane.b32.xlu0 %v2842, 112
  %v3718 = vpop.permute.xlu0 %3717
  %v3719 = vsel %vm1628, %v3688, %v3690
  %v3720 = vsel %vm1628, %v3690, %v3692
  %v3721 = vsel %vm1628, %v3692, %v3694
  %v3722 = vsel %vm1628, %v3696, %v3698
  %v3723 = vsel %vm1628, %v3698, %v3700
  %v3724 = vsel %vm1628, %v3700, %v3702
  %v3725 = vsel %vm1628, %v3704, %v3706
  %v3726 = vsel %vm1628, %v3706, %v3708
  %v3727 = vsel %vm1628, %v3708, %v3710
  %v3728 = vsel %vm1628, %v3712, %v3714
  %v3729 = vsel %vm1628, %v3714, %v3716
  %v3730 = vsel %vm1628, %v3716, %v3718
  %v3751 = vsel %vm1628, %v3694, %v3688
  %v3752 = vsel %vm1628, %v3702, %v3696
  %v3753 = vsel %vm1628, %v3710, %v3704
  %v3754 = vsel %vm1628, %v3718, %v3712
  %3755 = vset.pattern.permute.xlu0 7
  %3756 = vperm.xlu0 %3755, %v2527
  %v3757 = vpop.permute.xlu0 %3756
  %3759 = vset.pattern.permute.xlu0 7
  %3760 = vperm.xlu0 %3759, %v2528
  %v3761 = vpop.permute.xlu0 %3760
  %3763 = vset.pattern.permute.xlu0 7
  %3764 = vperm.xlu0 %3763, %v2529
  %v3765 = vpop.permute.xlu0 %3764
  %3767 = vset.pattern.permute.xlu0 7
  %3768 = vperm.xlu0 %3767, %v2530
  %v3769 = vpop.permute.xlu0 %3768
  %v3771 = vmul.f32 %v3719, %v3757
  %v3772 = vmul.f32 %v3720, %v3757
  %v3773 = vmul.f32 %v3721, %v3757
  %v3774 = vmul.f32 %v3751, %v3757
  %v3775 = vmul.f32 %v3722, %v3761
  %v3776 = vmul.f32 %v3723, %v3761
  %v3777 = vmul.f32 %v3724, %v3761
  %v3778 = vmul.f32 %v3752, %v3761
  %v3779 = vmul.f32 %v3725, %v3765
  %v3780 = vmul.f32 %v3726, %v3765
  %v3781 = vmul.f32 %v3727, %v3765
  %v3782 = vmul.f32 %v3753, %v3765
  %v3783 = vmul.f32 %v3728, %v3769
  %v3784 = vmul.f32 %v3729, %v3769
  %v3785 = vmul.f32 %v3730, %v3769
  %v3786 = vmul.f32 %v3754, %v3769
  %v3787 = vmul.f32 %v3771, %v1700
  %v3788 = vmul.f32 %v3772, %v1704
  %v3789 = vmul.f32 %v3773, %v1708
  %v3790 = vmul.f32 %v3774, %v1712
  %v3791 = vmul.f32 %v3775, %v1700
  %v3792 = vmul.f32 %v3776, %v1704
  %v3793 = vmul.f32 %v3777, %v1708
  %v3794 = vmul.f32 %v3778, %v1712
  %v3795 = vmul.f32 %v3779, %v1700
  %v3796 = vmul.f32 %v3780, %v1704
  %v3797 = vmul.f32 %v3781, %v1708
  %v3798 = vmul.f32 %v3782, %v1712
  %v3799 = vmul.f32 %v3783, %v1700
  %v3800 = vmul.f32 %v3784, %v1704
  %v3801 = vmul.f32 %v3785, %v1708
  %v3802 = vmul.f32 %v3786, %v1712
  %v3803 = vadd.f32 %v3671, %v3787
  %v3804 = vadd.f32 %v3672, %v3788
  %v3805 = vadd.f32 %v3673, %v3789
  %v3806 = vadd.f32 %v3674, %v3790
  %v3807 = vadd.f32 %v3675, %v3791
  %v3808 = vadd.f32 %v3676, %v3792
  %v3809 = vadd.f32 %v3677, %v3793
  %v3810 = vadd.f32 %v3678, %v3794
  %v3811 = vadd.f32 %v3679, %v3795
  %v3812 = vadd.f32 %v3680, %v3796
  %v3813 = vadd.f32 %v3681, %v3797
  %v3814 = vadd.f32 %v3682, %v3798
  %v3815 = vadd.f32 %v3683, %v3799
  %v3816 = vadd.f32 %v3684, %v3800
  %v3817 = vadd.f32 %v3685, %v3801
  %v3818 = vadd.f32 %v3686, %v3802
  %3819 = vrot.lane.b32.xlu0 %v2509, 111
  %v3820 = vpop.permute.xlu0 %3819
  %3821 = vrot.lane.b32.xlu0 %v2510, 111
  %v3822 = vpop.permute.xlu0 %3821
  %3823 = vrot.lane.b32.xlu0 %v2511, 111
  %v3824 = vpop.permute.xlu0 %3823
  %3825 = vrot.lane.b32.xlu0 %v2512, 111
  %v3826 = vpop.permute.xlu0 %3825
  %3827 = vrot.lane.b32.xlu0 %v2513, 111
  %v3828 = vpop.permute.xlu0 %3827
  %3829 = vrot.lane.b32.xlu0 %v2514, 111
  %v3830 = vpop.permute.xlu0 %3829
  %3831 = vrot.lane.b32.xlu0 %v2515, 111
  %v3832 = vpop.permute.xlu0 %3831
  %3833 = vrot.lane.b32.xlu0 %v2516, 111
  %v3834 = vpop.permute.xlu0 %3833
  %3835 = vrot.lane.b32.xlu0 %v2835, 111
  %v3836 = vpop.permute.xlu0 %3835
  %3837 = vrot.lane.b32.xlu0 %v2836, 111
  %v3838 = vpop.permute.xlu0 %3837
  %3839 = vrot.lane.b32.xlu0 %v2837, 111
  %v3840 = vpop.permute.xlu0 %3839
  %3841 = vrot.lane.b32.xlu0 %v2838, 111
  %v3842 = vpop.permute.xlu0 %3841
  %3843 = vrot.lane.b32.xlu0 %v2839, 111
  %v3844 = vpop.permute.xlu0 %3843
  %3845 = vrot.lane.b32.xlu0 %v2840, 111
  %v3846 = vpop.permute.xlu0 %3845
  %3847 = vrot.lane.b32.xlu0 %v2841, 111
  %v3848 = vpop.permute.xlu0 %3847
  %3849 = vrot.lane.b32.xlu0 %v2842, 111
  %v3850 = vpop.permute.xlu0 %3849
  %v3851 = vsel %vm1777, %v3820, %v3822
  %v3852 = vsel %vm1777, %v3822, %v3824
  %v3853 = vsel %vm1777, %v3824, %v3826
  %v3854 = vsel %vm1777, %v3828, %v3830
  %v3855 = vsel %vm1777, %v3830, %v3832
  %v3856 = vsel %vm1777, %v3832, %v3834
  %v3857 = vsel %vm1777, %v3836, %v3838
  %v3858 = vsel %vm1777, %v3838, %v3840
  %v3859 = vsel %vm1777, %v3840, %v3842
  %v3860 = vsel %vm1777, %v3844, %v3846
  %v3861 = vsel %vm1777, %v3846, %v3848
  %v3862 = vsel %vm1777, %v3848, %v3850
  %v3883 = vsel %vm1777, %v3826, %v3820
  %v3884 = vsel %vm1777, %v3834, %v3828
  %v3885 = vsel %vm1777, %v3842, %v3836
  %v3886 = vsel %vm1777, %v3850, %v3844
  %3887 = vset.pattern.permute.xlu0 8
  %3888 = vperm.xlu0 %3887, %v2527
  %v3889 = vpop.permute.xlu0 %3888
  %3891 = vset.pattern.permute.xlu0 8
  %3892 = vperm.xlu0 %3891, %v2528
  %v3893 = vpop.permute.xlu0 %3892
  %3895 = vset.pattern.permute.xlu0 8
  %3896 = vperm.xlu0 %3895, %v2529
  %v3897 = vpop.permute.xlu0 %3896
  %3899 = vset.pattern.permute.xlu0 8
  %3900 = vperm.xlu0 %3899, %v2530
  %v3901 = vpop.permute.xlu0 %3900
  %v3903 = vmul.f32 %v3851, %v3889
  %v3904 = vmul.f32 %v3852, %v3889
  %v3905 = vmul.f32 %v3853, %v3889
  %v3906 = vmul.f32 %v3883, %v3889
  %v3907 = vmul.f32 %v3854, %v3893
  %v3908 = vmul.f32 %v3855, %v3893
  %v3909 = vmul.f32 %v3856, %v3893
  %v3910 = vmul.f32 %v3884, %v3893
  %v3911 = vmul.f32 %v3857, %v3897
  %v3912 = vmul.f32 %v3858, %v3897
  %v3913 = vmul.f32 %v3859, %v3897
  %v3914 = vmul.f32 %v3885, %v3897
  %v3915 = vmul.f32 %v3860, %v3901
  %v3916 = vmul.f32 %v3861, %v3901
  %v3917 = vmul.f32 %v3862, %v3901
  %v3918 = vmul.f32 %v3886, %v3901
  %v3919 = vmul.f32 %v3903, %v1849
  %v3920 = vmul.f32 %v3904, %v1853
  %v3921 = vmul.f32 %v3905, %v1857
  %v3922 = vmul.f32 %v3906, %v1861
  %v3923 = vmul.f32 %v3907, %v1849
  %v3924 = vmul.f32 %v3908, %v1853
  %v3925 = vmul.f32 %v3909, %v1857
  %v3926 = vmul.f32 %v3910, %v1861
  %v3927 = vmul.f32 %v3911, %v1849
  %v3928 = vmul.f32 %v3912, %v1853
  %v3929 = vmul.f32 %v3913, %v1857
  %v3930 = vmul.f32 %v3914, %v1861
  %v3931 = vmul.f32 %v3915, %v1849
  %v3932 = vmul.f32 %v3916, %v1853
  %v3933 = vmul.f32 %v3917, %v1857
  %v3934 = vmul.f32 %v3918, %v1861
  %v3935 = vadd.f32 %v3803, %v3919
  %v3936 = vadd.f32 %v3804, %v3920
  %v3937 = vadd.f32 %v3805, %v3921
  %v3938 = vadd.f32 %v3806, %v3922
  %v3939 = vadd.f32 %v3807, %v3923
  %v3940 = vadd.f32 %v3808, %v3924
  %v3941 = vadd.f32 %v3809, %v3925
  %v3942 = vadd.f32 %v3810, %v3926
  %v3943 = vadd.f32 %v3811, %v3927
  %v3944 = vadd.f32 %v3812, %v3928
  %v3945 = vadd.f32 %v3813, %v3929
  %v3946 = vadd.f32 %v3814, %v3930
  %v3947 = vadd.f32 %v3815, %v3931
  %v3948 = vadd.f32 %v3816, %v3932
  %v3949 = vadd.f32 %v3817, %v3933
  %v3950 = vadd.f32 %v3818, %v3934
  %v3951 = vadd.f32 %v3935, %v3936
  %v3952 = vadd.f32 %v3951, %v3937
  %v3953 = vadd.f32 %v3952, %v3938
  %3954 = vadd.xlane.f32.xlu0 %v3953
  %v3955 = vpop.xlane.xlu0 %3954
  %v3956 = vadd.f32 %v3939, %v3940
  %v3957 = vadd.f32 %v3956, %v3941
  %v3958 = vadd.f32 %v3957, %v3942
  %3959 = vadd.xlane.f32.xlu0 %v3958
  %v3960 = vpop.xlane.xlu0 %3959
  %v3961 = vadd.f32 %v3943, %v3944
  %v3962 = vadd.f32 %v3961, %v3945
  %v3963 = vadd.f32 %v3962, %v3946
  %3964 = vadd.xlane.f32.xlu0 %v3963
  %v3965 = vpop.xlane.xlu0 %3964
  %v3966 = vadd.f32 %v3947, %v3948
  %v3967 = vadd.f32 %v3966, %v3949
  %v3968 = vadd.f32 %v3967, %v3950
  %3969 = vadd.xlane.f32.xlu0 %v3968
  %v3970 = vpop.xlane.xlu0 %3969
  %v3971 = vmul.f32 %v3955, %v522
  %v3972 = vmul.f32 %v3960, %v522
  %v3973 = vmul.f32 %v3965, %v522
  %v3974 = vmul.f32 %v3970, %v522
  %v3975 = vsub.f32 %v3935, %v3971
  %v3976 = vsub.f32 %v3936, %v3971
  %v3977 = vsub.f32 %v3937, %v3971
  %v3978 = vsub.f32 %v3938, %v3971
  %v3979 = vsub.f32 %v3939, %v3972
  %v3980 = vsub.f32 %v3940, %v3972
  %v3981 = vsub.f32 %v3941, %v3972
  %v3982 = vsub.f32 %v3942, %v3972
  %v3983 = vsub.f32 %v3943, %v3973
  %v3984 = vsub.f32 %v3944, %v3973
  %v3985 = vsub.f32 %v3945, %v3973
  %v3986 = vsub.f32 %v3946, %v3973
  %v3987 = vsub.f32 %v3947, %v3974
  %v3988 = vsub.f32 %v3948, %v3974
  %v3989 = vsub.f32 %v3949, %v3974
  %v3990 = vsub.f32 %v3950, %v3974
  %v3991 = vmul.f32 %v3975, %v3975
  %v3992 = vmul.f32 %v3976, %v3976
  %v3993 = vmul.f32 %v3977, %v3977
  %v3994 = vmul.f32 %v3978, %v3978
  %v3995 = vmul.f32 %v3979, %v3979
  %v3996 = vmul.f32 %v3980, %v3980
  %v3997 = vmul.f32 %v3981, %v3981
  %v3998 = vmul.f32 %v3982, %v3982
  %v3999 = vmul.f32 %v3983, %v3983
  %v4000 = vmul.f32 %v3984, %v3984
  %v4001 = vmul.f32 %v3985, %v3985
  %v4002 = vmul.f32 %v3986, %v3986
  %v4003 = vmul.f32 %v3987, %v3987
  %v4004 = vmul.f32 %v3988, %v3988
  %v4005 = vmul.f32 %v3989, %v3989
  %v4006 = vmul.f32 %v3990, %v3990
  %v4007 = vadd.f32 %v3991, %v3992
  %v4008 = vadd.f32 %v4007, %v3993
  %v4009 = vadd.f32 %v4008, %v3994
  %4010 = vadd.xlane.f32.xlu0 %v4009
  %v4011 = vpop.xlane.xlu0 %4010
  %v4012 = vadd.f32 %v3995, %v3996
  %v4013 = vadd.f32 %v4012, %v3997
  %v4014 = vadd.f32 %v4013, %v3998
  %4015 = vadd.xlane.f32.xlu0 %v4014
  %v4016 = vpop.xlane.xlu0 %4015
  %v4017 = vadd.f32 %v3999, %v4000
  %v4018 = vadd.f32 %v4017, %v4001
  %v4019 = vadd.f32 %v4018, %v4002
  %4020 = vadd.xlane.f32.xlu0 %v4019
  %v4021 = vpop.xlane.xlu0 %4020
  %v4022 = vadd.f32 %v4003, %v4004
  %v4023 = vadd.f32 %v4022, %v4005
  %v4024 = vadd.f32 %v4023, %v4006
  %4025 = vadd.xlane.f32.xlu0 %v4024
  %v4026 = vpop.xlane.xlu0 %4025
  %v4027 = vmul.f32 %v4011, %v522
  %v4028 = vmul.f32 %v4016, %v522
  %v4029 = vmul.f32 %v4021, %v522
  %v4030 = vmul.f32 %v4026, %v522
  %v4031 = vadd.f32 %v4027, 1e-05
  %v4032 = vadd.f32 %v4028, 1e-05
  %v4033 = vadd.f32 %v4029, 1e-05
  %v4034 = vadd.f32 %v4030, 1e-05
  %v4035 = vrsqrt.pop %v4031
  %v4036 = vrsqrt.pop %v4032
  %v4037 = vrsqrt.pop %v4033
  %v4038 = vrsqrt.pop %v4034
  %v4039 = vmul.f32 %v2537, %v4035
  %v4040 = vmul.f32 %v2538, %v4036
  %v4041 = vmul.f32 %v2539, %v4037
  %v4042 = vmul.f32 %v2540, %v4038
  %4044 = vset.pattern.permute.xlu0 0
  %4045 = vperm.xlu0 %4044, %v4039
  %v4046 = vpop.permute.xlu0 %4045
  %4049 = vset.pattern.permute.xlu0 0
  %4050 = vperm.xlu0 %4049, %v4040
  %v4051 = vpop.permute.xlu0 %4050
  %4054 = vset.pattern.permute.xlu0 0
  %4055 = vperm.xlu0 %4054, %v4041
  %v4056 = vpop.permute.xlu0 %4055
  %4059 = vset.pattern.permute.xlu0 0
  %4060 = vperm.xlu0 %4059, %v4042
  %v4061 = vpop.permute.xlu0 %4060
  %v4063 = vmul.f32 %v3975, %v4046
  %v4064 = vmul.f32 %v3976, %v4046
  %v4065 = vmul.f32 %v3977, %v4046
  %v4066 = vmul.f32 %v3978, %v4046
  %v4067 = vmul.f32 %v3979, %v4051
  %v4068 = vmul.f32 %v3980, %v4051
  %v4069 = vmul.f32 %v3981, %v4051
  %v4070 = vmul.f32 %v3982, %v4051
  %v4071 = vmul.f32 %v3983, %v4056
  %v4072 = vmul.f32 %v3984, %v4056
  %v4073 = vmul.f32 %v3985, %v4056
  %v4074 = vmul.f32 %v3986, %v4056
  %v4075 = vmul.f32 %v3987, %v4061
  %v4076 = vmul.f32 %v3988, %v4061
  %v4077 = vmul.f32 %v3989, %v4061
  %v4078 = vmul.f32 %v3990, %v4061
  %4080 = vset.pattern.permute.xlu0 1
  %4081 = vperm.xlu0 %4080, %v2537
  %v4082 = vpop.permute.xlu0 %4081
  %4085 = vset.pattern.permute.xlu0 1
  %4086 = vperm.xlu0 %4085, %v2538
  %v4087 = vpop.permute.xlu0 %4086
  %4090 = vset.pattern.permute.xlu0 1
  %4091 = vperm.xlu0 %4090, %v2539
  %v4092 = vpop.permute.xlu0 %4091
  %4095 = vset.pattern.permute.xlu0 1
  %4096 = vperm.xlu0 %4095, %v2540
  %v4097 = vpop.permute.xlu0 %4096
  %v4099 = vadd.f32 %v4063, %v4082
  %v4100 = vadd.f32 %v4064, %v4082
  %v4101 = vadd.f32 %v4065, %v4082
  %v4102 = vadd.f32 %v4066, %v4082
  %v4103 = vadd.f32 %v4067, %v4087
  %v4104 = vadd.f32 %v4068, %v4087
  %v4105 = vadd.f32 %v4069, %v4087
  %v4106 = vadd.f32 %v4070, %v4087
  %v4107 = vadd.f32 %v4071, %v4092
  %v4108 = vadd.f32 %v4072, %v4092
  %v4109 = vadd.f32 %v4073, %v4092
  %v4110 = vadd.f32 %v4074, %v4092
  %v4111 = vadd.f32 %v4075, %v4097
  %v4112 = vadd.f32 %v4076, %v4097
  %v4113 = vadd.f32 %v4077, %v4097
  %v4114 = vadd.f32 %v4078, %v4097
  %v4116 = vsel %vm2058, %v2531, 0
  %v4119 = vsel %vm2058, %v2532, 0
  %v4122 = vsel %vm2058, %v2533, 0
  %v4125 = vsel %vm2058, %v2534, 0
  %4127 = vmatprep.subr.mxu0 %v4100
  %4128 = vmatpush1.msra.mxu0 %v4099
  %4129 = vmatprep.subr.mxu0 %v4104
  %4130 = vmatpush1.msra.mxu0 %v4103
  %4131 = vmatprep.subr.mxu0 %v4108
  %4132 = vmatpush1.msra.mxu0 %v4107
  %4133 = vmatprep.subr.mxu0 %v4112
  %4134 = vmatpush1.msra.mxu0 %v4111
  %4135 = vmatprep.subr.mxu0 0.0
  %4136 = vmatpush1.msra.mxu0 0.0
  %4137 = vmatprep.subr.mxu0 0.0
  %4138 = vmatpush1.msra.mxu0 0.0
  %4139 = vmatprep.subr.mxu0 0.0
  %4140 = vmatpush1.msra.mxu0 0.0
  %4141 = vmatprep.subr.mxu0 0.0
  %4142 = vmatpush1.msra.mxu0 0.0
  %4143 = vmatprep.subr.mxu0 0.0
  %4144 = vmatpush1.msra.mxu0 0.0
  %4145 = vmatprep.subr.mxu0 0.0
  %4146 = vmatpush1.msra.mxu0 0.0
  %4147 = vmatprep.subr.mxu0 0.0
  %4148 = vmatpush1.msra.mxu0 0.0
  %4149 = vmatprep.subr.mxu0 0.0
  %4150 = vmatpush1.msra.mxu0 0.0
  %4151 = vmatprep.subr.mxu0 0.0
  %4152 = vmatpush1.msra.mxu0 0.0
  %4153 = vmatprep.subr.mxu0 0.0
  %4154 = vmatpush1.msra.mxu0 0.0
  %4155 = vmatprep.subr.mxu0 0.0
  %4156 = vmatpush1.msra.mxu0 0.0
  %4157 = vmatprep.subr.mxu0 0.0
  %4158 = vmatpush1.msra.mxu0 0.0
  %4159 = vmatprep.subr.mxu0 0.0
  %4160 = vmatpush1.msra.mxu0 0.0
  %4161 = vmatprep.subr.mxu0 0.0
  %4162 = vmatpush1.msra.mxu0 0.0
  %4163 = vmatprep.subr.mxu0 0.0
  %4164 = vmatpush1.msra.mxu0 0.0
  %4165 = vmatprep.subr.mxu0 0.0
  %4166 = vmatpush1.msra.mxu0 0.0
  %4167 = vmatprep.subr.mxu0 0.0
  %4168 = vmatpush1.msra.mxu0 0.0
  %4169 = vmatprep.subr.mxu0 0.0
  %4170 = vmatpush1.msra.mxu0 0.0
  %4171 = vmatprep.subr.mxu0 0.0
  %4172 = vmatpush1.msra.mxu0 0.0
  %4173 = vmatprep.subr.mxu0 0.0
  %4174 = vmatpush1.msra.mxu0 0.0
  %4175 = vmatprep.subr.mxu0 0.0
  %4176 = vmatpush1.msra.mxu0 0.0
  %4177 = vmatprep.subr.mxu0 0.0
  %4178 = vmatpush1.msra.mxu0 0.0
  %4179 = vmatprep.subr.mxu0 0.0
  %4180 = vmatpush1.msra.mxu0 0.0
  %4181 = vmatprep.subr.mxu0 0.0
  %4182 = vmatpush1.msra.mxu0 0.0
  %4183 = vmatprep.subr.mxu0 0.0
  %4184 = vmatpush1.msra.mxu0 0.0
  %4185 = vmatprep.subr.mxu0 0.0
  %4186 = vmatpush1.msra.mxu0 0.0
  %4187 = vmatprep.subr.mxu0 0.0
  %4188 = vmatpush1.msra.mxu0 0.0
  %4189 = vmatprep.subr.mxu0 0.0
  %4190 = vmatpush1.msra.mxu0 0.0
  %4191 = vmatprep.mubr.f32.mxu0 0.0
  %4192 = vmatmul.mubr.f32.gmra.mrb[0].mxu0 %v4116
  %v4193 = vpop.f32.mrb[0].mxu0
  %v4194 = vadd.f32 0.0, %v4193
  %v4195 = vpop.f32.mrb[0].mxu0
  %v4196 = vadd.f32 0.0, %v4195
  %4197 = vmatprep.mubr.f32.mxu0 0.0
  %4198 = vmatmul.mubr.f32.gmra.mrb[0].mxu0 %v4119
  %v4199 = vpop.f32.mrb[0].mxu0
  %v4200 = vadd.f32 0.0, %v4199
  %v4201 = vpop.f32.mrb[0].mxu0
  %v4202 = vadd.f32 0.0, %v4201
  %4203 = vmatprep.mubr.f32.mxu0 0.0
  %4204 = vmatmul.mubr.f32.gmra.mrb[0].mxu0 %v4122
  %v4205 = vpop.f32.mrb[0].mxu0
  %v4206 = vadd.f32 0.0, %v4205
  %v4207 = vpop.f32.mrb[0].mxu0
  %v4208 = vadd.f32 0.0, %v4207
  %4209 = vmatprep.mubr.f32.mxu0 0.0
  %4210 = vmatmul.mubr.f32.gmra.mrb[0].mxu0 %v4125
  %v4211 = vpop.f32.mrb[0].mxu0
  %v4212 = vadd.f32 0.0, %v4211
  %v4213 = vpop.f32.mrb[0].mxu0
  %v4214 = vadd.f32 0.0, %v4213
  %4215 = vdwg.mxu0
  %4216 = vmatprep.subr.mxu0 %v4102
  %4217 = vmatpush1.msra.mxu0 %v4101
  %4218 = vmatprep.subr.mxu0 %v4106
  %4219 = vmatpush1.msra.mxu0 %v4105
  %4220 = vmatprep.subr.mxu0 %v4110
  %4221 = vmatpush1.msra.mxu0 %v4109
  %4222 = vmatprep.subr.mxu0 %v4114
  %4223 = vmatpush1.msra.mxu0 %v4113
  %4224 = vmatprep.subr.mxu0 0.0
  %4225 = vmatpush1.msra.mxu0 0.0
  %4226 = vmatprep.subr.mxu0 0.0
  %4227 = vmatpush1.msra.mxu0 0.0
  %4228 = vmatprep.subr.mxu0 0.0
  %4229 = vmatpush1.msra.mxu0 0.0
  %4230 = vmatprep.subr.mxu0 0.0
  %4231 = vmatpush1.msra.mxu0 0.0
  %4232 = vmatprep.subr.mxu0 0.0
  %4233 = vmatpush1.msra.mxu0 0.0
  %4234 = vmatprep.subr.mxu0 0.0
  %4235 = vmatpush1.msra.mxu0 0.0
  %4236 = vmatprep.subr.mxu0 0.0
  %4237 = vmatpush1.msra.mxu0 0.0
  %4238 = vmatprep.subr.mxu0 0.0
  %4239 = vmatpush1.msra.mxu0 0.0
  %4240 = vmatprep.subr.mxu0 0.0
  %4241 = vmatpush1.msra.mxu0 0.0
  %4242 = vmatprep.subr.mxu0 0.0
  %4243 = vmatpush1.msra.mxu0 0.0
  %4244 = vmatprep.subr.mxu0 0.0
  %4245 = vmatpush1.msra.mxu0 0.0
  %4246 = vmatprep.subr.mxu0 0.0
  %4247 = vmatpush1.msra.mxu0 0.0
  %4248 = vmatprep.subr.mxu0 0.0
  %4249 = vmatpush1.msra.mxu0 0.0
  %4250 = vmatprep.subr.mxu0 0.0
  %4251 = vmatpush1.msra.mxu0 0.0
  %4252 = vmatprep.subr.mxu0 0.0
  %4253 = vmatpush1.msra.mxu0 0.0
  %4254 = vmatprep.subr.mxu0 0.0
  %4255 = vmatpush1.msra.mxu0 0.0
  %4256 = vmatprep.subr.mxu0 0.0
  %4257 = vmatpush1.msra.mxu0 0.0
  %4258 = vmatprep.subr.mxu0 0.0
  %4259 = vmatpush1.msra.mxu0 0.0
  %4260 = vmatprep.subr.mxu0 0.0
  %4261 = vmatpush1.msra.mxu0 0.0
  %4262 = vmatprep.subr.mxu0 0.0
  %4263 = vmatpush1.msra.mxu0 0.0
  %4264 = vmatprep.subr.mxu0 0.0
  %4265 = vmatpush1.msra.mxu0 0.0
  %4266 = vmatprep.subr.mxu0 0.0
  %4267 = vmatpush1.msra.mxu0 0.0
  %4268 = vmatprep.subr.mxu0 0.0
  %4269 = vmatpush1.msra.mxu0 0.0
  %4270 = vmatprep.subr.mxu0 0.0
  %4271 = vmatpush1.msra.mxu0 0.0
  %4272 = vmatprep.subr.mxu0 0.0
  %4273 = vmatpush1.msra.mxu0 0.0
  %4274 = vmatprep.subr.mxu0 0.0
  %4275 = vmatpush1.msra.mxu0 0.0
  %4276 = vmatprep.subr.mxu0 0.0
  %4277 = vmatpush1.msra.mxu0 0.0
  %4278 = vmatprep.subr.mxu0 0.0
  %4279 = vmatpush1.msra.mxu0 0.0
  %4280 = vmatprep.mubr.f32.mxu0 0.0
  %4281 = vmatmul.mubr.f32.gmra.mrb[0].mxu0 %v4116
  %v4282 = vpop.f32.mrb[0].mxu0
  %v4283 = vadd.f32 0.0, %v4282
  %v4284 = vpop.f32.mrb[0].mxu0
  %v4285 = vadd.f32 0.0, %v4284
  %4286 = vmatprep.mubr.f32.mxu0 0.0
  %4287 = vmatmul.mubr.f32.gmra.mrb[0].mxu0 %v4119
  %v4288 = vpop.f32.mrb[0].mxu0
  %v4289 = vadd.f32 0.0, %v4288
  %v4290 = vpop.f32.mrb[0].mxu0
  %v4291 = vadd.f32 0.0, %v4290
  %4292 = vmatprep.mubr.f32.mxu0 0.0
  %4293 = vmatmul.mubr.f32.gmra.mrb[0].mxu0 %v4122
  %v4294 = vpop.f32.mrb[0].mxu0
  %v4295 = vadd.f32 0.0, %v4294
  %v4296 = vpop.f32.mrb[0].mxu0
  %v4297 = vadd.f32 0.0, %v4296
  %4298 = vmatprep.mubr.f32.mxu0 0.0
  %4299 = vmatmul.mubr.f32.gmra.mrb[0].mxu0 %v4125
  %v4300 = vpop.f32.mrb[0].mxu0
  %v4301 = vadd.f32 0.0, %v4300
  %v4302 = vpop.f32.mrb[0].mxu0
  %v4303 = vadd.f32 0.0, %v4302
  %4304 = vdwg.mxu0
  %v4305 = vadd.f32 %v4194, %v4196
  %v4306 = vadd.f32 %v4305, %v4283
  %v4307 = vadd.f32 %v4306, %v4285
  %4308 = vadd.xlane.f32.xlu0 %v4307
  %v4309 = vpop.xlane.xlu0 %4308
  %v4310 = vadd.f32 %v4200, %v4202
  %v4311 = vadd.f32 %v4310, %v4289
  %v4312 = vadd.f32 %v4311, %v4291
  %4313 = vadd.xlane.f32.xlu0 %v4312
  %v4314 = vpop.xlane.xlu0 %4313
  %v4315 = vadd.f32 %v4206, %v4208
  %v4316 = vadd.f32 %v4315, %v4295
  %v4317 = vadd.f32 %v4316, %v4297
  %4318 = vadd.xlane.f32.xlu0 %v4317
  %v4319 = vpop.xlane.xlu0 %4318
  %v4320 = vadd.f32 %v4212, %v4214
  %v4321 = vadd.f32 %v4320, %v4301
  %v4322 = vadd.f32 %v4321, %v4303
  %4323 = vadd.xlane.f32.xlu0 %v4322
  %v4324 = vpop.xlane.xlu0 %4323
  %v4325 = vmul.f32 %v4309, %v522
  %v4326 = vmul.f32 %v4314, %v522
  %v4327 = vmul.f32 %v4319, %v522
  %v4328 = vmul.f32 %v4324, %v522
  %v4329 = vsub.f32 %v4194, %v4325
  %v4330 = vsub.f32 %v4196, %v4325
  %v4331 = vsub.f32 %v4283, %v4325
  %v4332 = vsub.f32 %v4285, %v4325
  %v4333 = vsub.f32 %v4200, %v4326
  %v4334 = vsub.f32 %v4202, %v4326
  %v4335 = vsub.f32 %v4289, %v4326
  %v4336 = vsub.f32 %v4291, %v4326
  %v4337 = vsub.f32 %v4206, %v4327
  %v4338 = vsub.f32 %v4208, %v4327
  %v4339 = vsub.f32 %v4295, %v4327
  %v4340 = vsub.f32 %v4297, %v4327
  %v4341 = vsub.f32 %v4212, %v4328
  %v4342 = vsub.f32 %v4214, %v4328
  %v4343 = vsub.f32 %v4301, %v4328
  %v4344 = vsub.f32 %v4303, %v4328
  %v4345 = vmul.f32 %v4329, %v4329
  %v4346 = vmul.f32 %v4330, %v4330
  %v4347 = vmul.f32 %v4331, %v4331
  %v4348 = vmul.f32 %v4332, %v4332
  %v4349 = vmul.f32 %v4333, %v4333
  %v4350 = vmul.f32 %v4334, %v4334
  %v4351 = vmul.f32 %v4335, %v4335
  %v4352 = vmul.f32 %v4336, %v4336
  %v4353 = vmul.f32 %v4337, %v4337
  %v4354 = vmul.f32 %v4338, %v4338
  %v4355 = vmul.f32 %v4339, %v4339
  %v4356 = vmul.f32 %v4340, %v4340
  %v4357 = vmul.f32 %v4341, %v4341
  %v4358 = vmul.f32 %v4342, %v4342
  %v4359 = vmul.f32 %v4343, %v4343
  %v4360 = vmul.f32 %v4344, %v4344
  %v4361 = vadd.f32 %v4345, %v4346
  %v4362 = vadd.f32 %v4361, %v4347
  %v4363 = vadd.f32 %v4362, %v4348
  %4364 = vadd.xlane.f32.xlu0 %v4363
  %v4365 = vpop.xlane.xlu0 %4364
  %v4366 = vadd.f32 %v4349, %v4350
  %v4367 = vadd.f32 %v4366, %v4351
  %v4368 = vadd.f32 %v4367, %v4352
  %4369 = vadd.xlane.f32.xlu0 %v4368
  %v4370 = vpop.xlane.xlu0 %4369
  %v4371 = vadd.f32 %v4353, %v4354
  %v4372 = vadd.f32 %v4371, %v4355
  %v4373 = vadd.f32 %v4372, %v4356
  %4374 = vadd.xlane.f32.xlu0 %v4373
  %v4375 = vpop.xlane.xlu0 %4374
  %v4376 = vadd.f32 %v4357, %v4358
  %v4377 = vadd.f32 %v4376, %v4359
  %v4378 = vadd.f32 %v4377, %v4360
  %4379 = vadd.xlane.f32.xlu0 %v4378
  %v4380 = vpop.xlane.xlu0 %4379
  %v4381 = vmul.f32 %v4365, %v522
  %v4382 = vmul.f32 %v4370, %v522
  %v4383 = vmul.f32 %v4375, %v522
  %v4384 = vmul.f32 %v4380, %v522
  %v4385 = vadd.f32 %v4381, 1e-05
  %v4386 = vadd.f32 %v4382, 1e-05
  %v4387 = vadd.f32 %v4383, 1e-05
  %v4388 = vadd.f32 %v4384, 1e-05
  %v4389 = vrsqrt.pop %v4385
  %v4390 = vrsqrt.pop %v4386
  %v4391 = vrsqrt.pop %v4387
  %v4392 = vrsqrt.pop %v4388
  %v4393 = vmul.f32 %v2541, %v4389
  %v4394 = vmul.f32 %v2542, %v4390
  %v4395 = vmul.f32 %v2543, %v4391
  %v4396 = vmul.f32 %v2544, %v4392
  %4398 = vset.pattern.permute.xlu0 0
  %4399 = vperm.xlu0 %4398, %v4393
  %v4400 = vpop.permute.xlu0 %4399
  %4403 = vset.pattern.permute.xlu0 0
  %4404 = vperm.xlu0 %4403, %v4394
  %v4405 = vpop.permute.xlu0 %4404
  %4408 = vset.pattern.permute.xlu0 0
  %4409 = vperm.xlu0 %4408, %v4395
  %v4410 = vpop.permute.xlu0 %4409
  %4413 = vset.pattern.permute.xlu0 0
  %4414 = vperm.xlu0 %4413, %v4396
  %v4415 = vpop.permute.xlu0 %4414
  %v4417 = vmul.f32 %v4329, %v4400
  %v4418 = vmul.f32 %v4330, %v4400
  %v4419 = vmul.f32 %v4331, %v4400
  %v4420 = vmul.f32 %v4332, %v4400
  %v4421 = vmul.f32 %v4333, %v4405
  %v4422 = vmul.f32 %v4334, %v4405
  %v4423 = vmul.f32 %v4335, %v4405
  %v4424 = vmul.f32 %v4336, %v4405
  %v4425 = vmul.f32 %v4337, %v4410
  %v4426 = vmul.f32 %v4338, %v4410
  %v4427 = vmul.f32 %v4339, %v4410
  %v4428 = vmul.f32 %v4340, %v4410
  %v4429 = vmul.f32 %v4341, %v4415
  %v4430 = vmul.f32 %v4342, %v4415
  %v4431 = vmul.f32 %v4343, %v4415
  %v4432 = vmul.f32 %v4344, %v4415
  %4434 = vset.pattern.permute.xlu0 1
  %4435 = vperm.xlu0 %4434, %v2541
  %v4436 = vpop.permute.xlu0 %4435
  %4439 = vset.pattern.permute.xlu0 1
  %4440 = vperm.xlu0 %4439, %v2542
  %v4441 = vpop.permute.xlu0 %4440
  %4444 = vset.pattern.permute.xlu0 1
  %4445 = vperm.xlu0 %4444, %v2543
  %v4446 = vpop.permute.xlu0 %4445
  %4449 = vset.pattern.permute.xlu0 1
  %4450 = vperm.xlu0 %4449, %v2544
  %v4451 = vpop.permute.xlu0 %4450
  %v4453 = vadd.f32 %v4417, %v4436
  %v4454 = vadd.f32 %v4418, %v4436
  %v4455 = vadd.f32 %v4419, %v4436
  %v4456 = vadd.f32 %v4420, %v4436
  %v4457 = vadd.f32 %v4421, %v4441
  %v4458 = vadd.f32 %v4422, %v4441
  %v4459 = vadd.f32 %v4423, %v4441
  %v4460 = vadd.f32 %v4424, %v4441
  %v4461 = vadd.f32 %v4425, %v4446
  %v4462 = vadd.f32 %v4426, %v4446
  %v4463 = vadd.f32 %v4427, %v4446
  %v4464 = vadd.f32 %v4428, %v4446
  %v4465 = vadd.f32 %v4429, %v4451
  %v4466 = vadd.f32 %v4430, %v4451
  %v4467 = vadd.f32 %v4431, %v4451
  %v4468 = vadd.f32 %v4432, %v4451
  %v4469 = vxor.u32 %v4453, 2147483648
  %v4470 = vxor.u32 %v4454, 2147483648
  %v4471 = vxor.u32 %v4455, 2147483648
  %v4472 = vxor.u32 %v4456, 2147483648
  %v4473 = vxor.u32 %v4457, 2147483648
  %v4474 = vxor.u32 %v4458, 2147483648
  %v4475 = vxor.u32 %v4459, 2147483648
  %v4476 = vxor.u32 %v4460, 2147483648
  %v4477 = vxor.u32 %v4461, 2147483648
  %v4478 = vxor.u32 %v4462, 2147483648
  %v4479 = vxor.u32 %v4463, 2147483648
  %v4480 = vxor.u32 %v4464, 2147483648
  %v4481 = vxor.u32 %v4465, 2147483648
  %v4482 = vxor.u32 %v4466, 2147483648
  %v4483 = vxor.u32 %v4467, 2147483648
  %v4484 = vxor.u32 %v4468, 2147483648
  %v4485 = vmul.f32 %v4469, 1.442695
  %v4486 = vpow.pop %v4485
  %v4487 = vmul.f32 %v4470, 1.442695
  %v4488 = vpow.pop %v4487
  %v4489 = vmul.f32 %v4471, 1.442695
  %v4490 = vpow.pop %v4489
  %v4491 = vmul.f32 %v4472, 1.442695
  %v4492 = vpow.pop %v4491
  %v4493 = vmul.f32 %v4473, 1.442695
  %v4494 = vpow.pop %v4493
  %v4495 = vmul.f32 %v4474, 1.442695
  %v4496 = vpow.pop %v4495
  %v4497 = vmul.f32 %v4475, 1.442695
  %v4498 = vpow.pop %v4497
  %v4499 = vmul.f32 %v4476, 1.442695
  %v4500 = vpow.pop %v4499
  %v4501 = vmul.f32 %v4477, 1.442695
  %v4502 = vpow.pop %v4501
  %v4503 = vmul.f32 %v4478, 1.442695
  %v4504 = vpow.pop %v4503
  %v4505 = vmul.f32 %v4479, 1.442695
  %v4506 = vpow.pop %v4505
  %v4507 = vmul.f32 %v4480, 1.442695
  %v4508 = vpow.pop %v4507
  %v4509 = vmul.f32 %v4481, 1.442695
  %v4510 = vpow.pop %v4509
  %v4511 = vmul.f32 %v4482, 1.442695
  %v4512 = vpow.pop %v4511
  %v4513 = vmul.f32 %v4483, 1.442695
  %v4514 = vpow.pop %v4513
  %v4515 = vmul.f32 %v4484, 1.442695
  %v4516 = vpow.pop %v4515
  %v4517 = vadd.f32 %v4486, 1.0
  %v4518 = vadd.f32 %v4488, 1.0
  %v4519 = vadd.f32 %v4490, 1.0
  %v4520 = vadd.f32 %v4492, 1.0
  %v4521 = vadd.f32 %v4494, 1.0
  %v4522 = vadd.f32 %v4496, 1.0
  %v4523 = vadd.f32 %v4498, 1.0
  %v4524 = vadd.f32 %v4500, 1.0
  %v4525 = vadd.f32 %v4502, 1.0
  %v4526 = vadd.f32 %v4504, 1.0
  %v4527 = vadd.f32 %v4506, 1.0
  %v4528 = vadd.f32 %v4508, 1.0
  %v4529 = vadd.f32 %v4510, 1.0
  %v4530 = vadd.f32 %v4512, 1.0
  %v4531 = vadd.f32 %v4514, 1.0
  %v4532 = vadd.f32 %v4516, 1.0
  %v4533 = vrcp.pop %v4517
  %v4534 = vmul.f32 1.0, %v4533
  %v4535 = vrcp.pop %v4518
  %v4536 = vmul.f32 1.0, %v4535
  %v4537 = vrcp.pop %v4519
  %v4538 = vmul.f32 1.0, %v4537
  %v4539 = vrcp.pop %v4520
  %v4540 = vmul.f32 1.0, %v4539
  %v4541 = vrcp.pop %v4521
  %v4542 = vmul.f32 1.0, %v4541
  %v4543 = vrcp.pop %v4522
  %v4544 = vmul.f32 1.0, %v4543
  %v4545 = vrcp.pop %v4523
  %v4546 = vmul.f32 1.0, %v4545
  %v4547 = vrcp.pop %v4524
  %v4548 = vmul.f32 1.0, %v4547
  %v4549 = vrcp.pop %v4525
  %v4550 = vmul.f32 1.0, %v4549
  %v4551 = vrcp.pop %v4526
  %v4552 = vmul.f32 1.0, %v4551
  %v4553 = vrcp.pop %v4527
  %v4554 = vmul.f32 1.0, %v4553
  %v4555 = vrcp.pop %v4528
  %v4556 = vmul.f32 1.0, %v4555
  %v4557 = vrcp.pop %v4529
  %v4558 = vmul.f32 1.0, %v4557
  %v4559 = vrcp.pop %v4530
  %v4560 = vmul.f32 1.0, %v4559
  %v4561 = vrcp.pop %v4531
  %v4562 = vmul.f32 1.0, %v4561
  %v4563 = vrcp.pop %v4532
  %v4564 = vmul.f32 1.0, %v4563
  %v4565 = vmul.f32 %v4453, %v4534
  %v4566 = vmul.f32 %v4454, %v4536
  %v4567 = vmul.f32 %v4455, %v4538
  %v4568 = vmul.f32 %v4456, %v4540
  %v4569 = vmul.f32 %v4457, %v4542
  %v4570 = vmul.f32 %v4458, %v4544
  %v4571 = vmul.f32 %v4459, %v4546
  %v4572 = vmul.f32 %v4460, %v4548
  %v4573 = vmul.f32 %v4461, %v4550
  %v4574 = vmul.f32 %v4462, %v4552
  %v4575 = vmul.f32 %v4463, %v4554
  %v4576 = vmul.f32 %v4464, %v4556
  %v4577 = vmul.f32 %v4465, %v4558
  %v4578 = vmul.f32 %v4466, %v4560
  %v4579 = vmul.f32 %v4467, %v4562
  %v4580 = vmul.f32 %v4468, %v4564
  %v4581 = vld [vmem:[%s29] sm:$0xff]
  %v4582 = vld [vmem:[%s29 + $0x8] sm:$0xff]
  %v4583 = vld [vmem:[%s31] sm:$0xff]
  %v4584 = vld [vmem:[%s31 + $0x8] sm:$0xff]
  %v4585 = vld [vmem:[%s31 + $0x10] sm:$0xff]
  %v4586 = vld [vmem:[%s31 + $0x18] sm:$0xff]
  %v4587 = vld [vmem:[%s33] sm:$0xff]
  %v4588 = vld [vmem:[%s33 + $0x8] sm:$0xff]
  %v4589 = vld [vmem:[%s33 + $0x10] sm:$0xff]
  %v4590 = vld [vmem:[%s33 + $0x18] sm:$0xff]
  %v4591 = vld [vmem:[%s35] sm:$0xff]
  %v4592 = vld [vmem:[%s35 + $0x8] sm:$0xff]
  %v4593 = vld [vmem:[%s35 + $0x10] sm:$0xff]
  %v4594 = vld [vmem:[%s35 + $0x18] sm:$0xff]
  %v4595 = vld [vmem:[%s35 + $0x20] sm:$0xff]
  %v4596 = vld [vmem:[%s35 + $0x28] sm:$0xff]
  %v4597 = vld [vmem:[%s35 + $0x30] sm:$0xff]
  %v4598 = vld [vmem:[%s35 + $0x38] sm:$0xff]
  %v4599 = vld [vmem:[%s35 + $0x40] sm:$0xff]
  %v4600 = vld [vmem:[%s35 + $0x48] sm:$0xff]
  %v4602 = vsel %vm351, %v4581, 0
  %v4605 = vsel %vm351, %v4582, 0
  %4607 = vmatprep.subr.mxu0 %v4574
  %4608 = vmatpush1.msra.mxu0 %v4573
  %4609 = vmatprep.subr.mxu0 %v4578
  %4610 = vmatpush1.msra.mxu0 %v4577
  %4611 = vmatprep.subr.mxu0 0.0
  %4612 = vmatpush1.msra.mxu0 0.0
  %4613 = vmatprep.subr.mxu0 0.0
  %4614 = vmatpush1.msra.mxu0 0.0
  %4615 = vmatprep.subr.mxu0 0.0
  %4616 = vmatpush1.msra.mxu0 0.0
  %4617 = vmatprep.subr.mxu0 0.0
  %4618 = vmatpush1.msra.mxu0 0.0
  %4619 = vmatprep.subr.mxu0 0.0
  %4620 = vmatpush1.msra.mxu0 0.0
  %4621 = vmatprep.subr.mxu0 0.0
  %4622 = vmatpush1.msra.mxu0 0.0
  %4623 = vmatprep.subr.mxu0 0.0
  %4624 = vmatpush1.msra.mxu0 0.0
  %4625 = vmatprep.subr.mxu0 0.0
  %4626 = vmatpush1.msra.mxu0 0.0
  %4627 = vmatprep.subr.mxu0 0.0
  %4628 = vmatpush1.msra.mxu0 0.0
  %4629 = vmatprep.subr.mxu0 0.0
  %4630 = vmatpush1.msra.mxu0 0.0
  %4631 = vmatprep.subr.mxu0 0.0
  %4632 = vmatpush1.msra.mxu0 0.0
  %4633 = vmatprep.subr.mxu0 0.0
  %4634 = vmatpush1.msra.mxu0 0.0
  %4635 = vmatprep.subr.mxu0 0.0
  %4636 = vmatpush1.msra.mxu0 0.0
  %4637 = vmatprep.subr.mxu0 0.0
  %4638 = vmatpush1.msra.mxu0 0.0
  %4639 = vmatprep.subr.mxu0 0.0
  %4640 = vmatpush1.msra.mxu0 0.0
  %4641 = vmatprep.subr.mxu0 0.0
  %4642 = vmatpush1.msra.mxu0 0.0
  %4643 = vmatprep.subr.mxu0 0.0
  %4644 = vmatpush1.msra.mxu0 0.0
  %4645 = vmatprep.subr.mxu0 0.0
  %4646 = vmatpush1.msra.mxu0 0.0
  %4647 = vmatprep.subr.mxu0 0.0
  %4648 = vmatpush1.msra.mxu0 0.0
  %4649 = vmatprep.subr.mxu0 0.0
  %4650 = vmatpush1.msra.mxu0 0.0
  %4651 = vmatprep.subr.mxu0 0.0
  %4652 = vmatpush1.msra.mxu0 0.0
  %4653 = vmatprep.subr.mxu0 0.0
  %4654 = vmatpush1.msra.mxu0 0.0
  %4655 = vmatprep.subr.mxu0 0.0
  %4656 = vmatpush1.msra.mxu0 0.0
  %4657 = vmatprep.subr.mxu0 0.0
  %4658 = vmatpush1.msra.mxu0 0.0
  %4659 = vmatprep.subr.mxu0 0.0
  %4660 = vmatpush1.msra.mxu0 0.0
  %4661 = vmatprep.subr.mxu0 0.0
  %4662 = vmatpush1.msra.mxu0 0.0
  %4663 = vmatprep.subr.mxu0 0.0
  %4664 = vmatpush1.msra.mxu0 0.0
  %4665 = vmatprep.subr.mxu0 0.0
  %4666 = vmatpush1.msra.mxu0 0.0
  %4667 = vmatprep.subr.mxu0 0.0
  %4668 = vmatpush1.msra.mxu0 0.0
  %4669 = vmatprep.subr.mxu0 0.0
  %4670 = vmatpush1.msra.mxu0 0.0
  %4671 = vmatprep.mubr.f32.mxu0 0.0
  %4672 = vmatmul.mubr.f32.gmra.mrb[0].mxu0 %v4602
  %v4673 = vpop.f32.mrb[0].mxu0
  %v4674 = vadd.f32 0.0, %v4673
  %v4675 = vpop.f32.mrb[0].mxu0
  %v4676 = vadd.f32 0.0, %v4675
  %4677 = vmatprep.mubr.f32.mxu0 0.0
  %4678 = vmatmul.mubr.f32.gmra.mrb[0].mxu0 %v4605
  %v4679 = vpop.f32.mrb[0].mxu0
  %v4680 = vadd.f32 0.0, %v4679
  %v4681 = vpop.f32.mrb[0].mxu0
  %v4682 = vadd.f32 0.0, %v4681
  %4683 = vdwg.mxu0
  %4684 = vmatprep.subr.mxu0 %v4576
  %4685 = vmatpush1.msra.mxu0 %v4575
  %4686 = vmatprep.subr.mxu0 %v4580
  %4687 = vmatpush1.msra.mxu0 %v4579
  %4688 = vmatprep.subr.mxu0 0.0
  %4689 = vmatpush1.msra.mxu0 0.0
  %4690 = vmatprep.subr.mxu0 0.0
  %4691 = vmatpush1.msra.mxu0 0.0
  %4692 = vmatprep.subr.mxu0 0.0
  %4693 = vmatpush1.msra.mxu0 0.0
  %4694 = vmatprep.subr.mxu0 0.0
  %4695 = vmatpush1.msra.mxu0 0.0
  %4696 = vmatprep.subr.mxu0 0.0
  %4697 = vmatpush1.msra.mxu0 0.0
  %4698 = vmatprep.subr.mxu0 0.0
  %4699 = vmatpush1.msra.mxu0 0.0
  %4700 = vmatprep.subr.mxu0 0.0
  %4701 = vmatpush1.msra.mxu0 0.0
  %4702 = vmatprep.subr.mxu0 0.0
  %4703 = vmatpush1.msra.mxu0 0.0
  %4704 = vmatprep.subr.mxu0 0.0
  %4705 = vmatpush1.msra.mxu0 0.0
  %4706 = vmatprep.subr.mxu0 0.0
  %4707 = vmatpush1.msra.mxu0 0.0
  %4708 = vmatprep.subr.mxu0 0.0
  %4709 = vmatpush1.msra.mxu0 0.0
  %4710 = vmatprep.subr.mxu0 0.0
  %4711 = vmatpush1.msra.mxu0 0.0
  %4712 = vmatprep.subr.mxu0 0.0
  %4713 = vmatpush1.msra.mxu0 0.0
  %4714 = vmatprep.subr.mxu0 0.0
  %4715 = vmatpush1.msra.mxu0 0.0
  %4716 = vmatprep.subr.mxu0 0.0
  %4717 = vmatpush1.msra.mxu0 0.0
  %4718 = vmatprep.subr.mxu0 0.0
  %4719 = vmatpush1.msra.mxu0 0.0
  %4720 = vmatprep.subr.mxu0 0.0
  %4721 = vmatpush1.msra.mxu0 0.0
  %4722 = vmatprep.subr.mxu0 0.0
  %4723 = vmatpush1.msra.mxu0 0.0
  %4724 = vmatprep.subr.mxu0 0.0
  %4725 = vmatpush1.msra.mxu0 0.0
  %4726 = vmatprep.subr.mxu0 0.0
  %4727 = vmatpush1.msra.mxu0 0.0
  %4728 = vmatprep.subr.mxu0 0.0
  %4729 = vmatpush1.msra.mxu0 0.0
  %4730 = vmatprep.subr.mxu0 0.0
  %4731 = vmatpush1.msra.mxu0 0.0
  %4732 = vmatprep.subr.mxu0 0.0
  %4733 = vmatpush1.msra.mxu0 0.0
  %4734 = vmatprep.subr.mxu0 0.0
  %4735 = vmatpush1.msra.mxu0 0.0
  %4736 = vmatprep.subr.mxu0 0.0
  %4737 = vmatpush1.msra.mxu0 0.0
  %4738 = vmatprep.subr.mxu0 0.0
  %4739 = vmatpush1.msra.mxu0 0.0
  %4740 = vmatprep.subr.mxu0 0.0
  %4741 = vmatpush1.msra.mxu0 0.0
  %4742 = vmatprep.subr.mxu0 0.0
  %4743 = vmatpush1.msra.mxu0 0.0
  %4744 = vmatprep.subr.mxu0 0.0
  %4745 = vmatpush1.msra.mxu0 0.0
  %4746 = vmatprep.subr.mxu0 0.0
  %4747 = vmatpush1.msra.mxu0 0.0
  %4748 = vmatprep.mubr.f32.mxu0 0.0
  %4749 = vmatmul.mubr.f32.gmra.mrb[0].mxu0 %v4602
  %v4750 = vpop.f32.mrb[0].mxu0
  %v4751 = vadd.f32 0.0, %v4750
  %v4752 = vpop.f32.mrb[0].mxu0
  %v4753 = vadd.f32 0.0, %v4752
  %4754 = vmatprep.mubr.f32.mxu0 0.0
  %4755 = vmatmul.mubr.f32.gmra.mrb[0].mxu0 %v4605
  %v4756 = vpop.f32.mrb[0].mxu0
  %v4757 = vadd.f32 0.0, %v4756
  %v4758 = vpop.f32.mrb[0].mxu0
  %v4759 = vadd.f32 0.0, %v4758
  %4760 = vdwg.mxu0
  %v4761 = vadd.f32 %v4674, %v4676
  %v4762 = vadd.f32 %v4761, %v4751
  %v4763 = vadd.f32 %v4762, %v4753
  %4764 = vadd.xlane.f32.xlu0 %v4763
  %v4765 = vpop.xlane.xlu0 %4764
  %v4766 = vadd.f32 %v4680, %v4682
  %v4767 = vadd.f32 %v4766, %v4757
  %v4768 = vadd.f32 %v4767, %v4759
  %4769 = vadd.xlane.f32.xlu0 %v4768
  %v4770 = vpop.xlane.xlu0 %4769
  %v4771 = vmul.f32 %v4765, %v522
  %v4772 = vmul.f32 %v4770, %v522
  %v4773 = vsub.f32 %v4674, %v4771
  %v4774 = vsub.f32 %v4676, %v4771
  %v4775 = vsub.f32 %v4751, %v4771
  %v4776 = vsub.f32 %v4753, %v4771
  %v4777 = vsub.f32 %v4680, %v4772
  %v4778 = vsub.f32 %v4682, %v4772
  %v4779 = vsub.f32 %v4757, %v4772
  %v4780 = vsub.f32 %v4759, %v4772
  %v4781 = vmul.f32 %v4773, %v4773
  %v4782 = vmul.f32 %v4774, %v4774
  %v4783 = vmul.f32 %v4775, %v4775
  %v4784 = vmul.f32 %v4776, %v4776
  %v4785 = vmul.f32 %v4777, %v4777
  %v4786 = vmul.f32 %v4778, %v4778
  %v4787 = vmul.f32 %v4779, %v4779
  %v4788 = vmul.f32 %v4780, %v4780
  %v4789 = vadd.f32 %v4781, %v4782
  %v4790 = vadd.f32 %v4789, %v4783
  %v4791 = vadd.f32 %v4790, %v4784
  %4792 = vadd.xlane.f32.xlu0 %v4791
  %v4793 = vpop.xlane.xlu0 %4792
  %v4794 = vadd.f32 %v4785, %v4786
  %v4795 = vadd.f32 %v4794, %v4787
  %v4796 = vadd.f32 %v4795, %v4788
  %4797 = vadd.xlane.f32.xlu0 %v4796
  %v4798 = vpop.xlane.xlu0 %4797
  %v4799 = vmul.f32 %v4793, %v522
  %v4800 = vmul.f32 %v4798, %v522
  %v4801 = vadd.f32 %v4799, 1e-05
  %v4802 = vadd.f32 %v4800, 1e-05
  %v4803 = vrsqrt.pop %v4801
  %v4804 = vrsqrt.pop %v4802
  %v4805 = vmul.f32 %v4591, %v4803
  %v4806 = vmul.f32 %v4592, %v4804
  %4808 = vset.pattern.permute.xlu0 0
  %4809 = vperm.xlu0 %4808, %v4805
  %v4810 = vpop.permute.xlu0 %4809
  %4813 = vset.pattern.permute.xlu0 0
  %4814 = vperm.xlu0 %4813, %v4806
  %v4815 = vpop.permute.xlu0 %4814
  %v4817 = vmul.f32 %v4773, %v4810
  %v4818 = vmul.f32 %v4774, %v4810
  %v4819 = vmul.f32 %v4775, %v4810
  %v4820 = vmul.f32 %v4776, %v4810
  %v4821 = vmul.f32 %v4777, %v4815
  %v4822 = vmul.f32 %v4778, %v4815
  %v4823 = vmul.f32 %v4779, %v4815
  %v4824 = vmul.f32 %v4780, %v4815
  %4826 = vset.pattern.permute.xlu0 1
  %4827 = vperm.xlu0 %4826, %v4591
  %v4828 = vpop.permute.xlu0 %4827
  %4831 = vset.pattern.permute.xlu0 1
  %4832 = vperm.xlu0 %4831, %v4592
  %v4833 = vpop.permute.xlu0 %4832
  %v4835 = vadd.f32 %v4817, %v4828
  %v4836 = vadd.f32 %v4818, %v4828
  %v4837 = vadd.f32 %v4819, %v4828
  %v4838 = vadd.f32 %v4820, %v4828
  %v4839 = vadd.f32 %v4821, %v4833
  %v4840 = vadd.f32 %v4822, %v4833
  %v4841 = vadd.f32 %v4823, %v4833
  %v4842 = vadd.f32 %v4824, %v4833
  %v4843 = vxor.u32 %v4835, 2147483648
  %v4844 = vxor.u32 %v4836, 2147483648
  %v4845 = vxor.u32 %v4837, 2147483648
  %v4846 = vxor.u32 %v4838, 2147483648
  %v4847 = vxor.u32 %v4839, 2147483648
  %v4848 = vxor.u32 %v4840, 2147483648
  %v4849 = vxor.u32 %v4841, 2147483648
  %v4850 = vxor.u32 %v4842, 2147483648
  %v4851 = vmul.f32 %v4843, 1.442695
  %v4852 = vpow.pop %v4851
  %v4853 = vmul.f32 %v4844, 1.442695
  %v4854 = vpow.pop %v4853
  %v4855 = vmul.f32 %v4845, 1.442695
  %v4856 = vpow.pop %v4855
  %v4857 = vmul.f32 %v4846, 1.442695
  %v4858 = vpow.pop %v4857
  %v4859 = vmul.f32 %v4847, 1.442695
  %v4860 = vpow.pop %v4859
  %v4861 = vmul.f32 %v4848, 1.442695
  %v4862 = vpow.pop %v4861
  %v4863 = vmul.f32 %v4849, 1.442695
  %v4864 = vpow.pop %v4863
  %v4865 = vmul.f32 %v4850, 1.442695
  %v4866 = vpow.pop %v4865
  %v4867 = vadd.f32 %v4852, 1.0
  %v4868 = vadd.f32 %v4854, 1.0
  %v4869 = vadd.f32 %v4856, 1.0
  %v4870 = vadd.f32 %v4858, 1.0
  %v4871 = vadd.f32 %v4860, 1.0
  %v4872 = vadd.f32 %v4862, 1.0
  %v4873 = vadd.f32 %v4864, 1.0
  %v4874 = vadd.f32 %v4866, 1.0
  %v4875 = vrcp.pop %v4867
  %v4876 = vmul.f32 1.0, %v4875
  %v4877 = vrcp.pop %v4868
  %v4878 = vmul.f32 1.0, %v4877
  %v4879 = vrcp.pop %v4869
  %v4880 = vmul.f32 1.0, %v4879
  %v4881 = vrcp.pop %v4870
  %v4882 = vmul.f32 1.0, %v4881
  %v4883 = vrcp.pop %v4871
  %v4884 = vmul.f32 1.0, %v4883
  %v4885 = vrcp.pop %v4872
  %v4886 = vmul.f32 1.0, %v4885
  %v4887 = vrcp.pop %v4873
  %v4888 = vmul.f32 1.0, %v4887
  %v4889 = vrcp.pop %v4874
  %v4890 = vmul.f32 1.0, %v4889
  %v4891 = vmul.f32 %v4835, %v4876
  %v4892 = vmul.f32 %v4836, %v4878
  %v4893 = vmul.f32 %v4837, %v4880
  %v4894 = vmul.f32 %v4838, %v4882
  %v4895 = vmul.f32 %v4839, %v4884
  %v4896 = vmul.f32 %v4840, %v4886
  %v4897 = vmul.f32 %v4841, %v4888
  %v4898 = vmul.f32 %v4842, %v4890
  %4900 = vset.pattern.permute.xlu0 4
  %4901 = vperm.xlu0 %4900, %v4583
  %v4902 = vpop.permute.xlu0 %4901
  %4905 = vset.pattern.permute.xlu0 4
  %4906 = vperm.xlu0 %4905, %v4584
  %v4907 = vpop.permute.xlu0 %4906
  %4910 = vset.pattern.permute.xlu0 4
  %4911 = vperm.xlu0 %4910, %v4585
  %v4912 = vpop.permute.xlu0 %4911
  %4915 = vset.pattern.permute.xlu0 4
  %4916 = vperm.xlu0 %4915, %v4586
  %v4917 = vpop.permute.xlu0 %4916
  %v4919 = vmul.f32 %v4565, %v4902
  %v4920 = vmul.f32 %v4566, %v4902
  %v4921 = vmul.f32 %v4567, %v4902
  %v4922 = vmul.f32 %v4568, %v4902
  %v4923 = vmul.f32 %v4569, %v4907
  %v4924 = vmul.f32 %v4570, %v4907
  %v4925 = vmul.f32 %v4571, %v4907
  %v4926 = vmul.f32 %v4572, %v4907
  %v4927 = vmul.f32 %v4891, %v4912
  %v4928 = vmul.f32 %v4892, %v4912
  %v4929 = vmul.f32 %v4893, %v4912
  %v4930 = vmul.f32 %v4894, %v4912
  %v4931 = vmul.f32 %v4895, %v4917
  %v4932 = vmul.f32 %v4896, %v4917
  %v4933 = vmul.f32 %v4897, %v4917
  %v4934 = vmul.f32 %v4898, %v4917
  %4939 = vrot.lane.b32.xlu0 %v4568, 17
  %v4940 = vpop.permute.xlu0 %4939
  %4941 = vrot.lane.b32.xlu0 %v4572, 17
  %v4942 = vpop.permute.xlu0 %4941
  %4943 = vrot.lane.b32.xlu0 %v4894, 17
  %v4944 = vpop.permute.xlu0 %4943
  %4945 = vrot.lane.b32.xlu0 %v4898, 17
  %v4946 = vpop.permute.xlu0 %4945
  %4963 = vrot.lane.b32.xlu0 %v4565, 17
  %v4964 = vpop.permute.xlu0 %4963
  %4965 = vrot.lane.b32.xlu0 %v4566, 17
  %v4966 = vpop.permute.xlu0 %4965
  %4967 = vrot.lane.b32.xlu0 %v4567, 17
  %v4968 = vpop.permute.xlu0 %4967
  %4969 = vrot.lane.b32.xlu0 %v4569, 17
  %v4970 = vpop.permute.xlu0 %4969
  %4971 = vrot.lane.b32.xlu0 %v4570, 17
  %v4972 = vpop.permute.xlu0 %4971
  %4973 = vrot.lane.b32.xlu0 %v4571, 17
  %v4974 = vpop.permute.xlu0 %4973
  %4975 = vrot.lane.b32.xlu0 %v4891, 17
  %v4976 = vpop.permute.xlu0 %4975
  %4977 = vrot.lane.b32.xlu0 %v4892, 17
  %v4978 = vpop.permute.xlu0 %4977
  %4979 = vrot.lane.b32.xlu0 %v4893, 17
  %v4980 = vpop.permute.xlu0 %4979
  %4981 = vrot.lane.b32.xlu0 %v4895, 17
  %v4982 = vpop.permute.xlu0 %4981
  %4983 = vrot.lane.b32.xlu0 %v4896, 17
  %v4984 = vpop.permute.xlu0 %4983
  %4985 = vrot.lane.b32.xlu0 %v4897, 17
  %v4986 = vpop.permute.xlu0 %4985
  %v4987 = vsel %vm739, %v4964, %v4966
  %v4988 = vsel %vm739, %v4966, %v4968
  %v4989 = vsel %vm739, %v4968, %v4940
  %v4990 = vsel %vm739, %v4970, %v4972
  %v4991 = vsel %vm739, %v4972, %v4974
  %v4992 = vsel %vm739, %v4974, %v4942
  %v4993 = vsel %vm739, %v4976, %v4978
  %v4994 = vsel %vm739, %v4978, %v4980
  %v4995 = vsel %vm739, %v4980, %v4944
  %v4996 = vsel %vm739, %v4982, %v4984
  %v4997 = vsel %vm739, %v4984, %v4986
  %v4998 = vsel %vm739, %v4986, %v4946
  %v5015 = vsel %vm739, %v4940, %v4964
  %v5016 = vsel %vm739, %v4942, %v4970
  %v5017 = vsel %vm739, %v4944, %v4976
  %v5018 = vsel %vm739, %v4946, %v4982
  %5019 = vset.pattern.permute.xlu0 0
  %5020 = vperm.xlu0 %5019, %v4583
  %v5021 = vpop.permute.xlu0 %5020
  %5023 = vset.pattern.permute.xlu0 0
  %5024 = vperm.xlu0 %5023, %v4584
  %v5025 = vpop.permute.xlu0 %5024
  %5027 = vset.pattern.permute.xlu0 0
  %5028 = vperm.xlu0 %5027, %v4585
  %v5029 = vpop.permute.xlu0 %5028
  %5031 = vset.pattern.permute.xlu0 0
  %5032 = vperm.xlu0 %5031, %v4586
  %v5033 = vpop.permute.xlu0 %5032
  %v5035 = vmul.f32 %v5015, %v5021
  %v5036 = vmul.f32 %v4987, %v5021
  %v5037 = vmul.f32 %v4988, %v5021
  %v5038 = vmul.f32 %v4989, %v5021
  %v5039 = vmul.f32 %v5016, %v5025
  %v5040 = vmul.f32 %v4990, %v5025
  %v5041 = vmul.f32 %v4991, %v5025
  %v5042 = vmul.f32 %v4992, %v5025
  %v5043 = vmul.f32 %v5017, %v5029
  %v5044 = vmul.f32 %v4993, %v5029
  %v5045 = vmul.f32 %v4994, %v5029
  %v5046 = vmul.f32 %v4995, %v5029
  %v5047 = vmul.f32 %v5018, %v5033
  %v5048 = vmul.f32 %v4996, %v5033
  %v5049 = vmul.f32 %v4997, %v5033
  %v5050 = vmul.f32 %v4998, %v5033
  %v5051 = vmul.f32 %v5035, %v807
  %v5052 = vmul.f32 %v5036, %v811
  %v5053 = vmul.f32 %v5037, %v815
  %v5054 = vmul.f32 %v5038, %v819
  %v5055 = vmul.f32 %v5039, %v807
  %v5056 = vmul.f32 %v5040, %v811
  %v5057 = vmul.f32 %v5041, %v815
  %v5058 = vmul.f32 %v5042, %v819
  %v5059 = vmul.f32 %v5043, %v807
  %v5060 = vmul.f32 %v5044, %v811
  %v5061 = vmul.f32 %v5045, %v815
  %v5062 = vmul.f32 %v5046, %v819
  %v5063 = vmul.f32 %v5047, %v807
  %v5064 = vmul.f32 %v5048, %v811
  %v5065 = vmul.f32 %v5049, %v815
  %v5066 = vmul.f32 %v5050, %v819
  %v5067 = vadd.f32 %v4919, %v5051
  %v5068 = vadd.f32 %v4920, %v5052
  %v5069 = vadd.f32 %v4921, %v5053
  %v5070 = vadd.f32 %v4922, %v5054
  %v5071 = vadd.f32 %v4923, %v5055
  %v5072 = vadd.f32 %v4924, %v5056
  %v5073 = vadd.f32 %v4925, %v5057
  %v5074 = vadd.f32 %v4926, %v5058
  %v5075 = vadd.f32 %v4927, %v5059
  %v5076 = vadd.f32 %v4928, %v5060
  %v5077 = vadd.f32 %v4929, %v5061
  %v5078 = vadd.f32 %v4930, %v5062
  %v5079 = vadd.f32 %v4931, %v5063
  %v5080 = vadd.f32 %v4932, %v5064
  %v5081 = vadd.f32 %v4933, %v5065
  %v5082 = vadd.f32 %v4934, %v5066
  %5083 = vrot.lane.b32.xlu0 %v4568, 16
  %v5084 = vpop.permute.xlu0 %5083
  %5085 = vrot.lane.b32.xlu0 %v4572, 16
  %v5086 = vpop.permute.xlu0 %5085
  %5087 = vrot.lane.b32.xlu0 %v4894, 16
  %v5088 = vpop.permute.xlu0 %5087
  %5089 = vrot.lane.b32.xlu0 %v4898, 16
  %v5090 = vpop.permute.xlu0 %5089
  %5095 = vrot.lane.b32.xlu0 %v4565, 16
  %v5096 = vpop.permute.xlu0 %5095
  %5097 = vrot.lane.b32.xlu0 %v4566, 16
  %v5098 = vpop.permute.xlu0 %5097
  %5099 = vrot.lane.b32.xlu0 %v4567, 16
  %v5100 = vpop.permute.xlu0 %5099
  %5101 = vrot.lane.b32.xlu0 %v4569, 16
  %v5102 = vpop.permute.xlu0 %5101
  %5103 = vrot.lane.b32.xlu0 %v4570, 16
  %v5104 = vpop.permute.xlu0 %5103
  %5105 = vrot.lane.b32.xlu0 %v4571, 16
  %v5106 = vpop.permute.xlu0 %5105
  %5107 = vrot.lane.b32.xlu0 %v4891, 16
  %v5108 = vpop.permute.xlu0 %5107
  %5109 = vrot.lane.b32.xlu0 %v4892, 16
  %v5110 = vpop.permute.xlu0 %5109
  %5111 = vrot.lane.b32.xlu0 %v4893, 16
  %v5112 = vpop.permute.xlu0 %5111
  %5113 = vrot.lane.b32.xlu0 %v4895, 16
  %v5114 = vpop.permute.xlu0 %5113
  %5115 = vrot.lane.b32.xlu0 %v4896, 16
  %v5116 = vpop.permute.xlu0 %5115
  %5117 = vrot.lane.b32.xlu0 %v4897, 16
  %v5118 = vpop.permute.xlu0 %5117
  %v5119 = vsel %vm351, %v5096, %v5098
  %v5120 = vsel %vm351, %v5098, %v5100
  %v5121 = vsel %vm351, %v5100, %v5084
  %v5122 = vsel %vm351, %v5102, %v5104
  %v5123 = vsel %vm351, %v5104, %v5106
  %v5124 = vsel %vm351, %v5106, %v5086
  %v5125 = vsel %vm351, %v5108, %v5110
  %v5126 = vsel %vm351, %v5110, %v5112
  %v5127 = vsel %vm351, %v5112, %v5088
  %v5128 = vsel %vm351, %v5114, %v5116
  %v5129 = vsel %vm351, %v5116, %v5118
  %v5130 = vsel %vm351, %v5118, %v5090
  %v5147 = vsel %vm351, %v5084, %v5096
  %v5148 = vsel %vm351, %v5086, %v5102
  %v5149 = vsel %vm351, %v5088, %v5108
  %v5150 = vsel %vm351, %v5090, %v5114
  %5151 = vset.pattern.permute.xlu0 1
  %5152 = vperm.xlu0 %5151, %v4583
  %v5153 = vpop.permute.xlu0 %5152
  %5155 = vset.pattern.permute.xlu0 1
  %5156 = vperm.xlu0 %5155, %v4584
  %v5157 = vpop.permute.xlu0 %5156
  %5159 = vset.pattern.permute.xlu0 1
  %5160 = vperm.xlu0 %5159, %v4585
  %v5161 = vpop.permute.xlu0 %5160
  %5163 = vset.pattern.permute.xlu0 1
  %5164 = vperm.xlu0 %5163, %v4586
  %v5165 = vpop.permute.xlu0 %5164
  %v5167 = vmul.f32 %v5147, %v5153
  %v5168 = vmul.f32 %v5119, %v5153
  %v5169 = vmul.f32 %v5120, %v5153
  %v5170 = vmul.f32 %v5121, %v5153
  %v5171 = vmul.f32 %v5148, %v5157
  %v5172 = vmul.f32 %v5122, %v5157
  %v5173 = vmul.f32 %v5123, %v5157
  %v5174 = vmul.f32 %v5124, %v5157
  %v5175 = vmul.f32 %v5149, %v5161
  %v5176 = vmul.f32 %v5125, %v5161
  %v5177 = vmul.f32 %v5126, %v5161
  %v5178 = vmul.f32 %v5127, %v5161
  %v5179 = vmul.f32 %v5150, %v5165
  %v5180 = vmul.f32 %v5128, %v5165
  %v5181 = vmul.f32 %v5129, %v5165
  %v5182 = vmul.f32 %v5130, %v5165
  %v5183 = vmul.f32 %v5167, %v955
  %v5184 = vmul.f32 %v5168, %v959
  %v5185 = vmul.f32 %v5169, %v963
  %v5186 = vmul.f32 %v5170, %v967
  %v5187 = vmul.f32 %v5171, %v955
  %v5188 = vmul.f32 %v5172, %v959
  %v5189 = vmul.f32 %v5173, %v963
  %v5190 = vmul.f32 %v5174, %v967
  %v5191 = vmul.f32 %v5175, %v955
  %v5192 = vmul.f32 %v5176, %v959
  %v5193 = vmul.f32 %v5177, %v963
  %v5194 = vmul.f32 %v5178, %v967
  %v5195 = vmul.f32 %v5179, %v955
  %v5196 = vmul.f32 %v5180, %v959
  %v5197 = vmul.f32 %v5181, %v963
  %v5198 = vmul.f32 %v5182, %v967
  %v5199 = vadd.f32 %v5067, %v5183
  %v5200 = vadd.f32 %v5068, %v5184
  %v5201 = vadd.f32 %v5069, %v5185
  %v5202 = vadd.f32 %v5070, %v5186
  %v5203 = vadd.f32 %v5071, %v5187
  %v5204 = vadd.f32 %v5072, %v5188
  %v5205 = vadd.f32 %v5073, %v5189
  %v5206 = vadd.f32 %v5074, %v5190
  %v5207 = vadd.f32 %v5075, %v5191
  %v5208 = vadd.f32 %v5076, %v5192
  %v5209 = vadd.f32 %v5077, %v5193
  %v5210 = vadd.f32 %v5078, %v5194
  %v5211 = vadd.f32 %v5079, %v5195
  %v5212 = vadd.f32 %v5080, %v5196
  %v5213 = vadd.f32 %v5081, %v5197
  %v5214 = vadd.f32 %v5082, %v5198
  %5215 = vrot.lane.b32.xlu0 %v4568, 15
  %v5216 = vpop.permute.xlu0 %5215
  %5217 = vrot.lane.b32.xlu0 %v4572, 15
  %v5218 = vpop.permute.xlu0 %5217
  %5219 = vrot.lane.b32.xlu0 %v4894, 15
  %v5220 = vpop.permute.xlu0 %5219
  %5221 = vrot.lane.b32.xlu0 %v4898, 15
  %v5222 = vpop.permute.xlu0 %5221
  %5227 = vrot.lane.b32.xlu0 %v4565, 15
  %v5228 = vpop.permute.xlu0 %5227
  %5229 = vrot.lane.b32.xlu0 %v4566, 15
  %v5230 = vpop.permute.xlu0 %5229
  %5231 = vrot.lane.b32.xlu0 %v4567, 15
  %v5232 = vpop.permute.xlu0 %5231
  %5233 = vrot.lane.b32.xlu0 %v4569, 15
  %v5234 = vpop.permute.xlu0 %5233
  %5235 = vrot.lane.b32.xlu0 %v4570, 15
  %v5236 = vpop.permute.xlu0 %5235
  %5237 = vrot.lane.b32.xlu0 %v4571, 15
  %v5238 = vpop.permute.xlu0 %5237
  %5239 = vrot.lane.b32.xlu0 %v4891, 15
  %v5240 = vpop.permute.xlu0 %5239
  %5241 = vrot.lane.b32.xlu0 %v4892, 15
  %v5242 = vpop.permute.xlu0 %5241
  %5243 = vrot.lane.b32.xlu0 %v4893, 15
  %v5244 = vpop.permute.xlu0 %5243
  %5245 = vrot.lane.b32.xlu0 %v4895, 15
  %v5246 = vpop.permute.xlu0 %5245
  %5247 = vrot.lane.b32.xlu0 %v4896, 15
  %v5248 = vpop.permute.xlu0 %5247
  %5249 = vrot.lane.b32.xlu0 %v4897, 15
  %v5250 = vpop.permute.xlu0 %5249
  %v5251 = vsel %vm1036, %v5228, %v5230
  %v5252 = vsel %vm1036, %v5230, %v5232
  %v5253 = vsel %vm1036, %v5232, %v5216
  %v5254 = vsel %vm1036, %v5234, %v5236
  %v5255 = vsel %vm1036, %v5236, %v5238
  %v5256 = vsel %vm1036, %v5238, %v5218
  %v5257 = vsel %vm1036, %v5240, %v5242
  %v5258 = vsel %vm1036, %v5242, %v5244
  %v5259 = vsel %vm1036, %v5244, %v5220
  %v5260 = vsel %vm1036, %v5246, %v5248
  %v5261 = vsel %vm1036, %v5248, %v5250
  %v5262 = vsel %vm1036, %v5250, %v5222
  %v5279 = vsel %vm1036, %v5216, %v5228
  %v5280 = vsel %vm1036, %v5218, %v5234
  %v5281 = vsel %vm1036, %v5220, %v5240
  %v5282 = vsel %vm1036, %v5222, %v5246
  %5283 = vset.pattern.permute.xlu0 2
  %5284 = vperm.xlu0 %5283, %v4583
  %v5285 = vpop.permute.xlu0 %5284
  %5287 = vset.pattern.permute.xlu0 2
  %5288 = vperm.xlu0 %5287, %v4584
  %v5289 = vpop.permute.xlu0 %5288
  %5291 = vset.pattern.permute.xlu0 2
  %5292 = vperm.xlu0 %5291, %v4585
  %v5293 = vpop.permute.xlu0 %5292
  %5295 = vset.pattern.permute.xlu0 2
  %5296 = vperm.xlu0 %5295, %v4586
  %v5297 = vpop.permute.xlu0 %5296
  %v5299 = vmul.f32 %v5279, %v5285
  %v5300 = vmul.f32 %v5251, %v5285
  %v5301 = vmul.f32 %v5252, %v5285
  %v5302 = vmul.f32 %v5253, %v5285
  %v5303 = vmul.f32 %v5280, %v5289
  %v5304 = vmul.f32 %v5254, %v5289
  %v5305 = vmul.f32 %v5255, %v5289
  %v5306 = vmul.f32 %v5256, %v5289
  %v5307 = vmul.f32 %v5281, %v5293
  %v5308 = vmul.f32 %v5257, %v5293
  %v5309 = vmul.f32 %v5258, %v5293
  %v5310 = vmul.f32 %v5259, %v5293
  %v5311 = vmul.f32 %v5282, %v5297
  %v5312 = vmul.f32 %v5260, %v5297
  %v5313 = vmul.f32 %v5261, %v5297
  %v5314 = vmul.f32 %v5262, %v5297
  %v5315 = vmul.f32 %v5299, %v1104
  %v5316 = vmul.f32 %v5300, %v1108
  %v5317 = vmul.f32 %v5301, %v1112
  %v5318 = vmul.f32 %v5302, %v1116
  %v5319 = vmul.f32 %v5303, %v1104
  %v5320 = vmul.f32 %v5304, %v1108
  %v5321 = vmul.f32 %v5305, %v1112
  %v5322 = vmul.f32 %v5306, %v1116
  %v5323 = vmul.f32 %v5307, %v1104
  %v5324 = vmul.f32 %v5308, %v1108
  %v5325 = vmul.f32 %v5309, %v1112
  %v5326 = vmul.f32 %v5310, %v1116
  %v5327 = vmul.f32 %v5311, %v1104
  %v5328 = vmul.f32 %v5312, %v1108
  %v5329 = vmul.f32 %v5313, %v1112
  %v5330 = vmul.f32 %v5314, %v1116
  %v5331 = vadd.f32 %v5199, %v5315
  %v5332 = vadd.f32 %v5200, %v5316
  %v5333 = vadd.f32 %v5201, %v5317
  %v5334 = vadd.f32 %v5202, %v5318
  %v5335 = vadd.f32 %v5203, %v5319
  %v5336 = vadd.f32 %v5204, %v5320
  %v5337 = vadd.f32 %v5205, %v5321
  %v5338 = vadd.f32 %v5206, %v5322
  %v5339 = vadd.f32 %v5207, %v5323
  %v5340 = vadd.f32 %v5208, %v5324
  %v5341 = vadd.f32 %v5209, %v5325
  %v5342 = vadd.f32 %v5210, %v5326
  %v5343 = vadd.f32 %v5211, %v5327
  %v5344 = vadd.f32 %v5212, %v5328
  %v5345 = vadd.f32 %v5213, %v5329
  %v5346 = vadd.f32 %v5214, %v5330
  %5347 = vrot.lane.b32.xlu0 %v4568, 1
  %v5348 = vpop.permute.xlu0 %5347
  %5349 = vrot.lane.b32.xlu0 %v4572, 1
  %v5350 = vpop.permute.xlu0 %5349
  %5351 = vrot.lane.b32.xlu0 %v4894, 1
  %v5352 = vpop.permute.xlu0 %5351
  %5353 = vrot.lane.b32.xlu0 %v4898, 1
  %v5354 = vpop.permute.xlu0 %5353
  %5359 = vrot.lane.b32.xlu0 %v4565, 1
  %v5360 = vpop.permute.xlu0 %5359
  %5361 = vrot.lane.b32.xlu0 %v4566, 1
  %v5362 = vpop.permute.xlu0 %5361
  %5363 = vrot.lane.b32.xlu0 %v4567, 1
  %v5364 = vpop.permute.xlu0 %5363
  %5365 = vrot.lane.b32.xlu0 %v4569, 1
  %v5366 = vpop.permute.xlu0 %5365
  %5367 = vrot.lane.b32.xlu0 %v4570, 1
  %v5368 = vpop.permute.xlu0 %5367
  %5369 = vrot.lane.b32.xlu0 %v4571, 1
  %v5370 = vpop.permute.xlu0 %5369
  %5371 = vrot.lane.b32.xlu0 %v4891, 1
  %v5372 = vpop.permute.xlu0 %5371
  %5373 = vrot.lane.b32.xlu0 %v4892, 1
  %v5374 = vpop.permute.xlu0 %5373
  %5375 = vrot.lane.b32.xlu0 %v4893, 1
  %v5376 = vpop.permute.xlu0 %5375
  %5377 = vrot.lane.b32.xlu0 %v4895, 1
  %v5378 = vpop.permute.xlu0 %5377
  %5379 = vrot.lane.b32.xlu0 %v4896, 1
  %v5380 = vpop.permute.xlu0 %5379
  %5381 = vrot.lane.b32.xlu0 %v4897, 1
  %v5382 = vpop.permute.xlu0 %5381
  %v5383 = vsel %vm1185, %v5360, %v5362
  %v5384 = vsel %vm1185, %v5362, %v5364
  %v5385 = vsel %vm1185, %v5364, %v5348
  %v5386 = vsel %vm1185, %v5366, %v5368
  %v5387 = vsel %vm1185, %v5368, %v5370
  %v5388 = vsel %vm1185, %v5370, %v5350
  %v5389 = vsel %vm1185, %v5372, %v5374
  %v5390 = vsel %vm1185, %v5374, %v5376
  %v5391 = vsel %vm1185, %v5376, %v5352
  %v5392 = vsel %vm1185, %v5378, %v5380
  %v5393 = vsel %vm1185, %v5380, %v5382
  %v5394 = vsel %vm1185, %v5382, %v5354
  %v5411 = vsel %vm1185, %v5348, %v5360
  %v5412 = vsel %vm1185, %v5350, %v5366
  %v5413 = vsel %vm1185, %v5352, %v5372
  %v5414 = vsel %vm1185, %v5354, %v5378
  %5415 = vset.pattern.permute.xlu0 3
  %5416 = vperm.xlu0 %5415, %v4583
  %v5417 = vpop.permute.xlu0 %5416
  %5419 = vset.pattern.permute.xlu0 3
  %5420 = vperm.xlu0 %5419, %v4584
  %v5421 = vpop.permute.xlu0 %5420
  %5423 = vset.pattern.permute.xlu0 3
  %5424 = vperm.xlu0 %5423, %v4585
  %v5425 = vpop.permute.xlu0 %5424
  %5427 = vset.pattern.permute.xlu0 3
  %5428 = vperm.xlu0 %5427, %v4586
  %v5429 = vpop.permute.xlu0 %5428
  %v5431 = vmul.f32 %v5411, %v5417
  %v5432 = vmul.f32 %v5383, %v5417
  %v5433 = vmul.f32 %v5384, %v5417
  %v5434 = vmul.f32 %v5385, %v5417
  %v5435 = vmul.f32 %v5412, %v5421
  %v5436 = vmul.f32 %v5386, %v5421
  %v5437 = vmul.f32 %v5387, %v5421
  %v5438 = vmul.f32 %v5388, %v5421
  %v5439 = vmul.f32 %v5413, %v5425
  %v5440 = vmul.f32 %v5389, %v5425
  %v5441 = vmul.f32 %v5390, %v5425
  %v5442 = vmul.f32 %v5391, %v5425
  %v5443 = vmul.f32 %v5414, %v5429
  %v5444 = vmul.f32 %v5392, %v5429
  %v5445 = vmul.f32 %v5393, %v5429
  %v5446 = vmul.f32 %v5394, %v5429
  %v5447 = vmul.f32 %v5431, %v1253
  %v5448 = vmul.f32 %v5432, %v1257
  %v5449 = vmul.f32 %v5433, %v1261
  %v5450 = vmul.f32 %v5434, %v1265
  %v5451 = vmul.f32 %v5435, %v1253
  %v5452 = vmul.f32 %v5436, %v1257
  %v5453 = vmul.f32 %v5437, %v1261
  %v5454 = vmul.f32 %v5438, %v1265
  %v5455 = vmul.f32 %v5439, %v1253
  %v5456 = vmul.f32 %v5440, %v1257
  %v5457 = vmul.f32 %v5441, %v1261
  %v5458 = vmul.f32 %v5442, %v1265
  %v5459 = vmul.f32 %v5443, %v1253
  %v5460 = vmul.f32 %v5444, %v1257
  %v5461 = vmul.f32 %v5445, %v1261
  %v5462 = vmul.f32 %v5446, %v1265
  %v5463 = vadd.f32 %v5331, %v5447
  %v5464 = vadd.f32 %v5332, %v5448
  %v5465 = vadd.f32 %v5333, %v5449
  %v5466 = vadd.f32 %v5334, %v5450
  %v5467 = vadd.f32 %v5335, %v5451
  %v5468 = vadd.f32 %v5336, %v5452
  %v5469 = vadd.f32 %v5337, %v5453
  %v5470 = vadd.f32 %v5338, %v5454
  %v5471 = vadd.f32 %v5339, %v5455
  %v5472 = vadd.f32 %v5340, %v5456
  %v5473 = vadd.f32 %v5341, %v5457
  %v5474 = vadd.f32 %v5342, %v5458
  %v5475 = vadd.f32 %v5343, %v5459
  %v5476 = vadd.f32 %v5344, %v5460
  %v5477 = vadd.f32 %v5345, %v5461
  %v5478 = vadd.f32 %v5346, %v5462
  %5479 = vrot.lane.b32.xlu0 %v4565, 127
  %v5480 = vpop.permute.xlu0 %5479
  %5481 = vrot.lane.b32.xlu0 %v4566, 127
  %v5482 = vpop.permute.xlu0 %5481
  %5483 = vrot.lane.b32.xlu0 %v4567, 127
  %v5484 = vpop.permute.xlu0 %5483
  %5485 = vrot.lane.b32.xlu0 %v4568, 127
  %v5486 = vpop.permute.xlu0 %5485
  %5487 = vrot.lane.b32.xlu0 %v4569, 127
  %v5488 = vpop.permute.xlu0 %5487
  %5489 = vrot.lane.b32.xlu0 %v4570, 127
  %v5490 = vpop.permute.xlu0 %5489
  %5491 = vrot.lane.b32.xlu0 %v4571, 127
  %v5492 = vpop.permute.xlu0 %5491
  %5493 = vrot.lane.b32.xlu0 %v4572, 127
  %v5494 = vpop.permute.xlu0 %5493
  %5495 = vrot.lane.b32.xlu0 %v4891, 127
  %v5496 = vpop.permute.xlu0 %5495
  %5497 = vrot.lane.b32.xlu0 %v4892, 127
  %v5498 = vpop.permute.xlu0 %5497
  %5499 = vrot.lane.b32.xlu0 %v4893, 127
  %v5500 = vpop.permute.xlu0 %5499
  %5501 = vrot.lane.b32.xlu0 %v4894, 127
  %v5502 = vpop.permute.xlu0 %5501
  %5503 = vrot.lane.b32.xlu0 %v4895, 127
  %v5504 = vpop.permute.xlu0 %5503
  %5505 = vrot.lane.b32.xlu0 %v4896, 127
  %v5506 = vpop.permute.xlu0 %5505
  %5507 = vrot.lane.b32.xlu0 %v4897, 127
  %v5508 = vpop.permute.xlu0 %5507
  %5509 = vrot.lane.b32.xlu0 %v4898, 127
  %v5510 = vpop.permute.xlu0 %5509
  %v5511 = vsel %vm1330, %v5480, %v5482
  %v5512 = vsel %vm1330, %v5482, %v5484
  %v5513 = vsel %vm1330, %v5484, %v5486
  %v5514 = vsel %vm1330, %v5488, %v5490
  %v5515 = vsel %vm1330, %v5490, %v5492
  %v5516 = vsel %vm1330, %v5492, %v5494
  %v5517 = vsel %vm1330, %v5496, %v5498
  %v5518 = vsel %vm1330, %v5498, %v5500
  %v5519 = vsel %vm1330, %v5500, %v5502
  %v5520 = vsel %vm1330, %v5504, %v5506
  %v5521 = vsel %vm1330, %v5506, %v5508
  %v5522 = vsel %vm1330, %v5508, %v5510
  %v5543 = vsel %vm1330, %v5486, %v5480
  %v5544 = vsel %vm1330, %v5494, %v5488
  %v5545 = vsel %vm1330, %v5502, %v5496
  %v5546 = vsel %vm1330, %v5510, %v5504
  %5547 = vset.pattern.permute.xlu0 5
  %5548 = vperm.xlu0 %5547, %v4583
  %v5549 = vpop.permute.xlu0 %5548
  %5551 = vset.pattern.permute.xlu0 5
  %5552 = vperm.xlu0 %5551, %v4584
  %v5553 = vpop.permute.xlu0 %5552
  %5555 = vset.pattern.permute.xlu0 5
  %5556 = vperm.xlu0 %5555, %v4585
  %v5557 = vpop.permute.xlu0 %5556
  %5559 = vset.pattern.permute.xlu0 5
  %5560 = vperm.xlu0 %5559, %v4586
  %v5561 = vpop.permute.xlu0 %5560
  %v5563 = vmul.f32 %v5511, %v5549
  %v5564 = vmul.f32 %v5512, %v5549
  %v5565 = vmul.f32 %v5513, %v5549
  %v5566 = vmul.f32 %v5543, %v5549
  %v5567 = vmul.f32 %v5514, %v5553
  %v5568 = vmul.f32 %v5515, %v5553
  %v5569 = vmul.f32 %v5516, %v5553
  %v5570 = vmul.f32 %v5544, %v5553
  %v5571 = vmul.f32 %v5517, %v5557
  %v5572 = vmul.f32 %v5518, %v5557
  %v5573 = vmul.f32 %v5519, %v5557
  %v5574 = vmul.f32 %v5545, %v5557
  %v5575 = vmul.f32 %v5520, %v5561
  %v5576 = vmul.f32 %v5521, %v5561
  %v5577 = vmul.f32 %v5522, %v5561
  %v5578 = vmul.f32 %v5546, %v5561
  %v5579 = vmul.f32 %v5563, %v1402
  %v5580 = vmul.f32 %v5564, %v1406
  %v5581 = vmul.f32 %v5565, %v1410
  %v5582 = vmul.f32 %v5566, %v1414
  %v5583 = vmul.f32 %v5567, %v1402
  %v5584 = vmul.f32 %v5568, %v1406
  %v5585 = vmul.f32 %v5569, %v1410
  %v5586 = vmul.f32 %v5570, %v1414
  %v5587 = vmul.f32 %v5571, %v1402
  %v5588 = vmul.f32 %v5572, %v1406
  %v5589 = vmul.f32 %v5573, %v1410
  %v5590 = vmul.f32 %v5574, %v1414
  %v5591 = vmul.f32 %v5575, %v1402
  %v5592 = vmul.f32 %v5576, %v1406
  %v5593 = vmul.f32 %v5577, %v1410
  %v5594 = vmul.f32 %v5578, %v1414
  %v5595 = vadd.f32 %v5463, %v5579
  %v5596 = vadd.f32 %v5464, %v5580
  %v5597 = vadd.f32 %v5465, %v5581
  %v5598 = vadd.f32 %v5466, %v5582
  %v5599 = vadd.f32 %v5467, %v5583
  %v5600 = vadd.f32 %v5468, %v5584
  %v5601 = vadd.f32 %v5469, %v5585
  %v5602 = vadd.f32 %v5470, %v5586
  %v5603 = vadd.f32 %v5471, %v5587
  %v5604 = vadd.f32 %v5472, %v5588
  %v5605 = vadd.f32 %v5473, %v5589
  %v5606 = vadd.f32 %v5474, %v5590
  %v5607 = vadd.f32 %v5475, %v5591
  %v5608 = vadd.f32 %v5476, %v5592
  %v5609 = vadd.f32 %v5477, %v5593
  %v5610 = vadd.f32 %v5478, %v5594
  %5611 = vrot.lane.b32.xlu0 %v4565, 113
  %v5612 = vpop.permute.xlu0 %5611
  %5613 = vrot.lane.b32.xlu0 %v4566, 113
  %v5614 = vpop.permute.xlu0 %5613
  %5615 = vrot.lane.b32.xlu0 %v4567, 113
  %v5616 = vpop.permute.xlu0 %5615
  %5617 = vrot.lane.b32.xlu0 %v4568, 113
  %v5618 = vpop.permute.xlu0 %5617
  %5619 = vrot.lane.b32.xlu0 %v4569, 113
  %v5620 = vpop.permute.xlu0 %5619
  %5621 = vrot.lane.b32.xlu0 %v4570, 113
  %v5622 = vpop.permute.xlu0 %5621
  %5623 = vrot.lane.b32.xlu0 %v4571, 113
  %v5624 = vpop.permute.xlu0 %5623
  %5625 = vrot.lane.b32.xlu0 %v4572, 113
  %v5626 = vpop.permute.xlu0 %5625
  %5627 = vrot.lane.b32.xlu0 %v4891, 113
  %v5628 = vpop.permute.xlu0 %5627
  %5629 = vrot.lane.b32.xlu0 %v4892, 113
  %v5630 = vpop.permute.xlu0 %5629
  %5631 = vrot.lane.b32.xlu0 %v4893, 113
  %v5632 = vpop.permute.xlu0 %5631
  %5633 = vrot.lane.b32.xlu0 %v4894, 113
  %v5634 = vpop.permute.xlu0 %5633
  %5635 = vrot.lane.b32.xlu0 %v4895, 113
  %v5636 = vpop.permute.xlu0 %5635
  %5637 = vrot.lane.b32.xlu0 %v4896, 113
  %v5638 = vpop.permute.xlu0 %5637
  %5639 = vrot.lane.b32.xlu0 %v4897, 113
  %v5640 = vpop.permute.xlu0 %5639
  %5641 = vrot.lane.b32.xlu0 %v4898, 113
  %v5642 = vpop.permute.xlu0 %5641
  %v5643 = vsel %vm1479, %v5612, %v5614
  %v5644 = vsel %vm1479, %v5614, %v5616
  %v5645 = vsel %vm1479, %v5616, %v5618
  %v5646 = vsel %vm1479, %v5620, %v5622
  %v5647 = vsel %vm1479, %v5622, %v5624
  %v5648 = vsel %vm1479, %v5624, %v5626
  %v5649 = vsel %vm1479, %v5628, %v5630
  %v5650 = vsel %vm1479, %v5630, %v5632
  %v5651 = vsel %vm1479, %v5632, %v5634
  %v5652 = vsel %vm1479, %v5636, %v5638
  %v5653 = vsel %vm1479, %v5638, %v5640
  %v5654 = vsel %vm1479, %v5640, %v5642
  %v5675 = vsel %vm1479, %v5618, %v5612
  %v5676 = vsel %vm1479, %v5626, %v5620
  %v5677 = vsel %vm1479, %v5634, %v5628
  %v5678 = vsel %vm1479, %v5642, %v5636
  %5679 = vset.pattern.permute.xlu0 6
  %5680 = vperm.xlu0 %5679, %v4583
  %v5681 = vpop.permute.xlu0 %5680
  %5683 = vset.pattern.permute.xlu0 6
  %5684 = vperm.xlu0 %5683, %v4584
  %v5685 = vpop.permute.xlu0 %5684
  %5687 = vset.pattern.permute.xlu0 6
  %5688 = vperm.xlu0 %5687, %v4585
  %v5689 = vpop.permute.xlu0 %5688
  %5691 = vset.pattern.permute.xlu0 6
  %5692 = vperm.xlu0 %5691, %v4586
  %v5693 = vpop.permute.xlu0 %5692
  %v5695 = vmul.f32 %v5643, %v5681
  %v5696 = vmul.f32 %v5644, %v5681
  %v5697 = vmul.f32 %v5645, %v5681
  %v5698 = vmul.f32 %v5675, %v5681
  %v5699 = vmul.f32 %v5646, %v5685
  %v5700 = vmul.f32 %v5647, %v5685
  %v5701 = vmul.f32 %v5648, %v5685
  %v5702 = vmul.f32 %v5676, %v5685
  %v5703 = vmul.f32 %v5649, %v5689
  %v5704 = vmul.f32 %v5650, %v5689
  %v5705 = vmul.f32 %v5651, %v5689
  %v5706 = vmul.f32 %v5677, %v5689
  %v5707 = vmul.f32 %v5652, %v5693
  %v5708 = vmul.f32 %v5653, %v5693
  %v5709 = vmul.f32 %v5654, %v5693
  %v5710 = vmul.f32 %v5678, %v5693
  %v5711 = vmul.f32 %v5695, %v1551
  %v5712 = vmul.f32 %v5696, %v1555
  %v5713 = vmul.f32 %v5697, %v1559
  %v5714 = vmul.f32 %v5698, %v1563
  %v5715 = vmul.f32 %v5699, %v1551
  %v5716 = vmul.f32 %v5700, %v1555
  %v5717 = vmul.f32 %v5701, %v1559
  %v5718 = vmul.f32 %v5702, %v1563
  %v5719 = vmul.f32 %v5703, %v1551
  %v5720 = vmul.f32 %v5704, %v1555
  %v5721 = vmul.f32 %v5705, %v1559
  %v5722 = vmul.f32 %v5706, %v1563
  %v5723 = vmul.f32 %v5707, %v1551
  %v5724 = vmul.f32 %v5708, %v1555
  %v5725 = vmul.f32 %v5709, %v1559
  %v5726 = vmul.f32 %v5710, %v1563
  %v5727 = vadd.f32 %v5595, %v5711
  %v5728 = vadd.f32 %v5596, %v5712
  %v5729 = vadd.f32 %v5597, %v5713
  %v5730 = vadd.f32 %v5598, %v5714
  %v5731 = vadd.f32 %v5599, %v5715
  %v5732 = vadd.f32 %v5600, %v5716
  %v5733 = vadd.f32 %v5601, %v5717
  %v5734 = vadd.f32 %v5602, %v5718
  %v5735 = vadd.f32 %v5603, %v5719
  %v5736 = vadd.f32 %v5604, %v5720
  %v5737 = vadd.f32 %v5605, %v5721
  %v5738 = vadd.f32 %v5606, %v5722
  %v5739 = vadd.f32 %v5607, %v5723
  %v5740 = vadd.f32 %v5608, %v5724
  %v5741 = vadd.f32 %v5609, %v5725
  %v5742 = vadd.f32 %v5610, %v5726
  %5743 = vrot.lane.b32.xlu0 %v4565, 112
  %v5744 = vpop.permute.xlu0 %5743
  %5745 = vrot.lane.b32.xlu0 %v4566, 112
  %v5746 = vpop.permute.xlu0 %5745
  %5747 = vrot.lane.b32.xlu0 %v4567, 112
  %v5748 = vpop.permute.xlu0 %5747
  %5749 = vrot.lane.b32.xlu0 %v4568, 112
  %v5750 = vpop.permute.xlu0 %5749
  %5751 = vrot.lane.b32.xlu0 %v4569, 112
  %v5752 = vpop.permute.xlu0 %5751
  %5753 = vrot.lane.b32.xlu0 %v4570, 112
  %v5754 = vpop.permute.xlu0 %5753
  %5755 = vrot.lane.b32.xlu0 %v4571, 112
  %v5756 = vpop.permute.xlu0 %5755
  %5757 = vrot.lane.b32.xlu0 %v4572, 112
  %v5758 = vpop.permute.xlu0 %5757
  %5759 = vrot.lane.b32.xlu0 %v4891, 112
  %v5760 = vpop.permute.xlu0 %5759
  %5761 = vrot.lane.b32.xlu0 %v4892, 112
  %v5762 = vpop.permute.xlu0 %5761
  %5763 = vrot.lane.b32.xlu0 %v4893, 112
  %v5764 = vpop.permute.xlu0 %5763
  %5765 = vrot.lane.b32.xlu0 %v4894, 112
  %v5766 = vpop.permute.xlu0 %5765
  %5767 = vrot.lane.b32.xlu0 %v4895, 112
  %v5768 = vpop.permute.xlu0 %5767
  %5769 = vrot.lane.b32.xlu0 %v4896, 112
  %v5770 = vpop.permute.xlu0 %5769
  %5771 = vrot.lane.b32.xlu0 %v4897, 112
  %v5772 = vpop.permute.xlu0 %5771
  %5773 = vrot.lane.b32.xlu0 %v4898, 112
  %v5774 = vpop.permute.xlu0 %5773
  %v5775 = vsel %vm1628, %v5744, %v5746
  %v5776 = vsel %vm1628, %v5746, %v5748
  %v5777 = vsel %vm1628, %v5748, %v5750
  %v5778 = vsel %vm1628, %v5752, %v5754
  %v5779 = vsel %vm1628, %v5754, %v5756
  %v5780 = vsel %vm1628, %v5756, %v5758
  %v5781 = vsel %vm1628, %v5760, %v5762
  %v5782 = vsel %vm1628, %v5762, %v5764
  %v5783 = vsel %vm1628, %v5764, %v5766
  %v5784 = vsel %vm1628, %v5768, %v5770
  %v5785 = vsel %vm1628, %v5770, %v5772
  %v5786 = vsel %vm1628, %v5772, %v5774
  %v5807 = vsel %vm1628, %v5750, %v5744
  %v5808 = vsel %vm1628, %v5758, %v5752
  %v5809 = vsel %vm1628, %v5766, %v5760
  %v5810 = vsel %vm1628, %v5774, %v5768
  %5811 = vset.pattern.permute.xlu0 7
  %5812 = vperm.xlu0 %5811, %v4583
  %v5813 = vpop.permute.xlu0 %5812
  %5815 = vset.pattern.permute.xlu0 7
  %5816 = vperm.xlu0 %5815, %v4584
  %v5817 = vpop.permute.xlu0 %5816
  %5819 = vset.pattern.permute.xlu0 7
  %5820 = vperm.xlu0 %5819, %v4585
  %v5821 = vpop.permute.xlu0 %5820
  %5823 = vset.pattern.permute.xlu0 7
  %5824 = vperm.xlu0 %5823, %v4586
  %v5825 = vpop.permute.xlu0 %5824
  %v5827 = vmul.f32 %v5775, %v5813
  %v5828 = vmul.f32 %v5776, %v5813
  %v5829 = vmul.f32 %v5777, %v5813
  %v5830 = vmul.f32 %v5807, %v5813
  %v5831 = vmul.f32 %v5778, %v5817
  %v5832 = vmul.f32 %v5779, %v5817
  %v5833 = vmul.f32 %v5780, %v5817
  %v5834 = vmul.f32 %v5808, %v5817
  %v5835 = vmul.f32 %v5781, %v5821
  %v5836 = vmul.f32 %v5782, %v5821
  %v5837 = vmul.f32 %v5783, %v5821
  %v5838 = vmul.f32 %v5809, %v5821
  %v5839 = vmul.f32 %v5784, %v5825
  %v5840 = vmul.f32 %v5785, %v5825
  %v5841 = vmul.f32 %v5786, %v5825
  %v5842 = vmul.f32 %v5810, %v5825
  %v5843 = vmul.f32 %v5827, %v1700
  %v5844 = vmul.f32 %v5828, %v1704
  %v5845 = vmul.f32 %v5829, %v1708
  %v5846 = vmul.f32 %v5830, %v1712
  %v5847 = vmul.f32 %v5831, %v1700
  %v5848 = vmul.f32 %v5832, %v1704
  %v5849 = vmul.f32 %v5833, %v1708
  %v5850 = vmul.f32 %v5834, %v1712
  %v5851 = vmul.f32 %v5835, %v1700
  %v5852 = vmul.f32 %v5836, %v1704
  %v5853 = vmul.f32 %v5837, %v1708
  %v5854 = vmul.f32 %v5838, %v1712
  %v5855 = vmul.f32 %v5839, %v1700
  %v5856 = vmul.f32 %v5840, %v1704
  %v5857 = vmul.f32 %v5841, %v1708
  %v5858 = vmul.f32 %v5842, %v1712
  %v5859 = vadd.f32 %v5727, %v5843
  %v5860 = vadd.f32 %v5728, %v5844
  %v5861 = vadd.f32 %v5729, %v5845
  %v5862 = vadd.f32 %v5730, %v5846
  %v5863 = vadd.f32 %v5731, %v5847
  %v5864 = vadd.f32 %v5732, %v5848
  %v5865 = vadd.f32 %v5733, %v5849
  %v5866 = vadd.f32 %v5734, %v5850
  %v5867 = vadd.f32 %v5735, %v5851
  %v5868 = vadd.f32 %v5736, %v5852
  %v5869 = vadd.f32 %v5737, %v5853
  %v5870 = vadd.f32 %v5738, %v5854
  %v5871 = vadd.f32 %v5739, %v5855
  %v5872 = vadd.f32 %v5740, %v5856
  %v5873 = vadd.f32 %v5741, %v5857
  %v5874 = vadd.f32 %v5742, %v5858
  %5875 = vrot.lane.b32.xlu0 %v4565, 111
  %v5876 = vpop.permute.xlu0 %5875
  %5877 = vrot.lane.b32.xlu0 %v4566, 111
  %v5878 = vpop.permute.xlu0 %5877
  %5879 = vrot.lane.b32.xlu0 %v4567, 111
  %v5880 = vpop.permute.xlu0 %5879
  %5881 = vrot.lane.b32.xlu0 %v4568, 111
  %v5882 = vpop.permute.xlu0 %5881
  %5883 = vrot.lane.b32.xlu0 %v4569, 111
  %v5884 = vpop.permute.xlu0 %5883
  %5885 = vrot.lane.b32.xlu0 %v4570, 111
  %v5886 = vpop.permute.xlu0 %5885
  %5887 = vrot.lane.b32.xlu0 %v4571, 111
  %v5888 = vpop.permute.xlu0 %5887
  %5889 = vrot.lane.b32.xlu0 %v4572, 111
  %v5890 = vpop.permute.xlu0 %5889
  %5891 = vrot.lane.b32.xlu0 %v4891, 111
  %v5892 = vpop.permute.xlu0 %5891
  %5893 = vrot.lane.b32.xlu0 %v4892, 111
  %v5894 = vpop.permute.xlu0 %5893
  %5895 = vrot.lane.b32.xlu0 %v4893, 111
  %v5896 = vpop.permute.xlu0 %5895
  %5897 = vrot.lane.b32.xlu0 %v4894, 111
  %v5898 = vpop.permute.xlu0 %5897
  %5899 = vrot.lane.b32.xlu0 %v4895, 111
  %v5900 = vpop.permute.xlu0 %5899
  %5901 = vrot.lane.b32.xlu0 %v4896, 111
  %v5902 = vpop.permute.xlu0 %5901
  %5903 = vrot.lane.b32.xlu0 %v4897, 111
  %v5904 = vpop.permute.xlu0 %5903
  %5905 = vrot.lane.b32.xlu0 %v4898, 111
  %v5906 = vpop.permute.xlu0 %5905
  %v5907 = vsel %vm1777, %v5876, %v5878
  %v5908 = vsel %vm1777, %v5878, %v5880
  %v5909 = vsel %vm1777, %v5880, %v5882
  %v5910 = vsel %vm1777, %v5884, %v5886
  %v5911 = vsel %vm1777, %v5886, %v5888
  %v5912 = vsel %vm1777, %v5888, %v5890
  %v5913 = vsel %vm1777, %v5892, %v5894
  %v5914 = vsel %vm1777, %v5894, %v5896
  %v5915 = vsel %vm1777, %v5896, %v5898
  %v5916 = vsel %vm1777, %v5900, %v5902
  %v5917 = vsel %vm1777, %v5902, %v5904
  %v5918 = vsel %vm1777, %v5904, %v5906
  %v5939 = vsel %vm1777, %v5882, %v5876
  %v5940 = vsel %vm1777, %v5890, %v5884
  %v5941 = vsel %vm1777, %v5898, %v5892
  %v5942 = vsel %vm1777, %v5906, %v5900
  %5943 = vset.pattern.permute.xlu0 8
  %5944 = vperm.xlu0 %5943, %v4583
  %v5945 = vpop.permute.xlu0 %5944
  %5947 = vset.pattern.permute.xlu0 8
  %5948 = vperm.xlu0 %5947, %v4584
  %v5949 = vpop.permute.xlu0 %5948
  %5951 = vset.pattern.permute.xlu0 8
  %5952 = vperm.xlu0 %5951, %v4585
  %v5953 = vpop.permute.xlu0 %5952
  %5955 = vset.pattern.permute.xlu0 8
  %5956 = vperm.xlu0 %5955, %v4586
  %v5957 = vpop.permute.xlu0 %5956
  %v5959 = vmul.f32 %v5907, %v5945
  %v5960 = vmul.f32 %v5908, %v5945
  %v5961 = vmul.f32 %v5909, %v5945
  %v5962 = vmul.f32 %v5939, %v5945
  %v5963 = vmul.f32 %v5910, %v5949
  %v5964 = vmul.f32 %v5911, %v5949
  %v5965 = vmul.f32 %v5912, %v5949
  %v5966 = vmul.f32 %v5940, %v5949
  %v5967 = vmul.f32 %v5913, %v5953
  %v5968 = vmul.f32 %v5914, %v5953
  %v5969 = vmul.f32 %v5915, %v5953
  %v5970 = vmul.f32 %v5941, %v5953
  %v5971 = vmul.f32 %v5916, %v5957
  %v5972 = vmul.f32 %v5917, %v5957
  %v5973 = vmul.f32 %v5918, %v5957
  %v5974 = vmul.f32 %v5942, %v5957
  %v5975 = vmul.f32 %v5959, %v1849
  %v5976 = vmul.f32 %v5960, %v1853
  %v5977 = vmul.f32 %v5961, %v1857
  %v5978 = vmul.f32 %v5962, %v1861
  %v5979 = vmul.f32 %v5963, %v1849
  %v5980 = vmul.f32 %v5964, %v1853
  %v5981 = vmul.f32 %v5965, %v1857
  %v5982 = vmul.f32 %v5966, %v1861
  %v5983 = vmul.f32 %v5967, %v1849
  %v5984 = vmul.f32 %v5968, %v1853
  %v5985 = vmul.f32 %v5969, %v1857
  %v5986 = vmul.f32 %v5970, %v1861
  %v5987 = vmul.f32 %v5971, %v1849
  %v5988 = vmul.f32 %v5972, %v1853
  %v5989 = vmul.f32 %v5973, %v1857
  %v5990 = vmul.f32 %v5974, %v1861
  %v5991 = vadd.f32 %v5859, %v5975
  %v5992 = vadd.f32 %v5860, %v5976
  %v5993 = vadd.f32 %v5861, %v5977
  %v5994 = vadd.f32 %v5862, %v5978
  %v5995 = vadd.f32 %v5863, %v5979
  %v5996 = vadd.f32 %v5864, %v5980
  %v5997 = vadd.f32 %v5865, %v5981
  %v5998 = vadd.f32 %v5866, %v5982
  %v5999 = vadd.f32 %v5867, %v5983
  %v6000 = vadd.f32 %v5868, %v5984
  %v6001 = vadd.f32 %v5869, %v5985
  %v6002 = vadd.f32 %v5870, %v5986
  %v6003 = vadd.f32 %v5871, %v5987
  %v6004 = vadd.f32 %v5872, %v5988
  %v6005 = vadd.f32 %v5873, %v5989
  %v6006 = vadd.f32 %v5874, %v5990
  %v6007 = vadd.f32 %v5991, %v5992
  %v6008 = vadd.f32 %v6007, %v5993
  %v6009 = vadd.f32 %v6008, %v5994
  %6010 = vadd.xlane.f32.xlu0 %v6009
  %v6011 = vpop.xlane.xlu0 %6010
  %v6012 = vadd.f32 %v5995, %v5996
  %v6013 = vadd.f32 %v6012, %v5997
  %v6014 = vadd.f32 %v6013, %v5998
  %6015 = vadd.xlane.f32.xlu0 %v6014
  %v6016 = vpop.xlane.xlu0 %6015
  %v6017 = vadd.f32 %v5999, %v6000
  %v6018 = vadd.f32 %v6017, %v6001
  %v6019 = vadd.f32 %v6018, %v6002
  %6020 = vadd.xlane.f32.xlu0 %v6019
  %v6021 = vpop.xlane.xlu0 %6020
  %v6022 = vadd.f32 %v6003, %v6004
  %v6023 = vadd.f32 %v6022, %v6005
  %v6024 = vadd.f32 %v6023, %v6006
  %6025 = vadd.xlane.f32.xlu0 %v6024
  %v6026 = vpop.xlane.xlu0 %6025
  %v6027 = vmul.f32 %v6011, %v522
  %v6028 = vmul.f32 %v6016, %v522
  %v6029 = vmul.f32 %v6021, %v522
  %v6030 = vmul.f32 %v6026, %v522
  %v6031 = vsub.f32 %v5991, %v6027
  %v6032 = vsub.f32 %v5992, %v6027
  %v6033 = vsub.f32 %v5993, %v6027
  %v6034 = vsub.f32 %v5994, %v6027
  %v6035 = vsub.f32 %v5995, %v6028
  %v6036 = vsub.f32 %v5996, %v6028
  %v6037 = vsub.f32 %v5997, %v6028
  %v6038 = vsub.f32 %v5998, %v6028
  %v6039 = vsub.f32 %v5999, %v6029
  %v6040 = vsub.f32 %v6000, %v6029
  %v6041 = vsub.f32 %v6001, %v6029
  %v6042 = vsub.f32 %v6002, %v6029
  %v6043 = vsub.f32 %v6003, %v6030
  %v6044 = vsub.f32 %v6004, %v6030
  %v6045 = vsub.f32 %v6005, %v6030
  %v6046 = vsub.f32 %v6006, %v6030
  %v6047 = vmul.f32 %v6031, %v6031
  %v6048 = vmul.f32 %v6032, %v6032
  %v6049 = vmul.f32 %v6033, %v6033
  %v6050 = vmul.f32 %v6034, %v6034
  %v6051 = vmul.f32 %v6035, %v6035
  %v6052 = vmul.f32 %v6036, %v6036
  %v6053 = vmul.f32 %v6037, %v6037
  %v6054 = vmul.f32 %v6038, %v6038
  %v6055 = vmul.f32 %v6039, %v6039
  %v6056 = vmul.f32 %v6040, %v6040
  %v6057 = vmul.f32 %v6041, %v6041
  %v6058 = vmul.f32 %v6042, %v6042
  %v6059 = vmul.f32 %v6043, %v6043
  %v6060 = vmul.f32 %v6044, %v6044
  %v6061 = vmul.f32 %v6045, %v6045
  %v6062 = vmul.f32 %v6046, %v6046
  %v6063 = vadd.f32 %v6047, %v6048
  %v6064 = vadd.f32 %v6063, %v6049
  %v6065 = vadd.f32 %v6064, %v6050
  %6066 = vadd.xlane.f32.xlu0 %v6065
  %v6067 = vpop.xlane.xlu0 %6066
  %v6068 = vadd.f32 %v6051, %v6052
  %v6069 = vadd.f32 %v6068, %v6053
  %v6070 = vadd.f32 %v6069, %v6054
  %6071 = vadd.xlane.f32.xlu0 %v6070
  %v6072 = vpop.xlane.xlu0 %6071
  %v6073 = vadd.f32 %v6055, %v6056
  %v6074 = vadd.f32 %v6073, %v6057
  %v6075 = vadd.f32 %v6074, %v6058
  %6076 = vadd.xlane.f32.xlu0 %v6075
  %v6077 = vpop.xlane.xlu0 %6076
  %v6078 = vadd.f32 %v6059, %v6060
  %v6079 = vadd.f32 %v6078, %v6061
  %v6080 = vadd.f32 %v6079, %v6062
  %6081 = vadd.xlane.f32.xlu0 %v6080
  %v6082 = vpop.xlane.xlu0 %6081
  %v6083 = vmul.f32 %v6067, %v522
  %v6084 = vmul.f32 %v6072, %v522
  %v6085 = vmul.f32 %v6077, %v522
  %v6086 = vmul.f32 %v6082, %v522
  %v6087 = vadd.f32 %v6083, 1e-05
  %v6088 = vadd.f32 %v6084, 1e-05
  %v6089 = vadd.f32 %v6085, 1e-05
  %v6090 = vadd.f32 %v6086, 1e-05
  %v6091 = vrsqrt.pop %v6087
  %v6092 = vrsqrt.pop %v6088
  %v6093 = vrsqrt.pop %v6089
  %v6094 = vrsqrt.pop %v6090
  %v6095 = vmul.f32 %v4593, %v6091
  %v6096 = vmul.f32 %v4594, %v6092
  %v6097 = vmul.f32 %v4595, %v6093
  %v6098 = vmul.f32 %v4596, %v6094
  %6100 = vset.pattern.permute.xlu0 0
  %6101 = vperm.xlu0 %6100, %v6095
  %v6102 = vpop.permute.xlu0 %6101
  %6105 = vset.pattern.permute.xlu0 0
  %6106 = vperm.xlu0 %6105, %v6096
  %v6107 = vpop.permute.xlu0 %6106
  %6110 = vset.pattern.permute.xlu0 0
  %6111 = vperm.xlu0 %6110, %v6097
  %v6112 = vpop.permute.xlu0 %6111
  %6115 = vset.pattern.permute.xlu0 0
  %6116 = vperm.xlu0 %6115, %v6098
  %v6117 = vpop.permute.xlu0 %6116
  %v6119 = vmul.f32 %v6031, %v6102
  %v6120 = vmul.f32 %v6032, %v6102
  %v6121 = vmul.f32 %v6033, %v6102
  %v6122 = vmul.f32 %v6034, %v6102
  %v6123 = vmul.f32 %v6035, %v6107
  %v6124 = vmul.f32 %v6036, %v6107
  %v6125 = vmul.f32 %v6037, %v6107
  %v6126 = vmul.f32 %v6038, %v6107
  %v6127 = vmul.f32 %v6039, %v6112
  %v6128 = vmul.f32 %v6040, %v6112
  %v6129 = vmul.f32 %v6041, %v6112
  %v6130 = vmul.f32 %v6042, %v6112
  %v6131 = vmul.f32 %v6043, %v6117
  %v6132 = vmul.f32 %v6044, %v6117
  %v6133 = vmul.f32 %v6045, %v6117
  %v6134 = vmul.f32 %v6046, %v6117
  %6136 = vset.pattern.permute.xlu0 1
  %6137 = vperm.xlu0 %6136, %v4593
  %v6138 = vpop.permute.xlu0 %6137
  %6141 = vset.pattern.permute.xlu0 1
  %6142 = vperm.xlu0 %6141, %v4594
  %v6143 = vpop.permute.xlu0 %6142
  %6146 = vset.pattern.permute.xlu0 1
  %6147 = vperm.xlu0 %6146, %v4595
  %v6148 = vpop.permute.xlu0 %6147
  %6151 = vset.pattern.permute.xlu0 1
  %6152 = vperm.xlu0 %6151, %v4596
  %v6153 = vpop.permute.xlu0 %6152
  %v6155 = vadd.f32 %v6119, %v6138
  %v6156 = vadd.f32 %v6120, %v6138
  %v6157 = vadd.f32 %v6121, %v6138
  %v6158 = vadd.f32 %v6122, %v6138
  %v6159 = vadd.f32 %v6123, %v6143
  %v6160 = vadd.f32 %v6124, %v6143
  %v6161 = vadd.f32 %v6125, %v6143
  %v6162 = vadd.f32 %v6126, %v6143
  %v6163 = vadd.f32 %v6127, %v6148
  %v6164 = vadd.f32 %v6128, %v6148
  %v6165 = vadd.f32 %v6129, %v6148
  %v6166 = vadd.f32 %v6130, %v6148
  %v6167 = vadd.f32 %v6131, %v6153
  %v6168 = vadd.f32 %v6132, %v6153
  %v6169 = vadd.f32 %v6133, %v6153
  %v6170 = vadd.f32 %v6134, %v6153
  %v6172 = vsel %vm2058, %v4587, 0
  %v6175 = vsel %vm2058, %v4588, 0
  %v6178 = vsel %vm2058, %v4589, 0
  %v6181 = vsel %vm2058, %v4590, 0
  %6183 = vmatprep.subr.mxu0 %v6156
  %6184 = vmatpush1.msra.mxu0 %v6155
  %6185 = vmatprep.subr.mxu0 %v6160
  %6186 = vmatpush1.msra.mxu0 %v6159
  %6187 = vmatprep.subr.mxu0 %v6164
  %6188 = vmatpush1.msra.mxu0 %v6163
  %6189 = vmatprep.subr.mxu0 %v6168
  %6190 = vmatpush1.msra.mxu0 %v6167
  %6191 = vmatprep.subr.mxu0 0.0
  %6192 = vmatpush1.msra.mxu0 0.0
  %6193 = vmatprep.subr.mxu0 0.0
  %6194 = vmatpush1.msra.mxu0 0.0
  %6195 = vmatprep.subr.mxu0 0.0
  %6196 = vmatpush1.msra.mxu0 0.0
  %6197 = vmatprep.subr.mxu0 0.0
  %6198 = vmatpush1.msra.mxu0 0.0
  %6199 = vmatprep.subr.mxu0 0.0
  %6200 = vmatpush1.msra.mxu0 0.0
  %6201 = vmatprep.subr.mxu0 0.0
  %6202 = vmatpush1.msra.mxu0 0.0
  %6203 = vmatprep.subr.mxu0 0.0
  %6204 = vmatpush1.msra.mxu0 0.0
  %6205 = vmatprep.subr.mxu0 0.0
  %6206 = vmatpush1.msra.mxu0 0.0
  %6207 = vmatprep.subr.mxu0 0.0
  %6208 = vmatpush1.msra.mxu0 0.0
  %6209 = vmatprep.subr.mxu0 0.0
  %6210 = vmatpush1.msra.mxu0 0.0
  %6211 = vmatprep.subr.mxu0 0.0
  %6212 = vmatpush1.msra.mxu0 0.0
  %6213 = vmatprep.subr.mxu0 0.0
  %6214 = vmatpush1.msra.mxu0 0.0
  %6215 = vmatprep.subr.mxu0 0.0
  %6216 = vmatpush1.msra.mxu0 0.0
  %6217 = vmatprep.subr.mxu0 0.0
  %6218 = vmatpush1.msra.mxu0 0.0
  %6219 = vmatprep.subr.mxu0 0.0
  %6220 = vmatpush1.msra.mxu0 0.0
  %6221 = vmatprep.subr.mxu0 0.0
  %6222 = vmatpush1.msra.mxu0 0.0
  %6223 = vmatprep.subr.mxu0 0.0
  %6224 = vmatpush1.msra.mxu0 0.0
  %6225 = vmatprep.subr.mxu0 0.0
  %6226 = vmatpush1.msra.mxu0 0.0
  %6227 = vmatprep.subr.mxu0 0.0
  %6228 = vmatpush1.msra.mxu0 0.0
  %6229 = vmatprep.subr.mxu0 0.0
  %6230 = vmatpush1.msra.mxu0 0.0
  %6231 = vmatprep.subr.mxu0 0.0
  %6232 = vmatpush1.msra.mxu0 0.0
  %6233 = vmatprep.subr.mxu0 0.0
  %6234 = vmatpush1.msra.mxu0 0.0
  %6235 = vmatprep.subr.mxu0 0.0
  %6236 = vmatpush1.msra.mxu0 0.0
  %6237 = vmatprep.subr.mxu0 0.0
  %6238 = vmatpush1.msra.mxu0 0.0
  %6239 = vmatprep.subr.mxu0 0.0
  %6240 = vmatpush1.msra.mxu0 0.0
  %6241 = vmatprep.subr.mxu0 0.0
  %6242 = vmatpush1.msra.mxu0 0.0
  %6243 = vmatprep.subr.mxu0 0.0
  %6244 = vmatpush1.msra.mxu0 0.0
  %6245 = vmatprep.subr.mxu0 0.0
  %6246 = vmatpush1.msra.mxu0 0.0
  %6247 = vmatprep.mubr.f32.mxu0 0.0
  %6248 = vmatmul.mubr.f32.gmra.mrb[0].mxu0 %v6172
  %v6249 = vpop.f32.mrb[0].mxu0
  %v6250 = vadd.f32 0.0, %v6249
  %v6251 = vpop.f32.mrb[0].mxu0
  %v6252 = vadd.f32 0.0, %v6251
  %6253 = vmatprep.mubr.f32.mxu0 0.0
  %6254 = vmatmul.mubr.f32.gmra.mrb[0].mxu0 %v6175
  %v6255 = vpop.f32.mrb[0].mxu0
  %v6256 = vadd.f32 0.0, %v6255
  %v6257 = vpop.f32.mrb[0].mxu0
  %v6258 = vadd.f32 0.0, %v6257
  %6259 = vmatprep.mubr.f32.mxu0 0.0
  %6260 = vmatmul.mubr.f32.gmra.mrb[0].mxu0 %v6178
  %v6261 = vpop.f32.mrb[0].mxu0
  %v6262 = vadd.f32 0.0, %v6261
  %v6263 = vpop.f32.mrb[0].mxu0
  %v6264 = vadd.f32 0.0, %v6263
  %6265 = vmatprep.mubr.f32.mxu0 0.0
  %6266 = vmatmul.mubr.f32.gmra.mrb[0].mxu0 %v6181
  %v6267 = vpop.f32.mrb[0].mxu0
  %v6268 = vadd.f32 0.0, %v6267
  %v6269 = vpop.f32.mrb[0].mxu0
  %v6270 = vadd.f32 0.0, %v6269
  %6271 = vdwg.mxu0
  %6272 = vmatprep.subr.mxu0 %v6158
  %6273 = vmatpush1.msra.mxu0 %v6157
  %6274 = vmatprep.subr.mxu0 %v6162
  %6275 = vmatpush1.msra.mxu0 %v6161
  %6276 = vmatprep.subr.mxu0 %v6166
  %6277 = vmatpush1.msra.mxu0 %v6165
  %6278 = vmatprep.subr.mxu0 %v6170
  %6279 = vmatpush1.msra.mxu0 %v6169
  %6280 = vmatprep.subr.mxu0 0.0
  %6281 = vmatpush1.msra.mxu0 0.0
  %6282 = vmatprep.subr.mxu0 0.0
  %6283 = vmatpush1.msra.mxu0 0.0
  %6284 = vmatprep.subr.mxu0 0.0
  %6285 = vmatpush1.msra.mxu0 0.0
  %6286 = vmatprep.subr.mxu0 0.0
  %6287 = vmatpush1.msra.mxu0 0.0
  %6288 = vmatprep.subr.mxu0 0.0
  %6289 = vmatpush1.msra.mxu0 0.0
  %6290 = vmatprep.subr.mxu0 0.0
  %6291 = vmatpush1.msra.mxu0 0.0
  %6292 = vmatprep.subr.mxu0 0.0
  %6293 = vmatpush1.msra.mxu0 0.0
  %6294 = vmatprep.subr.mxu0 0.0
  %6295 = vmatpush1.msra.mxu0 0.0
  %6296 = vmatprep.subr.mxu0 0.0
  %6297 = vmatpush1.msra.mxu0 0.0
  %6298 = vmatprep.subr.mxu0 0.0
  %6299 = vmatpush1.msra.mxu0 0.0
  %6300 = vmatprep.subr.mxu0 0.0
  %6301 = vmatpush1.msra.mxu0 0.0
  %6302 = vmatprep.subr.mxu0 0.0
  %6303 = vmatpush1.msra.mxu0 0.0
  %6304 = vmatprep.subr.mxu0 0.0
  %6305 = vmatpush1.msra.mxu0 0.0
  %6306 = vmatprep.subr.mxu0 0.0
  %6307 = vmatpush1.msra.mxu0 0.0
  %6308 = vmatprep.subr.mxu0 0.0
  %6309 = vmatpush1.msra.mxu0 0.0
  %6310 = vmatprep.subr.mxu0 0.0
  %6311 = vmatpush1.msra.mxu0 0.0
  %6312 = vmatprep.subr.mxu0 0.0
  %6313 = vmatpush1.msra.mxu0 0.0
  %6314 = vmatprep.subr.mxu0 0.0
  %6315 = vmatpush1.msra.mxu0 0.0
  %6316 = vmatprep.subr.mxu0 0.0
  %6317 = vmatpush1.msra.mxu0 0.0
  %6318 = vmatprep.subr.mxu0 0.0
  %6319 = vmatpush1.msra.mxu0 0.0
  %6320 = vmatprep.subr.mxu0 0.0
  %6321 = vmatpush1.msra.mxu0 0.0
  %6322 = vmatprep.subr.mxu0 0.0
  %6323 = vmatpush1.msra.mxu0 0.0
  %6324 = vmatprep.subr.mxu0 0.0
  %6325 = vmatpush1.msra.mxu0 0.0
  %6326 = vmatprep.subr.mxu0 0.0
  %6327 = vmatpush1.msra.mxu0 0.0
  %6328 = vmatprep.subr.mxu0 0.0
  %6329 = vmatpush1.msra.mxu0 0.0
  %6330 = vmatprep.subr.mxu0 0.0
  %6331 = vmatpush1.msra.mxu0 0.0
  %6332 = vmatprep.subr.mxu0 0.0
  %6333 = vmatpush1.msra.mxu0 0.0
  %6334 = vmatprep.subr.mxu0 0.0
  %6335 = vmatpush1.msra.mxu0 0.0
  %6336 = vmatprep.mubr.f32.mxu0 0.0
  %6337 = vmatmul.mubr.f32.gmra.mrb[0].mxu0 %v6172
  %v6338 = vpop.f32.mrb[0].mxu0
  %v6339 = vadd.f32 0.0, %v6338
  %v6340 = vpop.f32.mrb[0].mxu0
  %v6341 = vadd.f32 0.0, %v6340
  %6342 = vmatprep.mubr.f32.mxu0 0.0
  %6343 = vmatmul.mubr.f32.gmra.mrb[0].mxu0 %v6175
  %v6344 = vpop.f32.mrb[0].mxu0
  %v6345 = vadd.f32 0.0, %v6344
  %v6346 = vpop.f32.mrb[0].mxu0
  %v6347 = vadd.f32 0.0, %v6346
  %6348 = vmatprep.mubr.f32.mxu0 0.0
  %6349 = vmatmul.mubr.f32.gmra.mrb[0].mxu0 %v6178
  %v6350 = vpop.f32.mrb[0].mxu0
  %v6351 = vadd.f32 0.0, %v6350
  %v6352 = vpop.f32.mrb[0].mxu0
  %v6353 = vadd.f32 0.0, %v6352
  %6354 = vmatprep.mubr.f32.mxu0 0.0
  %6355 = vmatmul.mubr.f32.gmra.mrb[0].mxu0 %v6181
  %v6356 = vpop.f32.mrb[0].mxu0
  %v6357 = vadd.f32 0.0, %v6356
  %v6358 = vpop.f32.mrb[0].mxu0
  %v6359 = vadd.f32 0.0, %v6358
  %6360 = vdwg.mxu0
  %v6361 = vadd.f32 %v6250, %v6252
  %v6362 = vadd.f32 %v6361, %v6339
  %v6363 = vadd.f32 %v6362, %v6341
  %6364 = vadd.xlane.f32.xlu0 %v6363
  %v6365 = vpop.xlane.xlu0 %6364
  %v6366 = vadd.f32 %v6256, %v6258
  %v6367 = vadd.f32 %v6366, %v6345
  %v6368 = vadd.f32 %v6367, %v6347
  %6369 = vadd.xlane.f32.xlu0 %v6368
  %v6370 = vpop.xlane.xlu0 %6369
  %v6371 = vadd.f32 %v6262, %v6264
  %v6372 = vadd.f32 %v6371, %v6351
  %v6373 = vadd.f32 %v6372, %v6353
  %6374 = vadd.xlane.f32.xlu0 %v6373
  %v6375 = vpop.xlane.xlu0 %6374
  %v6376 = vadd.f32 %v6268, %v6270
  %v6377 = vadd.f32 %v6376, %v6357
  %v6378 = vadd.f32 %v6377, %v6359
  %6379 = vadd.xlane.f32.xlu0 %v6378
  %v6380 = vpop.xlane.xlu0 %6379
  %v6381 = vmul.f32 %v6365, %v522
  %v6382 = vmul.f32 %v6370, %v522
  %v6383 = vmul.f32 %v6375, %v522
  %v6384 = vmul.f32 %v6380, %v522
  %v6385 = vsub.f32 %v6250, %v6381
  %v6386 = vsub.f32 %v6252, %v6381
  %v6387 = vsub.f32 %v6339, %v6381
  %v6388 = vsub.f32 %v6341, %v6381
  %v6389 = vsub.f32 %v6256, %v6382
  %v6390 = vsub.f32 %v6258, %v6382
  %v6391 = vsub.f32 %v6345, %v6382
  %v6392 = vsub.f32 %v6347, %v6382
  %v6393 = vsub.f32 %v6262, %v6383
  %v6394 = vsub.f32 %v6264, %v6383
  %v6395 = vsub.f32 %v6351, %v6383
  %v6396 = vsub.f32 %v6353, %v6383
  %v6397 = vsub.f32 %v6268, %v6384
  %v6398 = vsub.f32 %v6270, %v6384
  %v6399 = vsub.f32 %v6357, %v6384
  %v6400 = vsub.f32 %v6359, %v6384
  %v6401 = vmul.f32 %v6385, %v6385
  %v6402 = vmul.f32 %v6386, %v6386
  %v6403 = vmul.f32 %v6387, %v6387
  %v6404 = vmul.f32 %v6388, %v6388
  %v6405 = vmul.f32 %v6389, %v6389
  %v6406 = vmul.f32 %v6390, %v6390
  %v6407 = vmul.f32 %v6391, %v6391
  %v6408 = vmul.f32 %v6392, %v6392
  %v6409 = vmul.f32 %v6393, %v6393
  %v6410 = vmul.f32 %v6394, %v6394
  %v6411 = vmul.f32 %v6395, %v6395
  %v6412 = vmul.f32 %v6396, %v6396
  %v6413 = vmul.f32 %v6397, %v6397
  %v6414 = vmul.f32 %v6398, %v6398
  %v6415 = vmul.f32 %v6399, %v6399
  %v6416 = vmul.f32 %v6400, %v6400
  %v6417 = vadd.f32 %v6401, %v6402
  %v6418 = vadd.f32 %v6417, %v6403
  %v6419 = vadd.f32 %v6418, %v6404
  %6420 = vadd.xlane.f32.xlu0 %v6419
  %v6421 = vpop.xlane.xlu0 %6420
  %v6422 = vadd.f32 %v6405, %v6406
  %v6423 = vadd.f32 %v6422, %v6407
  %v6424 = vadd.f32 %v6423, %v6408
  %6425 = vadd.xlane.f32.xlu0 %v6424
  %v6426 = vpop.xlane.xlu0 %6425
  %v6427 = vadd.f32 %v6409, %v6410
  %v6428 = vadd.f32 %v6427, %v6411
  %v6429 = vadd.f32 %v6428, %v6412
  %6430 = vadd.xlane.f32.xlu0 %v6429
  %v6431 = vpop.xlane.xlu0 %6430
  %v6432 = vadd.f32 %v6413, %v6414
  %v6433 = vadd.f32 %v6432, %v6415
  %v6434 = vadd.f32 %v6433, %v6416
  %6435 = vadd.xlane.f32.xlu0 %v6434
  %v6436 = vpop.xlane.xlu0 %6435
  %v6437 = vmul.f32 %v6421, %v522
  %v6438 = vmul.f32 %v6426, %v522
  %v6439 = vmul.f32 %v6431, %v522
  %v6440 = vmul.f32 %v6436, %v522
  %v6441 = vadd.f32 %v6437, 1e-05
  %v6442 = vadd.f32 %v6438, 1e-05
  %v6443 = vadd.f32 %v6439, 1e-05
  %v6444 = vadd.f32 %v6440, 1e-05
  %v6445 = vrsqrt.pop %v6441
  %v6446 = vrsqrt.pop %v6442
  %v6447 = vrsqrt.pop %v6443
  %v6448 = vrsqrt.pop %v6444
  %v6449 = vmul.f32 %v4597, %v6445
  %v6450 = vmul.f32 %v4598, %v6446
  %v6451 = vmul.f32 %v4599, %v6447
  %v6452 = vmul.f32 %v4600, %v6448
  %6454 = vset.pattern.permute.xlu0 0
  %6455 = vperm.xlu0 %6454, %v6449
  %v6456 = vpop.permute.xlu0 %6455
  %6459 = vset.pattern.permute.xlu0 0
  %6460 = vperm.xlu0 %6459, %v6450
  %v6461 = vpop.permute.xlu0 %6460
  %6464 = vset.pattern.permute.xlu0 0
  %6465 = vperm.xlu0 %6464, %v6451
  %v6466 = vpop.permute.xlu0 %6465
  %6469 = vset.pattern.permute.xlu0 0
  %6470 = vperm.xlu0 %6469, %v6452
  %v6471 = vpop.permute.xlu0 %6470
  %v6473 = vmul.f32 %v6385, %v6456
  %v6474 = vmul.f32 %v6386, %v6456
  %v6475 = vmul.f32 %v6387, %v6456
  %v6476 = vmul.f32 %v6388, %v6456
  %v6477 = vmul.f32 %v6389, %v6461
  %v6478 = vmul.f32 %v6390, %v6461
  %v6479 = vmul.f32 %v6391, %v6461
  %v6480 = vmul.f32 %v6392, %v6461
  %v6481 = vmul.f32 %v6393, %v6466
  %v6482 = vmul.f32 %v6394, %v6466
  %v6483 = vmul.f32 %v6395, %v6466
  %v6484 = vmul.f32 %v6396, %v6466
  %v6485 = vmul.f32 %v6397, %v6471
  %v6486 = vmul.f32 %v6398, %v6471
  %v6487 = vmul.f32 %v6399, %v6471
  %v6488 = vmul.f32 %v6400, %v6471
  %6490 = vset.pattern.permute.xlu0 1
  %6491 = vperm.xlu0 %6490, %v4597
  %v6492 = vpop.permute.xlu0 %6491
  %6495 = vset.pattern.permute.xlu0 1
  %6496 = vperm.xlu0 %6495, %v4598
  %v6497 = vpop.permute.xlu0 %6496
  %6500 = vset.pattern.permute.xlu0 1
  %6501 = vperm.xlu0 %6500, %v4599
  %v6502 = vpop.permute.xlu0 %6501
  %6505 = vset.pattern.permute.xlu0 1
  %6506 = vperm.xlu0 %6505, %v4600
  %v6507 = vpop.permute.xlu0 %6506
  %v6509 = vadd.f32 %v6473, %v6492
  %v6510 = vadd.f32 %v6474, %v6492
  %v6511 = vadd.f32 %v6475, %v6492
  %v6512 = vadd.f32 %v6476, %v6492
  %v6513 = vadd.f32 %v6477, %v6497
  %v6514 = vadd.f32 %v6478, %v6497
  %v6515 = vadd.f32 %v6479, %v6497
  %v6516 = vadd.f32 %v6480, %v6497
  %v6517 = vadd.f32 %v6481, %v6502
  %v6518 = vadd.f32 %v6482, %v6502
  %v6519 = vadd.f32 %v6483, %v6502
  %v6520 = vadd.f32 %v6484, %v6502
  %v6521 = vadd.f32 %v6485, %v6507
  %v6522 = vadd.f32 %v6486, %v6507
  %v6523 = vadd.f32 %v6487, %v6507
  %v6524 = vadd.f32 %v6488, %v6507
  %v6525 = vxor.u32 %v6509, 2147483648
  %v6526 = vxor.u32 %v6510, 2147483648
  %v6527 = vxor.u32 %v6511, 2147483648
  %v6528 = vxor.u32 %v6512, 2147483648
  %v6529 = vxor.u32 %v6513, 2147483648
  %v6530 = vxor.u32 %v6514, 2147483648
  %v6531 = vxor.u32 %v6515, 2147483648
  %v6532 = vxor.u32 %v6516, 2147483648
  %v6533 = vxor.u32 %v6517, 2147483648
  %v6534 = vxor.u32 %v6518, 2147483648
  %v6535 = vxor.u32 %v6519, 2147483648
  %v6536 = vxor.u32 %v6520, 2147483648
  %v6537 = vxor.u32 %v6521, 2147483648
  %v6538 = vxor.u32 %v6522, 2147483648
  %v6539 = vxor.u32 %v6523, 2147483648
  %v6540 = vxor.u32 %v6524, 2147483648
  %v6541 = vmul.f32 %v6525, 1.442695
  %v6542 = vpow.pop %v6541
  %v6543 = vmul.f32 %v6526, 1.442695
  %v6544 = vpow.pop %v6543
  %v6545 = vmul.f32 %v6527, 1.442695
  %v6546 = vpow.pop %v6545
  %v6547 = vmul.f32 %v6528, 1.442695
  %v6548 = vpow.pop %v6547
  %v6549 = vmul.f32 %v6529, 1.442695
  %v6550 = vpow.pop %v6549
  %v6551 = vmul.f32 %v6530, 1.442695
  %v6552 = vpow.pop %v6551
  %v6553 = vmul.f32 %v6531, 1.442695
  %v6554 = vpow.pop %v6553
  %v6555 = vmul.f32 %v6532, 1.442695
  %v6556 = vpow.pop %v6555
  %v6557 = vmul.f32 %v6533, 1.442695
  %v6558 = vpow.pop %v6557
  %v6559 = vmul.f32 %v6534, 1.442695
  %v6560 = vpow.pop %v6559
  %v6561 = vmul.f32 %v6535, 1.442695
  %v6562 = vpow.pop %v6561
  %v6563 = vmul.f32 %v6536, 1.442695
  %v6564 = vpow.pop %v6563
  %v6565 = vmul.f32 %v6537, 1.442695
  %v6566 = vpow.pop %v6565
  %v6567 = vmul.f32 %v6538, 1.442695
  %v6568 = vpow.pop %v6567
  %v6569 = vmul.f32 %v6539, 1.442695
  %v6570 = vpow.pop %v6569
  %v6571 = vmul.f32 %v6540, 1.442695
  %v6572 = vpow.pop %v6571
  %v6573 = vadd.f32 %v6542, 1.0
  %v6574 = vadd.f32 %v6544, 1.0
  %v6575 = vadd.f32 %v6546, 1.0
  %v6576 = vadd.f32 %v6548, 1.0
  %v6577 = vadd.f32 %v6550, 1.0
  %v6578 = vadd.f32 %v6552, 1.0
  %v6579 = vadd.f32 %v6554, 1.0
  %v6580 = vadd.f32 %v6556, 1.0
  %v6581 = vadd.f32 %v6558, 1.0
  %v6582 = vadd.f32 %v6560, 1.0
  %v6583 = vadd.f32 %v6562, 1.0
  %v6584 = vadd.f32 %v6564, 1.0
  %v6585 = vadd.f32 %v6566, 1.0
  %v6586 = vadd.f32 %v6568, 1.0
  %v6587 = vadd.f32 %v6570, 1.0
  %v6588 = vadd.f32 %v6572, 1.0
  %v6589 = vrcp.pop %v6573
  %v6590 = vmul.f32 1.0, %v6589
  %v6591 = vrcp.pop %v6574
  %v6592 = vmul.f32 1.0, %v6591
  %v6593 = vrcp.pop %v6575
  %v6594 = vmul.f32 1.0, %v6593
  %v6595 = vrcp.pop %v6576
  %v6596 = vmul.f32 1.0, %v6595
  %v6597 = vrcp.pop %v6577
  %v6598 = vmul.f32 1.0, %v6597
  %v6599 = vrcp.pop %v6578
  %v6600 = vmul.f32 1.0, %v6599
  %v6601 = vrcp.pop %v6579
  %v6602 = vmul.f32 1.0, %v6601
  %v6603 = vrcp.pop %v6580
  %v6604 = vmul.f32 1.0, %v6603
  %v6605 = vrcp.pop %v6581
  %v6606 = vmul.f32 1.0, %v6605
  %v6607 = vrcp.pop %v6582
  %v6608 = vmul.f32 1.0, %v6607
  %v6609 = vrcp.pop %v6583
  %v6610 = vmul.f32 1.0, %v6609
  %v6611 = vrcp.pop %v6584
  %v6612 = vmul.f32 1.0, %v6611
  %v6613 = vrcp.pop %v6585
  %v6614 = vmul.f32 1.0, %v6613
  %v6615 = vrcp.pop %v6586
  %v6616 = vmul.f32 1.0, %v6615
  %v6617 = vrcp.pop %v6587
  %v6618 = vmul.f32 1.0, %v6617
  %v6619 = vrcp.pop %v6588
  %v6620 = vmul.f32 1.0, %v6619
  %v6621 = vmul.f32 %v6509, %v6590
  %v6622 = vmul.f32 %v6510, %v6592
  %v6623 = vmul.f32 %v6511, %v6594
  %v6624 = vmul.f32 %v6512, %v6596
  %v6625 = vmul.f32 %v6513, %v6598
  %v6626 = vmul.f32 %v6514, %v6600
  %v6627 = vmul.f32 %v6515, %v6602
  %v6628 = vmul.f32 %v6516, %v6604
  %v6629 = vmul.f32 %v6517, %v6606
  %v6630 = vmul.f32 %v6518, %v6608
  %v6631 = vmul.f32 %v6519, %v6610
  %v6632 = vmul.f32 %v6520, %v6612
  %v6633 = vmul.f32 %v6521, %v6614
  %v6634 = vmul.f32 %v6522, %v6616
  %v6635 = vmul.f32 %v6523, %v6618
  %v6636 = vmul.f32 %v6524, %v6620
  %v6637 = vld [vmem:[%s37] sm:$0xff]
  %v6638 = vld [vmem:[%s37 + $0x8] sm:$0xff]
  %v6639 = vld [vmem:[%s39] sm:$0xff]
  %v6640 = vld [vmem:[%s39 + $0x8] sm:$0xff]
  %v6641 = vld [vmem:[%s39 + $0x10] sm:$0xff]
  %v6642 = vld [vmem:[%s39 + $0x18] sm:$0xff]
  %v6643 = vld [vmem:[%s41] sm:$0xff]
  %v6644 = vld [vmem:[%s41 + $0x8] sm:$0xff]
  %v6645 = vld [vmem:[%s43] sm:$0xff]
  %v6646 = vld [vmem:[%s43 + $0x8] sm:$0xff]
  %v6647 = vld [vmem:[%s43 + $0x10] sm:$0xff]
  %v6648 = vld [vmem:[%s43 + $0x18] sm:$0xff]
  %v6649 = vld [vmem:[%s43 + $0x20] sm:$0xff]
  %v6650 = vld [vmem:[%s43 + $0x28] sm:$0xff]
  %v6651 = vld [vmem:[%s43 + $0x30] sm:$0xff]
  %v6652 = vld [vmem:[%s43 + $0x38] sm:$0xff]
  %v6654 = vsel %vm351, %v6637, 0
  %v6657 = vsel %vm351, %v6638, 0
  %6659 = vmatprep.subr.mxu0 %v6630
  %6660 = vmatpush1.msra.mxu0 %v6629
  %6661 = vmatprep.subr.mxu0 %v6634
  %6662 = vmatpush1.msra.mxu0 %v6633
  %6663 = vmatprep.subr.mxu0 0.0
  %6664 = vmatpush1.msra.mxu0 0.0
  %6665 = vmatprep.subr.mxu0 0.0
  %6666 = vmatpush1.msra.mxu0 0.0
  %6667 = vmatprep.subr.mxu0 0.0
  %6668 = vmatpush1.msra.mxu0 0.0
  %6669 = vmatprep.subr.mxu0 0.0
  %6670 = vmatpush1.msra.mxu0 0.0
  %6671 = vmatprep.subr.mxu0 0.0
  %6672 = vmatpush1.msra.mxu0 0.0
  %6673 = vmatprep.subr.mxu0 0.0
  %6674 = vmatpush1.msra.mxu0 0.0
  %6675 = vmatprep.subr.mxu0 0.0
  %6676 = vmatpush1.msra.mxu0 0.0
  %6677 = vmatprep.subr.mxu0 0.0
  %6678 = vmatpush1.msra.mxu0 0.0
  %6679 = vmatprep.subr.mxu0 0.0
  %6680 = vmatpush1.msra.mxu0 0.0
  %6681 = vmatprep.subr.mxu0 0.0
  %6682 = vmatpush1.msra.mxu0 0.0
  %6683 = vmatprep.subr.mxu0 0.0
  %6684 = vmatpush1.msra.mxu0 0.0
  %6685 = vmatprep.subr.mxu0 0.0
  %6686 = vmatpush1.msra.mxu0 0.0
  %6687 = vmatprep.subr.mxu0 0.0
  %6688 = vmatpush1.msra.mxu0 0.0
  %6689 = vmatprep.subr.mxu0 0.0
  %6690 = vmatpush1.msra.mxu0 0.0
  %6691 = vmatprep.subr.mxu0 0.0
  %6692 = vmatpush1.msra.mxu0 0.0
  %6693 = vmatprep.subr.mxu0 0.0
  %6694 = vmatpush1.msra.mxu0 0.0
  %6695 = vmatprep.subr.mxu0 0.0
  %6696 = vmatpush1.msra.mxu0 0.0
  %6697 = vmatprep.subr.mxu0 0.0
  %6698 = vmatpush1.msra.mxu0 0.0
  %6699 = vmatprep.subr.mxu0 0.0
  %6700 = vmatpush1.msra.mxu0 0.0
  %6701 = vmatprep.subr.mxu0 0.0
  %6702 = vmatpush1.msra.mxu0 0.0
  %6703 = vmatprep.subr.mxu0 0.0
  %6704 = vmatpush1.msra.mxu0 0.0
  %6705 = vmatprep.subr.mxu0 0.0
  %6706 = vmatpush1.msra.mxu0 0.0
  %6707 = vmatprep.subr.mxu0 0.0
  %6708 = vmatpush1.msra.mxu0 0.0
  %6709 = vmatprep.subr.mxu0 0.0
  %6710 = vmatpush1.msra.mxu0 0.0
  %6711 = vmatprep.subr.mxu0 0.0
  %6712 = vmatpush1.msra.mxu0 0.0
  %6713 = vmatprep.subr.mxu0 0.0
  %6714 = vmatpush1.msra.mxu0 0.0
  %6715 = vmatprep.subr.mxu0 0.0
  %6716 = vmatpush1.msra.mxu0 0.0
  %6717 = vmatprep.subr.mxu0 0.0
  %6718 = vmatpush1.msra.mxu0 0.0
  %6719 = vmatprep.subr.mxu0 0.0
  %6720 = vmatpush1.msra.mxu0 0.0
  %6721 = vmatprep.subr.mxu0 0.0
  %6722 = vmatpush1.msra.mxu0 0.0
  %6723 = vmatprep.mubr.f32.mxu0 0.0
  %6724 = vmatmul.mubr.f32.gmra.mrb[0].mxu0 %v6654
  %v6725 = vpop.f32.mrb[0].mxu0
  %v6726 = vadd.f32 0.0, %v6725
  %v6727 = vpop.f32.mrb[0].mxu0
  %v6728 = vadd.f32 0.0, %v6727
  %6729 = vmatprep.mubr.f32.mxu0 0.0
  %6730 = vmatmul.mubr.f32.gmra.mrb[0].mxu0 %v6657
  %v6731 = vpop.f32.mrb[0].mxu0
  %v6732 = vadd.f32 0.0, %v6731
  %v6733 = vpop.f32.mrb[0].mxu0
  %v6734 = vadd.f32 0.0, %v6733
  %6735 = vdwg.mxu0
  %6736 = vmatprep.subr.mxu0 %v6632
  %6737 = vmatpush1.msra.mxu0 %v6631
  %6738 = vmatprep.subr.mxu0 %v6636
  %6739 = vmatpush1.msra.mxu0 %v6635
  %6740 = vmatprep.subr.mxu0 0.0
  %6741 = vmatpush1.msra.mxu0 0.0
  %6742 = vmatprep.subr.mxu0 0.0
  %6743 = vmatpush1.msra.mxu0 0.0
  %6744 = vmatprep.subr.mxu0 0.0
  %6745 = vmatpush1.msra.mxu0 0.0
  %6746 = vmatprep.subr.mxu0 0.0
  %6747 = vmatpush1.msra.mxu0 0.0
  %6748 = vmatprep.subr.mxu0 0.0
  %6749 = vmatpush1.msra.mxu0 0.0
  %6750 = vmatprep.subr.mxu0 0.0
  %6751 = vmatpush1.msra.mxu0 0.0
  %6752 = vmatprep.subr.mxu0 0.0
  %6753 = vmatpush1.msra.mxu0 0.0
  %6754 = vmatprep.subr.mxu0 0.0
  %6755 = vmatpush1.msra.mxu0 0.0
  %6756 = vmatprep.subr.mxu0 0.0
  %6757 = vmatpush1.msra.mxu0 0.0
  %6758 = vmatprep.subr.mxu0 0.0
  %6759 = vmatpush1.msra.mxu0 0.0
  %6760 = vmatprep.subr.mxu0 0.0
  %6761 = vmatpush1.msra.mxu0 0.0
  %6762 = vmatprep.subr.mxu0 0.0
  %6763 = vmatpush1.msra.mxu0 0.0
  %6764 = vmatprep.subr.mxu0 0.0
  %6765 = vmatpush1.msra.mxu0 0.0
  %6766 = vmatprep.subr.mxu0 0.0
  %6767 = vmatpush1.msra.mxu0 0.0
  %6768 = vmatprep.subr.mxu0 0.0
  %6769 = vmatpush1.msra.mxu0 0.0
  %6770 = vmatprep.subr.mxu0 0.0
  %6771 = vmatpush1.msra.mxu0 0.0
  %6772 = vmatprep.subr.mxu0 0.0
  %6773 = vmatpush1.msra.mxu0 0.0
  %6774 = vmatprep.subr.mxu0 0.0
  %6775 = vmatpush1.msra.mxu0 0.0
  %6776 = vmatprep.subr.mxu0 0.0
  %6777 = vmatpush1.msra.mxu0 0.0
  %6778 = vmatprep.subr.mxu0 0.0
  %6779 = vmatpush1.msra.mxu0 0.0
  %6780 = vmatprep.subr.mxu0 0.0
  %6781 = vmatpush1.msra.mxu0 0.0
  %6782 = vmatprep.subr.mxu0 0.0
  %6783 = vmatpush1.msra.mxu0 0.0
  %6784 = vmatprep.subr.mxu0 0.0
  %6785 = vmatpush1.msra.mxu0 0.0
  %6786 = vmatprep.subr.mxu0 0.0
  %6787 = vmatpush1.msra.mxu0 0.0
  %6788 = vmatprep.subr.mxu0 0.0
  %6789 = vmatpush1.msra.mxu0 0.0
  %6790 = vmatprep.subr.mxu0 0.0
  %6791 = vmatpush1.msra.mxu0 0.0
  %6792 = vmatprep.subr.mxu0 0.0
  %6793 = vmatpush1.msra.mxu0 0.0
  %6794 = vmatprep.subr.mxu0 0.0
  %6795 = vmatpush1.msra.mxu0 0.0
  %6796 = vmatprep.subr.mxu0 0.0
  %6797 = vmatpush1.msra.mxu0 0.0
  %6798 = vmatprep.subr.mxu0 0.0
  %6799 = vmatpush1.msra.mxu0 0.0
  %6800 = vmatprep.mubr.f32.mxu0 0.0
  %6801 = vmatmul.mubr.f32.gmra.mrb[0].mxu0 %v6654
  %v6802 = vpop.f32.mrb[0].mxu0
  %v6803 = vadd.f32 0.0, %v6802
  %v6804 = vpop.f32.mrb[0].mxu0
  %v6805 = vadd.f32 0.0, %v6804
  %6806 = vmatprep.mubr.f32.mxu0 0.0
  %6807 = vmatmul.mubr.f32.gmra.mrb[0].mxu0 %v6657
  %v6808 = vpop.f32.mrb[0].mxu0
  %v6809 = vadd.f32 0.0, %v6808
  %v6810 = vpop.f32.mrb[0].mxu0
  %v6811 = vadd.f32 0.0, %v6810
  %6812 = vdwg.mxu0
  %v6813 = vadd.f32 %v6726, %v6728
  %v6814 = vadd.f32 %v6813, %v6803
  %v6815 = vadd.f32 %v6814, %v6805
  %6816 = vadd.xlane.f32.xlu0 %v6815
  %v6817 = vpop.xlane.xlu0 %6816
  %v6818 = vadd.f32 %v6732, %v6734
  %v6819 = vadd.f32 %v6818, %v6809
  %v6820 = vadd.f32 %v6819, %v6811
  %6821 = vadd.xlane.f32.xlu0 %v6820
  %v6822 = vpop.xlane.xlu0 %6821
  %v6823 = vmul.f32 %v6817, %v522
  %v6824 = vmul.f32 %v6822, %v522
  %v6825 = vsub.f32 %v6726, %v6823
  %v6826 = vsub.f32 %v6728, %v6823
  %v6827 = vsub.f32 %v6803, %v6823
  %v6828 = vsub.f32 %v6805, %v6823
  %v6829 = vsub.f32 %v6732, %v6824
  %v6830 = vsub.f32 %v6734, %v6824
  %v6831 = vsub.f32 %v6809, %v6824
  %v6832 = vsub.f32 %v6811, %v6824
  %v6833 = vmul.f32 %v6825, %v6825
  %v6834 = vmul.f32 %v6826, %v6826
  %v6835 = vmul.f32 %v6827, %v6827
  %v6836 = vmul.f32 %v6828, %v6828
  %v6837 = vmul.f32 %v6829, %v6829
  %v6838 = vmul.f32 %v6830, %v6830
  %v6839 = vmul.f32 %v6831, %v6831
  %v6840 = vmul.f32 %v6832, %v6832
  %v6841 = vadd.f32 %v6833, %v6834
  %v6842 = vadd.f32 %v6841, %v6835
  %v6843 = vadd.f32 %v6842, %v6836
  %6844 = vadd.xlane.f32.xlu0 %v6843
  %v6845 = vpop.xlane.xlu0 %6844
  %v6846 = vadd.f32 %v6837, %v6838
  %v6847 = vadd.f32 %v6846, %v6839
  %v6848 = vadd.f32 %v6847, %v6840
  %6849 = vadd.xlane.f32.xlu0 %v6848
  %v6850 = vpop.xlane.xlu0 %6849
  %v6851 = vmul.f32 %v6845, %v522
  %v6852 = vmul.f32 %v6850, %v522
  %v6853 = vadd.f32 %v6851, 1e-05
  %v6854 = vadd.f32 %v6852, 1e-05
  %v6855 = vrsqrt.pop %v6853
  %v6856 = vrsqrt.pop %v6854
  %v6857 = vmul.f32 %v6645, %v6855
  %v6858 = vmul.f32 %v6646, %v6856
  %6860 = vset.pattern.permute.xlu0 0
  %6861 = vperm.xlu0 %6860, %v6857
  %v6862 = vpop.permute.xlu0 %6861
  %6865 = vset.pattern.permute.xlu0 0
  %6866 = vperm.xlu0 %6865, %v6858
  %v6867 = vpop.permute.xlu0 %6866
  %v6869 = vmul.f32 %v6825, %v6862
  %v6870 = vmul.f32 %v6826, %v6862
  %v6871 = vmul.f32 %v6827, %v6862
  %v6872 = vmul.f32 %v6828, %v6862
  %v6873 = vmul.f32 %v6829, %v6867
  %v6874 = vmul.f32 %v6830, %v6867
  %v6875 = vmul.f32 %v6831, %v6867
  %v6876 = vmul.f32 %v6832, %v6867
  %6878 = vset.pattern.permute.xlu0 1
  %6879 = vperm.xlu0 %6878, %v6645
  %v6880 = vpop.permute.xlu0 %6879
  %6883 = vset.pattern.permute.xlu0 1
  %6884 = vperm.xlu0 %6883, %v6646
  %v6885 = vpop.permute.xlu0 %6884
  %v6887 = vadd.f32 %v6869, %v6880
  %v6888 = vadd.f32 %v6870, %v6880
  %v6889 = vadd.f32 %v6871, %v6880
  %v6890 = vadd.f32 %v6872, %v6880
  %v6891 = vadd.f32 %v6873, %v6885
  %v6892 = vadd.f32 %v6874, %v6885
  %v6893 = vadd.f32 %v6875, %v6885
  %v6894 = vadd.f32 %v6876, %v6885
  %v6895 = vxor.u32 %v6887, 2147483648
  %v6896 = vxor.u32 %v6888, 2147483648
  %v6897 = vxor.u32 %v6889, 2147483648
  %v6898 = vxor.u32 %v6890, 2147483648
  %v6899 = vxor.u32 %v6891, 2147483648
  %v6900 = vxor.u32 %v6892, 2147483648
  %v6901 = vxor.u32 %v6893, 2147483648
  %v6902 = vxor.u32 %v6894, 2147483648
  %v6903 = vmul.f32 %v6895, 1.442695
  %v6904 = vpow.pop %v6903
  %v6905 = vmul.f32 %v6896, 1.442695
  %v6906 = vpow.pop %v6905
  %v6907 = vmul.f32 %v6897, 1.442695
  %v6908 = vpow.pop %v6907
  %v6909 = vmul.f32 %v6898, 1.442695
  %v6910 = vpow.pop %v6909
  %v6911 = vmul.f32 %v6899, 1.442695
  %v6912 = vpow.pop %v6911
  %v6913 = vmul.f32 %v6900, 1.442695
  %v6914 = vpow.pop %v6913
  %v6915 = vmul.f32 %v6901, 1.442695
  %v6916 = vpow.pop %v6915
  %v6917 = vmul.f32 %v6902, 1.442695
  %v6918 = vpow.pop %v6917
  %v6919 = vadd.f32 %v6904, 1.0
  %v6920 = vadd.f32 %v6906, 1.0
  %v6921 = vadd.f32 %v6908, 1.0
  %v6922 = vadd.f32 %v6910, 1.0
  %v6923 = vadd.f32 %v6912, 1.0
  %v6924 = vadd.f32 %v6914, 1.0
  %v6925 = vadd.f32 %v6916, 1.0
  %v6926 = vadd.f32 %v6918, 1.0
  %v6927 = vrcp.pop %v6919
  %v6928 = vmul.f32 1.0, %v6927
  %v6929 = vrcp.pop %v6920
  %v6930 = vmul.f32 1.0, %v6929
  %v6931 = vrcp.pop %v6921
  %v6932 = vmul.f32 1.0, %v6931
  %v6933 = vrcp.pop %v6922
  %v6934 = vmul.f32 1.0, %v6933
  %v6935 = vrcp.pop %v6923
  %v6936 = vmul.f32 1.0, %v6935
  %v6937 = vrcp.pop %v6924
  %v6938 = vmul.f32 1.0, %v6937
  %v6939 = vrcp.pop %v6925
  %v6940 = vmul.f32 1.0, %v6939
  %v6941 = vrcp.pop %v6926
  %v6942 = vmul.f32 1.0, %v6941
  %v6943 = vmul.f32 %v6887, %v6928
  %v6944 = vmul.f32 %v6888, %v6930
  %v6945 = vmul.f32 %v6889, %v6932
  %v6946 = vmul.f32 %v6890, %v6934
  %v6947 = vmul.f32 %v6891, %v6936
  %v6948 = vmul.f32 %v6892, %v6938
  %v6949 = vmul.f32 %v6893, %v6940
  %v6950 = vmul.f32 %v6894, %v6942
  %6952 = vset.pattern.permute.xlu0 4
  %6953 = vperm.xlu0 %6952, %v6639
  %v6954 = vpop.permute.xlu0 %6953
  %6957 = vset.pattern.permute.xlu0 4
  %6958 = vperm.xlu0 %6957, %v6640
  %v6959 = vpop.permute.xlu0 %6958
  %6962 = vset.pattern.permute.xlu0 4
  %6963 = vperm.xlu0 %6962, %v6641
  %v6964 = vpop.permute.xlu0 %6963
  %6967 = vset.pattern.permute.xlu0 4
  %6968 = vperm.xlu0 %6967, %v6642
  %v6969 = vpop.permute.xlu0 %6968
  %v6971 = vmul.f32 %v6621, %v6954
  %v6972 = vmul.f32 %v6622, %v6954
  %v6973 = vmul.f32 %v6623, %v6954
  %v6974 = vmul.f32 %v6624, %v6954
  %v6975 = vmul.f32 %v6625, %v6959
  %v6976 = vmul.f32 %v6626, %v6959
  %v6977 = vmul.f32 %v6627, %v6959
  %v6978 = vmul.f32 %v6628, %v6959
  %v6979 = vmul.f32 %v6943, %v6964
  %v6980 = vmul.f32 %v6944, %v6964
  %v6981 = vmul.f32 %v6945, %v6964
  %v6982 = vmul.f32 %v6946, %v6964
  %v6983 = vmul.f32 %v6947, %v6969
  %v6984 = vmul.f32 %v6948, %v6969
  %v6985 = vmul.f32 %v6949, %v6969
  %v6986 = vmul.f32 %v6950, %v6969
  %6991 = vrot.lane.b32.xlu0 %v6624, 17
  %v6992 = vpop.permute.xlu0 %6991
  %6993 = vrot.lane.b32.xlu0 %v6628, 17
  %v6994 = vpop.permute.xlu0 %6993
  %6995 = vrot.lane.b32.xlu0 %v6946, 17
  %v6996 = vpop.permute.xlu0 %6995
  %6997 = vrot.lane.b32.xlu0 %v6950, 17
  %v6998 = vpop.permute.xlu0 %6997
  %7015 = vrot.lane.b32.xlu0 %v6621, 17
  %v7016 = vpop.permute.xlu0 %7015
  %7017 = vrot.lane.b32.xlu0 %v6622, 17
  %v7018 = vpop.permute.xlu0 %7017
  %7019 = vrot.lane.b32.xlu0 %v6623, 17
  %v7020 = vpop.permute.xlu0 %7019
  %7021 = vrot.lane.b32.xlu0 %v6625, 17
  %v7022 = vpop.permute.xlu0 %7021
  %7023 = vrot.lane.b32.xlu0 %v6626, 17
  %v7024 = vpop.permute.xlu0 %7023
  %7025 = vrot.lane.b32.xlu0 %v6627, 17
  %v7026 = vpop.permute.xlu0 %7025
  %7027 = vrot.lane.b32.xlu0 %v6943, 17
  %v7028 = vpop.permute.xlu0 %7027
  %7029 = vrot.lane.b32.xlu0 %v6944, 17
  %v7030 = vpop.permute.xlu0 %7029
  %7031 = vrot.lane.b32.xlu0 %v6945, 17
  %v7032 = vpop.permute.xlu0 %7031
  %7033 = vrot.lane.b32.xlu0 %v6947, 17
  %v7034 = vpop.permute.xlu0 %7033
  %7035 = vrot.lane.b32.xlu0 %v6948, 17
  %v7036 = vpop.permute.xlu0 %7035
  %7037 = vrot.lane.b32.xlu0 %v6949, 17
  %v7038 = vpop.permute.xlu0 %7037
  %v7039 = vsel %vm739, %v7016, %v7018
  %v7040 = vsel %vm739, %v7018, %v7020
  %v7041 = vsel %vm739, %v7020, %v6992
  %v7042 = vsel %vm739, %v7022, %v7024
  %v7043 = vsel %vm739, %v7024, %v7026
  %v7044 = vsel %vm739, %v7026, %v6994
  %v7045 = vsel %vm739, %v7028, %v7030
  %v7046 = vsel %vm739, %v7030, %v7032
  %v7047 = vsel %vm739, %v7032, %v6996
  %v7048 = vsel %vm739, %v7034, %v7036
  %v7049 = vsel %vm739, %v7036, %v7038
  %v7050 = vsel %vm739, %v7038, %v6998
  %v7067 = vsel %vm739, %v6992, %v7016
  %v7068 = vsel %vm739, %v6994, %v7022
  %v7069 = vsel %vm739, %v6996, %v7028
  %v7070 = vsel %vm739, %v6998, %v7034
  %7071 = vset.pattern.permute.xlu0 0
  %7072 = vperm.xlu0 %7071, %v6639
  %v7073 = vpop.permute.xlu0 %7072
  %7075 = vset.pattern.permute.xlu0 0
  %7076 = vperm.xlu0 %7075, %v6640
  %v7077 = vpop.permute.xlu0 %7076
  %7079 = vset.pattern.permute.xlu0 0
  %7080 = vperm.xlu0 %7079, %v6641
  %v7081 = vpop.permute.xlu0 %7080
  %7083 = vset.pattern.permute.xlu0 0
  %7084 = vperm.xlu0 %7083, %v6642
  %v7085 = vpop.permute.xlu0 %7084
  %v7087 = vmul.f32 %v7067, %v7073
  %v7088 = vmul.f32 %v7039, %v7073
  %v7089 = vmul.f32 %v7040, %v7073
  %v7090 = vmul.f32 %v7041, %v7073
  %v7091 = vmul.f32 %v7068, %v7077
  %v7092 = vmul.f32 %v7042, %v7077
  %v7093 = vmul.f32 %v7043, %v7077
  %v7094 = vmul.f32 %v7044, %v7077
  %v7095 = vmul.f32 %v7069, %v7081
  %v7096 = vmul.f32 %v7045, %v7081
  %v7097 = vmul.f32 %v7046, %v7081
  %v7098 = vmul.f32 %v7047, %v7081
  %v7099 = vmul.f32 %v7070, %v7085
  %v7100 = vmul.f32 %v7048, %v7085
  %v7101 = vmul.f32 %v7049, %v7085
  %v7102 = vmul.f32 %v7050, %v7085
  %v7103 = vmul.f32 %v7087, %v807
  %v7104 = vmul.f32 %v7088, %v811
  %v7105 = vmul.f32 %v7089, %v815
  %v7106 = vmul.f32 %v7090, %v819
  %v7107 = vmul.f32 %v7091, %v807
  %v7108 = vmul.f32 %v7092, %v811
  %v7109 = vmul.f32 %v7093, %v815
  %v7110 = vmul.f32 %v7094, %v819
  %v7111 = vmul.f32 %v7095, %v807
  %v7112 = vmul.f32 %v7096, %v811
  %v7113 = vmul.f32 %v7097, %v815
  %v7114 = vmul.f32 %v7098, %v819
  %v7115 = vmul.f32 %v7099, %v807
  %v7116 = vmul.f32 %v7100, %v811
  %v7117 = vmul.f32 %v7101, %v815
  %v7118 = vmul.f32 %v7102, %v819
  %v7119 = vadd.f32 %v6971, %v7103
  %v7120 = vadd.f32 %v6972, %v7104
  %v7121 = vadd.f32 %v6973, %v7105
  %v7122 = vadd.f32 %v6974, %v7106
  %v7123 = vadd.f32 %v6975, %v7107
  %v7124 = vadd.f32 %v6976, %v7108
  %v7125 = vadd.f32 %v6977, %v7109
  %v7126 = vadd.f32 %v6978, %v7110
  %v7127 = vadd.f32 %v6979, %v7111
  %v7128 = vadd.f32 %v6980, %v7112
  %v7129 = vadd.f32 %v6981, %v7113
  %v7130 = vadd.f32 %v6982, %v7114
  %v7131 = vadd.f32 %v6983, %v7115
  %v7132 = vadd.f32 %v6984, %v7116
  %v7133 = vadd.f32 %v6985, %v7117
  %v7134 = vadd.f32 %v6986, %v7118
  %7135 = vrot.lane.b32.xlu0 %v6624, 16
  %v7136 = vpop.permute.xlu0 %7135
  %7137 = vrot.lane.b32.xlu0 %v6628, 16
  %v7138 = vpop.permute.xlu0 %7137
  %7139 = vrot.lane.b32.xlu0 %v6946, 16
  %v7140 = vpop.permute.xlu0 %7139
  %7141 = vrot.lane.b32.xlu0 %v6950, 16
  %v7142 = vpop.permute.xlu0 %7141
  %7147 = vrot.lane.b32.xlu0 %v6621, 16
  %v7148 = vpop.permute.xlu0 %7147
  %7149 = vrot.lane.b32.xlu0 %v6622, 16
  %v7150 = vpop.permute.xlu0 %7149
  %7151 = vrot.lane.b32.xlu0 %v6623, 16
  %v7152 = vpop.permute.xlu0 %7151
  %7153 = vrot.lane.b32.xlu0 %v6625, 16
  %v7154 = vpop.permute.xlu0 %7153
  %7155 = vrot.lane.b32.xlu0 %v6626, 16
  %v7156 = vpop.permute.xlu0 %7155
  %7157 = vrot.lane.b32.xlu0 %v6627, 16
  %v7158 = vpop.permute.xlu0 %7157
  %7159 = vrot.lane.b32.xlu0 %v6943, 16
  %v7160 = vpop.permute.xlu0 %7159
  %7161 = vrot.lane.b32.xlu0 %v6944, 16
  %v7162 = vpop.permute.xlu0 %7161
  %7163 = vrot.lane.b32.xlu0 %v6945, 16
  %v7164 = vpop.permute.xlu0 %7163
  %7165 = vrot.lane.b32.xlu0 %v6947, 16
  %v7166 = vpop.permute.xlu0 %7165
  %7167 = vrot.lane.b32.xlu0 %v6948, 16
  %v7168 = vpop.permute.xlu0 %7167
  %7169 = vrot.lane.b32.xlu0 %v6949, 16
  %v7170 = vpop.permute.xlu0 %7169
  %v7171 = vsel %vm351, %v7148, %v7150
  %v7172 = vsel %vm351, %v7150, %v7152
  %v7173 = vsel %vm351, %v7152, %v7136
  %v7174 = vsel %vm351, %v7154, %v7156
  %v7175 = vsel %vm351, %v7156, %v7158
  %v7176 = vsel %vm351, %v7158, %v7138
  %v7177 = vsel %vm351, %v7160, %v7162
  %v7178 = vsel %vm351, %v7162, %v7164
  %v7179 = vsel %vm351, %v7164, %v7140
  %v7180 = vsel %vm351, %v7166, %v7168
  %v7181 = vsel %vm351, %v7168, %v7170
  %v7182 = vsel %vm351, %v7170, %v7142
  %v7199 = vsel %vm351, %v7136, %v7148
  %v7200 = vsel %vm351, %v7138, %v7154
  %v7201 = vsel %vm351, %v7140, %v7160
  %v7202 = vsel %vm351, %v7142, %v7166
  %7203 = vset.pattern.permute.xlu0 1
  %7204 = vperm.xlu0 %7203, %v6639
  %v7205 = vpop.permute.xlu0 %7204
  %7207 = vset.pattern.permute.xlu0 1
  %7208 = vperm.xlu0 %7207, %v6640
  %v7209 = vpop.permute.xlu0 %7208
  %7211 = vset.pattern.permute.xlu0 1
  %7212 = vperm.xlu0 %7211, %v6641
  %v7213 = vpop.permute.xlu0 %7212
  %7215 = vset.pattern.permute.xlu0 1
  %7216 = vperm.xlu0 %7215, %v6642
  %v7217 = vpop.permute.xlu0 %7216
  %v7219 = vmul.f32 %v7199, %v7205
  %v7220 = vmul.f32 %v7171, %v7205
  %v7221 = vmul.f32 %v7172, %v7205
  %v7222 = vmul.f32 %v7173, %v7205
  %v7223 = vmul.f32 %v7200, %v7209
  %v7224 = vmul.f32 %v7174, %v7209
  %v7225 = vmul.f32 %v7175, %v7209
  %v7226 = vmul.f32 %v7176, %v7209
  %v7227 = vmul.f32 %v7201, %v7213
  %v7228 = vmul.f32 %v7177, %v7213
  %v7229 = vmul.f32 %v7178, %v7213
  %v7230 = vmul.f32 %v7179, %v7213
  %v7231 = vmul.f32 %v7202, %v7217
  %v7232 = vmul.f32 %v7180, %v7217
  %v7233 = vmul.f32 %v7181, %v7217
  %v7234 = vmul.f32 %v7182, %v7217
  %v7235 = vmul.f32 %v7219, %v955
  %v7236 = vmul.f32 %v7220, %v959
  %v7237 = vmul.f32 %v7221, %v963
  %v7238 = vmul.f32 %v7222, %v967
  %v7239 = vmul.f32 %v7223, %v955
  %v7240 = vmul.f32 %v7224, %v959
  %v7241 = vmul.f32 %v7225, %v963
  %v7242 = vmul.f32 %v7226, %v967
  %v7243 = vmul.f32 %v7227, %v955
  %v7244 = vmul.f32 %v7228, %v959
  %v7245 = vmul.f32 %v7229, %v963
  %v7246 = vmul.f32 %v7230, %v967
  %v7247 = vmul.f32 %v7231, %v955
  %v7248 = vmul.f32 %v7232, %v959
  %v7249 = vmul.f32 %v7233, %v963
  %v7250 = vmul.f32 %v7234, %v967
  %v7251 = vadd.f32 %v7119, %v7235
  %v7252 = vadd.f32 %v7120, %v7236
  %v7253 = vadd.f32 %v7121, %v7237
  %v7254 = vadd.f32 %v7122, %v7238
  %v7255 = vadd.f32 %v7123, %v7239
  %v7256 = vadd.f32 %v7124, %v7240
  %v7257 = vadd.f32 %v7125, %v7241
  %v7258 = vadd.f32 %v7126, %v7242
  %v7259 = vadd.f32 %v7127, %v7243
  %v7260 = vadd.f32 %v7128, %v7244
  %v7261 = vadd.f32 %v7129, %v7245
  %v7262 = vadd.f32 %v7130, %v7246
  %v7263 = vadd.f32 %v7131, %v7247
  %v7264 = vadd.f32 %v7132, %v7248
  %v7265 = vadd.f32 %v7133, %v7249
  %v7266 = vadd.f32 %v7134, %v7250
  %7267 = vrot.lane.b32.xlu0 %v6624, 15
  %v7268 = vpop.permute.xlu0 %7267
  %7269 = vrot.lane.b32.xlu0 %v6628, 15
  %v7270 = vpop.permute.xlu0 %7269
  %7271 = vrot.lane.b32.xlu0 %v6946, 15
  %v7272 = vpop.permute.xlu0 %7271
  %7273 = vrot.lane.b32.xlu0 %v6950, 15
  %v7274 = vpop.permute.xlu0 %7273
  %7279 = vrot.lane.b32.xlu0 %v6621, 15
  %v7280 = vpop.permute.xlu0 %7279
  %7281 = vrot.lane.b32.xlu0 %v6622, 15
  %v7282 = vpop.permute.xlu0 %7281
  %7283 = vrot.lane.b32.xlu0 %v6623, 15
  %v7284 = vpop.permute.xlu0 %7283
  %7285 = vrot.lane.b32.xlu0 %v6625, 15
  %v7286 = vpop.permute.xlu0 %7285
  %7287 = vrot.lane.b32.xlu0 %v6626, 15
  %v7288 = vpop.permute.xlu0 %7287
  %7289 = vrot.lane.b32.xlu0 %v6627, 15
  %v7290 = vpop.permute.xlu0 %7289
  %7291 = vrot.lane.b32.xlu0 %v6943, 15
  %v7292 = vpop.permute.xlu0 %7291
  %7293 = vrot.lane.b32.xlu0 %v6944, 15
  %v7294 = vpop.permute.xlu0 %7293
  %7295 = vrot.lane.b32.xlu0 %v6945, 15
  %v7296 = vpop.permute.xlu0 %7295
  %7297 = vrot.lane.b32.xlu0 %v6947, 15
  %v7298 = vpop.permute.xlu0 %7297
  %7299 = vrot.lane.b32.xlu0 %v6948, 15
  %v7300 = vpop.permute.xlu0 %7299
  %7301 = vrot.lane.b32.xlu0 %v6949, 15
  %v7302 = vpop.permute.xlu0 %7301
  %v7303 = vsel %vm1036, %v7280, %v7282
  %v7304 = vsel %vm1036, %v7282, %v7284
  %v7305 = vsel %vm1036, %v7284, %v7268
  %v7306 = vsel %vm1036, %v7286, %v7288
  %v7307 = vsel %vm1036, %v7288, %v7290
  %v7308 = vsel %vm1036, %v7290, %v7270
  %v7309 = vsel %vm1036, %v7292, %v7294
  %v7310 = vsel %vm1036, %v7294, %v7296
  %v7311 = vsel %vm1036, %v7296, %v7272
  %v7312 = vsel %vm1036, %v7298, %v7300
  %v7313 = vsel %vm1036, %v7300, %v7302
  %v7314 = vsel %vm1036, %v7302, %v7274
  %v7331 = vsel %vm1036, %v7268, %v7280
  %v7332 = vsel %vm1036, %v7270, %v7286
  %v7333 = vsel %vm1036, %v7272, %v7292
  %v7334 = vsel %vm1036, %v7274, %v7298
  %7335 = vset.pattern.permute.xlu0 2
  %7336 = vperm.xlu0 %7335, %v6639
  %v7337 = vpop.permute.xlu0 %7336
  %7339 = vset.pattern.permute.xlu0 2
  %7340 = vperm.xlu0 %7339, %v6640
  %v7341 = vpop.permute.xlu0 %7340
  %7343 = vset.pattern.permute.xlu0 2
  %7344 = vperm.xlu0 %7343, %v6641
  %v7345 = vpop.permute.xlu0 %7344
  %7347 = vset.pattern.permute.xlu0 2
  %7348 = vperm.xlu0 %7347, %v6642
  %v7349 = vpop.permute.xlu0 %7348
  %v7351 = vmul.f32 %v7331, %v7337
  %v7352 = vmul.f32 %v7303, %v7337
  %v7353 = vmul.f32 %v7304, %v7337
  %v7354 = vmul.f32 %v7305, %v7337
  %v7355 = vmul.f32 %v7332, %v7341
  %v7356 = vmul.f32 %v7306, %v7341
  %v7357 = vmul.f32 %v7307, %v7341
  %v7358 = vmul.f32 %v7308, %v7341
  %v7359 = vmul.f32 %v7333, %v7345
  %v7360 = vmul.f32 %v7309, %v7345
  %v7361 = vmul.f32 %v7310, %v7345
  %v7362 = vmul.f32 %v7311, %v7345
  %v7363 = vmul.f32 %v7334, %v7349
  %v7364 = vmul.f32 %v7312, %v7349
  %v7365 = vmul.f32 %v7313, %v7349
  %v7366 = vmul.f32 %v7314, %v7349
  %v7367 = vmul.f32 %v7351, %v1104
  %v7368 = vmul.f32 %v7352, %v1108
  %v7369 = vmul.f32 %v7353, %v1112
  %v7370 = vmul.f32 %v7354, %v1116
  %v7371 = vmul.f32 %v7355, %v1104
  %v7372 = vmul.f32 %v7356, %v1108
  %v7373 = vmul.f32 %v7357, %v1112
  %v7374 = vmul.f32 %v7358, %v1116
  %v7375 = vmul.f32 %v7359, %v1104
  %v7376 = vmul.f32 %v7360, %v1108
  %v7377 = vmul.f32 %v7361, %v1112
  %v7378 = vmul.f32 %v7362, %v1116
  %v7379 = vmul.f32 %v7363, %v1104
  %v7380 = vmul.f32 %v7364, %v1108
  %v7381 = vmul.f32 %v7365, %v1112
  %v7382 = vmul.f32 %v7366, %v1116
  %v7383 = vadd.f32 %v7251, %v7367
  %v7384 = vadd.f32 %v7252, %v7368
  %v7385 = vadd.f32 %v7253, %v7369
  %v7386 = vadd.f32 %v7254, %v7370
  %v7387 = vadd.f32 %v7255, %v7371
  %v7388 = vadd.f32 %v7256, %v7372
  %v7389 = vadd.f32 %v7257, %v7373
  %v7390 = vadd.f32 %v7258, %v7374
  %v7391 = vadd.f32 %v7259, %v7375
  %v7392 = vadd.f32 %v7260, %v7376
  %v7393 = vadd.f32 %v7261, %v7377
  %v7394 = vadd.f32 %v7262, %v7378
  %v7395 = vadd.f32 %v7263, %v7379
  %v7396 = vadd.f32 %v7264, %v7380
  %v7397 = vadd.f32 %v7265, %v7381
  %v7398 = vadd.f32 %v7266, %v7382
  %7399 = vrot.lane.b32.xlu0 %v6624, 1
  %v7400 = vpop.permute.xlu0 %7399
  %7401 = vrot.lane.b32.xlu0 %v6628, 1
  %v7402 = vpop.permute.xlu0 %7401
  %7403 = vrot.lane.b32.xlu0 %v6946, 1
  %v7404 = vpop.permute.xlu0 %7403
  %7405 = vrot.lane.b32.xlu0 %v6950, 1
  %v7406 = vpop.permute.xlu0 %7405
  %7411 = vrot.lane.b32.xlu0 %v6621, 1
  %v7412 = vpop.permute.xlu0 %7411
  %7413 = vrot.lane.b32.xlu0 %v6622, 1
  %v7414 = vpop.permute.xlu0 %7413
  %7415 = vrot.lane.b32.xlu0 %v6623, 1
  %v7416 = vpop.permute.xlu0 %7415
  %7417 = vrot.lane.b32.xlu0 %v6625, 1
  %v7418 = vpop.permute.xlu0 %7417
  %7419 = vrot.lane.b32.xlu0 %v6626, 1
  %v7420 = vpop.permute.xlu0 %7419
  %7421 = vrot.lane.b32.xlu0 %v6627, 1
  %v7422 = vpop.permute.xlu0 %7421
  %7423 = vrot.lane.b32.xlu0 %v6943, 1
  %v7424 = vpop.permute.xlu0 %7423
  %7425 = vrot.lane.b32.xlu0 %v6944, 1
  %v7426 = vpop.permute.xlu0 %7425
  %7427 = vrot.lane.b32.xlu0 %v6945, 1
  %v7428 = vpop.permute.xlu0 %7427
  %7429 = vrot.lane.b32.xlu0 %v6947, 1
  %v7430 = vpop.permute.xlu0 %7429
  %7431 = vrot.lane.b32.xlu0 %v6948, 1
  %v7432 = vpop.permute.xlu0 %7431
  %7433 = vrot.lane.b32.xlu0 %v6949, 1
  %v7434 = vpop.permute.xlu0 %7433
  %v7435 = vsel %vm1185, %v7412, %v7414
  %v7436 = vsel %vm1185, %v7414, %v7416
  %v7437 = vsel %vm1185, %v7416, %v7400
  %v7438 = vsel %vm1185, %v7418, %v7420
  %v7439 = vsel %vm1185, %v7420, %v7422
  %v7440 = vsel %vm1185, %v7422, %v7402
  %v7441 = vsel %vm1185, %v7424, %v7426
  %v7442 = vsel %vm1185, %v7426, %v7428
  %v7443 = vsel %vm1185, %v7428, %v7404
  %v7444 = vsel %vm1185, %v7430, %v7432
  %v7445 = vsel %vm1185, %v7432, %v7434
  %v7446 = vsel %vm1185, %v7434, %v7406
  %v7463 = vsel %vm1185, %v7400, %v7412
  %v7464 = vsel %vm1185, %v7402, %v7418
  %v7465 = vsel %vm1185, %v7404, %v7424
  %v7466 = vsel %vm1185, %v7406, %v7430
  %7467 = vset.pattern.permute.xlu0 3
  %7468 = vperm.xlu0 %7467, %v6639
  %v7469 = vpop.permute.xlu0 %7468
  %7471 = vset.pattern.permute.xlu0 3
  %7472 = vperm.xlu0 %7471, %v6640
  %v7473 = vpop.permute.xlu0 %7472
  %7475 = vset.pattern.permute.xlu0 3
  %7476 = vperm.xlu0 %7475, %v6641
  %v7477 = vpop.permute.xlu0 %7476
  %7479 = vset.pattern.permute.xlu0 3
  %7480 = vperm.xlu0 %7479, %v6642
  %v7481 = vpop.permute.xlu0 %7480
  %v7483 = vmul.f32 %v7463, %v7469
  %v7484 = vmul.f32 %v7435, %v7469
  %v7485 = vmul.f32 %v7436, %v7469
  %v7486 = vmul.f32 %v7437, %v7469
  %v7487 = vmul.f32 %v7464, %v7473
  %v7488 = vmul.f32 %v7438, %v7473
  %v7489 = vmul.f32 %v7439, %v7473
  %v7490 = vmul.f32 %v7440, %v7473
  %v7491 = vmul.f32 %v7465, %v7477
  %v7492 = vmul.f32 %v7441, %v7477
  %v7493 = vmul.f32 %v7442, %v7477
  %v7494 = vmul.f32 %v7443, %v7477
  %v7495 = vmul.f32 %v7466, %v7481
  %v7496 = vmul.f32 %v7444, %v7481
  %v7497 = vmul.f32 %v7445, %v7481
  %v7498 = vmul.f32 %v7446, %v7481
  %v7499 = vmul.f32 %v7483, %v1253
  %v7500 = vmul.f32 %v7484, %v1257
  %v7501 = vmul.f32 %v7485, %v1261
  %v7502 = vmul.f32 %v7486, %v1265
  %v7503 = vmul.f32 %v7487, %v1253
  %v7504 = vmul.f32 %v7488, %v1257
  %v7505 = vmul.f32 %v7489, %v1261
  %v7506 = vmul.f32 %v7490, %v1265
  %v7507 = vmul.f32 %v7491, %v1253
  %v7508 = vmul.f32 %v7492, %v1257
  %v7509 = vmul.f32 %v7493, %v1261
  %v7510 = vmul.f32 %v7494, %v1265
  %v7511 = vmul.f32 %v7495, %v1253
  %v7512 = vmul.f32 %v7496, %v1257
  %v7513 = vmul.f32 %v7497, %v1261
  %v7514 = vmul.f32 %v7498, %v1265
  %v7515 = vadd.f32 %v7383, %v7499
  %v7516 = vadd.f32 %v7384, %v7500
  %v7517 = vadd.f32 %v7385, %v7501
  %v7518 = vadd.f32 %v7386, %v7502
  %v7519 = vadd.f32 %v7387, %v7503
  %v7520 = vadd.f32 %v7388, %v7504
  %v7521 = vadd.f32 %v7389, %v7505
  %v7522 = vadd.f32 %v7390, %v7506
  %v7523 = vadd.f32 %v7391, %v7507
  %v7524 = vadd.f32 %v7392, %v7508
  %v7525 = vadd.f32 %v7393, %v7509
  %v7526 = vadd.f32 %v7394, %v7510
  %v7527 = vadd.f32 %v7395, %v7511
  %v7528 = vadd.f32 %v7396, %v7512
  %v7529 = vadd.f32 %v7397, %v7513
  %v7530 = vadd.f32 %v7398, %v7514
  %7531 = vrot.lane.b32.xlu0 %v6621, 127
  %v7532 = vpop.permute.xlu0 %7531
  %7533 = vrot.lane.b32.xlu0 %v6622, 127
  %v7534 = vpop.permute.xlu0 %7533
  %7535 = vrot.lane.b32.xlu0 %v6623, 127
  %v7536 = vpop.permute.xlu0 %7535
  %7537 = vrot.lane.b32.xlu0 %v6624, 127
  %v7538 = vpop.permute.xlu0 %7537
  %7539 = vrot.lane.b32.xlu0 %v6625, 127
  %v7540 = vpop.permute.xlu0 %7539
  %7541 = vrot.lane.b32.xlu0 %v6626, 127
  %v7542 = vpop.permute.xlu0 %7541
  %7543 = vrot.lane.b32.xlu0 %v6627, 127
  %v7544 = vpop.permute.xlu0 %7543
  %7545 = vrot.lane.b32.xlu0 %v6628, 127
  %v7546 = vpop.permute.xlu0 %7545
  %7547 = vrot.lane.b32.xlu0 %v6943, 127
  %v7548 = vpop.permute.xlu0 %7547
  %7549 = vrot.lane.b32.xlu0 %v6944, 127
  %v7550 = vpop.permute.xlu0 %7549
  %7551 = vrot.lane.b32.xlu0 %v6945, 127
  %v7552 = vpop.permute.xlu0 %7551
  %7553 = vrot.lane.b32.xlu0 %v6946, 127
  %v7554 = vpop.permute.xlu0 %7553
  %7555 = vrot.lane.b32.xlu0 %v6947, 127
  %v7556 = vpop.permute.xlu0 %7555
  %7557 = vrot.lane.b32.xlu0 %v6948, 127
  %v7558 = vpop.permute.xlu0 %7557
  %7559 = vrot.lane.b32.xlu0 %v6949, 127
  %v7560 = vpop.permute.xlu0 %7559
  %7561 = vrot.lane.b32.xlu0 %v6950, 127
  %v7562 = vpop.permute.xlu0 %7561
  %v7563 = vsel %vm1330, %v7532, %v7534
  %v7564 = vsel %vm1330, %v7534, %v7536
  %v7565 = vsel %vm1330, %v7536, %v7538
  %v7566 = vsel %vm1330, %v7540, %v7542
  %v7567 = vsel %vm1330, %v7542, %v7544
  %v7568 = vsel %vm1330, %v7544, %v7546
  %v7569 = vsel %vm1330, %v7548, %v7550
  %v7570 = vsel %vm1330, %v7550, %v7552
  %v7571 = vsel %vm1330, %v7552, %v7554
  %v7572 = vsel %vm1330, %v7556, %v7558
  %v7573 = vsel %vm1330, %v7558, %v7560
  %v7574 = vsel %vm1330, %v7560, %v7562
  %v7595 = vsel %vm1330, %v7538, %v7532
  %v7596 = vsel %vm1330, %v7546, %v7540
  %v7597 = vsel %vm1330, %v7554, %v7548
  %v7598 = vsel %vm1330, %v7562, %v7556
  %7599 = vset.pattern.permute.xlu0 5
  %7600 = vperm.xlu0 %7599, %v6639
  %v7601 = vpop.permute.xlu0 %7600
  %7603 = vset.pattern.permute.xlu0 5
  %7604 = vperm.xlu0 %7603, %v6640
  %v7605 = vpop.permute.xlu0 %7604
  %7607 = vset.pattern.permute.xlu0 5
  %7608 = vperm.xlu0 %7607, %v6641
  %v7609 = vpop.permute.xlu0 %7608
  %7611 = vset.pattern.permute.xlu0 5
  %7612 = vperm.xlu0 %7611, %v6642
  %v7613 = vpop.permute.xlu0 %7612
  %v7615 = vmul.f32 %v7563, %v7601
  %v7616 = vmul.f32 %v7564, %v7601
  %v7617 = vmul.f32 %v7565, %v7601
  %v7618 = vmul.f32 %v7595, %v7601
  %v7619 = vmul.f32 %v7566, %v7605
  %v7620 = vmul.f32 %v7567, %v7605
  %v7621 = vmul.f32 %v7568, %v7605
  %v7622 = vmul.f32 %v7596, %v7605
  %v7623 = vmul.f32 %v7569, %v7609
  %v7624 = vmul.f32 %v7570, %v7609
  %v7625 = vmul.f32 %v7571, %v7609
  %v7626 = vmul.f32 %v7597, %v7609
  %v7627 = vmul.f32 %v7572, %v7613
  %v7628 = vmul.f32 %v7573, %v7613
  %v7629 = vmul.f32 %v7574, %v7613
  %v7630 = vmul.f32 %v7598, %v7613
  %v7631 = vmul.f32 %v7615, %v1402
  %v7632 = vmul.f32 %v7616, %v1406
  %v7633 = vmul.f32 %v7617, %v1410
  %v7634 = vmul.f32 %v7618, %v1414
  %v7635 = vmul.f32 %v7619, %v1402
  %v7636 = vmul.f32 %v7620, %v1406
  %v7637 = vmul.f32 %v7621, %v1410
  %v7638 = vmul.f32 %v7622, %v1414
  %v7639 = vmul.f32 %v7623, %v1402
  %v7640 = vmul.f32 %v7624, %v1406
  %v7641 = vmul.f32 %v7625, %v1410
  %v7642 = vmul.f32 %v7626, %v1414
  %v7643 = vmul.f32 %v7627, %v1402
  %v7644 = vmul.f32 %v7628, %v1406
  %v7645 = vmul.f32 %v7629, %v1410
  %v7646 = vmul.f32 %v7630, %v1414
  %v7647 = vadd.f32 %v7515, %v7631
  %v7648 = vadd.f32 %v7516, %v7632
  %v7649 = vadd.f32 %v7517, %v7633
  %v7650 = vadd.f32 %v7518, %v7634
  %v7651 = vadd.f32 %v7519, %v7635
  %v7652 = vadd.f32 %v7520, %v7636
  %v7653 = vadd.f32 %v7521, %v7637
  %v7654 = vadd.f32 %v7522, %v7638
  %v7655 = vadd.f32 %v7523, %v7639
  %v7656 = vadd.f32 %v7524, %v7640
  %v7657 = vadd.f32 %v7525, %v7641
  %v7658 = vadd.f32 %v7526, %v7642
  %v7659 = vadd.f32 %v7527, %v7643
  %v7660 = vadd.f32 %v7528, %v7644
  %v7661 = vadd.f32 %v7529, %v7645
  %v7662 = vadd.f32 %v7530, %v7646
  %7663 = vrot.lane.b32.xlu0 %v6621, 113
  %v7664 = vpop.permute.xlu0 %7663
  %7665 = vrot.lane.b32.xlu0 %v6622, 113
  %v7666 = vpop.permute.xlu0 %7665
  %7667 = vrot.lane.b32.xlu0 %v6623, 113
  %v7668 = vpop.permute.xlu0 %7667
  %7669 = vrot.lane.b32.xlu0 %v6624, 113
  %v7670 = vpop.permute.xlu0 %7669
  %7671 = vrot.lane.b32.xlu0 %v6625, 113
  %v7672 = vpop.permute.xlu0 %7671
  %7673 = vrot.lane.b32.xlu0 %v6626, 113
  %v7674 = vpop.permute.xlu0 %7673
  %7675 = vrot.lane.b32.xlu0 %v6627, 113
  %v7676 = vpop.permute.xlu0 %7675
  %7677 = vrot.lane.b32.xlu0 %v6628, 113
  %v7678 = vpop.permute.xlu0 %7677
  %7679 = vrot.lane.b32.xlu0 %v6943, 113
  %v7680 = vpop.permute.xlu0 %7679
  %7681 = vrot.lane.b32.xlu0 %v6944, 113
  %v7682 = vpop.permute.xlu0 %7681
  %7683 = vrot.lane.b32.xlu0 %v6945, 113
  %v7684 = vpop.permute.xlu0 %7683
  %7685 = vrot.lane.b32.xlu0 %v6946, 113
  %v7686 = vpop.permute.xlu0 %7685
  %7687 = vrot.lane.b32.xlu0 %v6947, 113
  %v7688 = vpop.permute.xlu0 %7687
  %7689 = vrot.lane.b32.xlu0 %v6948, 113
  %v7690 = vpop.permute.xlu0 %7689
  %7691 = vrot.lane.b32.xlu0 %v6949, 113
  %v7692 = vpop.permute.xlu0 %7691
  %7693 = vrot.lane.b32.xlu0 %v6950, 113
  %v7694 = vpop.permute.xlu0 %7693
  %v7695 = vsel %vm1479, %v7664, %v7666
  %v7696 = vsel %vm1479, %v7666, %v7668
  %v7697 = vsel %vm1479, %v7668, %v7670
  %v7698 = vsel %vm1479, %v7672, %v7674
  %v7699 = vsel %vm1479, %v7674, %v7676
  %v7700 = vsel %vm1479, %v7676, %v7678
  %v7701 = vsel %vm1479, %v7680, %v7682
  %v7702 = vsel %vm1479, %v7682, %v7684
  %v7703 = vsel %vm1479, %v7684, %v7686
  %v7704 = vsel %vm1479, %v7688, %v7690
  %v7705 = vsel %vm1479, %v7690, %v7692
  %v7706 = vsel %vm1479, %v7692, %v7694
  %v7727 = vsel %vm1479, %v7670, %v7664
  %v7728 = vsel %vm1479, %v7678, %v7672
  %v7729 = vsel %vm1479, %v7686, %v7680
  %v7730 = vsel %vm1479, %v7694, %v7688
  %7731 = vset.pattern.permute.xlu0 6
  %7732 = vperm.xlu0 %7731, %v6639
  %v7733 = vpop.permute.xlu0 %7732
  %7735 = vset.pattern.permute.xlu0 6
  %7736 = vperm.xlu0 %7735, %v6640
  %v7737 = vpop.permute.xlu0 %7736
  %7739 = vset.pattern.permute.xlu0 6
  %7740 = vperm.xlu0 %7739, %v6641
  %v7741 = vpop.permute.xlu0 %7740
  %7743 = vset.pattern.permute.xlu0 6
  %7744 = vperm.xlu0 %7743, %v6642
  %v7745 = vpop.permute.xlu0 %7744
  %v7747 = vmul.f32 %v7695, %v7733
  %v7748 = vmul.f32 %v7696, %v7733
  %v7749 = vmul.f32 %v7697, %v7733
  %v7750 = vmul.f32 %v7727, %v7733
  %v7751 = vmul.f32 %v7698, %v7737
  %v7752 = vmul.f32 %v7699, %v7737
  %v7753 = vmul.f32 %v7700, %v7737
  %v7754 = vmul.f32 %v7728, %v7737
  %v7755 = vmul.f32 %v7701, %v7741
  %v7756 = vmul.f32 %v7702, %v7741
  %v7757 = vmul.f32 %v7703, %v7741
  %v7758 = vmul.f32 %v7729, %v7741
  %v7759 = vmul.f32 %v7704, %v7745
  %v7760 = vmul.f32 %v7705, %v7745
  %v7761 = vmul.f32 %v7706, %v7745
  %v7762 = vmul.f32 %v7730, %v7745
  %v7763 = vmul.f32 %v7747, %v1551
  %v7764 = vmul.f32 %v7748, %v1555
  %v7765 = vmul.f32 %v7749, %v1559
  %v7766 = vmul.f32 %v7750, %v1563
  %v7767 = vmul.f32 %v7751, %v1551
  %v7768 = vmul.f32 %v7752, %v1555
  %v7769 = vmul.f32 %v7753, %v1559
  %v7770 = vmul.f32 %v7754, %v1563
  %v7771 = vmul.f32 %v7755, %v1551
  %v7772 = vmul.f32 %v7756, %v1555
  %v7773 = vmul.f32 %v7757, %v1559
  %v7774 = vmul.f32 %v7758, %v1563
  %v7775 = vmul.f32 %v7759, %v1551
  %v7776 = vmul.f32 %v7760, %v1555
  %v7777 = vmul.f32 %v7761, %v1559
  %v7778 = vmul.f32 %v7762, %v1563
  %v7779 = vadd.f32 %v7647, %v7763
  %v7780 = vadd.f32 %v7648, %v7764
  %v7781 = vadd.f32 %v7649, %v7765
  %v7782 = vadd.f32 %v7650, %v7766
  %v7783 = vadd.f32 %v7651, %v7767
  %v7784 = vadd.f32 %v7652, %v7768
  %v7785 = vadd.f32 %v7653, %v7769
  %v7786 = vadd.f32 %v7654, %v7770
  %v7787 = vadd.f32 %v7655, %v7771
  %v7788 = vadd.f32 %v7656, %v7772
  %v7789 = vadd.f32 %v7657, %v7773
  %v7790 = vadd.f32 %v7658, %v7774
  %v7791 = vadd.f32 %v7659, %v7775
  %v7792 = vadd.f32 %v7660, %v7776
  %v7793 = vadd.f32 %v7661, %v7777
  %v7794 = vadd.f32 %v7662, %v7778
  %7795 = vrot.lane.b32.xlu0 %v6621, 112
  %v7796 = vpop.permute.xlu0 %7795
  %7797 = vrot.lane.b32.xlu0 %v6622, 112
  %v7798 = vpop.permute.xlu0 %7797
  %7799 = vrot.lane.b32.xlu0 %v6623, 112
  %v7800 = vpop.permute.xlu0 %7799
  %7801 = vrot.lane.b32.xlu0 %v6624, 112
  %v7802 = vpop.permute.xlu0 %7801
  %7803 = vrot.lane.b32.xlu0 %v6625, 112
  %v7804 = vpop.permute.xlu0 %7803
  %7805 = vrot.lane.b32.xlu0 %v6626, 112
  %v7806 = vpop.permute.xlu0 %7805
  %7807 = vrot.lane.b32.xlu0 %v6627, 112
  %v7808 = vpop.permute.xlu0 %7807
  %7809 = vrot.lane.b32.xlu0 %v6628, 112
  %v7810 = vpop.permute.xlu0 %7809
  %7811 = vrot.lane.b32.xlu0 %v6943, 112
  %v7812 = vpop.permute.xlu0 %7811
  %7813 = vrot.lane.b32.xlu0 %v6944, 112
  %v7814 = vpop.permute.xlu0 %7813
  %7815 = vrot.lane.b32.xlu0 %v6945, 112
  %v7816 = vpop.permute.xlu0 %7815
  %7817 = vrot.lane.b32.xlu0 %v6946, 112
  %v7818 = vpop.permute.xlu0 %7817
  %7819 = vrot.lane.b32.xlu0 %v6947, 112
  %v7820 = vpop.permute.xlu0 %7819
  %7821 = vrot.lane.b32.xlu0 %v6948, 112
  %v7822 = vpop.permute.xlu0 %7821
  %7823 = vrot.lane.b32.xlu0 %v6949, 112
  %v7824 = vpop.permute.xlu0 %7823
  %7825 = vrot.lane.b32.xlu0 %v6950, 112
  %v7826 = vpop.permute.xlu0 %7825
  %v7827 = vsel %vm1628, %v7796, %v7798
  %v7828 = vsel %vm1628, %v7798, %v7800
  %v7829 = vsel %vm1628, %v7800, %v7802
  %v7830 = vsel %vm1628, %v7804, %v7806
  %v7831 = vsel %vm1628, %v7806, %v7808
  %v7832 = vsel %vm1628, %v7808, %v7810
  %v7833 = vsel %vm1628, %v7812, %v7814
  %v7834 = vsel %vm1628, %v7814, %v7816
  %v7835 = vsel %vm1628, %v7816, %v7818
  %v7836 = vsel %vm1628, %v7820, %v7822
  %v7837 = vsel %vm1628, %v7822, %v7824
  %v7838 = vsel %vm1628, %v7824, %v7826
  %v7859 = vsel %vm1628, %v7802, %v7796
  %v7860 = vsel %vm1628, %v7810, %v7804
  %v7861 = vsel %vm1628, %v7818, %v7812
  %v7862 = vsel %vm1628, %v7826, %v7820
  %7863 = vset.pattern.permute.xlu0 7
  %7864 = vperm.xlu0 %7863, %v6639
  %v7865 = vpop.permute.xlu0 %7864
  %7867 = vset.pattern.permute.xlu0 7
  %7868 = vperm.xlu0 %7867, %v6640
  %v7869 = vpop.permute.xlu0 %7868
  %7871 = vset.pattern.permute.xlu0 7
  %7872 = vperm.xlu0 %7871, %v6641
  %v7873 = vpop.permute.xlu0 %7872
  %7875 = vset.pattern.permute.xlu0 7
  %7876 = vperm.xlu0 %7875, %v6642
  %v7877 = vpop.permute.xlu0 %7876
  %v7879 = vmul.f32 %v7827, %v7865
  %v7880 = vmul.f32 %v7828, %v7865
  %v7881 = vmul.f32 %v7829, %v7865
  %v7882 = vmul.f32 %v7859, %v7865
  %v7883 = vmul.f32 %v7830, %v7869
  %v7884 = vmul.f32 %v7831, %v7869
  %v7885 = vmul.f32 %v7832, %v7869
  %v7886 = vmul.f32 %v7860, %v7869
  %v7887 = vmul.f32 %v7833, %v7873
  %v7888 = vmul.f32 %v7834, %v7873
  %v7889 = vmul.f32 %v7835, %v7873
  %v7890 = vmul.f32 %v7861, %v7873
  %v7891 = vmul.f32 %v7836, %v7877
  %v7892 = vmul.f32 %v7837, %v7877
  %v7893 = vmul.f32 %v7838, %v7877
  %v7894 = vmul.f32 %v7862, %v7877
  %v7895 = vmul.f32 %v7879, %v1700
  %v7896 = vmul.f32 %v7880, %v1704
  %v7897 = vmul.f32 %v7881, %v1708
  %v7898 = vmul.f32 %v7882, %v1712
  %v7899 = vmul.f32 %v7883, %v1700
  %v7900 = vmul.f32 %v7884, %v1704
  %v7901 = vmul.f32 %v7885, %v1708
  %v7902 = vmul.f32 %v7886, %v1712
  %v7903 = vmul.f32 %v7887, %v1700
  %v7904 = vmul.f32 %v7888, %v1704
  %v7905 = vmul.f32 %v7889, %v1708
  %v7906 = vmul.f32 %v7890, %v1712
  %v7907 = vmul.f32 %v7891, %v1700
  %v7908 = vmul.f32 %v7892, %v1704
  %v7909 = vmul.f32 %v7893, %v1708
  %v7910 = vmul.f32 %v7894, %v1712
  %v7911 = vadd.f32 %v7779, %v7895
  %v7912 = vadd.f32 %v7780, %v7896
  %v7913 = vadd.f32 %v7781, %v7897
  %v7914 = vadd.f32 %v7782, %v7898
  %v7915 = vadd.f32 %v7783, %v7899
  %v7916 = vadd.f32 %v7784, %v7900
  %v7917 = vadd.f32 %v7785, %v7901
  %v7918 = vadd.f32 %v7786, %v7902
  %v7919 = vadd.f32 %v7787, %v7903
  %v7920 = vadd.f32 %v7788, %v7904
  %v7921 = vadd.f32 %v7789, %v7905
  %v7922 = vadd.f32 %v7790, %v7906
  %v7923 = vadd.f32 %v7791, %v7907
  %v7924 = vadd.f32 %v7792, %v7908
  %v7925 = vadd.f32 %v7793, %v7909
  %v7926 = vadd.f32 %v7794, %v7910
  %7927 = vrot.lane.b32.xlu0 %v6621, 111
  %v7928 = vpop.permute.xlu0 %7927
  %7929 = vrot.lane.b32.xlu0 %v6622, 111
  %v7930 = vpop.permute.xlu0 %7929
  %7931 = vrot.lane.b32.xlu0 %v6623, 111
  %v7932 = vpop.permute.xlu0 %7931
  %7933 = vrot.lane.b32.xlu0 %v6624, 111
  %v7934 = vpop.permute.xlu0 %7933
  %7935 = vrot.lane.b32.xlu0 %v6625, 111
  %v7936 = vpop.permute.xlu0 %7935
  %7937 = vrot.lane.b32.xlu0 %v6626, 111
  %v7938 = vpop.permute.xlu0 %7937
  %7939 = vrot.lane.b32.xlu0 %v6627, 111
  %v7940 = vpop.permute.xlu0 %7939
  %7941 = vrot.lane.b32.xlu0 %v6628, 111
  %v7942 = vpop.permute.xlu0 %7941
  %7943 = vrot.lane.b32.xlu0 %v6943, 111
  %v7944 = vpop.permute.xlu0 %7943
  %7945 = vrot.lane.b32.xlu0 %v6944, 111
  %v7946 = vpop.permute.xlu0 %7945
  %7947 = vrot.lane.b32.xlu0 %v6945, 111
  %v7948 = vpop.permute.xlu0 %7947
  %7949 = vrot.lane.b32.xlu0 %v6946, 111
  %v7950 = vpop.permute.xlu0 %7949
  %7951 = vrot.lane.b32.xlu0 %v6947, 111
  %v7952 = vpop.permute.xlu0 %7951
  %7953 = vrot.lane.b32.xlu0 %v6948, 111
  %v7954 = vpop.permute.xlu0 %7953
  %7955 = vrot.lane.b32.xlu0 %v6949, 111
  %v7956 = vpop.permute.xlu0 %7955
  %7957 = vrot.lane.b32.xlu0 %v6950, 111
  %v7958 = vpop.permute.xlu0 %7957
  %v7959 = vsel %vm1777, %v7928, %v7930
  %v7960 = vsel %vm1777, %v7930, %v7932
  %v7961 = vsel %vm1777, %v7932, %v7934
  %v7962 = vsel %vm1777, %v7936, %v7938
  %v7963 = vsel %vm1777, %v7938, %v7940
  %v7964 = vsel %vm1777, %v7940, %v7942
  %v7965 = vsel %vm1777, %v7944, %v7946
  %v7966 = vsel %vm1777, %v7946, %v7948
  %v7967 = vsel %vm1777, %v7948, %v7950
  %v7968 = vsel %vm1777, %v7952, %v7954
  %v7969 = vsel %vm1777, %v7954, %v7956
  %v7970 = vsel %vm1777, %v7956, %v7958
  %v7991 = vsel %vm1777, %v7934, %v7928
  %v7992 = vsel %vm1777, %v7942, %v7936
  %v7993 = vsel %vm1777, %v7950, %v7944
  %v7994 = vsel %vm1777, %v7958, %v7952
  %7995 = vset.pattern.permute.xlu0 8
  %7996 = vperm.xlu0 %7995, %v6639
  %v7997 = vpop.permute.xlu0 %7996
  %7999 = vset.pattern.permute.xlu0 8
  %8000 = vperm.xlu0 %7999, %v6640
  %v8001 = vpop.permute.xlu0 %8000
  %8003 = vset.pattern.permute.xlu0 8
  %8004 = vperm.xlu0 %8003, %v6641
  %v8005 = vpop.permute.xlu0 %8004
  %8007 = vset.pattern.permute.xlu0 8
  %8008 = vperm.xlu0 %8007, %v6642
  %v8009 = vpop.permute.xlu0 %8008
  %v8011 = vmul.f32 %v7959, %v7997
  %v8012 = vmul.f32 %v7960, %v7997
  %v8013 = vmul.f32 %v7961, %v7997
  %v8014 = vmul.f32 %v7991, %v7997
  %v8015 = vmul.f32 %v7962, %v8001
  %v8016 = vmul.f32 %v7963, %v8001
  %v8017 = vmul.f32 %v7964, %v8001
  %v8018 = vmul.f32 %v7992, %v8001
  %v8019 = vmul.f32 %v7965, %v8005
  %v8020 = vmul.f32 %v7966, %v8005
  %v8021 = vmul.f32 %v7967, %v8005
  %v8022 = vmul.f32 %v7993, %v8005
  %v8023 = vmul.f32 %v7968, %v8009
  %v8024 = vmul.f32 %v7969, %v8009
  %v8025 = vmul.f32 %v7970, %v8009
  %v8026 = vmul.f32 %v7994, %v8009
  %v8027 = vmul.f32 %v8011, %v1849
  %v8028 = vmul.f32 %v8012, %v1853
  %v8029 = vmul.f32 %v8013, %v1857
  %v8030 = vmul.f32 %v8014, %v1861
  %v8031 = vmul.f32 %v8015, %v1849
  %v8032 = vmul.f32 %v8016, %v1853
  %v8033 = vmul.f32 %v8017, %v1857
  %v8034 = vmul.f32 %v8018, %v1861
  %v8035 = vmul.f32 %v8019, %v1849
  %v8036 = vmul.f32 %v8020, %v1853
  %v8037 = vmul.f32 %v8021, %v1857
  %v8038 = vmul.f32 %v8022, %v1861
  %v8039 = vmul.f32 %v8023, %v1849
  %v8040 = vmul.f32 %v8024, %v1853
  %v8041 = vmul.f32 %v8025, %v1857
  %v8042 = vmul.f32 %v8026, %v1861
  %v8043 = vadd.f32 %v7911, %v8027
  %v8044 = vadd.f32 %v7912, %v8028
  %v8045 = vadd.f32 %v7913, %v8029
  %v8046 = vadd.f32 %v7914, %v8030
  %v8047 = vadd.f32 %v7915, %v8031
  %v8048 = vadd.f32 %v7916, %v8032
  %v8049 = vadd.f32 %v7917, %v8033
  %v8050 = vadd.f32 %v7918, %v8034
  %v8051 = vadd.f32 %v7919, %v8035
  %v8052 = vadd.f32 %v7920, %v8036
  %v8053 = vadd.f32 %v7921, %v8037
  %v8054 = vadd.f32 %v7922, %v8038
  %v8055 = vadd.f32 %v7923, %v8039
  %v8056 = vadd.f32 %v7924, %v8040
  %v8057 = vadd.f32 %v7925, %v8041
  %v8058 = vadd.f32 %v7926, %v8042
  %v8059 = vadd.f32 %v8043, %v8044
  %v8060 = vadd.f32 %v8059, %v8045
  %v8061 = vadd.f32 %v8060, %v8046
  %8062 = vadd.xlane.f32.xlu0 %v8061
  %v8063 = vpop.xlane.xlu0 %8062
  %v8064 = vadd.f32 %v8047, %v8048
  %v8065 = vadd.f32 %v8064, %v8049
  %v8066 = vadd.f32 %v8065, %v8050
  %8067 = vadd.xlane.f32.xlu0 %v8066
  %v8068 = vpop.xlane.xlu0 %8067
  %v8069 = vadd.f32 %v8051, %v8052
  %v8070 = vadd.f32 %v8069, %v8053
  %v8071 = vadd.f32 %v8070, %v8054
  %8072 = vadd.xlane.f32.xlu0 %v8071
  %v8073 = vpop.xlane.xlu0 %8072
  %v8074 = vadd.f32 %v8055, %v8056
  %v8075 = vadd.f32 %v8074, %v8057
  %v8076 = vadd.f32 %v8075, %v8058
  %8077 = vadd.xlane.f32.xlu0 %v8076
  %v8078 = vpop.xlane.xlu0 %8077
  %v8079 = vmul.f32 %v8063, %v522
  %v8080 = vmul.f32 %v8068, %v522
  %v8081 = vmul.f32 %v8073, %v522
  %v8082 = vmul.f32 %v8078, %v522
  %v8083 = vsub.f32 %v8043, %v8079
  %v8084 = vsub.f32 %v8044, %v8079
  %v8085 = vsub.f32 %v8045, %v8079
  %v8086 = vsub.f32 %v8046, %v8079
  %v8087 = vsub.f32 %v8047, %v8080
  %v8088 = vsub.f32 %v8048, %v8080
  %v8089 = vsub.f32 %v8049, %v8080
  %v8090 = vsub.f32 %v8050, %v8080
  %v8091 = vsub.f32 %v8051, %v8081
  %v8092 = vsub.f32 %v8052, %v8081
  %v8093 = vsub.f32 %v8053, %v8081
  %v8094 = vsub.f32 %v8054, %v8081
  %v8095 = vsub.f32 %v8055, %v8082
  %v8096 = vsub.f32 %v8056, %v8082
  %v8097 = vsub.f32 %v8057, %v8082
  %v8098 = vsub.f32 %v8058, %v8082
  %v8099 = vmul.f32 %v8083, %v8083
  %v8100 = vmul.f32 %v8084, %v8084
  %v8101 = vmul.f32 %v8085, %v8085
  %v8102 = vmul.f32 %v8086, %v8086
  %v8103 = vmul.f32 %v8087, %v8087
  %v8104 = vmul.f32 %v8088, %v8088
  %v8105 = vmul.f32 %v8089, %v8089
  %v8106 = vmul.f32 %v8090, %v8090
  %v8107 = vmul.f32 %v8091, %v8091
  %v8108 = vmul.f32 %v8092, %v8092
  %v8109 = vmul.f32 %v8093, %v8093
  %v8110 = vmul.f32 %v8094, %v8094
  %v8111 = vmul.f32 %v8095, %v8095
  %v8112 = vmul.f32 %v8096, %v8096
  %v8113 = vmul.f32 %v8097, %v8097
  %v8114 = vmul.f32 %v8098, %v8098
  %v8115 = vadd.f32 %v8099, %v8100
  %v8116 = vadd.f32 %v8115, %v8101
  %v8117 = vadd.f32 %v8116, %v8102
  %8118 = vadd.xlane.f32.xlu0 %v8117
  %v8119 = vpop.xlane.xlu0 %8118
  %v8120 = vadd.f32 %v8103, %v8104
  %v8121 = vadd.f32 %v8120, %v8105
  %v8122 = vadd.f32 %v8121, %v8106
  %8123 = vadd.xlane.f32.xlu0 %v8122
  %v8124 = vpop.xlane.xlu0 %8123
  %v8125 = vadd.f32 %v8107, %v8108
  %v8126 = vadd.f32 %v8125, %v8109
  %v8127 = vadd.f32 %v8126, %v8110
  %8128 = vadd.xlane.f32.xlu0 %v8127
  %v8129 = vpop.xlane.xlu0 %8128
  %v8130 = vadd.f32 %v8111, %v8112
  %v8131 = vadd.f32 %v8130, %v8113
  %v8132 = vadd.f32 %v8131, %v8114
  %8133 = vadd.xlane.f32.xlu0 %v8132
  %v8134 = vpop.xlane.xlu0 %8133
  %v8135 = vmul.f32 %v8119, %v522
  %v8136 = vmul.f32 %v8124, %v522
  %v8137 = vmul.f32 %v8129, %v522
  %v8138 = vmul.f32 %v8134, %v522
  %v8139 = vadd.f32 %v8135, 1e-05
  %v8140 = vadd.f32 %v8136, 1e-05
  %v8141 = vadd.f32 %v8137, 1e-05
  %v8142 = vadd.f32 %v8138, 1e-05
  %v8143 = vrsqrt.pop %v8139
  %v8144 = vrsqrt.pop %v8140
  %v8145 = vrsqrt.pop %v8141
  %v8146 = vrsqrt.pop %v8142
  %v8147 = vmul.f32 %v6647, %v8143
  %v8148 = vmul.f32 %v6648, %v8144
  %v8149 = vmul.f32 %v6649, %v8145
  %v8150 = vmul.f32 %v6650, %v8146
  %8152 = vset.pattern.permute.xlu0 0
  %8153 = vperm.xlu0 %8152, %v8147
  %v8154 = vpop.permute.xlu0 %8153
  %8157 = vset.pattern.permute.xlu0 0
  %8158 = vperm.xlu0 %8157, %v8148
  %v8159 = vpop.permute.xlu0 %8158
  %8162 = vset.pattern.permute.xlu0 0
  %8163 = vperm.xlu0 %8162, %v8149
  %v8164 = vpop.permute.xlu0 %8163
  %8167 = vset.pattern.permute.xlu0 0
  %8168 = vperm.xlu0 %8167, %v8150
  %v8169 = vpop.permute.xlu0 %8168
  %v8171 = vmul.f32 %v8083, %v8154
  %v8172 = vmul.f32 %v8084, %v8154
  %v8173 = vmul.f32 %v8085, %v8154
  %v8174 = vmul.f32 %v8086, %v8154
  %v8175 = vmul.f32 %v8087, %v8159
  %v8176 = vmul.f32 %v8088, %v8159
  %v8177 = vmul.f32 %v8089, %v8159
  %v8178 = vmul.f32 %v8090, %v8159
  %v8179 = vmul.f32 %v8091, %v8164
  %v8180 = vmul.f32 %v8092, %v8164
  %v8181 = vmul.f32 %v8093, %v8164
  %v8182 = vmul.f32 %v8094, %v8164
  %v8183 = vmul.f32 %v8095, %v8169
  %v8184 = vmul.f32 %v8096, %v8169
  %v8185 = vmul.f32 %v8097, %v8169
  %v8186 = vmul.f32 %v8098, %v8169
  %8188 = vset.pattern.permute.xlu0 1
  %8189 = vperm.xlu0 %8188, %v6647
  %v8190 = vpop.permute.xlu0 %8189
  %8193 = vset.pattern.permute.xlu0 1
  %8194 = vperm.xlu0 %8193, %v6648
  %v8195 = vpop.permute.xlu0 %8194
  %8198 = vset.pattern.permute.xlu0 1
  %8199 = vperm.xlu0 %8198, %v6649
  %v8200 = vpop.permute.xlu0 %8199
  %8203 = vset.pattern.permute.xlu0 1
  %8204 = vperm.xlu0 %8203, %v6650
  %v8205 = vpop.permute.xlu0 %8204
  %v8207 = vadd.f32 %v8171, %v8190
  %v8208 = vadd.f32 %v8172, %v8190
  %v8209 = vadd.f32 %v8173, %v8190
  %v8210 = vadd.f32 %v8174, %v8190
  %v8211 = vadd.f32 %v8175, %v8195
  %v8212 = vadd.f32 %v8176, %v8195
  %v8213 = vadd.f32 %v8177, %v8195
  %v8214 = vadd.f32 %v8178, %v8195
  %v8215 = vadd.f32 %v8179, %v8200
  %v8216 = vadd.f32 %v8180, %v8200
  %v8217 = vadd.f32 %v8181, %v8200
  %v8218 = vadd.f32 %v8182, %v8200
  %v8219 = vadd.f32 %v8183, %v8205
  %v8220 = vadd.f32 %v8184, %v8205
  %v8221 = vadd.f32 %v8185, %v8205
  %v8222 = vadd.f32 %v8186, %v8205
  %v8224 = vsel %vm2058, %v6643, 0
  %v8227 = vsel %vm2058, %v6644, 0
  %8229 = vmatprep.subr.mxu0 %v8208
  %8230 = vmatpush1.msra.mxu0 %v8207
  %8231 = vmatprep.subr.mxu0 %v8212
  %8232 = vmatpush1.msra.mxu0 %v8211
  %8233 = vmatprep.subr.mxu0 %v8216
  %8234 = vmatpush1.msra.mxu0 %v8215
  %8235 = vmatprep.subr.mxu0 %v8220
  %8236 = vmatpush1.msra.mxu0 %v8219
  %8237 = vmatprep.subr.mxu0 0.0
  %8238 = vmatpush1.msra.mxu0 0.0
  %8239 = vmatprep.subr.mxu0 0.0
  %8240 = vmatpush1.msra.mxu0 0.0
  %8241 = vmatprep.subr.mxu0 0.0
  %8242 = vmatpush1.msra.mxu0 0.0
  %8243 = vmatprep.subr.mxu0 0.0
  %8244 = vmatpush1.msra.mxu0 0.0
  %8245 = vmatprep.subr.mxu0 0.0
  %8246 = vmatpush1.msra.mxu0 0.0
  %8247 = vmatprep.subr.mxu0 0.0
  %8248 = vmatpush1.msra.mxu0 0.0
  %8249 = vmatprep.subr.mxu0 0.0
  %8250 = vmatpush1.msra.mxu0 0.0
  %8251 = vmatprep.subr.mxu0 0.0
  %8252 = vmatpush1.msra.mxu0 0.0
  %8253 = vmatprep.subr.mxu0 0.0
  %8254 = vmatpush1.msra.mxu0 0.0
  %8255 = vmatprep.subr.mxu0 0.0
  %8256 = vmatpush1.msra.mxu0 0.0
  %8257 = vmatprep.subr.mxu0 0.0
  %8258 = vmatpush1.msra.mxu0 0.0
  %8259 = vmatprep.subr.mxu0 0.0
  %8260 = vmatpush1.msra.mxu0 0.0
  %8261 = vmatprep.subr.mxu0 0.0
  %8262 = vmatpush1.msra.mxu0 0.0
  %8263 = vmatprep.subr.mxu0 0.0
  %8264 = vmatpush1.msra.mxu0 0.0
  %8265 = vmatprep.subr.mxu0 0.0
  %8266 = vmatpush1.msra.mxu0 0.0
  %8267 = vmatprep.subr.mxu0 0.0
  %8268 = vmatpush1.msra.mxu0 0.0
  %8269 = vmatprep.subr.mxu0 0.0
  %8270 = vmatpush1.msra.mxu0 0.0
  %8271 = vmatprep.subr.mxu0 0.0
  %8272 = vmatpush1.msra.mxu0 0.0
  %8273 = vmatprep.subr.mxu0 0.0
  %8274 = vmatpush1.msra.mxu0 0.0
  %8275 = vmatprep.subr.mxu0 0.0
  %8276 = vmatpush1.msra.mxu0 0.0
  %8277 = vmatprep.subr.mxu0 0.0
  %8278 = vmatpush1.msra.mxu0 0.0
  %8279 = vmatprep.subr.mxu0 0.0
  %8280 = vmatpush1.msra.mxu0 0.0
  %8281 = vmatprep.subr.mxu0 0.0
  %8282 = vmatpush1.msra.mxu0 0.0
  %8283 = vmatprep.subr.mxu0 0.0
  %8284 = vmatpush1.msra.mxu0 0.0
  %8285 = vmatprep.subr.mxu0 0.0
  %8286 = vmatpush1.msra.mxu0 0.0
  %8287 = vmatprep.subr.mxu0 0.0
  %8288 = vmatpush1.msra.mxu0 0.0
  %8289 = vmatprep.subr.mxu0 0.0
  %8290 = vmatpush1.msra.mxu0 0.0
  %8291 = vmatprep.subr.mxu0 0.0
  %8292 = vmatpush1.msra.mxu0 0.0
  %8293 = vmatprep.mubr.f32.mxu0 0.0
  %8294 = vmatmul.mubr.f32.gmra.mrb[0].mxu0 %v8224
  %v8295 = vpop.f32.mrb[0].mxu0
  %v8296 = vadd.f32 0.0, %v8295
  %v8297 = vpop.f32.mrb[0].mxu0
  %v8298 = vadd.f32 0.0, %v8297
  %8299 = vmatprep.mubr.f32.mxu0 0.0
  %8300 = vmatmul.mubr.f32.gmra.mrb[0].mxu0 %v8227
  %v8301 = vpop.f32.mrb[0].mxu0
  %v8302 = vadd.f32 0.0, %v8301
  %v8303 = vpop.f32.mrb[0].mxu0
  %v8304 = vadd.f32 0.0, %v8303
  %8305 = vdwg.mxu0
  %8306 = vmatprep.subr.mxu0 %v8210
  %8307 = vmatpush1.msra.mxu0 %v8209
  %8308 = vmatprep.subr.mxu0 %v8214
  %8309 = vmatpush1.msra.mxu0 %v8213
  %8310 = vmatprep.subr.mxu0 %v8218
  %8311 = vmatpush1.msra.mxu0 %v8217
  %8312 = vmatprep.subr.mxu0 %v8222
  %8313 = vmatpush1.msra.mxu0 %v8221
  %8314 = vmatprep.subr.mxu0 0.0
  %8315 = vmatpush1.msra.mxu0 0.0
  %8316 = vmatprep.subr.mxu0 0.0
  %8317 = vmatpush1.msra.mxu0 0.0
  %8318 = vmatprep.subr.mxu0 0.0
  %8319 = vmatpush1.msra.mxu0 0.0
  %8320 = vmatprep.subr.mxu0 0.0
  %8321 = vmatpush1.msra.mxu0 0.0
  %8322 = vmatprep.subr.mxu0 0.0
  %8323 = vmatpush1.msra.mxu0 0.0
  %8324 = vmatprep.subr.mxu0 0.0
  %8325 = vmatpush1.msra.mxu0 0.0
  %8326 = vmatprep.subr.mxu0 0.0
  %8327 = vmatpush1.msra.mxu0 0.0
  %8328 = vmatprep.subr.mxu0 0.0
  %8329 = vmatpush1.msra.mxu0 0.0
  %8330 = vmatprep.subr.mxu0 0.0
  %8331 = vmatpush1.msra.mxu0 0.0
  %8332 = vmatprep.subr.mxu0 0.0
  %8333 = vmatpush1.msra.mxu0 0.0
  %8334 = vmatprep.subr.mxu0 0.0
  %8335 = vmatpush1.msra.mxu0 0.0
  %8336 = vmatprep.subr.mxu0 0.0
  %8337 = vmatpush1.msra.mxu0 0.0
  %8338 = vmatprep.subr.mxu0 0.0
  %8339 = vmatpush1.msra.mxu0 0.0
  %8340 = vmatprep.subr.mxu0 0.0
  %8341 = vmatpush1.msra.mxu0 0.0
  %8342 = vmatprep.subr.mxu0 0.0
  %8343 = vmatpush1.msra.mxu0 0.0
  %8344 = vmatprep.subr.mxu0 0.0
  %8345 = vmatpush1.msra.mxu0 0.0
  %8346 = vmatprep.subr.mxu0 0.0
  %8347 = vmatpush1.msra.mxu0 0.0
  %8348 = vmatprep.subr.mxu0 0.0
  %8349 = vmatpush1.msra.mxu0 0.0
  %8350 = vmatprep.subr.mxu0 0.0
  %8351 = vmatpush1.msra.mxu0 0.0
  %8352 = vmatprep.subr.mxu0 0.0
  %8353 = vmatpush1.msra.mxu0 0.0
  %8354 = vmatprep.subr.mxu0 0.0
  %8355 = vmatpush1.msra.mxu0 0.0
  %8356 = vmatprep.subr.mxu0 0.0
  %8357 = vmatpush1.msra.mxu0 0.0
  %8358 = vmatprep.subr.mxu0 0.0
  %8359 = vmatpush1.msra.mxu0 0.0
  %8360 = vmatprep.subr.mxu0 0.0
  %8361 = vmatpush1.msra.mxu0 0.0
  %8362 = vmatprep.subr.mxu0 0.0
  %8363 = vmatpush1.msra.mxu0 0.0
  %8364 = vmatprep.subr.mxu0 0.0
  %8365 = vmatpush1.msra.mxu0 0.0
  %8366 = vmatprep.subr.mxu0 0.0
  %8367 = vmatpush1.msra.mxu0 0.0
  %8368 = vmatprep.subr.mxu0 0.0
  %8369 = vmatpush1.msra.mxu0 0.0
  %8370 = vmatprep.mubr.f32.mxu0 0.0
  %8371 = vmatmul.mubr.f32.gmra.mrb[0].mxu0 %v8224
  %v8372 = vpop.f32.mrb[0].mxu0
  %v8373 = vadd.f32 0.0, %v8372
  %v8374 = vpop.f32.mrb[0].mxu0
  %v8375 = vadd.f32 0.0, %v8374
  %8376 = vmatprep.mubr.f32.mxu0 0.0
  %8377 = vmatmul.mubr.f32.gmra.mrb[0].mxu0 %v8227
  %v8378 = vpop.f32.mrb[0].mxu0
  %v8379 = vadd.f32 0.0, %v8378
  %v8380 = vpop.f32.mrb[0].mxu0
  %v8381 = vadd.f32 0.0, %v8380
  %8382 = vdwg.mxu0
  %v8383 = vadd.f32 %v8296, %v8298
  %v8384 = vadd.f32 %v8383, %v8373
  %v8385 = vadd.f32 %v8384, %v8375
  %8386 = vadd.xlane.f32.xlu0 %v8385
  %v8387 = vpop.xlane.xlu0 %8386
  %v8388 = vadd.f32 %v8302, %v8304
  %v8389 = vadd.f32 %v8388, %v8379
  %v8390 = vadd.f32 %v8389, %v8381
  %8391 = vadd.xlane.f32.xlu0 %v8390
  %v8392 = vpop.xlane.xlu0 %8391
  %v8393 = vmul.f32 %v8387, %v522
  %v8394 = vmul.f32 %v8392, %v522
  %v8395 = vsub.f32 %v8296, %v8393
  %v8396 = vsub.f32 %v8298, %v8393
  %v8397 = vsub.f32 %v8373, %v8393
  %v8398 = vsub.f32 %v8375, %v8393
  %v8399 = vsub.f32 %v8302, %v8394
  %v8400 = vsub.f32 %v8304, %v8394
  %v8401 = vsub.f32 %v8379, %v8394
  %v8402 = vsub.f32 %v8381, %v8394
  %v8403 = vmul.f32 %v8395, %v8395
  %v8404 = vmul.f32 %v8396, %v8396
  %v8405 = vmul.f32 %v8397, %v8397
  %v8406 = vmul.f32 %v8398, %v8398
  %v8407 = vmul.f32 %v8399, %v8399
  %v8408 = vmul.f32 %v8400, %v8400
  %v8409 = vmul.f32 %v8401, %v8401
  %v8410 = vmul.f32 %v8402, %v8402
  %v8411 = vadd.f32 %v8403, %v8404
  %v8412 = vadd.f32 %v8411, %v8405
  %v8413 = vadd.f32 %v8412, %v8406
  %8414 = vadd.xlane.f32.xlu0 %v8413
  %v8415 = vpop.xlane.xlu0 %8414
  %v8416 = vadd.f32 %v8407, %v8408
  %v8417 = vadd.f32 %v8416, %v8409
  %v8418 = vadd.f32 %v8417, %v8410
  %8419 = vadd.xlane.f32.xlu0 %v8418
  %v8420 = vpop.xlane.xlu0 %8419
  %v8421 = vmul.f32 %v8415, %v522
  %v8422 = vmul.f32 %v8420, %v522
  %v8423 = vadd.f32 %v8421, 1e-05
  %v8424 = vadd.f32 %v8422, 1e-05
  %v8425 = vrsqrt.pop %v8423
  %v8426 = vrsqrt.pop %v8424
  %v8427 = vmul.f32 %v6651, %v8425
  %v8428 = vmul.f32 %v6652, %v8426
  %8430 = vset.pattern.permute.xlu0 0
  %8431 = vperm.xlu0 %8430, %v8427
  %v8432 = vpop.permute.xlu0 %8431
  %8435 = vset.pattern.permute.xlu0 0
  %8436 = vperm.xlu0 %8435, %v8428
  %v8437 = vpop.permute.xlu0 %8436
  %v8439 = vmul.f32 %v8395, %v8432
  %v8440 = vmul.f32 %v8396, %v8432
  %v8441 = vmul.f32 %v8397, %v8432
  %v8442 = vmul.f32 %v8398, %v8432
  %v8443 = vmul.f32 %v8399, %v8437
  %v8444 = vmul.f32 %v8400, %v8437
  %v8445 = vmul.f32 %v8401, %v8437
  %v8446 = vmul.f32 %v8402, %v8437
  %8448 = vset.pattern.permute.xlu0 1
  %8449 = vperm.xlu0 %8448, %v6651
  %v8450 = vpop.permute.xlu0 %8449
  %8453 = vset.pattern.permute.xlu0 1
  %8454 = vperm.xlu0 %8453, %v6652
  %v8455 = vpop.permute.xlu0 %8454
  %v8457 = vadd.f32 %v8439, %v8450
  %v8458 = vadd.f32 %v8440, %v8450
  %v8459 = vadd.f32 %v8441, %v8450
  %v8460 = vadd.f32 %v8442, %v8450
  %v8461 = vadd.f32 %v8443, %v8455
  %v8462 = vadd.f32 %v8444, %v8455
  %v8463 = vadd.f32 %v8445, %v8455
  %v8464 = vadd.f32 %v8446, %v8455
  %v8465 = vxor.u32 %v8457, 2147483648
  %v8466 = vxor.u32 %v8458, 2147483648
  %v8467 = vxor.u32 %v8459, 2147483648
  %v8468 = vxor.u32 %v8460, 2147483648
  %v8469 = vxor.u32 %v8461, 2147483648
  %v8470 = vxor.u32 %v8462, 2147483648
  %v8471 = vxor.u32 %v8463, 2147483648
  %v8472 = vxor.u32 %v8464, 2147483648
  %v8473 = vmul.f32 %v8465, 1.442695
  %v8474 = vpow.pop %v8473
  %v8475 = vmul.f32 %v8466, 1.442695
  %v8476 = vpow.pop %v8475
  %v8477 = vmul.f32 %v8467, 1.442695
  %v8478 = vpow.pop %v8477
  %v8479 = vmul.f32 %v8468, 1.442695
  %v8480 = vpow.pop %v8479
  %v8481 = vmul.f32 %v8469, 1.442695
  %v8482 = vpow.pop %v8481
  %v8483 = vmul.f32 %v8470, 1.442695
  %v8484 = vpow.pop %v8483
  %v8485 = vmul.f32 %v8471, 1.442695
  %v8486 = vpow.pop %v8485
  %v8487 = vmul.f32 %v8472, 1.442695
  %v8488 = vpow.pop %v8487
  %v8489 = vadd.f32 %v8474, 1.0
  %v8490 = vadd.f32 %v8476, 1.0
  %v8491 = vadd.f32 %v8478, 1.0
  %v8492 = vadd.f32 %v8480, 1.0
  %v8493 = vadd.f32 %v8482, 1.0
  %v8494 = vadd.f32 %v8484, 1.0
  %v8495 = vadd.f32 %v8486, 1.0
  %v8496 = vadd.f32 %v8488, 1.0
  %v8497 = vrcp.pop %v8489
  %v8498 = vmul.f32 1.0, %v8497
  %v8499 = vrcp.pop %v8490
  %v8500 = vmul.f32 1.0, %v8499
  %v8501 = vrcp.pop %v8491
  %v8502 = vmul.f32 1.0, %v8501
  %v8503 = vrcp.pop %v8492
  %v8504 = vmul.f32 1.0, %v8503
  %v8505 = vrcp.pop %v8493
  %v8506 = vmul.f32 1.0, %v8505
  %v8507 = vrcp.pop %v8494
  %v8508 = vmul.f32 1.0, %v8507
  %v8509 = vrcp.pop %v8495
  %v8510 = vmul.f32 1.0, %v8509
  %v8511 = vrcp.pop %v8496
  %v8512 = vmul.f32 1.0, %v8511
  %v8513 = vmul.f32 %v8457, %v8498
  %v8514 = vmul.f32 %v8458, %v8500
  %v8515 = vmul.f32 %v8459, %v8502
  %v8516 = vmul.f32 %v8460, %v8504
  %v8517 = vmul.f32 %v8461, %v8506
  %v8518 = vmul.f32 %v8462, %v8508
  %v8519 = vmul.f32 %v8463, %v8510
  %v8520 = vmul.f32 %v8464, %v8512
  %v8521 = vld [vmem:[%s53] sm:$0xff]
  %v8522 = vld [vmem:[%s53 + $0x8] sm:$0xff]
  %v8523 = vld [vmem:[%s53 + $0x10] sm:$0xff]
  %v8524 = vld [vmem:[%s53 + $0x18] sm:$0xff]
  %v8525 = vld [vmem:[%s5] sm:$0xff]
  %v8526 = vld [vmem:[%s5 + $0x8] sm:$0xff]
  %v8527 = vld [vmem:[%s5 + $0x10] sm:$0xff]
  %v8528 = vld [vmem:[%s5 + $0x18] sm:$0xff]
  %v8529 = vld [vmem:[%s55] sm:$0xff]
  %v8530 = vld [vmem:[%s55 + $0x8] sm:$0xff]
  %v8531 = vld [vmem:[%s55 + $0x10] sm:$0xff]
  %v8532 = vld [vmem:[%s55 + $0x18] sm:$0xff]
  %8534 = vset.pattern.permute.xlu0 0
  %8535 = vperm.xlu0 %8534, %v8529
  %v8536 = vpop.permute.xlu0 %8535
  %8539 = vset.pattern.permute.xlu0 0
  %8540 = vperm.xlu0 %8539, %v8530
  %v8541 = vpop.permute.xlu0 %8540
  %8544 = vset.pattern.permute.xlu0 0
  %8545 = vperm.xlu0 %8544, %v8531
  %v8546 = vpop.permute.xlu0 %8545
  %8549 = vset.pattern.permute.xlu0 0
  %8550 = vperm.xlu0 %8549, %v8532
  %v8551 = vpop.permute.xlu0 %8550
  %v8554 = vsel %vm2058, %v8521, 0
  %v8557 = vsel %vm2058, %v8522, 0
  %v8560 = vsel %vm2058, %v8523, 0
  %v8563 = vsel %vm2058, %v8524, 0
  %8565 = vmatprep.subr.mxu0 0.0
  %8566 = vmatpush1.msra.mxu0 %v8525
  %8567 = vmatprep.subr.mxu0 0.0
  %8568 = vmatpush1.msra.mxu0 %v8526
  %8569 = vmatprep.subr.mxu0 0.0
  %8570 = vmatpush1.msra.mxu0 %v8527
  %8571 = vmatprep.subr.mxu0 0.0
  %8572 = vmatpush1.msra.mxu0 %v8528
  %8573 = vmatprep.subr.mxu0 0.0
  %8574 = vmatpush1.msra.mxu0 0.0
  %8575 = vmatprep.subr.mxu0 0.0
  %8576 = vmatpush1.msra.mxu0 0.0
  %8577 = vmatprep.subr.mxu0 0.0
  %8578 = vmatpush1.msra.mxu0 0.0
  %8579 = vmatprep.subr.mxu0 0.0
  %8580 = vmatpush1.msra.mxu0 0.0
  %8581 = vmatprep.subr.mxu0 0.0
  %8582 = vmatpush1.msra.mxu0 0.0
  %8583 = vmatprep.subr.mxu0 0.0
  %8584 = vmatpush1.msra.mxu0 0.0
  %8585 = vmatprep.subr.mxu0 0.0
  %8586 = vmatpush1.msra.mxu0 0.0
  %8587 = vmatprep.subr.mxu0 0.0
  %8588 = vmatpush1.msra.mxu0 0.0
  %8589 = vmatprep.subr.mxu0 0.0
  %8590 = vmatpush1.msra.mxu0 0.0
  %8591 = vmatprep.subr.mxu0 0.0
  %8592 = vmatpush1.msra.mxu0 0.0
  %8593 = vmatprep.subr.mxu0 0.0
  %8594 = vmatpush1.msra.mxu0 0.0
  %8595 = vmatprep.subr.mxu0 0.0
  %8596 = vmatpush1.msra.mxu0 0.0
  %8597 = vmatprep.subr.mxu0 0.0
  %8598 = vmatpush1.msra.mxu0 0.0
  %8599 = vmatprep.subr.mxu0 0.0
  %8600 = vmatpush1.msra.mxu0 0.0
  %8601 = vmatprep.subr.mxu0 0.0
  %8602 = vmatpush1.msra.mxu0 0.0
  %8603 = vmatprep.subr.mxu0 0.0
  %8604 = vmatpush1.msra.mxu0 0.0
  %8605 = vmatprep.subr.mxu0 0.0
  %8606 = vmatpush1.msra.mxu0 0.0
  %8607 = vmatprep.subr.mxu0 0.0
  %8608 = vmatpush1.msra.mxu0 0.0
  %8609 = vmatprep.subr.mxu0 0.0
  %8610 = vmatpush1.msra.mxu0 0.0
  %8611 = vmatprep.subr.mxu0 0.0
  %8612 = vmatpush1.msra.mxu0 0.0
  %8613 = vmatprep.subr.mxu0 0.0
  %8614 = vmatpush1.msra.mxu0 0.0
  %8615 = vmatprep.subr.mxu0 0.0
  %8616 = vmatpush1.msra.mxu0 0.0
  %8617 = vmatprep.subr.mxu0 0.0
  %8618 = vmatpush1.msra.mxu0 0.0
  %8619 = vmatprep.subr.mxu0 0.0
  %8620 = vmatpush1.msra.mxu0 0.0
  %8621 = vmatprep.subr.mxu0 0.0
  %8622 = vmatpush1.msra.mxu0 0.0
  %8623 = vmatprep.subr.mxu0 0.0
  %8624 = vmatpush1.msra.mxu0 0.0
  %8625 = vmatprep.subr.mxu0 0.0
  %8626 = vmatpush1.msra.mxu0 0.0
  %8627 = vmatprep.subr.mxu0 0.0
  %8628 = vmatpush1.msra.mxu0 0.0
  %8629 = vmatprep.mubr.f32.mxu0 0.0
  %8630 = vmatmul.mubr.f32.gmra.mrb[0].mxu0 %v8554
  %v8631 = vpop.f32.mrb[0].mxu0
  %v8632 = vadd.f32 %v8536, %v8631
  %v8633 = vpop.f32.mrb[0].mxu0
  %8634 = vmatprep.mubr.f32.mxu0 0.0
  %8635 = vmatmul.mubr.f32.gmra.mrb[0].mxu0 %v8557
  %v8636 = vpop.f32.mrb[0].mxu0
  %v8637 = vadd.f32 %v8541, %v8636
  %v8638 = vpop.f32.mrb[0].mxu0
  %8639 = vmatprep.mubr.f32.mxu0 0.0
  %8640 = vmatmul.mubr.f32.gmra.mrb[0].mxu0 %v8560
  %v8641 = vpop.f32.mrb[0].mxu0
  %v8642 = vadd.f32 %v8546, %v8641
  %v8643 = vpop.f32.mrb[0].mxu0
  %8644 = vmatprep.mubr.f32.mxu0 0.0
  %8645 = vmatmul.mubr.f32.gmra.mrb[0].mxu0 %v8563
  %v8646 = vpop.f32.mrb[0].mxu0
  %v8647 = vadd.f32 %v8551, %v8646
  %v8648 = vpop.f32.mrb[0].mxu0
  %8649 = vdwg.mxu0
  %v8650 = vxor.u32 %v8632, 2147483648
  %v8651 = vxor.u32 %v8637, 2147483648
  %v8652 = vxor.u32 %v8642, 2147483648
  %v8653 = vxor.u32 %v8647, 2147483648
  %v8654 = vmul.f32 %v8650, 1.442695
  %v8655 = vpow.pop %v8654
  %v8656 = vmul.f32 %v8651, 1.442695
  %v8657 = vpow.pop %v8656
  %v8658 = vmul.f32 %v8652, 1.442695
  %v8659 = vpow.pop %v8658
  %v8660 = vmul.f32 %v8653, 1.442695
  %v8661 = vpow.pop %v8660
  %v8662 = vadd.f32 %v8655, 1.0
  %v8663 = vadd.f32 %v8657, 1.0
  %v8664 = vadd.f32 %v8659, 1.0
  %v8665 = vadd.f32 %v8661, 1.0
  %v8666 = vrcp.pop %v8662
  %v8667 = vmul.f32 1.0, %v8666
  %v8668 = vrcp.pop %v8663
  %v8669 = vmul.f32 1.0, %v8668
  %v8670 = vrcp.pop %v8664
  %v8671 = vmul.f32 1.0, %v8670
  %v8672 = vrcp.pop %v8665
  %v8673 = vmul.f32 1.0, %v8672
  %v8674 = vmul.f32 %v8632, %v8667
  %v8675 = vmul.f32 %v8637, %v8669
  %v8676 = vmul.f32 %v8642, %v8671
  %v8677 = vmul.f32 %v8647, %v8673
  %v8678 = vld [vmem:[%s57] sm:$0xff]
  %v8679 = vld [vmem:[%s57 + $0x8] sm:$0xff]
  %v8680 = vld [vmem:[%s59] sm:$0xff]
  %v8681 = vld [vmem:[%s59 + $0x8] sm:$0xff]
  %8683 = vset.pattern.permute.xlu0 0
  %8684 = vperm.xlu0 %8683, %v8680
  %v8685 = vpop.permute.xlu0 %8684
  %8688 = vset.pattern.permute.xlu0 0
  %8689 = vperm.xlu0 %8688, %v8681
  %v8690 = vpop.permute.xlu0 %8689
  %v8693 = vsel %vm2058, %v8678, 0
  %v8696 = vsel %vm2058, %v8679, 0
  %8698 = vmatprep.subr.mxu0 0.0
  %8699 = vmatpush1.msra.mxu0 %v8674
  %8700 = vmatprep.subr.mxu0 0.0
  %8701 = vmatpush1.msra.mxu0 %v8675
  %8702 = vmatprep.subr.mxu0 0.0
  %8703 = vmatpush1.msra.mxu0 %v8676
  %8704 = vmatprep.subr.mxu0 0.0
  %8705 = vmatpush1.msra.mxu0 %v8677
  %8706 = vmatprep.subr.mxu0 0.0
  %8707 = vmatpush1.msra.mxu0 0.0
  %8708 = vmatprep.subr.mxu0 0.0
  %8709 = vmatpush1.msra.mxu0 0.0
  %8710 = vmatprep.subr.mxu0 0.0
  %8711 = vmatpush1.msra.mxu0 0.0
  %8712 = vmatprep.subr.mxu0 0.0
  %8713 = vmatpush1.msra.mxu0 0.0
  %8714 = vmatprep.subr.mxu0 0.0
  %8715 = vmatpush1.msra.mxu0 0.0
  %8716 = vmatprep.subr.mxu0 0.0
  %8717 = vmatpush1.msra.mxu0 0.0
  %8718 = vmatprep.subr.mxu0 0.0
  %8719 = vmatpush1.msra.mxu0 0.0
  %8720 = vmatprep.subr.mxu0 0.0
  %8721 = vmatpush1.msra.mxu0 0.0
  %8722 = vmatprep.subr.mxu0 0.0
  %8723 = vmatpush1.msra.mxu0 0.0
  %8724 = vmatprep.subr.mxu0 0.0
  %8725 = vmatpush1.msra.mxu0 0.0
  %8726 = vmatprep.subr.mxu0 0.0
  %8727 = vmatpush1.msra.mxu0 0.0
  %8728 = vmatprep.subr.mxu0 0.0
  %8729 = vmatpush1.msra.mxu0 0.0
  %8730 = vmatprep.subr.mxu0 0.0
  %8731 = vmatpush1.msra.mxu0 0.0
  %8732 = vmatprep.subr.mxu0 0.0
  %8733 = vmatpush1.msra.mxu0 0.0
  %8734 = vmatprep.subr.mxu0 0.0
  %8735 = vmatpush1.msra.mxu0 0.0
  %8736 = vmatprep.subr.mxu0 0.0
  %8737 = vmatpush1.msra.mxu0 0.0
  %8738 = vmatprep.subr.mxu0 0.0
  %8739 = vmatpush1.msra.mxu0 0.0
  %8740 = vmatprep.subr.mxu0 0.0
  %8741 = vmatpush1.msra.mxu0 0.0
  %8742 = vmatprep.subr.mxu0 0.0
  %8743 = vmatpush1.msra.mxu0 0.0
  %8744 = vmatprep.subr.mxu0 0.0
  %8745 = vmatpush1.msra.mxu0 0.0
  %8746 = vmatprep.subr.mxu0 0.0
  %8747 = vmatpush1.msra.mxu0 0.0
  %8748 = vmatprep.subr.mxu0 0.0
  %8749 = vmatpush1.msra.mxu0 0.0
  %8750 = vmatprep.subr.mxu0 0.0
  %8751 = vmatpush1.msra.mxu0 0.0
  %8752 = vmatprep.subr.mxu0 0.0
  %8753 = vmatpush1.msra.mxu0 0.0
  %8754 = vmatprep.subr.mxu0 0.0
  %8755 = vmatpush1.msra.mxu0 0.0
  %8756 = vmatprep.subr.mxu0 0.0
  %8757 = vmatpush1.msra.mxu0 0.0
  %8758 = vmatprep.subr.mxu0 0.0
  %8759 = vmatpush1.msra.mxu0 0.0
  %8760 = vmatprep.subr.mxu0 0.0
  %8761 = vmatpush1.msra.mxu0 0.0
  %8762 = vmatprep.mubr.f32.mxu0 0.0
  %8763 = vmatmul.mubr.f32.gmra.mrb[0].mxu0 %v8693
  %v8764 = vpop.f32.mrb[0].mxu0
  %v8765 = vadd.f32 %v8685, %v8764
  %v8766 = vpop.f32.mrb[0].mxu0
  %8767 = vmatprep.mubr.f32.mxu0 0.0
  %8768 = vmatmul.mubr.f32.gmra.mrb[0].mxu0 %v8696
  %v8769 = vpop.f32.mrb[0].mxu0
  %v8770 = vadd.f32 %v8690, %v8769
  %v8771 = vpop.f32.mrb[0].mxu0
  %8772 = vdwg.mxu0
  %v8773 = vld [vmem:[%s9] sm:$0xff]
  %v8775 = vcombine.high %v8773, %v8773
  %v8777 = vunpack.c.l.s4 1983009808
  %v8778 = vunpack.c.0.s8 %v8777
  %v8779 = vlaneseq
  %v8780 = vshrl.u32 %v8779, 7
  %v8781 = vsub.s32 %v8778, %v8780
  %v8782 = vrot.slane %v8773, %v8781
  %v8784 = vunpack.c.l.s4 1983009808
  %v8785 = vunpack.c.0.s8 %v8784
  %v8786 = vlaneseq
  %v8787 = vshrl.u32 %v8786, 7
  %v8788 = vsub.s32 %v8785, %v8787
  %v8789 = vrot.slane %v8775, %v8788
  %v8790 = vcombine.high %v8782, %v8782
  %v8791 = vcombine.high %v8789, %v8789
  %vm8792 = vcmask 15360
  %v8794 = vsel %vm8792, %v8765, 0
  %v8797 = vsel %vm8792, %v8770, 0
  %vm8799 = vcmask 1041408
  %v8800 = vsel %vm8799, %v8782, 0
  %v8802 = vsel %vm8799, %v8790, 0
  %v8804 = vsel %vm8799, %v8789, 0
  %v8806 = vsel %vm8799, %v8791, 0
  %8808 = vmatprep.subr.mxu0 %v8802
  %8809 = vmatpush1.msra.mxu0 %v8800
  %8810 = vmatprep.subr.mxu0 0.0
  %8811 = vmatpush1.msra.mxu0 0.0
  %8812 = vmatprep.subr.mxu0 0.0
  %8813 = vmatpush1.msra.mxu0 0.0
  %8814 = vmatprep.subr.mxu0 0.0
  %8815 = vmatpush1.msra.mxu0 0.0
  %8816 = vmatprep.subr.mxu0 0.0
  %8817 = vmatpush1.msra.mxu0 0.0
  %8818 = vmatprep.subr.mxu0 0.0
  %8819 = vmatpush1.msra.mxu0 0.0
  %8820 = vmatprep.subr.mxu0 0.0
  %8821 = vmatpush1.msra.mxu0 0.0
  %8822 = vmatprep.subr.mxu0 0.0
  %8823 = vmatpush1.msra.mxu0 0.0
  %8824 = vmatprep.subr.mxu0 0.0
  %8825 = vmatpush1.msra.mxu0 0.0
  %8826 = vmatprep.subr.mxu0 0.0
  %8827 = vmatpush1.msra.mxu0 0.0
  %8828 = vmatprep.subr.mxu0 0.0
  %8829 = vmatpush1.msra.mxu0 0.0
  %8830 = vmatprep.subr.mxu0 0.0
  %8831 = vmatpush1.msra.mxu0 0.0
  %8832 = vmatprep.subr.mxu0 0.0
  %8833 = vmatpush1.msra.mxu0 0.0
  %8834 = vmatprep.subr.mxu0 0.0
  %8835 = vmatpush1.msra.mxu0 0.0
  %8836 = vmatprep.subr.mxu0 0.0
  %8837 = vmatpush1.msra.mxu0 0.0
  %8838 = vmatprep.subr.mxu0 0.0
  %8839 = vmatpush1.msra.mxu0 0.0
  %8840 = vmatprep.subr.mxu0 0.0
  %8841 = vmatpush1.msra.mxu0 0.0
  %8842 = vmatprep.subr.mxu0 0.0
  %8843 = vmatpush1.msra.mxu0 0.0
  %8844 = vmatprep.subr.mxu0 0.0
  %8845 = vmatpush1.msra.mxu0 0.0
  %8846 = vmatprep.subr.mxu0 0.0
  %8847 = vmatpush1.msra.mxu0 0.0
  %8848 = vmatprep.subr.mxu0 0.0
  %8849 = vmatpush1.msra.mxu0 0.0
  %8850 = vmatprep.subr.mxu0 0.0
  %8851 = vmatpush1.msra.mxu0 0.0
  %8852 = vmatprep.subr.mxu0 0.0
  %8853 = vmatpush1.msra.mxu0 0.0
  %8854 = vmatprep.subr.mxu0 0.0
  %8855 = vmatpush1.msra.mxu0 0.0
  %8856 = vmatprep.subr.mxu0 0.0
  %8857 = vmatpush1.msra.mxu0 0.0
  %8858 = vmatprep.subr.mxu0 0.0
  %8859 = vmatpush1.msra.mxu0 0.0
  %8860 = vmatprep.subr.mxu0 0.0
  %8861 = vmatpush1.msra.mxu0 0.0
  %8862 = vmatprep.subr.mxu0 0.0
  %8863 = vmatpush1.msra.mxu0 0.0
  %8864 = vmatprep.subr.mxu0 0.0
  %8865 = vmatpush1.msra.mxu0 0.0
  %8866 = vmatprep.subr.mxu0 0.0
  %8867 = vmatpush1.msra.mxu0 0.0
  %8868 = vmatprep.subr.mxu0 0.0
  %8869 = vmatpush1.msra.mxu0 0.0
  %8870 = vmatprep.subr.mxu0 0.0
  %8871 = vmatpush1.msra.mxu0 0.0
  %8872 = vmatprep.mubr.f32.mxu0 0.0
  %8873 = vmatmul.mubr.f32.gmra.mrb[0].mxu0 %v8794
  %v8874 = vpop.f32.mrb[0].mxu0
  %v8875 = vadd.f32 0.0, %v8874
  %v8876 = vpop.f32.mrb[0].mxu0
  %v8877 = vadd.f32 0.0, %v8876
  %8878 = vmatprep.mubr.f32.mxu0 0.0
  %8879 = vmatmul.mubr.f32.gmra.mrb[0].mxu0 %v8797
  %v8880 = vpop.f32.mrb[0].mxu0
  %v8881 = vadd.f32 0.0, %v8880
  %v8882 = vpop.f32.mrb[0].mxu0
  %v8883 = vadd.f32 0.0, %v8882
  %8884 = vdwg.mxu0
  %8885 = vmatprep.subr.mxu0 %v8806
  %8886 = vmatpush1.msra.mxu0 %v8804
  %8887 = vmatprep.subr.mxu0 0.0
  %8888 = vmatpush1.msra.mxu0 0.0
  %8889 = vmatprep.subr.mxu0 0.0
  %8890 = vmatpush1.msra.mxu0 0.0
  %8891 = vmatprep.subr.mxu0 0.0
  %8892 = vmatpush1.msra.mxu0 0.0
  %8893 = vmatprep.subr.mxu0 0.0
  %8894 = vmatpush1.msra.mxu0 0.0
  %8895 = vmatprep.subr.mxu0 0.0
  %8896 = vmatpush1.msra.mxu0 0.0
  %8897 = vmatprep.subr.mxu0 0.0
  %8898 = vmatpush1.msra.mxu0 0.0
  %8899 = vmatprep.subr.mxu0 0.0
  %8900 = vmatpush1.msra.mxu0 0.0
  %8901 = vmatprep.subr.mxu0 0.0
  %8902 = vmatpush1.msra.mxu0 0.0
  %8903 = vmatprep.subr.mxu0 0.0
  %8904 = vmatpush1.msra.mxu0 0.0
  %8905 = vmatprep.subr.mxu0 0.0
  %8906 = vmatpush1.msra.mxu0 0.0
  %8907 = vmatprep.subr.mxu0 0.0
  %8908 = vmatpush1.msra.mxu0 0.0
  %8909 = vmatprep.subr.mxu0 0.0
  %8910 = vmatpush1.msra.mxu0 0.0
  %8911 = vmatprep.subr.mxu0 0.0
  %8912 = vmatpush1.msra.mxu0 0.0
  %8913 = vmatprep.subr.mxu0 0.0
  %8914 = vmatpush1.msra.mxu0 0.0
  %8915 = vmatprep.subr.mxu0 0.0
  %8916 = vmatpush1.msra.mxu0 0.0
  %8917 = vmatprep.subr.mxu0 0.0
  %8918 = vmatpush1.msra.mxu0 0.0
  %8919 = vmatprep.subr.mxu0 0.0
  %8920 = vmatpush1.msra.mxu0 0.0
  %8921 = vmatprep.subr.mxu0 0.0
  %8922 = vmatpush1.msra.mxu0 0.0
  %8923 = vmatprep.subr.mxu0 0.0
  %8924 = vmatpush1.msra.mxu0 0.0
  %8925 = vmatprep.subr.mxu0 0.0
  %8926 = vmatpush1.msra.mxu0 0.0
  %8927 = vmatprep.subr.mxu0 0.0
  %8928 = vmatpush1.msra.mxu0 0.0
  %8929 = vmatprep.subr.mxu0 0.0
  %8930 = vmatpush1.msra.mxu0 0.0
  %8931 = vmatprep.subr.mxu0 0.0
  %8932 = vmatpush1.msra.mxu0 0.0
  %8933 = vmatprep.subr.mxu0 0.0
  %8934 = vmatpush1.msra.mxu0 0.0
  %8935 = vmatprep.subr.mxu0 0.0
  %8936 = vmatpush1.msra.mxu0 0.0
  %8937 = vmatprep.subr.mxu0 0.0
  %8938 = vmatpush1.msra.mxu0 0.0
  %8939 = vmatprep.subr.mxu0 0.0
  %8940 = vmatpush1.msra.mxu0 0.0
  %8941 = vmatprep.subr.mxu0 0.0
  %8942 = vmatpush1.msra.mxu0 0.0
  %8943 = vmatprep.subr.mxu0 0.0
  %8944 = vmatpush1.msra.mxu0 0.0
  %8945 = vmatprep.subr.mxu0 0.0
  %8946 = vmatpush1.msra.mxu0 0.0
  %8947 = vmatprep.subr.mxu0 0.0
  %8948 = vmatpush1.msra.mxu0 0.0
  %8949 = vmatprep.mubr.f32.mxu0 0.0
  %8950 = vmatmul.mubr.f32.gmra.mrb[0].mxu0 %v8794
  %v8951 = vpop.f32.mrb[0].mxu0
  %v8952 = vadd.f32 0.0, %v8951
  %v8953 = vpop.f32.mrb[0].mxu0
  %v8954 = vadd.f32 0.0, %v8953
  %8955 = vmatprep.mubr.f32.mxu0 0.0
  %8956 = vmatmul.mubr.f32.gmra.mrb[0].mxu0 %v8797
  %v8957 = vpop.f32.mrb[0].mxu0
  %v8958 = vadd.f32 0.0, %v8957
  %v8959 = vpop.f32.mrb[0].mxu0
  %v8960 = vadd.f32 0.0, %v8959
  %8961 = vdwg.mxu0
  %v8962 = vadd.f32 %v8513, %v8875
  %v8963 = vadd.f32 %v8514, %v8877
  %v8964 = vadd.f32 %v8515, %v8952
  %v8965 = vadd.f32 %v8516, %v8954
  %v8966 = vadd.f32 %v8517, %v8881
  %v8967 = vadd.f32 %v8518, %v8883
  %v8968 = vadd.f32 %v8519, %v8958
  %v8969 = vadd.f32 %v8520, %v8960
  %v8970 = vxor.u32 %v8962, 2147483648
  %v8971 = vxor.u32 %v8963, 2147483648
  %v8972 = vxor.u32 %v8964, 2147483648
  %v8973 = vxor.u32 %v8965, 2147483648
  %v8974 = vxor.u32 %v8966, 2147483648
  %v8975 = vxor.u32 %v8967, 2147483648
  %v8976 = vxor.u32 %v8968, 2147483648
  %v8977 = vxor.u32 %v8969, 2147483648
  %v8978 = vmul.f32 %v8970, 1.442695
  %v8979 = vpow.pop %v8978
  %v8980 = vmul.f32 %v8971, 1.442695
  %v8981 = vpow.pop %v8980
  %v8982 = vmul.f32 %v8972, 1.442695
  %v8983 = vpow.pop %v8982
  %v8984 = vmul.f32 %v8973, 1.442695
  %v8985 = vpow.pop %v8984
  %v8986 = vmul.f32 %v8974, 1.442695
  %v8987 = vpow.pop %v8986
  %v8988 = vmul.f32 %v8975, 1.442695
  %v8989 = vpow.pop %v8988
  %v8990 = vmul.f32 %v8976, 1.442695
  %v8991 = vpow.pop %v8990
  %v8992 = vmul.f32 %v8977, 1.442695
  %v8993 = vpow.pop %v8992
  %v8994 = vadd.f32 %v8979, 1.0
  %v8995 = vadd.f32 %v8981, 1.0
  %v8996 = vadd.f32 %v8983, 1.0
  %v8997 = vadd.f32 %v8985, 1.0
  %v8998 = vadd.f32 %v8987, 1.0
  %v8999 = vadd.f32 %v8989, 1.0
  %v9000 = vadd.f32 %v8991, 1.0
  %v9001 = vadd.f32 %v8993, 1.0
  %v9002 = vrcp.pop %v8994
  %v9003 = vmul.f32 1.0, %v9002
  %v9004 = vrcp.pop %v8995
  %v9005 = vmul.f32 1.0, %v9004
  %v9006 = vrcp.pop %v8996
  %v9007 = vmul.f32 1.0, %v9006
  %v9008 = vrcp.pop %v8997
  %v9009 = vmul.f32 1.0, %v9008
  %v9010 = vrcp.pop %v8998
  %v9011 = vmul.f32 1.0, %v9010
  %v9012 = vrcp.pop %v8999
  %v9013 = vmul.f32 1.0, %v9012
  %v9014 = vrcp.pop %v9000
  %v9015 = vmul.f32 1.0, %v9014
  %v9016 = vrcp.pop %v9001
  %v9017 = vmul.f32 1.0, %v9016
  %v9018 = vmul.f32 %v8962, %v9003
  %v9019 = vmul.f32 %v8963, %v9005
  %v9020 = vmul.f32 %v8964, %v9007
  %v9021 = vmul.f32 %v8965, %v9009
  %v9022 = vmul.f32 %v8966, %v9011
  %v9023 = vmul.f32 %v8967, %v9013
  %v9024 = vmul.f32 %v8968, %v9015
  %v9025 = vmul.f32 %v8969, %v9017
  %v9026 = vld [vmem:[%s45] sm:$0xff]
  %v9027 = vld [vmem:[%s47] sm:$0xff]
  %v9028 = vld [vmem:[%s47 + $0x8] sm:$0xff]
  %v9029 = vld [vmem:[%s49] sm:$0xff]
  %v9030 = vld [vmem:[%s49 + $0x8] sm:$0xff]
  %v9031 = vld [vmem:[%s51] sm:$0xff]
  %v9032 = vld [vmem:[%s51 + $0x8] sm:$0xff]
  %v9033 = vld [vmem:[%s51 + $0x10] sm:$0xff]
  %v9034 = vld [vmem:[%s51 + $0x18] sm:$0xff]
  %v9035 = vld [vmem:[%s51 + $0x20] sm:$0xff]
  %vm9036 = vcmask 64512
  %v9038 = vsel %vm9036, %v9026, 0
  %9040 = vmatprep.subr.mxu0 %v9023
  %9041 = vmatpush1.msra.mxu0 %v9022
  %9042 = vmatprep.subr.mxu0 0.0
  %9043 = vmatpush1.msra.mxu0 0.0
  %9044 = vmatprep.subr.mxu0 0.0
  %9045 = vmatpush1.msra.mxu0 0.0
  %9046 = vmatprep.subr.mxu0 0.0
  %9047 = vmatpush1.msra.mxu0 0.0
  %9048 = vmatprep.subr.mxu0 0.0
  %9049 = vmatpush1.msra.mxu0 0.0
  %9050 = vmatprep.subr.mxu0 0.0
  %9051 = vmatpush1.msra.mxu0 0.0
  %9052 = vmatprep.subr.mxu0 0.0
  %9053 = vmatpush1.msra.mxu0 0.0
  %9054 = vmatprep.subr.mxu0 0.0
  %9055 = vmatpush1.msra.mxu0 0.0
  %9056 = vmatprep.subr.mxu0 0.0
  %9057 = vmatpush1.msra.mxu0 0.0
  %9058 = vmatprep.subr.mxu0 0.0
  %9059 = vmatpush1.msra.mxu0 0.0
  %9060 = vmatprep.subr.mxu0 0.0
  %9061 = vmatpush1.msra.mxu0 0.0
  %9062 = vmatprep.subr.mxu0 0.0
  %9063 = vmatpush1.msra.mxu0 0.0
  %9064 = vmatprep.subr.mxu0 0.0
  %9065 = vmatpush1.msra.mxu0 0.0
  %9066 = vmatprep.subr.mxu0 0.0
  %9067 = vmatpush1.msra.mxu0 0.0
  %9068 = vmatprep.subr.mxu0 0.0
  %9069 = vmatpush1.msra.mxu0 0.0
  %9070 = vmatprep.subr.mxu0 0.0
  %9071 = vmatpush1.msra.mxu0 0.0
  %9072 = vmatprep.subr.mxu0 0.0
  %9073 = vmatpush1.msra.mxu0 0.0
  %9074 = vmatprep.subr.mxu0 0.0
  %9075 = vmatpush1.msra.mxu0 0.0
  %9076 = vmatprep.subr.mxu0 0.0
  %9077 = vmatpush1.msra.mxu0 0.0
  %9078 = vmatprep.subr.mxu0 0.0
  %9079 = vmatpush1.msra.mxu0 0.0
  %9080 = vmatprep.subr.mxu0 0.0
  %9081 = vmatpush1.msra.mxu0 0.0
  %9082 = vmatprep.subr.mxu0 0.0
  %9083 = vmatpush1.msra.mxu0 0.0
  %9084 = vmatprep.subr.mxu0 0.0
  %9085 = vmatpush1.msra.mxu0 0.0
  %9086 = vmatprep.subr.mxu0 0.0
  %9087 = vmatpush1.msra.mxu0 0.0
  %9088 = vmatprep.subr.mxu0 0.0
  %9089 = vmatpush1.msra.mxu0 0.0
  %9090 = vmatprep.subr.mxu0 0.0
  %9091 = vmatpush1.msra.mxu0 0.0
  %9092 = vmatprep.subr.mxu0 0.0
  %9093 = vmatpush1.msra.mxu0 0.0
  %9094 = vmatprep.subr.mxu0 0.0
  %9095 = vmatpush1.msra.mxu0 0.0
  %9096 = vmatprep.subr.mxu0 0.0
  %9097 = vmatpush1.msra.mxu0 0.0
  %9098 = vmatprep.subr.mxu0 0.0
  %9099 = vmatpush1.msra.mxu0 0.0
  %9100 = vmatprep.subr.mxu0 0.0
  %9101 = vmatpush1.msra.mxu0 0.0
  %9102 = vmatprep.subr.mxu0 0.0
  %9103 = vmatpush1.msra.mxu0 0.0
  %9104 = vmatprep.mubr.f32.mxu0 0.0
  %9105 = vmatmul.mubr.f32.gmra.mrb[0].mxu0 %v9038
  %v9106 = vpop.f32.mrb[0].mxu0
  %v9107 = vadd.f32 0.0, %v9106
  %v9108 = vpop.f32.mrb[0].mxu0
  %v9109 = vadd.f32 0.0, %v9108
  %9110 = vdwg.mxu0
  %9111 = vmatprep.subr.mxu0 %v9025
  %9112 = vmatpush1.msra.mxu0 %v9024
  %9113 = vmatprep.subr.mxu0 0.0
  %9114 = vmatpush1.msra.mxu0 0.0
  %9115 = vmatprep.subr.mxu0 0.0
  %9116 = vmatpush1.msra.mxu0 0.0
  %9117 = vmatprep.subr.mxu0 0.0
  %9118 = vmatpush1.msra.mxu0 0.0
  %9119 = vmatprep.subr.mxu0 0.0
  %9120 = vmatpush1.msra.mxu0 0.0
  %9121 = vmatprep.subr.mxu0 0.0
  %9122 = vmatpush1.msra.mxu0 0.0
  %9123 = vmatprep.subr.mxu0 0.0
  %9124 = vmatpush1.msra.mxu0 0.0
  %9125 = vmatprep.subr.mxu0 0.0
  %9126 = vmatpush1.msra.mxu0 0.0
  %9127 = vmatprep.subr.mxu0 0.0
  %9128 = vmatpush1.msra.mxu0 0.0
  %9129 = vmatprep.subr.mxu0 0.0
  %9130 = vmatpush1.msra.mxu0 0.0
  %9131 = vmatprep.subr.mxu0 0.0
  %9132 = vmatpush1.msra.mxu0 0.0
  %9133 = vmatprep.subr.mxu0 0.0
  %9134 = vmatpush1.msra.mxu0 0.0
  %9135 = vmatprep.subr.mxu0 0.0
  %9136 = vmatpush1.msra.mxu0 0.0
  %9137 = vmatprep.subr.mxu0 0.0
  %9138 = vmatpush1.msra.mxu0 0.0
  %9139 = vmatprep.subr.mxu0 0.0
  %9140 = vmatpush1.msra.mxu0 0.0
  %9141 = vmatprep.subr.mxu0 0.0
  %9142 = vmatpush1.msra.mxu0 0.0
  %9143 = vmatprep.subr.mxu0 0.0
  %9144 = vmatpush1.msra.mxu0 0.0
  %9145 = vmatprep.subr.mxu0 0.0
  %9146 = vmatpush1.msra.mxu0 0.0
  %9147 = vmatprep.subr.mxu0 0.0
  %9148 = vmatpush1.msra.mxu0 0.0
  %9149 = vmatprep.subr.mxu0 0.0
  %9150 = vmatpush1.msra.mxu0 0.0
  %9151 = vmatprep.subr.mxu0 0.0
  %9152 = vmatpush1.msra.mxu0 0.0
  %9153 = vmatprep.subr.mxu0 0.0
  %9154 = vmatpush1.msra.mxu0 0.0
  %9155 = vmatprep.subr.mxu0 0.0
  %9156 = vmatpush1.msra.mxu0 0.0
  %9157 = vmatprep.subr.mxu0 0.0
  %9158 = vmatpush1.msra.mxu0 0.0
  %9159 = vmatprep.subr.mxu0 0.0
  %9160 = vmatpush1.msra.mxu0 0.0
  %9161 = vmatprep.subr.mxu0 0.0
  %9162 = vmatpush1.msra.mxu0 0.0
  %9163 = vmatprep.subr.mxu0 0.0
  %9164 = vmatpush1.msra.mxu0 0.0
  %9165 = vmatprep.subr.mxu0 0.0
  %9166 = vmatpush1.msra.mxu0 0.0
  %9167 = vmatprep.subr.mxu0 0.0
  %9168 = vmatpush1.msra.mxu0 0.0
  %9169 = vmatprep.subr.mxu0 0.0
  %9170 = vmatpush1.msra.mxu0 0.0
  %9171 = vmatprep.subr.mxu0 0.0
  %9172 = vmatpush1.msra.mxu0 0.0
  %9173 = vmatprep.subr.mxu0 0.0
  %9174 = vmatpush1.msra.mxu0 0.0
  %9175 = vmatprep.mubr.f32.mxu0 0.0
  %9176 = vmatmul.mubr.f32.gmra.mrb[0].mxu0 %v9038
  %v9177 = vpop.f32.mrb[0].mxu0
  %v9178 = vadd.f32 0.0, %v9177
  %v9179 = vpop.f32.mrb[0].mxu0
  %v9180 = vadd.f32 0.0, %v9179
  %9181 = vdwg.mxu0
  %v9182 = vadd.f32 %v9107, %v9109
  %v9183 = vadd.f32 %v9182, %v9178
  %v9184 = vadd.f32 %v9183, %v9180
  %9185 = vadd.xlane.f32.xlu0 %v9184
  %v9186 = vpop.xlane.xlu0 %9185
  %v9187 = vmul.f32 %v9186, %v522
  %v9188 = vsub.f32 %v9107, %v9187
  %v9189 = vsub.f32 %v9109, %v9187
  %v9190 = vsub.f32 %v9178, %v9187
  %v9191 = vsub.f32 %v9180, %v9187
  %v9192 = vmul.f32 %v9188, %v9188
  %v9193 = vmul.f32 %v9189, %v9189
  %v9194 = vmul.f32 %v9190, %v9190
  %v9195 = vmul.f32 %v9191, %v9191
  %v9196 = vadd.f32 %v9192, %v9193
  %v9197 = vadd.f32 %v9196, %v9194
  %v9198 = vadd.f32 %v9197, %v9195
  %9199 = vadd.xlane.f32.xlu0 %v9198
  %v9200 = vpop.xlane.xlu0 %9199
  %v9201 = vmul.f32 %v9200, %v522
  %v9202 = vadd.f32 %v9201, 1e-05
  %v9203 = vrsqrt.pop %v9202
  %v9204 = vmul.f32 %v9031, %v9203
  %9206 = vset.pattern.permute.xlu0 0
  %9207 = vperm.xlu0 %9206, %v9204
  %v9208 = vpop.permute.xlu0 %9207
  %v9210 = vmul.f32 %v9188, %v9208
  %v9211 = vmul.f32 %v9189, %v9208
  %v9212 = vmul.f32 %v9190, %v9208
  %v9213 = vmul.f32 %v9191, %v9208
  %9215 = vset.pattern.permute.xlu0 1
  %9216 = vperm.xlu0 %9215, %v9031
  %v9217 = vpop.permute.xlu0 %9216
  %v9219 = vadd.f32 %v9210, %v9217
  %v9220 = vadd.f32 %v9211, %v9217
  %v9221 = vadd.f32 %v9212, %v9217
  %v9222 = vadd.f32 %v9213, %v9217
  %v9223 = vxor.u32 %v9219, 2147483648
  %v9224 = vxor.u32 %v9220, 2147483648
  %v9225 = vxor.u32 %v9221, 2147483648
  %v9226 = vxor.u32 %v9222, 2147483648
  %v9227 = vmul.f32 %v9223, 1.442695
  %v9228 = vpow.pop %v9227
  %v9229 = vmul.f32 %v9224, 1.442695
  %v9230 = vpow.pop %v9229
  %v9231 = vmul.f32 %v9225, 1.442695
  %v9232 = vpow.pop %v9231
  %v9233 = vmul.f32 %v9226, 1.442695
  %v9234 = vpow.pop %v9233
  %v9235 = vadd.f32 %v9228, 1.0
  %v9236 = vadd.f32 %v9230, 1.0
  %v9237 = vadd.f32 %v9232, 1.0
  %v9238 = vadd.f32 %v9234, 1.0
  %v9239 = vrcp.pop %v9235
  %v9240 = vmul.f32 1.0, %v9239
  %v9241 = vrcp.pop %v9236
  %v9242 = vmul.f32 1.0, %v9241
  %v9243 = vrcp.pop %v9237
  %v9244 = vmul.f32 1.0, %v9243
  %v9245 = vrcp.pop %v9238
  %v9246 = vmul.f32 1.0, %v9245
  %v9247 = vmul.f32 %v9219, %v9240
  %v9248 = vmul.f32 %v9220, %v9242
  %v9249 = vmul.f32 %v9221, %v9244
  %v9250 = vmul.f32 %v9222, %v9246
  %9252 = vset.pattern.permute.xlu0 4
  %9253 = vperm.xlu0 %9252, %v9027
  %v9254 = vpop.permute.xlu0 %9253
  %9257 = vset.pattern.permute.xlu0 4
  %9258 = vperm.xlu0 %9257, %v9028
  %v9259 = vpop.permute.xlu0 %9258
  %v9261 = vmul.f32 %v9018, %v9254
  %v9262 = vmul.f32 %v9019, %v9254
  %v9263 = vmul.f32 %v9020, %v9254
  %v9264 = vmul.f32 %v9021, %v9254
  %v9265 = vmul.f32 %v9247, %v9259
  %v9266 = vmul.f32 %v9248, %v9259
  %v9267 = vmul.f32 %v9249, %v9259
  %v9268 = vmul.f32 %v9250, %v9259
  %9271 = vrot.lane.b32.xlu0 %v9021, 17
  %v9272 = vpop.permute.xlu0 %9271
  %9273 = vrot.lane.b32.xlu0 %v9250, 17
  %v9274 = vpop.permute.xlu0 %9273
  %9283 = vrot.lane.b32.xlu0 %v9018, 17
  %v9284 = vpop.permute.xlu0 %9283
  %9285 = vrot.lane.b32.xlu0 %v9019, 17
  %v9286 = vpop.permute.xlu0 %9285
  %9287 = vrot.lane.b32.xlu0 %v9020, 17
  %v9288 = vpop.permute.xlu0 %9287
  %9289 = vrot.lane.b32.xlu0 %v9247, 17
  %v9290 = vpop.permute.xlu0 %9289
  %9291 = vrot.lane.b32.xlu0 %v9248, 17
  %v9292 = vpop.permute.xlu0 %9291
  %9293 = vrot.lane.b32.xlu0 %v9249, 17
  %v9294 = vpop.permute.xlu0 %9293
  %v9295 = vsel %vm739, %v9284, %v9286
  %v9296 = vsel %vm739, %v9286, %v9288
  %v9297 = vsel %vm739, %v9288, %v9272
  %v9298 = vsel %vm739, %v9290, %v9292
  %v9299 = vsel %vm739, %v9292, %v9294
  %v9300 = vsel %vm739, %v9294, %v9274
  %v9309 = vsel %vm739, %v9272, %v9284
  %v9310 = vsel %vm739, %v9274, %v9290
  %9311 = vset.pattern.permute.xlu0 0
  %9312 = vperm.xlu0 %9311, %v9027
  %v9313 = vpop.permute.xlu0 %9312
  %9315 = vset.pattern.permute.xlu0 0
  %9316 = vperm.xlu0 %9315, %v9028
  %v9317 = vpop.permute.xlu0 %9316
  %v9319 = vmul.f32 %v9309, %v9313
  %v9320 = vmul.f32 %v9295, %v9313
  %v9321 = vmul.f32 %v9296, %v9313
  %v9322 = vmul.f32 %v9297, %v9313
  %v9323 = vmul.f32 %v9310, %v9317
  %v9324 = vmul.f32 %v9298, %v9317
  %v9325 = vmul.f32 %v9299, %v9317
  %v9326 = vmul.f32 %v9300, %v9317
  %v9327 = vmul.f32 %v9319, %v807
  %v9328 = vmul.f32 %v9320, %v811
  %v9329 = vmul.f32 %v9321, %v815
  %v9330 = vmul.f32 %v9322, %v819
  %v9331 = vmul.f32 %v9323, %v807
  %v9332 = vmul.f32 %v9324, %v811
  %v9333 = vmul.f32 %v9325, %v815
  %v9334 = vmul.f32 %v9326, %v819
  %v9335 = vadd.f32 %v9261, %v9327
  %v9336 = vadd.f32 %v9262, %v9328
  %v9337 = vadd.f32 %v9263, %v9329
  %v9338 = vadd.f32 %v9264, %v9330
  %v9339 = vadd.f32 %v9265, %v9331
  %v9340 = vadd.f32 %v9266, %v9332
  %v9341 = vadd.f32 %v9267, %v9333
  %v9342 = vadd.f32 %v9268, %v9334
  %9343 = vrot.lane.b32.xlu0 %v9021, 16
  %v9344 = vpop.permute.xlu0 %9343
  %9345 = vrot.lane.b32.xlu0 %v9250, 16
  %v9346 = vpop.permute.xlu0 %9345
  %9349 = vrot.lane.b32.xlu0 %v9018, 16
  %v9350 = vpop.permute.xlu0 %9349
  %9351 = vrot.lane.b32.xlu0 %v9019, 16
  %v9352 = vpop.permute.xlu0 %9351
  %9353 = vrot.lane.b32.xlu0 %v9020, 16
  %v9354 = vpop.permute.xlu0 %9353
  %9355 = vrot.lane.b32.xlu0 %v9247, 16
  %v9356 = vpop.permute.xlu0 %9355
  %9357 = vrot.lane.b32.xlu0 %v9248, 16
  %v9358 = vpop.permute.xlu0 %9357
  %9359 = vrot.lane.b32.xlu0 %v9249, 16
  %v9360 = vpop.permute.xlu0 %9359
  %v9361 = vsel %vm351, %v9350, %v9352
  %v9362 = vsel %vm351, %v9352, %v9354
  %v9363 = vsel %vm351, %v9354, %v9344
  %v9364 = vsel %vm351, %v9356, %v9358
  %v9365 = vsel %vm351, %v9358, %v9360
  %v9366 = vsel %vm351, %v9360, %v9346
  %v9375 = vsel %vm351, %v9344, %v9350
  %v9376 = vsel %vm351, %v9346, %v9356
  %9377 = vset.pattern.permute.xlu0 1
  %9378 = vperm.xlu0 %9377, %v9027
  %v9379 = vpop.permute.xlu0 %9378
  %9381 = vset.pattern.permute.xlu0 1
  %9382 = vperm.xlu0 %9381, %v9028
  %v9383 = vpop.permute.xlu0 %9382
  %v9385 = vmul.f32 %v9375, %v9379
  %v9386 = vmul.f32 %v9361, %v9379
  %v9387 = vmul.f32 %v9362, %v9379
  %v9388 = vmul.f32 %v9363, %v9379
  %v9389 = vmul.f32 %v9376, %v9383
  %v9390 = vmul.f32 %v9364, %v9383
  %v9391 = vmul.f32 %v9365, %v9383
  %v9392 = vmul.f32 %v9366, %v9383
  %v9393 = vmul.f32 %v9385, %v955
  %v9394 = vmul.f32 %v9386, %v959
  %v9395 = vmul.f32 %v9387, %v963
  %v9396 = vmul.f32 %v9388, %v967
  %v9397 = vmul.f32 %v9389, %v955
  %v9398 = vmul.f32 %v9390, %v959
  %v9399 = vmul.f32 %v9391, %v963
  %v9400 = vmul.f32 %v9392, %v967
  %v9401 = vadd.f32 %v9335, %v9393
  %v9402 = vadd.f32 %v9336, %v9394
  %v9403 = vadd.f32 %v9337, %v9395
  %v9404 = vadd.f32 %v9338, %v9396
  %v9405 = vadd.f32 %v9339, %v9397
  %v9406 = vadd.f32 %v9340, %v9398
  %v9407 = vadd.f32 %v9341, %v9399
  %v9408 = vadd.f32 %v9342, %v9400
  %9409 = vrot.lane.b32.xlu0 %v9021, 15
  %v9410 = vpop.permute.xlu0 %9409
  %9411 = vrot.lane.b32.xlu0 %v9250, 15
  %v9412 = vpop.permute.xlu0 %9411
  %9415 = vrot.lane.b32.xlu0 %v9018, 15
  %v9416 = vpop.permute.xlu0 %9415
  %9417 = vrot.lane.b32.xlu0 %v9019, 15
  %v9418 = vpop.permute.xlu0 %9417
  %9419 = vrot.lane.b32.xlu0 %v9020, 15
  %v9420 = vpop.permute.xlu0 %9419
  %9421 = vrot.lane.b32.xlu0 %v9247, 15
  %v9422 = vpop.permute.xlu0 %9421
  %9423 = vrot.lane.b32.xlu0 %v9248, 15
  %v9424 = vpop.permute.xlu0 %9423
  %9425 = vrot.lane.b32.xlu0 %v9249, 15
  %v9426 = vpop.permute.xlu0 %9425
  %v9427 = vsel %vm1036, %v9416, %v9418
  %v9428 = vsel %vm1036, %v9418, %v9420
  %v9429 = vsel %vm1036, %v9420, %v9410
  %v9430 = vsel %vm1036, %v9422, %v9424
  %v9431 = vsel %vm1036, %v9424, %v9426
  %v9432 = vsel %vm1036, %v9426, %v9412
  %v9441 = vsel %vm1036, %v9410, %v9416
  %v9442 = vsel %vm1036, %v9412, %v9422
  %9443 = vset.pattern.permute.xlu0 2
  %9444 = vperm.xlu0 %9443, %v9027
  %v9445 = vpop.permute.xlu0 %9444
  %9447 = vset.pattern.permute.xlu0 2
  %9448 = vperm.xlu0 %9447, %v9028
  %v9449 = vpop.permute.xlu0 %9448
  %v9451 = vmul.f32 %v9441, %v9445
  %v9452 = vmul.f32 %v9427, %v9445
  %v9453 = vmul.f32 %v9428, %v9445
  %v9454 = vmul.f32 %v9429, %v9445
  %v9455 = vmul.f32 %v9442, %v9449
  %v9456 = vmul.f32 %v9430, %v9449
  %v9457 = vmul.f32 %v9431, %v9449
  %v9458 = vmul.f32 %v9432, %v9449
  %v9459 = vmul.f32 %v9451, %v1104
  %v9460 = vmul.f32 %v9452, %v1108
  %v9461 = vmul.f32 %v9453, %v1112
  %v9462 = vmul.f32 %v9454, %v1116
  %v9463 = vmul.f32 %v9455, %v1104
  %v9464 = vmul.f32 %v9456, %v1108
  %v9465 = vmul.f32 %v9457, %v1112
  %v9466 = vmul.f32 %v9458, %v1116
  %v9467 = vadd.f32 %v9401, %v9459
  %v9468 = vadd.f32 %v9402, %v9460
  %v9469 = vadd.f32 %v9403, %v9461
  %v9470 = vadd.f32 %v9404, %v9462
  %v9471 = vadd.f32 %v9405, %v9463
  %v9472 = vadd.f32 %v9406, %v9464
  %v9473 = vadd.f32 %v9407, %v9465
  %v9474 = vadd.f32 %v9408, %v9466
  %9475 = vrot.lane.b32.xlu0 %v9021, 1
  %v9476 = vpop.permute.xlu0 %9475
  %9477 = vrot.lane.b32.xlu0 %v9250, 1
  %v9478 = vpop.permute.xlu0 %9477
  %9481 = vrot.lane.b32.xlu0 %v9018, 1
  %v9482 = vpop.permute.xlu0 %9481
  %9483 = vrot.lane.b32.xlu0 %v9019, 1
  %v9484 = vpop.permute.xlu0 %9483
  %9485 = vrot.lane.b32.xlu0 %v9020, 1
  %v9486 = vpop.permute.xlu0 %9485
  %9487 = vrot.lane.b32.xlu0 %v9247, 1
  %v9488 = vpop.permute.xlu0 %9487
  %9489 = vrot.lane.b32.xlu0 %v9248, 1
  %v9490 = vpop.permute.xlu0 %9489
  %9491 = vrot.lane.b32.xlu0 %v9249, 1
  %v9492 = vpop.permute.xlu0 %9491
  %v9493 = vsel %vm1185, %v9482, %v9484
  %v9494 = vsel %vm1185, %v9484, %v9486
  %v9495 = vsel %vm1185, %v9486, %v9476
  %v9496 = vsel %vm1185, %v9488, %v9490
  %v9497 = vsel %vm1185, %v9490, %v9492
  %v9498 = vsel %vm1185, %v9492, %v9478
  %v9507 = vsel %vm1185, %v9476, %v9482
  %v9508 = vsel %vm1185, %v9478, %v9488
  %9509 = vset.pattern.permute.xlu0 3
  %9510 = vperm.xlu0 %9509, %v9027
  %v9511 = vpop.permute.xlu0 %9510
  %9513 = vset.pattern.permute.xlu0 3
  %9514 = vperm.xlu0 %9513, %v9028
  %v9515 = vpop.permute.xlu0 %9514
  %v9517 = vmul.f32 %v9507, %v9511
  %v9518 = vmul.f32 %v9493, %v9511
  %v9519 = vmul.f32 %v9494, %v9511
  %v9520 = vmul.f32 %v9495, %v9511
  %v9521 = vmul.f32 %v9508, %v9515
  %v9522 = vmul.f32 %v9496, %v9515
  %v9523 = vmul.f32 %v9497, %v9515
  %v9524 = vmul.f32 %v9498, %v9515
  %v9525 = vmul.f32 %v9517, %v1253
  %v9526 = vmul.f32 %v9518, %v1257
  %v9527 = vmul.f32 %v9519, %v1261
  %v9528 = vmul.f32 %v9520, %v1265
  %v9529 = vmul.f32 %v9521, %v1253
  %v9530 = vmul.f32 %v9522, %v1257
  %v9531 = vmul.f32 %v9523, %v1261
  %v9532 = vmul.f32 %v9524, %v1265
  %v9533 = vadd.f32 %v9467, %v9525
  %v9534 = vadd.f32 %v9468, %v9526
  %v9535 = vadd.f32 %v9469, %v9527
  %v9536 = vadd.f32 %v9470, %v9528
  %v9537 = vadd.f32 %v9471, %v9529
  %v9538 = vadd.f32 %v9472, %v9530
  %v9539 = vadd.f32 %v9473, %v9531
  %v9540 = vadd.f32 %v9474, %v9532
  %9541 = vrot.lane.b32.xlu0 %v9018, 127
  %v9542 = vpop.permute.xlu0 %9541
  %9543 = vrot.lane.b32.xlu0 %v9019, 127
  %v9544 = vpop.permute.xlu0 %9543
  %9545 = vrot.lane.b32.xlu0 %v9020, 127
  %v9546 = vpop.permute.xlu0 %9545
  %9547 = vrot.lane.b32.xlu0 %v9021, 127
  %v9548 = vpop.permute.xlu0 %9547
  %9549 = vrot.lane.b32.xlu0 %v9247, 127
  %v9550 = vpop.permute.xlu0 %9549
  %9551 = vrot.lane.b32.xlu0 %v9248, 127
  %v9552 = vpop.permute.xlu0 %9551
  %9553 = vrot.lane.b32.xlu0 %v9249, 127
  %v9554 = vpop.permute.xlu0 %9553
  %9555 = vrot.lane.b32.xlu0 %v9250, 127
  %v9556 = vpop.permute.xlu0 %9555
  %v9557 = vsel %vm1330, %v9542, %v9544
  %v9558 = vsel %vm1330, %v9544, %v9546
  %v9559 = vsel %vm1330, %v9546, %v9548
  %v9560 = vsel %vm1330, %v9550, %v9552
  %v9561 = vsel %vm1330, %v9552, %v9554
  %v9562 = vsel %vm1330, %v9554, %v9556
  %v9573 = vsel %vm1330, %v9548, %v9542
  %v9574 = vsel %vm1330, %v9556, %v9550
  %9575 = vset.pattern.permute.xlu0 5
  %9576 = vperm.xlu0 %9575, %v9027
  %v9577 = vpop.permute.xlu0 %9576
  %9579 = vset.pattern.permute.xlu0 5
  %9580 = vperm.xlu0 %9579, %v9028
  %v9581 = vpop.permute.xlu0 %9580
  %v9583 = vmul.f32 %v9557, %v9577
  %v9584 = vmul.f32 %v9558, %v9577
  %v9585 = vmul.f32 %v9559, %v9577
  %v9586 = vmul.f32 %v9573, %v9577
  %v9587 = vmul.f32 %v9560, %v9581
  %v9588 = vmul.f32 %v9561, %v9581
  %v9589 = vmul.f32 %v9562, %v9581
  %v9590 = vmul.f32 %v9574, %v9581
  %v9591 = vmul.f32 %v9583, %v1402
  %v9592 = vmul.f32 %v9584, %v1406
  %v9593 = vmul.f32 %v9585, %v1410
  %v9594 = vmul.f32 %v9586, %v1414
  %v9595 = vmul.f32 %v9587, %v1402
  %v9596 = vmul.f32 %v9588, %v1406
  %v9597 = vmul.f32 %v9589, %v1410
  %v9598 = vmul.f32 %v9590, %v1414
  %v9599 = vadd.f32 %v9533, %v9591
  %v9600 = vadd.f32 %v9534, %v9592
  %v9601 = vadd.f32 %v9535, %v9593
  %v9602 = vadd.f32 %v9536, %v9594
  %v9603 = vadd.f32 %v9537, %v9595
  %v9604 = vadd.f32 %v9538, %v9596
  %v9605 = vadd.f32 %v9539, %v9597
  %v9606 = vadd.f32 %v9540, %v9598
  %9607 = vrot.lane.b32.xlu0 %v9018, 113
  %v9608 = vpop.permute.xlu0 %9607
  %9609 = vrot.lane.b32.xlu0 %v9019, 113
  %v9610 = vpop.permute.xlu0 %9609
  %9611 = vrot.lane.b32.xlu0 %v9020, 113
  %v9612 = vpop.permute.xlu0 %9611
  %9613 = vrot.lane.b32.xlu0 %v9021, 113
  %v9614 = vpop.permute.xlu0 %9613
  %9615 = vrot.lane.b32.xlu0 %v9247, 113
  %v9616 = vpop.permute.xlu0 %9615
  %9617 = vrot.lane.b32.xlu0 %v9248, 113
  %v9618 = vpop.permute.xlu0 %9617
  %9619 = vrot.lane.b32.xlu0 %v9249, 113
  %v9620 = vpop.permute.xlu0 %9619
  %9621 = vrot.lane.b32.xlu0 %v9250, 113
  %v9622 = vpop.permute.xlu0 %9621
  %v9623 = vsel %vm1479, %v9608, %v9610
  %v9624 = vsel %vm1479, %v9610, %v9612
  %v9625 = vsel %vm1479, %v9612, %v9614
  %v9626 = vsel %vm1479, %v9616, %v9618
  %v9627 = vsel %vm1479, %v9618, %v9620
  %v9628 = vsel %vm1479, %v9620, %v9622
  %v9639 = vsel %vm1479, %v9614, %v9608
  %v9640 = vsel %vm1479, %v9622, %v9616
  %9641 = vset.pattern.permute.xlu0 6
  %9642 = vperm.xlu0 %9641, %v9027
  %v9643 = vpop.permute.xlu0 %9642
  %9645 = vset.pattern.permute.xlu0 6
  %9646 = vperm.xlu0 %9645, %v9028
  %v9647 = vpop.permute.xlu0 %9646
  %v9649 = vmul.f32 %v9623, %v9643
  %v9650 = vmul.f32 %v9624, %v9643
  %v9651 = vmul.f32 %v9625, %v9643
  %v9652 = vmul.f32 %v9639, %v9643
  %v9653 = vmul.f32 %v9626, %v9647
  %v9654 = vmul.f32 %v9627, %v9647
  %v9655 = vmul.f32 %v9628, %v9647
  %v9656 = vmul.f32 %v9640, %v9647
  %v9657 = vmul.f32 %v9649, %v1551
  %v9658 = vmul.f32 %v9650, %v1555
  %v9659 = vmul.f32 %v9651, %v1559
  %v9660 = vmul.f32 %v9652, %v1563
  %v9661 = vmul.f32 %v9653, %v1551
  %v9662 = vmul.f32 %v9654, %v1555
  %v9663 = vmul.f32 %v9655, %v1559
  %v9664 = vmul.f32 %v9656, %v1563
  %v9665 = vadd.f32 %v9599, %v9657
  %v9666 = vadd.f32 %v9600, %v9658
  %v9667 = vadd.f32 %v9601, %v9659
  %v9668 = vadd.f32 %v9602, %v9660
  %v9669 = vadd.f32 %v9603, %v9661
  %v9670 = vadd.f32 %v9604, %v9662
  %v9671 = vadd.f32 %v9605, %v9663
  %v9672 = vadd.f32 %v9606, %v9664
  %9673 = vrot.lane.b32.xlu0 %v9018, 112
  %v9674 = vpop.permute.xlu0 %9673
  %9675 = vrot.lane.b32.xlu0 %v9019, 112
  %v9676 = vpop.permute.xlu0 %9675
  %9677 = vrot.lane.b32.xlu0 %v9020, 112
  %v9678 = vpop.permute.xlu0 %9677
  %9679 = vrot.lane.b32.xlu0 %v9021, 112
  %v9680 = vpop.permute.xlu0 %9679
  %9681 = vrot.lane.b32.xlu0 %v9247, 112
  %v9682 = vpop.permute.xlu0 %9681
  %9683 = vrot.lane.b32.xlu0 %v9248, 112
  %v9684 = vpop.permute.xlu0 %9683
  %9685 = vrot.lane.b32.xlu0 %v9249, 112
  %v9686 = vpop.permute.xlu0 %9685
  %9687 = vrot.lane.b32.xlu0 %v9250, 112
  %v9688 = vpop.permute.xlu0 %9687
  %v9689 = vsel %vm1628, %v9674, %v9676
  %v9690 = vsel %vm1628, %v9676, %v9678
  %v9691 = vsel %vm1628, %v9678, %v9680
  %v9692 = vsel %vm1628, %v9682, %v9684
  %v9693 = vsel %vm1628, %v9684, %v9686
  %v9694 = vsel %vm1628, %v9686, %v9688
  %v9705 = vsel %vm1628, %v9680, %v9674
  %v9706 = vsel %vm1628, %v9688, %v9682
  %9707 = vset.pattern.permute.xlu0 7
  %9708 = vperm.xlu0 %9707, %v9027
  %v9709 = vpop.permute.xlu0 %9708
  %9711 = vset.pattern.permute.xlu0 7
  %9712 = vperm.xlu0 %9711, %v9028
  %v9713 = vpop.permute.xlu0 %9712
  %v9715 = vmul.f32 %v9689, %v9709
  %v9716 = vmul.f32 %v9690, %v9709
  %v9717 = vmul.f32 %v9691, %v9709
  %v9718 = vmul.f32 %v9705, %v9709
  %v9719 = vmul.f32 %v9692, %v9713
  %v9720 = vmul.f32 %v9693, %v9713
  %v9721 = vmul.f32 %v9694, %v9713
  %v9722 = vmul.f32 %v9706, %v9713
  %v9723 = vmul.f32 %v9715, %v1700
  %v9724 = vmul.f32 %v9716, %v1704
  %v9725 = vmul.f32 %v9717, %v1708
  %v9726 = vmul.f32 %v9718, %v1712
  %v9727 = vmul.f32 %v9719, %v1700
  %v9728 = vmul.f32 %v9720, %v1704
  %v9729 = vmul.f32 %v9721, %v1708
  %v9730 = vmul.f32 %v9722, %v1712
  %v9731 = vadd.f32 %v9665, %v9723
  %v9732 = vadd.f32 %v9666, %v9724
  %v9733 = vadd.f32 %v9667, %v9725
  %v9734 = vadd.f32 %v9668, %v9726
  %v9735 = vadd.f32 %v9669, %v9727
  %v9736 = vadd.f32 %v9670, %v9728
  %v9737 = vadd.f32 %v9671, %v9729
  %v9738 = vadd.f32 %v9672, %v9730
  %9739 = vrot.lane.b32.xlu0 %v9018, 111
  %v9740 = vpop.permute.xlu0 %9739
  %9741 = vrot.lane.b32.xlu0 %v9019, 111
  %v9742 = vpop.permute.xlu0 %9741
  %9743 = vrot.lane.b32.xlu0 %v9020, 111
  %v9744 = vpop.permute.xlu0 %9743
  %9745 = vrot.lane.b32.xlu0 %v9021, 111
  %v9746 = vpop.permute.xlu0 %9745
  %9747 = vrot.lane.b32.xlu0 %v9247, 111
  %v9748 = vpop.permute.xlu0 %9747
  %9749 = vrot.lane.b32.xlu0 %v9248, 111
  %v9750 = vpop.permute.xlu0 %9749
  %9751 = vrot.lane.b32.xlu0 %v9249, 111
  %v9752 = vpop.permute.xlu0 %9751
  %9753 = vrot.lane.b32.xlu0 %v9250, 111
  %v9754 = vpop.permute.xlu0 %9753
  %v9755 = vsel %vm1777, %v9740, %v9742
  %v9756 = vsel %vm1777, %v9742, %v9744
  %v9757 = vsel %vm1777, %v9744, %v9746
  %v9758 = vsel %vm1777, %v9748, %v9750
  %v9759 = vsel %vm1777, %v9750, %v9752
  %v9760 = vsel %vm1777, %v9752, %v9754
  %v9771 = vsel %vm1777, %v9746, %v9740
  %v9772 = vsel %vm1777, %v9754, %v9748
  %9773 = vset.pattern.permute.xlu0 8
  %9774 = vperm.xlu0 %9773, %v9027
  %v9775 = vpop.permute.xlu0 %9774
  %9777 = vset.pattern.permute.xlu0 8
  %9778 = vperm.xlu0 %9777, %v9028
  %v9779 = vpop.permute.xlu0 %9778
  %v9781 = vmul.f32 %v9755, %v9775
  %v9782 = vmul.f32 %v9756, %v9775
  %v9783 = vmul.f32 %v9757, %v9775
  %v9784 = vmul.f32 %v9771, %v9775
  %v9785 = vmul.f32 %v9758, %v9779
  %v9786 = vmul.f32 %v9759, %v9779
  %v9787 = vmul.f32 %v9760, %v9779
  %v9788 = vmul.f32 %v9772, %v9779
  %v9789 = vmul.f32 %v9781, %v1849
  %v9790 = vmul.f32 %v9782, %v1853
  %v9791 = vmul.f32 %v9783, %v1857
  %v9792 = vmul.f32 %v9784, %v1861
  %v9793 = vmul.f32 %v9785, %v1849
  %v9794 = vmul.f32 %v9786, %v1853
  %v9795 = vmul.f32 %v9787, %v1857
  %v9796 = vmul.f32 %v9788, %v1861
  %v9797 = vadd.f32 %v9731, %v9789
  %v9798 = vadd.f32 %v9732, %v9790
  %v9799 = vadd.f32 %v9733, %v9791
  %v9800 = vadd.f32 %v9734, %v9792
  %v9801 = vadd.f32 %v9735, %v9793
  %v9802 = vadd.f32 %v9736, %v9794
  %v9803 = vadd.f32 %v9737, %v9795
  %v9804 = vadd.f32 %v9738, %v9796
  %v9805 = vadd.f32 %v9797, %v9798
  %v9806 = vadd.f32 %v9805, %v9799
  %v9807 = vadd.f32 %v9806, %v9800
  %9808 = vadd.xlane.f32.xlu0 %v9807
  %v9809 = vpop.xlane.xlu0 %9808
  %v9810 = vadd.f32 %v9801, %v9802
  %v9811 = vadd.f32 %v9810, %v9803
  %v9812 = vadd.f32 %v9811, %v9804
  %9813 = vadd.xlane.f32.xlu0 %v9812
  %v9814 = vpop.xlane.xlu0 %9813
  %v9815 = vmul.f32 %v9809, %v522
  %v9816 = vmul.f32 %v9814, %v522
  %v9817 = vsub.f32 %v9797, %v9815
  %v9818 = vsub.f32 %v9798, %v9815
  %v9819 = vsub.f32 %v9799, %v9815
  %v9820 = vsub.f32 %v9800, %v9815
  %v9821 = vsub.f32 %v9801, %v9816
  %v9822 = vsub.f32 %v9802, %v9816
  %v9823 = vsub.f32 %v9803, %v9816
  %v9824 = vsub.f32 %v9804, %v9816
  %v9825 = vmul.f32 %v9817, %v9817
  %v9826 = vmul.f32 %v9818, %v9818
  %v9827 = vmul.f32 %v9819, %v9819
  %v9828 = vmul.f32 %v9820, %v9820
  %v9829 = vmul.f32 %v9821, %v9821
  %v9830 = vmul.f32 %v9822, %v9822
  %v9831 = vmul.f32 %v9823, %v9823
  %v9832 = vmul.f32 %v9824, %v9824
  %v9833 = vadd.f32 %v9825, %v9826
  %v9834 = vadd.f32 %v9833, %v9827
  %v9835 = vadd.f32 %v9834, %v9828
  %9836 = vadd.xlane.f32.xlu0 %v9835
  %v9837 = vpop.xlane.xlu0 %9836
  %v9838 = vadd.f32 %v9829, %v9830
  %v9839 = vadd.f32 %v9838, %v9831
  %v9840 = vadd.f32 %v9839, %v9832
  %9841 = vadd.xlane.f32.xlu0 %v9840
  %v9842 = vpop.xlane.xlu0 %9841
  %v9843 = vmul.f32 %v9837, %v522
  %v9844 = vmul.f32 %v9842, %v522
  %v9845 = vadd.f32 %v9843, 1e-05
  %v9846 = vadd.f32 %v9844, 1e-05
  %v9847 = vrsqrt.pop %v9845
  %v9848 = vrsqrt.pop %v9846
  %v9849 = vmul.f32 %v9032, %v9847
  %v9850 = vmul.f32 %v9033, %v9848
  %9852 = vset.pattern.permute.xlu0 0
  %9853 = vperm.xlu0 %9852, %v9849
  %v9854 = vpop.permute.xlu0 %9853
  %9857 = vset.pattern.permute.xlu0 0
  %9858 = vperm.xlu0 %9857, %v9850
  %v9859 = vpop.permute.xlu0 %9858
  %v9861 = vmul.f32 %v9817, %v9854
  %v9862 = vmul.f32 %v9818, %v9854
  %v9863 = vmul.f32 %v9819, %v9854
  %v9864 = vmul.f32 %v9820, %v9854
  %v9865 = vmul.f32 %v9821, %v9859
  %v9866 = vmul.f32 %v9822, %v9859
  %v9867 = vmul.f32 %v9823, %v9859
  %v9868 = vmul.f32 %v9824, %v9859
  %9870 = vset.pattern.permute.xlu0 1
  %9871 = vperm.xlu0 %9870, %v9032
  %v9872 = vpop.permute.xlu0 %9871
  %9875 = vset.pattern.permute.xlu0 1
  %9876 = vperm.xlu0 %9875, %v9033
  %v9877 = vpop.permute.xlu0 %9876
  %v9879 = vadd.f32 %v9861, %v9872
  %v9880 = vadd.f32 %v9862, %v9872
  %v9881 = vadd.f32 %v9863, %v9872
  %v9882 = vadd.f32 %v9864, %v9872
  %v9883 = vadd.f32 %v9865, %v9877
  %v9884 = vadd.f32 %v9866, %v9877
  %v9885 = vadd.f32 %v9867, %v9877
  %v9886 = vadd.f32 %v9868, %v9877
  %v9888 = vsel %vm351, %v9029, 0
  %v9891 = vsel %vm351, %v9030, 0
  %9893 = vmatprep.subr.mxu0 %v9880
  %9894 = vmatpush1.msra.mxu0 %v9879
  %9895 = vmatprep.subr.mxu0 %v9884
  %9896 = vmatpush1.msra.mxu0 %v9883
  %9897 = vmatprep.subr.mxu0 0.0
  %9898 = vmatpush1.msra.mxu0 0.0
  %9899 = vmatprep.subr.mxu0 0.0
  %9900 = vmatpush1.msra.mxu0 0.0
  %9901 = vmatprep.subr.mxu0 0.0
  %9902 = vmatpush1.msra.mxu0 0.0
  %9903 = vmatprep.subr.mxu0 0.0
  %9904 = vmatpush1.msra.mxu0 0.0
  %9905 = vmatprep.subr.mxu0 0.0
  %9906 = vmatpush1.msra.mxu0 0.0
  %9907 = vmatprep.subr.mxu0 0.0
  %9908 = vmatpush1.msra.mxu0 0.0
  %9909 = vmatprep.subr.mxu0 0.0
  %9910 = vmatpush1.msra.mxu0 0.0
  %9911 = vmatprep.subr.mxu0 0.0
  %9912 = vmatpush1.msra.mxu0 0.0
  %9913 = vmatprep.subr.mxu0 0.0
  %9914 = vmatpush1.msra.mxu0 0.0
  %9915 = vmatprep.subr.mxu0 0.0
  %9916 = vmatpush1.msra.mxu0 0.0
  %9917 = vmatprep.subr.mxu0 0.0
  %9918 = vmatpush1.msra.mxu0 0.0
  %9919 = vmatprep.subr.mxu0 0.0
  %9920 = vmatpush1.msra.mxu0 0.0
  %9921 = vmatprep.subr.mxu0 0.0
  %9922 = vmatpush1.msra.mxu0 0.0
  %9923 = vmatprep.subr.mxu0 0.0
  %9924 = vmatpush1.msra.mxu0 0.0
  %9925 = vmatprep.subr.mxu0 0.0
  %9926 = vmatpush1.msra.mxu0 0.0
  %9927 = vmatprep.subr.mxu0 0.0
  %9928 = vmatpush1.msra.mxu0 0.0
  %9929 = vmatprep.subr.mxu0 0.0
  %9930 = vmatpush1.msra.mxu0 0.0
  %9931 = vmatprep.subr.mxu0 0.0
  %9932 = vmatpush1.msra.mxu0 0.0
  %9933 = vmatprep.subr.mxu0 0.0
  %9934 = vmatpush1.msra.mxu0 0.0
  %9935 = vmatprep.subr.mxu0 0.0
  %9936 = vmatpush1.msra.mxu0 0.0
  %9937 = vmatprep.subr.mxu0 0.0
  %9938 = vmatpush1.msra.mxu0 0.0
  %9939 = vmatprep.subr.mxu0 0.0
  %9940 = vmatpush1.msra.mxu0 0.0
  %9941 = vmatprep.subr.mxu0 0.0
  %9942 = vmatpush1.msra.mxu0 0.0
  %9943 = vmatprep.subr.mxu0 0.0
  %9944 = vmatpush1.msra.mxu0 0.0
  %9945 = vmatprep.subr.mxu0 0.0
  %9946 = vmatpush1.msra.mxu0 0.0
  %9947 = vmatprep.subr.mxu0 0.0
  %9948 = vmatpush1.msra.mxu0 0.0
  %9949 = vmatprep.subr.mxu0 0.0
  %9950 = vmatpush1.msra.mxu0 0.0
  %9951 = vmatprep.subr.mxu0 0.0
  %9952 = vmatpush1.msra.mxu0 0.0
  %9953 = vmatprep.subr.mxu0 0.0
  %9954 = vmatpush1.msra.mxu0 0.0
  %9955 = vmatprep.subr.mxu0 0.0
  %9956 = vmatpush1.msra.mxu0 0.0
  %9957 = vmatprep.mubr.f32.mxu0 0.0
  %9958 = vmatmul.mubr.f32.gmra.mrb[0].mxu0 %v9888
  %v9959 = vpop.f32.mrb[0].mxu0
  %v9960 = vadd.f32 0.0, %v9959
  %v9961 = vpop.f32.mrb[0].mxu0
  %v9962 = vadd.f32 0.0, %v9961
  %9963 = vmatprep.mubr.f32.mxu0 0.0
  %9964 = vmatmul.mubr.f32.gmra.mrb[0].mxu0 %v9891
  %v9965 = vpop.f32.mrb[0].mxu0
  %v9966 = vadd.f32 0.0, %v9965
  %v9967 = vpop.f32.mrb[0].mxu0
  %v9968 = vadd.f32 0.0, %v9967
  %9969 = vdwg.mxu0
  %9970 = vmatprep.subr.mxu0 %v9882
  %9971 = vmatpush1.msra.mxu0 %v9881
  %9972 = vmatprep.subr.mxu0 %v9886
  %9973 = vmatpush1.msra.mxu0 %v9885
  %9974 = vmatprep.subr.mxu0 0.0
  %9975 = vmatpush1.msra.mxu0 0.0
  %9976 = vmatprep.subr.mxu0 0.0
  %9977 = vmatpush1.msra.mxu0 0.0
  %9978 = vmatprep.subr.mxu0 0.0
  %9979 = vmatpush1.msra.mxu0 0.0
  %9980 = vmatprep.subr.mxu0 0.0
  %9981 = vmatpush1.msra.mxu0 0.0
  %9982 = vmatprep.subr.mxu0 0.0
  %9983 = vmatpush1.msra.mxu0 0.0
  %9984 = vmatprep.subr.mxu0 0.0
  %9985 = vmatpush1.msra.mxu0 0.0
  %9986 = vmatprep.subr.mxu0 0.0
  %9987 = vmatpush1.msra.mxu0 0.0
  %9988 = vmatprep.subr.mxu0 0.0
  %9989 = vmatpush1.msra.mxu0 0.0
  %9990 = vmatprep.subr.mxu0 0.0
  %9991 = vmatpush1.msra.mxu0 0.0
  %9992 = vmatprep.subr.mxu0 0.0
  %9993 = vmatpush1.msra.mxu0 0.0
  %9994 = vmatprep.subr.mxu0 0.0
  %9995 = vmatpush1.msra.mxu0 0.0
  %9996 = vmatprep.subr.mxu0 0.0
  %9997 = vmatpush1.msra.mxu0 0.0
  %9998 = vmatprep.subr.mxu0 0.0
  %9999 = vmatpush1.msra.mxu0 0.0
  %10000 = vmatprep.subr.mxu0 0.0
  %10001 = vmatpush1.msra.mxu0 0.0
  %10002 = vmatprep.subr.mxu0 0.0
  %10003 = vmatpush1.msra.mxu0 0.0
  %10004 = vmatprep.subr.mxu0 0.0
  %10005 = vmatpush1.msra.mxu0 0.0
  %10006 = vmatprep.subr.mxu0 0.0
  %10007 = vmatpush1.msra.mxu0 0.0
  %10008 = vmatprep.subr.mxu0 0.0
  %10009 = vmatpush1.msra.mxu0 0.0
  %10010 = vmatprep.subr.mxu0 0.0
  %10011 = vmatpush1.msra.mxu0 0.0
  %10012 = vmatprep.subr.mxu0 0.0
  %10013 = vmatpush1.msra.mxu0 0.0
  %10014 = vmatprep.subr.mxu0 0.0
  %10015 = vmatpush1.msra.mxu0 0.0
  %10016 = vmatprep.subr.mxu0 0.0
  %10017 = vmatpush1.msra.mxu0 0.0
  %10018 = vmatprep.subr.mxu0 0.0
  %10019 = vmatpush1.msra.mxu0 0.0
  %10020 = vmatprep.subr.mxu0 0.0
  %10021 = vmatpush1.msra.mxu0 0.0
  %10022 = vmatprep.subr.mxu0 0.0
  %10023 = vmatpush1.msra.mxu0 0.0
  %10024 = vmatprep.subr.mxu0 0.0
  %10025 = vmatpush1.msra.mxu0 0.0
  %10026 = vmatprep.subr.mxu0 0.0
  %10027 = vmatpush1.msra.mxu0 0.0
  %10028 = vmatprep.subr.mxu0 0.0
  %10029 = vmatpush1.msra.mxu0 0.0
  %10030 = vmatprep.subr.mxu0 0.0
  %10031 = vmatpush1.msra.mxu0 0.0
  %10032 = vmatprep.subr.mxu0 0.0
  %10033 = vmatpush1.msra.mxu0 0.0
  %10034 = vmatprep.mubr.f32.mxu0 0.0
  %10035 = vmatmul.mubr.f32.gmra.mrb[0].mxu0 %v9888
  %v10036 = vpop.f32.mrb[0].mxu0
  %v10037 = vadd.f32 0.0, %v10036
  %v10038 = vpop.f32.mrb[0].mxu0
  %v10039 = vadd.f32 0.0, %v10038
  %10040 = vmatprep.mubr.f32.mxu0 0.0
  %10041 = vmatmul.mubr.f32.gmra.mrb[0].mxu0 %v9891
  %v10042 = vpop.f32.mrb[0].mxu0
  %v10043 = vadd.f32 0.0, %v10042
  %v10044 = vpop.f32.mrb[0].mxu0
  %v10045 = vadd.f32 0.0, %v10044
  %10046 = vdwg.mxu0
  %v10047 = vadd.f32 %v9960, %v9962
  %v10048 = vadd.f32 %v10047, %v10037
  %v10049 = vadd.f32 %v10048, %v10039
  %10050 = vadd.xlane.f32.xlu0 %v10049
  %v10051 = vpop.xlane.xlu0 %10050
  %v10052 = vadd.f32 %v9966, %v9968
  %v10053 = vadd.f32 %v10052, %v10043
  %v10054 = vadd.f32 %v10053, %v10045
  %10055 = vadd.xlane.f32.xlu0 %v10054
  %v10056 = vpop.xlane.xlu0 %10055
  %v10057 = vmul.f32 %v10051, %v522
  %v10058 = vmul.f32 %v10056, %v522
  %v10059 = vsub.f32 %v9960, %v10057
  %v10060 = vsub.f32 %v9962, %v10057
  %v10061 = vsub.f32 %v10037, %v10057
  %v10062 = vsub.f32 %v10039, %v10057
  %v10063 = vsub.f32 %v9966, %v10058
  %v10064 = vsub.f32 %v9968, %v10058
  %v10065 = vsub.f32 %v10043, %v10058
  %v10066 = vsub.f32 %v10045, %v10058
  %v10067 = vmul.f32 %v10059, %v10059
  %v10068 = vmul.f32 %v10060, %v10060
  %v10069 = vmul.f32 %v10061, %v10061
  %v10070 = vmul.f32 %v10062, %v10062
  %v10071 = vmul.f32 %v10063, %v10063
  %v10072 = vmul.f32 %v10064, %v10064
  %v10073 = vmul.f32 %v10065, %v10065
  %v10074 = vmul.f32 %v10066, %v10066
  %v10075 = vadd.f32 %v10067, %v10068
  %v10076 = vadd.f32 %v10075, %v10069
  %v10077 = vadd.f32 %v10076, %v10070
  %10078 = vadd.xlane.f32.xlu0 %v10077
  %v10079 = vpop.xlane.xlu0 %10078
  %v10080 = vadd.f32 %v10071, %v10072
  %v10081 = vadd.f32 %v10080, %v10073
  %v10082 = vadd.f32 %v10081, %v10074
  %10083 = vadd.xlane.f32.xlu0 %v10082
  %v10084 = vpop.xlane.xlu0 %10083
  %v10085 = vmul.f32 %v10079, %v522
  %v10086 = vmul.f32 %v10084, %v522
  %v10087 = vadd.f32 %v10085, 1e-05
  %v10088 = vadd.f32 %v10086, 1e-05
  %v10089 = vrsqrt.pop %v10087
  %v10090 = vrsqrt.pop %v10088
  %v10091 = vmul.f32 %v9034, %v10089
  %v10092 = vmul.f32 %v9035, %v10090
  %10094 = vset.pattern.permute.xlu0 0
  %10095 = vperm.xlu0 %10094, %v10091
  %v10096 = vpop.permute.xlu0 %10095
  %10099 = vset.pattern.permute.xlu0 0
  %10100 = vperm.xlu0 %10099, %v10092
  %v10101 = vpop.permute.xlu0 %10100
  %v10103 = vmul.f32 %v10059, %v10096
  %v10104 = vmul.f32 %v10060, %v10096
  %v10105 = vmul.f32 %v10061, %v10096
  %v10106 = vmul.f32 %v10062, %v10096
  %v10107 = vmul.f32 %v10063, %v10101
  %v10108 = vmul.f32 %v10064, %v10101
  %v10109 = vmul.f32 %v10065, %v10101
  %v10110 = vmul.f32 %v10066, %v10101
  %10112 = vset.pattern.permute.xlu0 1
  %10113 = vperm.xlu0 %10112, %v9034
  %v10114 = vpop.permute.xlu0 %10113
  %10117 = vset.pattern.permute.xlu0 1
  %10118 = vperm.xlu0 %10117, %v9035
  %v10119 = vpop.permute.xlu0 %10118
  %v10121 = vadd.f32 %v10103, %v10114
  %v10122 = vadd.f32 %v10104, %v10114
  %v10123 = vadd.f32 %v10105, %v10114
  %v10124 = vadd.f32 %v10106, %v10114
  %v10125 = vadd.f32 %v10107, %v10119
  %v10126 = vadd.f32 %v10108, %v10119
  %v10127 = vadd.f32 %v10109, %v10119
  %v10128 = vadd.f32 %v10110, %v10119
  %v10129 = vxor.u32 %v10121, 2147483648
  %v10130 = vxor.u32 %v10122, 2147483648
  %v10131 = vxor.u32 %v10123, 2147483648
  %v10132 = vxor.u32 %v10124, 2147483648
  %v10133 = vxor.u32 %v10125, 2147483648
  %v10134 = vxor.u32 %v10126, 2147483648
  %v10135 = vxor.u32 %v10127, 2147483648
  %v10136 = vxor.u32 %v10128, 2147483648
  %v10137 = vmul.f32 %v10129, 1.442695
  %v10138 = vpow.pop %v10137
  %v10139 = vmul.f32 %v10130, 1.442695
  %v10140 = vpow.pop %v10139
  %v10141 = vmul.f32 %v10131, 1.442695
  %v10142 = vpow.pop %v10141
  %v10143 = vmul.f32 %v10132, 1.442695
  %v10144 = vpow.pop %v10143
  %v10145 = vmul.f32 %v10133, 1.442695
  %v10146 = vpow.pop %v10145
  %v10147 = vmul.f32 %v10134, 1.442695
  %v10148 = vpow.pop %v10147
  %v10149 = vmul.f32 %v10135, 1.442695
  %v10150 = vpow.pop %v10149
  %v10151 = vmul.f32 %v10136, 1.442695
  %v10152 = vpow.pop %v10151
  %v10153 = vadd.f32 %v10138, 1.0
  %v10154 = vadd.f32 %v10140, 1.0
  %v10155 = vadd.f32 %v10142, 1.0
  %v10156 = vadd.f32 %v10144, 1.0
  %v10157 = vadd.f32 %v10146, 1.0
  %v10158 = vadd.f32 %v10148, 1.0
  %v10159 = vadd.f32 %v10150, 1.0
  %v10160 = vadd.f32 %v10152, 1.0
  %v10161 = vrcp.pop %v10153
  %v10162 = vmul.f32 1.0, %v10161
  %v10163 = vrcp.pop %v10154
  %v10164 = vmul.f32 1.0, %v10163
  %v10165 = vrcp.pop %v10155
  %v10166 = vmul.f32 1.0, %v10165
  %v10167 = vrcp.pop %v10156
  %v10168 = vmul.f32 1.0, %v10167
  %v10169 = vrcp.pop %v10157
  %v10170 = vmul.f32 1.0, %v10169
  %v10171 = vrcp.pop %v10158
  %v10172 = vmul.f32 1.0, %v10171
  %v10173 = vrcp.pop %v10159
  %v10174 = vmul.f32 1.0, %v10173
  %v10175 = vrcp.pop %v10160
  %v10176 = vmul.f32 1.0, %v10175
  %v10177 = vmul.f32 %v10121, %v10162
  %v10178 = vmul.f32 %v10122, %v10164
  %v10179 = vmul.f32 %v10123, %v10166
  %v10180 = vmul.f32 %v10124, %v10168
  %v10181 = vmul.f32 %v10125, %v10170
  %v10182 = vmul.f32 %v10126, %v10172
  %v10183 = vmul.f32 %v10127, %v10174
  %v10184 = vmul.f32 %v10128, %v10176
  %10185 = vst [vmem:[%s61] sm:$0xff] %v10177
  %10186 = vst [vmem:[%s61 + $0x8] sm:$0xff] %v10178
  %10187 = vst [vmem:[%s61 + $0x10] sm:$0xff] %v10181
  %10188 = vst [vmem:[%s61 + $0x18] sm:$0xff] %v10182
  %s10189 = scalar_lea.vmem %s61, 32
  %10190 = vst [vmem:[%s10189] sm:$0xff] %v10179
  %10191 = vst [vmem:[%s10189 + $0x8] sm:$0xff] %v10180
  %10192 = vst [vmem:[%s10189 + $0x10] sm:$0xff] %v10183
  %10193 = vst [vmem:[%s10189 + $0x18] sm:$0xff] %v10184
  // Predicated region
  $region122: #{decoder_block_pallas.1} parent=0 // pred_check
    _
  $region123: #{decoder_block_pallas.1} parent=0 // pred_check_branch
    %10195 = sbr.rel (0) target = $region125
  $region124: #{decoder_block_pallas.1} parent=0 // pred_region
    _
  $region125: #{decoder_block_pallas.1} parent=0 // pred_fallthru
    _
  // Predicated region
  $region126: #{decoder_block_pallas.1} parent=0 // pred_check
    _
  $region127: #{decoder_block_pallas.1} parent=0 // pred_check_branch
    %10197 = sbr.rel (0) target = $region129
  $region128: #{decoder_block_pallas.1} parent=0 // pred_region
    _
  $region129: #{decoder_block_pallas.1} parent=0 // pred_fallthru
    _

</llo_original>
